<compile_context>
chip_gen: v7x
topology: tpu7x:2x2x1
jax: 0.10.0
libtpu: 0.0.40
codegen_flags: <defaults>
</compile_context>

<pallas_src>
import functools

import jax
import jax.numpy as jnp
from jax.experimental import pallas as pl
from jax.experimental.pallas import tpu as pltpu

# -------------------- model configuration (small, synthetic) -----------------
CUR_DIM   = 32          # args.cur_dim
N_FACET   = [4]         # args.n_facet (per layer)
N_ITER    = 2           # args.n_iter (routing iterations)
N_LAYER   = 1           # args.n_layer
N_NEIGH   = [8]         # args.n_neigh (per layer)
BATCH     = 2
N_NEG     = 1           # candidates per example

N_USERS      = 10
N_BUSINESSES = 12
N_CITIES     = 5
N_CATEGORIES = 6
N_NODES_LIST = [N_USERS, N_BUSINESSES, N_CITIES, N_CATEGORIES]   # 'yelp'

NEIGHS_TYPE  = [[1], [0], [], []]     # user's neighbors are businesses, and v.v.
N_PATHS_TYPE = [[2], [2], [], []]     # two meta-paths per (type, neigh-type)

# TODO(synk): reference HomoAggregate_attention source missing; 0.2 is the GAT
# convention, nn.LeakyReLU default would be 0.01.
LEAKY_SLOPE = 0.2

OUT_SUBLANES = 8        # pad logit output rows to a full sublane tile
OUT_LANES    = 128      # pad logit output lanes to a full lane tile (unmasked vst)

VMEM = pltpu.MemorySpace.VMEM


# ------------------------------ fused Pallas kernel ----------------------------
def fused_multi_han_kernel(h0_ref, nb_ref, preWn_ref, heteW_ref, fw_ref, out_ref,
                           *, n_facet, n_iter):
    # h0_ref   : (2, M, D)          branch-stacked self hidden (layer 0: no pre-encode)
    # nb_ref   : (2, M, P, N, D)    branch-stacked neighbor embeddings (all meta-paths)
    # preWn_ref: (2, D, D)          pre_encoders weight for each branch's neighbor type
    # heteW_ref: (2, D, D)          HeteAttention weight for each branch's node type
    # fw_ref   : (1, F)             UserItemAttention facet weights (softmaxed here)
    # out_ref  : (8, 128)           lane-dense padded logits; rows [:M], col 0 valid
    n_branch, M, P, N, D = nb_ref.shape
    F = n_facet
    d = D // F
    inv_sqrt_d = 1.0 / jnp.sqrt(jnp.float32(d))

    branch_hidden = []
    for b in range(n_branch):                          # branch 0 = user, 1 = item
        h = h0_ref[b]                                  # (M, D)  current_layer==0: raw emb

        # ---- pre-encode ALL meta-path neighbors with one MXU matmul per branch ----
        nb_flat = nb_ref[b].reshape(M * P * N, D)
        nb_proj = jnp.dot(nb_flat, preWn_ref[b],
                          preferred_element_type=jnp.float32).reshape(M, P, N, D)
        hete_W = heteW_ref[b]

        # routing weights: ones init, kept in registers across iterations
        wp = [jnp.ones((M, F), jnp.float32) for _ in range(P)]

        # n_iter is a static compile-time constant; this unrolled Python loop is
        # equivalent to lax.fori_loop(..., unroll=True) at these trip counts.
        for _ in range(n_iter):
            # ------------- HomoAggregate_attention: per path, per facet -------------
            z_list = []
            for p in range(P):
                nb_p = nb_proj[:, p]                    # (M, N, D)
                z_parts = []
                for f in range(F):
                    sl = slice(f * d, (f + 1) * d)
                    nb_pf = nb_p[:, :, sl]              # (M, N, d)
                    h_f = h[:, sl]                      # (M, d)
                    # facet dot-product attention logits (VPU + lane reduce, no MXU)
                    e = jnp.sum(nb_pf * h_f[:, None, :], axis=-1) * inv_sqrt_d   # (M, N)
                    e = jnp.where(e > 0, e, LEAKY_SLOPE * e)                     # LeakyReLU
                    e = e * wp[p][:, f:f + 1]                                    # routing modulation
                    e = e - jnp.max(e, axis=-1, keepdims=True)
                    a = jnp.exp(e)
                    a = a * pl.reciprocal(jnp.sum(a, axis=-1, keepdims=True),
                                          approx=True)                           # softmax over N
                    z_parts.append(jnp.sum(a[:, :, None] * nb_pf, axis=1))       # (M, d)
                z_list.append(jnp.concatenate(z_parts, axis=-1))                 # (M, D)

            # ------------- HeteAttention: softmax over meta-paths, per facet --------
            q = jnp.dot(h, hete_W, preferred_element_type=jnp.float32)           # (M, D)
            new_h_parts = []
            new_wp_cols = [[] for _ in range(P)]
            for f in range(F):
                sl = slice(f * d, (f + 1) * d)
                s_f = jnp.concatenate(
                    [jnp.sum(q[:, sl] * z_list[p][:, sl], axis=-1, keepdims=True)
                     for p in range(P)], axis=-1) * inv_sqrt_d                   # (M, P)
                s_f = s_f - jnp.max(s_f, axis=-1, keepdims=True)
                beta = jnp.exp(s_f)
                beta = beta * pl.reciprocal(jnp.sum(beta, axis=-1, keepdims=True),
                                            approx=True)                         # (M, P)
                agg = jnp.zeros((M, d), jnp.float32)
                for p in range(P):
                    agg = agg + beta[:, p:p + 1] * z_list[p][:, sl]
                    new_wp_cols[p].append(beta[:, p:p + 1])
                new_h_parts.append(h[:, sl] + agg)                                # residual update
            h = jnp.concatenate(new_h_parts, axis=-1)                             # (M, D)
            wp = [jnp.concatenate(new_wp_cols[p], axis=-1) for p in range(P)]     # (M, F) each

        branch_hidden.append(h)

    # ------------- UserItemAttention: facet-weighted user-item scoring -------------
    u, it = branch_hidden[0], branch_hidden[1]          # (M, D) each, rows aligned
    prod = u * it                                        # (M, D)
    fw = fw_ref[...]                                     # (1, F)
    fw = fw - jnp.max(fw, axis=-1, keepdims=True)
    w = jnp.exp(fw)
    w = w * pl.reciprocal(jnp.sum(w, axis=-1, keepdims=True), approx=True)        # (1, F)
    logit = jnp.zeros((M, 1), jnp.float32)
    for f in range(F):
        sl = slice(f * d, (f + 1) * d)
        logit = logit + w[:, f:f + 1] * jnp.sum(prod[:, sl], axis=-1, keepdims=True)

    # lane-dense, fully padded (8, 128) store (unmasked vst); wrapper slices it out
    pad_rows = out_ref.shape[0] - M
    if pad_rows > 0:
        logit = jnp.concatenate(
            [logit, jnp.zeros((pad_rows, 1), jnp.float32)], axis=0)
    out_ref[...] = jnp.broadcast_to(logit, out_ref.shape)


def fused_forward_call(h0, nb, preWn, heteW, fw):
    kernel = functools.partial(fused_multi_han_kernel,
                               n_facet=N_FACET[0], n_iter=N_ITER)
    return pl.pallas_call(
        kernel,
        out_shape=jax.ShapeDtypeStruct((OUT_SUBLANES, OUT_LANES), jnp.float32),
        in_specs=[pl.BlockSpec(memory_space=VMEM)] * 5,
        out_specs=pl.BlockSpec(memory_space=VMEM),
    )(h0, nb, preWn, heteW, fw)


# ------------------------------ parameters -------------------------------------
def init_params(key):
    D = CUR_DIM
    F = N_FACET[0]
    stdv = 1.0 / jnp.sqrt(jnp.float32(D))
    n_types = len(N_NODES_LIST)

    keys = jax.random.split(key, 4 + 2 * N_LAYER * n_types + 1)
    k_i = 0

    emb = []
    for n in N_NODES_LIST:
        tbl = jax.random.uniform(keys[k_i], (n + 1, D), jnp.float32, -stdv, stdv)
        k_i += 1
        tbl = tbl.at[n].set(0.0)        # padding_idx row = 0
        emb.append(tbl)

    pre_W, hete_W = [], []
    for _ in range(N_LAYER):
        pw, hw = [], []
        for _ in range(n_types):
            pw.append(jax.random.uniform(keys[k_i], (D, D), jnp.float32, -stdv, stdv)); k_i += 1
            hw.append(jax.random.uniform(keys[k_i], (D, D), jnp.float32, -stdv, stdv)); k_i += 1
        pre_W.append(pw)
        hete_W.append(hw)

    fusion_fw = jax.random.uniform(keys[k_i], (1, F), jnp.float32, -stdv, stdv)

    return {"emb": emb, "pre_W": pre_W, "hete_W": hete_W, "fusion_fw": fusion_fw}


# ------------------------------ forward pass ------------------------------------
def forward(params, user_layers, item_layers):
    D = CUR_DIM
    emb = params["emb"]
    B, n_neg = user_layers[0].shape
    M = B * n_neg
    N = N_NEIGH[0]

    # recur_emb: embedding lookups (glue, plain JAX gather)
    user_h0 = jnp.take(emb[0], user_layers[0], axis=0).reshape(M, D)
    item_h0 = jnp.take(emb[1], item_layers[0], axis=0).reshape(M, D)
    u_nb = jnp.stack([jnp.take(emb[NEIGHS_TYPE[0][0]], ids, axis=0).reshape(M, N, D)
                      for ids in user_layers[1][0]], axis=1)          # (M, P, N, D)
    i_nb = jnp.stack([jnp.take(emb[NEIGHS_TYPE[1][0]], ids, axis=0).reshape(M, N, D)
                      for ids in item_layers[1][0]], axis=1)          # (M, P, N, D)

    # branch-stacked inputs for the single fused kernel launch
    h0 = jnp.stack([user_h0, item_h0], axis=0)                        # (2, M, D)
    nb = jnp.stack([u_nb, i_nb], axis=0)                              # (2, M, P, N, D)
    preWn = jnp.stack([params["pre_W"][0][NEIGHS_TYPE[0][0]],
                       params["pre_W"][0][NEIGHS_TYPE[1][0]]], axis=0)  # (2, D, D)
    heteW = jnp.stack([params["hete_W"][0][0],
                       params["hete_W"][0][1]], axis=0)                 # (2, D, D)

    out = fused_forward_call(h0, nb, preWn, heteW, params["fusion_fw"])
    return out[:M, :1].reshape(B, n_neg)


# TODO(synk): HomoAggregate_attention / HeteAttention / UserItemAttention class
# bodies were not included in the reference source; their semantics are
# implemented here as DisenHAN-style facet attention with iterative routing.
# TODO(synk): padded (zero-embedding) neighbors are not masked out of the
# neighbor softmax; the synthetic inputs below never use the padding row.

# ------------------------------ main ---------------------------------------------
if __name__ == "__main__":
    key = jax.random.PRNGKey(0)
    k_params, k_u, k_un0, k_un1, k_i, k_in0, k_in1 = jax.random.split(key, 7)

    params = init_params(k_params)

    user_ids = jax.random.randint(k_u, (BATCH, N_NEG), 0, N_USERS)
    user_nb0 = jax.random.randint(k_un0, (BATCH, N_NEG * N_NEIGH[0]), 0, N_BUSINESSES)
    user_nb1 = jax.random.randint(k_un1, (BATCH, N_NEG * N_NEIGH[0]), 0, N_BUSINESSES)
    item_ids = jax.random.randint(k_i, (BATCH, N_NEG), 0, N_BUSINESSES)
    item_nb0 = jax.random.randint(k_in0, (BATCH, N_NEG * N_NEIGH[0]), 0, N_USERS)
    item_nb1 = jax.random.randint(k_in1, (BATCH, N_NEG * N_NEIGH[0]), 0, N_USERS)

    user_neighs_layers = [user_ids, [[user_nb0, user_nb1]]]
    item_neighs_layers = [item_ids, [[item_nb0, item_nb1]]]

    logit = forward(params, user_neighs_layers, item_neighs_layers)
    logit = jax.block_until_ready(logit)
    assert logit.shape == (BATCH, N_NEG), logit.shape
    assert bool(jnp.all(jnp.isfinite(logit)))
    print("KERNEL_OK")
</pallas_src>

<mosaic_0001>
module attributes {stable_mosaic.version = 11 : i64} {
  func.func @fused_multi_han_kernel(%arg0: memref<2x2x32xf32, #tpu.memory_space<vmem>>, %arg1: memref<2x2x2x8x32xf32, #tpu.memory_space<vmem>>, %arg2: memref<2x32x32xf32, #tpu.memory_space<vmem>>, %arg3: memref<2x32x32xf32, #tpu.memory_space<vmem>>, %arg4: memref<1x4xf32, #tpu.memory_space<vmem>>, %arg5: memref<8x128xf32, #tpu.memory_space<vmem>>) attributes {dimension_semantics = [], scalar_prefetch = 0 : i64, scratch_operands = 0 : i64, tpu.core_type = #tpu.core_type<tc>} {
    %cst = arith.constant 8.000000e+00 : f32
    %0 = math.sqrt %cst : f32
    %cst_0 = arith.constant 1.000000e+00 : f32
    %1 = arith.divf %cst_0, %0 : f32
    %c0 = arith.constant 0 : index
    %c0_1 = arith.constant 0 : index
    %c0_2 = arith.constant 0 : index
    %2 = vector.load %arg0[%c0, %c0_1, %c0_2] : memref<2x2x32xf32, #tpu.memory_space<vmem>>, vector<1x2x32xf32>
    %3 = vector.shape_cast %2 : vector<1x2x32xf32> to vector<2x32xf32>
    %c0_3 = arith.constant 0 : index
    %c0_4 = arith.constant 0 : index
    %c0_5 = arith.constant 0 : index
    %c0_6 = arith.constant 0 : index
    %c0_7 = arith.constant 0 : index
    %4 = vector.load %arg1[%c0_3, %c0_4, %c0_5, %c0_6, %c0_7] : memref<2x2x2x8x32xf32, #tpu.memory_space<vmem>>, vector<1x2x2x8x32xf32>
    %5 = vector.shape_cast %4 : vector<1x2x2x8x32xf32> to vector<2x2x8x32xf32>
    %6 = vector.shape_cast %5 : vector<2x2x8x32xf32> to vector<32x32xf32>
    %c0_8 = arith.constant 0 : index
    %c0_9 = arith.constant 0 : index
    %c0_10 = arith.constant 0 : index
    %7 = vector.load %arg2[%c0_8, %c0_9, %c0_10] : memref<2x32x32xf32, #tpu.memory_space<vmem>>, vector<1x32x32xf32>
    %8 = vector.shape_cast %7 : vector<1x32x32xf32> to vector<32x32xf32>
    %cst_11 = arith.constant dense<0.000000e+00> : vector<32x32xf32>
    %9 = tpu.matmul %6, %8, %cst_11 {dimension_numbers = #tpu.dot_dimension_numbers<[1], [0], [0], [1], [0, 0, 1, 1], [], []>} : vector<32x32xf32>, vector<32x32xf32>, vector<32x32xf32> -> vector<32x32xf32>
    %10 = vector.shape_cast %9 : vector<32x32xf32> to vector<2x2x8x32xf32>
    %c0_12 = arith.constant 0 : index
    %c0_13 = arith.constant 0 : index
    %c0_14 = arith.constant 0 : index
    %11 = vector.load %arg3[%c0_12, %c0_13, %c0_14] : memref<2x32x32xf32, #tpu.memory_space<vmem>>, vector<1x32x32xf32>
    %12 = vector.shape_cast %11 : vector<1x32x32xf32> to vector<32x32xf32>
    %cst_15 = arith.constant 1.000000e+00 : f32
    %13 = vector.broadcast %cst_15 : f32 to vector<2x4xf32>
    %cst_16 = arith.constant 1.000000e+00 : f32
    %14 = vector.broadcast %cst_16 : f32 to vector<2x4xf32>
    %15 = vector.extract_strided_slice %10 {offsets = [0, 0, 0, 0], sizes = [2, 1, 8, 32], strides = [1, 1, 1, 1]} : vector<2x2x8x32xf32> to vector<2x1x8x32xf32>
    %16 = vector.shape_cast %15 : vector<2x1x8x32xf32> to vector<2x8x32xf32>
    %17 = vector.extract_strided_slice %16 {offsets = [0, 0, 0], sizes = [2, 8, 8], strides = [1, 1, 1]} : vector<2x8x32xf32> to vector<2x8x8xf32>
    %18 = vector.extract_strided_slice %3 {offsets = [0, 0], sizes = [2, 8], strides = [1, 1]} : vector<2x32xf32> to vector<2x8xf32>
    %19 = vector.shape_cast %18 : vector<2x8xf32> to vector<2x1x8xf32>
    %20 = vector.broadcast %19 : vector<2x1x8xf32> to vector<2x8x8xf32>
    %21 = arith.mulf %17, %20 : vector<2x8x8xf32>
    %cst_17 = arith.constant dense<0.000000e+00> : vector<2x8xf32>
    %22 = vector.multi_reduction <add>, %21, %cst_17 [2] : vector<2x8x8xf32> to vector<2x8xf32>
    %23 = vector.broadcast %1 : f32 to vector<2x8xf32>
    %24 = arith.mulf %22, %23 : vector<2x8xf32>
    %cst_18 = arith.constant 0.000000e+00 : f32
    %25 = vector.broadcast %cst_18 : f32 to vector<2x8xf32>
    %26 = arith.cmpf ogt, %24, %25 : vector<2x8xf32>
    %cst_19 = arith.constant 2.000000e-01 : f32
    %27 = vector.broadcast %cst_19 : f32 to vector<2x8xf32>
    %28 = arith.mulf %27, %24 : vector<2x8xf32>
    %29 = arith.select %26, %24, %28 : vector<2x8xi1>, vector<2x8xf32>
    %30 = vector.extract_strided_slice %13 {offsets = [0, 0], sizes = [2, 1], strides = [1, 1]} : vector<2x4xf32> to vector<2x1xf32>
    %31 = vector.broadcast %30 : vector<2x1xf32> to vector<2x8xf32>
    %32 = arith.mulf %29, %31 : vector<2x8xf32>
    %cst_20 = arith.constant dense<0xFF800000> : vector<2xf32>
    %33 = vector.multi_reduction <maximumf>, %32, %cst_20 [1] : vector<2x8xf32> to vector<2xf32>
    %34 = vector.shape_cast %33 : vector<2xf32> to vector<2x1xf32>
    %35 = vector.broadcast %34 : vector<2x1xf32> to vector<2x8xf32>
    %36 = arith.subf %32, %35 : vector<2x8xf32>
    %37 = math.exp %36 : vector<2x8xf32>
    %cst_21 = arith.constant dense<0.000000e+00> : vector<2xf32>
    %38 = vector.multi_reduction <add>, %37, %cst_21 [1] : vector<2x8xf32> to vector<2xf32>
    %39 = vector.shape_cast %38 : vector<2xf32> to vector<2x1xf32>
    %40 = tpu.reciprocal %39 {approx = true} : vector<2x1xf32> -> vector<2x1xf32>
    %41 = vector.broadcast %40 : vector<2x1xf32> to vector<2x8xf32>
    %42 = arith.mulf %37, %41 : vector<2x8xf32>
    %43 = vector.shape_cast %42 : vector<2x8xf32> to vector<2x8x1xf32>
    %44 = vector.broadcast %43 : vector<2x8x1xf32> to vector<2x8x8xf32>
    %45 = arith.mulf %44, %17 : vector<2x8x8xf32>
    %cst_22 = arith.constant dense<0.000000e+00> : vector<2x8xf32>
    %46 = vector.multi_reduction <add>, %45, %cst_22 [1] : vector<2x8x8xf32> to vector<2x8xf32>
    %47 = vector.extract_strided_slice %16 {offsets = [0, 0, 8], sizes = [2, 8, 8], strides = [1, 1, 1]} : vector<2x8x32xf32> to vector<2x8x8xf32>
    %48 = vector.extract_strided_slice %3 {offsets = [0, 8], sizes = [2, 8], strides = [1, 1]} : vector<2x32xf32> to vector<2x8xf32>
    %49 = vector.shape_cast %48 : vector<2x8xf32> to vector<2x1x8xf32>
    %50 = vector.broadcast %49 : vector<2x1x8xf32> to vector<2x8x8xf32>
    %51 = arith.mulf %47, %50 : vector<2x8x8xf32>
    %cst_23 = arith.constant dense<0.000000e+00> : vector<2x8xf32>
    %52 = vector.multi_reduction <add>, %51, %cst_23 [2] : vector<2x8x8xf32> to vector<2x8xf32>
    %53 = vector.broadcast %1 : f32 to vector<2x8xf32>
    %54 = arith.mulf %52, %53 : vector<2x8xf32>
    %cst_24 = arith.constant 0.000000e+00 : f32
    %55 = vector.broadcast %cst_24 : f32 to vector<2x8xf32>
    %56 = arith.cmpf ogt, %54, %55 : vector<2x8xf32>
    %cst_25 = arith.constant 2.000000e-01 : f32
    %57 = vector.broadcast %cst_25 : f32 to vector<2x8xf32>
    %58 = arith.mulf %57, %54 : vector<2x8xf32>
    %59 = arith.select %56, %54, %58 : vector<2x8xi1>, vector<2x8xf32>
    %60 = vector.extract_strided_slice %13 {offsets = [0, 1], sizes = [2, 1], strides = [1, 1]} : vector<2x4xf32> to vector<2x1xf32>
    %61 = vector.broadcast %60 : vector<2x1xf32> to vector<2x8xf32>
    %62 = arith.mulf %59, %61 : vector<2x8xf32>
    %cst_26 = arith.constant dense<0xFF800000> : vector<2xf32>
    %63 = vector.multi_reduction <maximumf>, %62, %cst_26 [1] : vector<2x8xf32> to vector<2xf32>
    %64 = vector.shape_cast %63 : vector<2xf32> to vector<2x1xf32>
    %65 = vector.broadcast %64 : vector<2x1xf32> to vector<2x8xf32>
    %66 = arith.subf %62, %65 : vector<2x8xf32>
    %67 = math.exp %66 : vector<2x8xf32>
    %cst_27 = arith.constant dense<0.000000e+00> : vector<2xf32>
    %68 = vector.multi_reduction <add>, %67, %cst_27 [1] : vector<2x8xf32> to vector<2xf32>
    %69 = vector.shape_cast %68 : vector<2xf32> to vector<2x1xf32>
    %70 = tpu.reciprocal %69 {approx = true} : vector<2x1xf32> -> vector<2x1xf32>
    %71 = vector.broadcast %70 : vector<2x1xf32> to vector<2x8xf32>
    %72 = arith.mulf %67, %71 : vector<2x8xf32>
    %73 = vector.shape_cast %72 : vector<2x8xf32> to vector<2x8x1xf32>
    %74 = vector.broadcast %73 : vector<2x8x1xf32> to vector<2x8x8xf32>
    %75 = arith.mulf %74, %47 : vector<2x8x8xf32>
    %cst_28 = arith.constant dense<0.000000e+00> : vector<2x8xf32>
    %76 = vector.multi_reduction <add>, %75, %cst_28 [1] : vector<2x8x8xf32> to vector<2x8xf32>
    %77 = vector.extract_strided_slice %16 {offsets = [0, 0, 16], sizes = [2, 8, 8], strides = [1, 1, 1]} : vector<2x8x32xf32> to vector<2x8x8xf32>
    %78 = vector.extract_strided_slice %3 {offsets = [0, 16], sizes = [2, 8], strides = [1, 1]} : vector<2x32xf32> to vector<2x8xf32>
    %79 = vector.shape_cast %78 : vector<2x8xf32> to vector<2x1x8xf32>
    %80 = vector.broadcast %79 : vector<2x1x8xf32> to vector<2x8x8xf32>
    %81 = arith.mulf %77, %80 : vector<2x8x8xf32>
    %cst_29 = arith.constant dense<0.000000e+00> : vector<2x8xf32>
    %82 = vector.multi_reduction <add>, %81, %cst_29 [2] : vector<2x8x8xf32> to vector<2x8xf32>
    %83 = vector.broadcast %1 : f32 to vector<2x8xf32>
    %84 = arith.mulf %82, %83 : vector<2x8xf32>
    %cst_30 = arith.constant 0.000000e+00 : f32
    %85 = vector.broadcast %cst_30 : f32 to vector<2x8xf32>
    %86 = arith.cmpf ogt, %84, %85 : vector<2x8xf32>
    %cst_31 = arith.constant 2.000000e-01 : f32
    %87 = vector.broadcast %cst_31 : f32 to vector<2x8xf32>
    %88 = arith.mulf %87, %84 : vector<2x8xf32>
    %89 = arith.select %86, %84, %88 : vector<2x8xi1>, vector<2x8xf32>
    %90 = vector.extract_strided_slice %13 {offsets = [0, 2], sizes = [2, 1], strides = [1, 1]} : vector<2x4xf32> to vector<2x1xf32>
    %91 = vector.broadcast %90 : vector<2x1xf32> to vector<2x8xf32>
    %92 = arith.mulf %89, %91 : vector<2x8xf32>
    %cst_32 = arith.constant dense<0xFF800000> : vector<2xf32>
    %93 = vector.multi_reduction <maximumf>, %92, %cst_32 [1] : vector<2x8xf32> to vector<2xf32>
    %94 = vector.shape_cast %93 : vector<2xf32> to vector<2x1xf32>
    %95 = vector.broadcast %94 : vector<2x1xf32> to vector<2x8xf32>
    %96 = arith.subf %92, %95 : vector<2x8xf32>
    %97 = math.exp %96 : vector<2x8xf32>
    %cst_33 = arith.constant dense<0.000000e+00> : vector<2xf32>
    %98 = vector.multi_reduction <add>, %97, %cst_33 [1] : vector<2x8xf32> to vector<2xf32>
    %99 = vector.shape_cast %98 : vector<2xf32> to vector<2x1xf32>
    %100 = tpu.reciprocal %99 {approx = true} : vector<2x1xf32> -> vector<2x1xf32>
    %101 = vector.broadcast %100 : vector<2x1xf32> to vector<2x8xf32>
    %102 = arith.mulf %97, %101 : vector<2x8xf32>
    %103 = vector.shape_cast %102 : vector<2x8xf32> to vector<2x8x1xf32>
    %104 = vector.broadcast %103 : vector<2x8x1xf32> to vector<2x8x8xf32>
    %105 = arith.mulf %104, %77 : vector<2x8x8xf32>
    %cst_34 = arith.constant dense<0.000000e+00> : vector<2x8xf32>
    %106 = vector.multi_reduction <add>, %105, %cst_34 [1] : vector<2x8x8xf32> to vector<2x8xf32>
    %107 = vector.extract_strided_slice %16 {offsets = [0, 0, 24], sizes = [2, 8, 8], strides = [1, 1, 1]} : vector<2x8x32xf32> to vector<2x8x8xf32>
    %108 = vector.extract_strided_slice %3 {offsets = [0, 24], sizes = [2, 8], strides = [1, 1]} : vector<2x32xf32> to vector<2x8xf32>
    %109 = vector.shape_cast %108 : vector<2x8xf32> to vector<2x1x8xf32>
    %110 = vector.broadcast %109 : vector<2x1x8xf32> to vector<2x8x8xf32>
    %111 = arith.mulf %107, %110 : vector<2x8x8xf32>
    %cst_35 = arith.constant dense<0.000000e+00> : vector<2x8xf32>
    %112 = vector.multi_reduction <add>, %111, %cst_35 [2] : vector<2x8x8xf32> to vector<2x8xf32>
    %113 = vector.broadcast %1 : f32 to vector<2x8xf32>
    %114 = arith.mulf %112, %113 : vector<2x8xf32>
    %cst_36 = arith.constant 0.000000e+00 : f32
    %115 = vector.broadcast %cst_36 : f32 to vector<2x8xf32>
    %116 = arith.cmpf ogt, %114, %115 : vector<2x8xf32>
    %cst_37 = arith.constant 2.000000e-01 : f32
    %117 = vector.broadcast %cst_37 : f32 to vector<2x8xf32>
    %118 = arith.mulf %117, %114 : vector<2x8xf32>
    %119 = arith.select %116, %114, %118 : vector<2x8xi1>, vector<2x8xf32>
    %120 = vector.extract_strided_slice %13 {offsets = [0, 3], sizes = [2, 1], strides = [1, 1]} : vector<2x4xf32> to vector<2x1xf32>
    %121 = vector.broadcast %120 : vector<2x1xf32> to vector<2x8xf32>
    %122 = arith.mulf %119, %121 : vector<2x8xf32>
    %cst_38 = arith.constant dense<0xFF800000> : vector<2xf32>
    %123 = vector.multi_reduction <maximumf>, %122, %cst_38 [1] : vector<2x8xf32> to vector<2xf32>
    %124 = vector.shape_cast %123 : vector<2xf32> to vector<2x1xf32>
    %125 = vector.broadcast %124 : vector<2x1xf32> to vector<2x8xf32>
    %126 = arith.subf %122, %125 : vector<2x8xf32>
    %127 = math.exp %126 : vector<2x8xf32>
    %cst_39 = arith.constant dense<0.000000e+00> : vector<2xf32>
    %128 = vector.multi_reduction <add>, %127, %cst_39 [1] : vector<2x8xf32> to vector<2xf32>
    %129 = vector.shape_cast %128 : vector<2xf32> to vector<2x1xf32>
    %130 = tpu.reciprocal %129 {approx = true} : vector<2x1xf32> -> vector<2x1xf32>
    %131 = vector.broadcast %130 : vector<2x1xf32> to vector<2x8xf32>
    %132 = arith.mulf %127, %131 : vector<2x8xf32>
    %133 = vector.shape_cast %132 : vector<2x8xf32> to vector<2x8x1xf32>
    %134 = vector.broadcast %133 : vector<2x8x1xf32> to vector<2x8x8xf32>
    %135 = arith.mulf %134, %107 : vector<2x8x8xf32>
    %cst_40 = arith.constant dense<0.000000e+00> : vector<2x8xf32>
    %136 = vector.multi_reduction <add>, %135, %cst_40 [1] : vector<2x8x8xf32> to vector<2x8xf32>
    %137 = tpu.concatenate %46, %76, %106, %136 in 1 : vector<2x8xf32>, vector<2x8xf32>, vector<2x8xf32>, vector<2x8xf32> -> vector<2x32xf32>
    %138 = vector.extract_strided_slice %10 {offsets = [0, 1, 0, 0], sizes = [2, 1, 8, 32], strides = [1, 1, 1, 1]} : vector<2x2x8x32xf32> to vector<2x1x8x32xf32>
    %139 = vector.shape_cast %138 : vector<2x1x8x32xf32> to vector<2x8x32xf32>
    %140 = vector.extract_strided_slice %139 {offsets = [0, 0, 0], sizes = [2, 8, 8], strides = [1, 1, 1]} : vector<2x8x32xf32> to vector<2x8x8xf32>
    %141 = vector.extract_strided_slice %3 {offsets = [0, 0], sizes = [2, 8], strides = [1, 1]} : vector<2x32xf32> to vector<2x8xf32>
    %142 = vector.shape_cast %141 : vector<2x8xf32> to vector<2x1x8xf32>
    %143 = vector.broadcast %142 : vector<2x1x8xf32> to vector<2x8x8xf32>
    %144 = arith.mulf %140, %143 : vector<2x8x8xf32>
    %cst_41 = arith.constant dense<0.000000e+00> : vector<2x8xf32>
    %145 = vector.multi_reduction <add>, %144, %cst_41 [2] : vector<2x8x8xf32> to vector<2x8xf32>
    %146 = vector.broadcast %1 : f32 to vector<2x8xf32>
    %147 = arith.mulf %145, %146 : vector<2x8xf32>
    %cst_42 = arith.constant 0.000000e+00 : f32
    %148 = vector.broadcast %cst_42 : f32 to vector<2x8xf32>
    %149 = arith.cmpf ogt, %147, %148 : vector<2x8xf32>
    %cst_43 = arith.constant 2.000000e-01 : f32
    %150 = vector.broadcast %cst_43 : f32 to vector<2x8xf32>
    %151 = arith.mulf %150, %147 : vector<2x8xf32>
    %152 = arith.select %149, %147, %151 : vector<2x8xi1>, vector<2x8xf32>
    %153 = vector.extract_strided_slice %14 {offsets = [0, 0], sizes = [2, 1], strides = [1, 1]} : vector<2x4xf32> to vector<2x1xf32>
    %154 = vector.broadcast %153 : vector<2x1xf32> to vector<2x8xf32>
    %155 = arith.mulf %152, %154 : vector<2x8xf32>
    %cst_44 = arith.constant dense<0xFF800000> : vector<2xf32>
    %156 = vector.multi_reduction <maximumf>, %155, %cst_44 [1] : vector<2x8xf32> to vector<2xf32>
    %157 = vector.shape_cast %156 : vector<2xf32> to vector<2x1xf32>
    %158 = vector.broadcast %157 : vector<2x1xf32> to vector<2x8xf32>
    %159 = arith.subf %155, %158 : vector<2x8xf32>
    %160 = math.exp %159 : vector<2x8xf32>
    %cst_45 = arith.constant dense<0.000000e+00> : vector<2xf32>
    %161 = vector.multi_reduction <add>, %160, %cst_45 [1] : vector<2x8xf32> to vector<2xf32>
    %162 = vector.shape_cast %161 : vector<2xf32> to vector<2x1xf32>
    %163 = tpu.reciprocal %162 {approx = true} : vector<2x1xf32> -> vector<2x1xf32>
    %164 = vector.broadcast %163 : vector<2x1xf32> to vector<2x8xf32>
    %165 = arith.mulf %160, %164 : vector<2x8xf32>
    %166 = vector.shape_cast %165 : vector<2x8xf32> to vector<2x8x1xf32>
    %167 = vector.broadcast %166 : vector<2x8x1xf32> to vector<2x8x8xf32>
    %168 = arith.mulf %167, %140 : vector<2x8x8xf32>
    %cst_46 = arith.constant dense<0.000000e+00> : vector<2x8xf32>
    %169 = vector.multi_reduction <add>, %168, %cst_46 [1] : vector<2x8x8xf32> to vector<2x8xf32>
    %170 = vector.extract_strided_slice %139 {offsets = [0, 0, 8], sizes = [2, 8, 8], strides = [1, 1, 1]} : vector<2x8x32xf32> to vector<2x8x8xf32>
    %171 = vector.extract_strided_slice %3 {offsets = [0, 8], sizes = [2, 8], strides = [1, 1]} : vector<2x32xf32> to vector<2x8xf32>
    %172 = vector.shape_cast %171 : vector<2x8xf32> to vector<2x1x8xf32>
    %173 = vector.broadcast %172 : vector<2x1x8xf32> to vector<2x8x8xf32>
    %174 = arith.mulf %170, %173 : vector<2x8x8xf32>
    %cst_47 = arith.constant dense<0.000000e+00> : vector<2x8xf32>
    %175 = vector.multi_reduction <add>, %174, %cst_47 [2] : vector<2x8x8xf32> to vector<2x8xf32>
    %176 = vector.broadcast %1 : f32 to vector<2x8xf32>
    %177 = arith.mulf %175, %176 : vector<2x8xf32>
    %cst_48 = arith.constant 0.000000e+00 : f32
    %178 = vector.broadcast %cst_48 : f32 to vector<2x8xf32>
    %179 = arith.cmpf ogt, %177, %178 : vector<2x8xf32>
    %cst_49 = arith.constant 2.000000e-01 : f32
    %180 = vector.broadcast %cst_49 : f32 to vector<2x8xf32>
    %181 = arith.mulf %180, %177 : vector<2x8xf32>
    %182 = arith.select %179, %177, %181 : vector<2x8xi1>, vector<2x8xf32>
    %183 = vector.extract_strided_slice %14 {offsets = [0, 1], sizes = [2, 1], strides = [1, 1]} : vector<2x4xf32> to vector<2x1xf32>
    %184 = vector.broadcast %183 : vector<2x1xf32> to vector<2x8xf32>
    %185 = arith.mulf %182, %184 : vector<2x8xf32>
    %cst_50 = arith.constant dense<0xFF800000> : vector<2xf32>
    %186 = vector.multi_reduction <maximumf>, %185, %cst_50 [1] : vector<2x8xf32> to vector<2xf32>
    %187 = vector.shape_cast %186 : vector<2xf32> to vector<2x1xf32>
    %188 = vector.broadcast %187 : vector<2x1xf32> to vector<2x8xf32>
    %189 = arith.subf %185, %188 : vector<2x8xf32>
    %190 = math.exp %189 : vector<2x8xf32>
    %cst_51 = arith.constant dense<0.000000e+00> : vector<2xf32>
    %191 = vector.multi_reduction <add>, %190, %cst_51 [1] : vector<2x8xf32> to vector<2xf32>
    %192 = vector.shape_cast %191 : vector<2xf32> to vector<2x1xf32>
    %193 = tpu.reciprocal %192 {approx = true} : vector<2x1xf32> -> vector<2x1xf32>
    %194 = vector.broadcast %193 : vector<2x1xf32> to vector<2x8xf32>
    %195 = arith.mulf %190, %194 : vector<2x8xf32>
    %196 = vector.shape_cast %195 : vector<2x8xf32> to vector<2x8x1xf32>
    %197 = vector.broadcast %196 : vector<2x8x1xf32> to vector<2x8x8xf32>
    %198 = arith.mulf %197, %170 : vector<2x8x8xf32>
    %cst_52 = arith.constant dense<0.000000e+00> : vector<2x8xf32>
    %199 = vector.multi_reduction <add>, %198, %cst_52 [1] : vector<2x8x8xf32> to vector<2x8xf32>
    %200 = vector.extract_strided_slice %139 {offsets = [0, 0, 16], sizes = [2, 8, 8], strides = [1, 1, 1]} : vector<2x8x32xf32> to vector<2x8x8xf32>
    %201 = vector.extract_strided_slice %3 {offsets = [0, 16], sizes = [2, 8], strides = [1, 1]} : vector<2x32xf32> to vector<2x8xf32>
    %202 = vector.shape_cast %201 : vector<2x8xf32> to vector<2x1x8xf32>
    %203 = vector.broadcast %202 : vector<2x1x8xf32> to vector<2x8x8xf32>
    %204 = arith.mulf %200, %203 : vector<2x8x8xf32>
    %cst_53 = arith.constant dense<0.000000e+00> : vector<2x8xf32>
    %205 = vector.multi_reduction <add>, %204, %cst_53 [2] : vector<2x8x8xf32> to vector<2x8xf32>
    %206 = vector.broadcast %1 : f32 to vector<2x8xf32>
    %207 = arith.mulf %205, %206 : vector<2x8xf32>
    %cst_54 = arith.constant 0.000000e+00 : f32
    %208 = vector.broadcast %cst_54 : f32 to vector<2x8xf32>
    %209 = arith.cmpf ogt, %207, %208 : vector<2x8xf32>
    %cst_55 = arith.constant 2.000000e-01 : f32
    %210 = vector.broadcast %cst_55 : f32 to vector<2x8xf32>
    %211 = arith.mulf %210, %207 : vector<2x8xf32>
    %212 = arith.select %209, %207, %211 : vector<2x8xi1>, vector<2x8xf32>
    %213 = vector.extract_strided_slice %14 {offsets = [0, 2], sizes = [2, 1], strides = [1, 1]} : vector<2x4xf32> to vector<2x1xf32>
    %214 = vector.broadcast %213 : vector<2x1xf32> to vector<2x8xf32>
    %215 = arith.mulf %212, %214 : vector<2x8xf32>
    %cst_56 = arith.constant dense<0xFF800000> : vector<2xf32>
    %216 = vector.multi_reduction <maximumf>, %215, %cst_56 [1] : vector<2x8xf32> to vector<2xf32>
    %217 = vector.shape_cast %216 : vector<2xf32> to vector<2x1xf32>
    %218 = vector.broadcast %217 : vector<2x1xf32> to vector<2x8xf32>
    %219 = arith.subf %215, %218 : vector<2x8xf32>
    %220 = math.exp %219 : vector<2x8xf32>
    %cst_57 = arith.constant dense<0.000000e+00> : vector<2xf32>
    %221 = vector.multi_reduction <add>, %220, %cst_57 [1] : vector<2x8xf32> to vector<2xf32>
    %222 = vector.shape_cast %221 : vector<2xf32> to vector<2x1xf32>
    %223 = tpu.reciprocal %222 {approx = true} : vector<2x1xf32> -> vector<2x1xf32>
    %224 = vector.broadcast %223 : vector<2x1xf32> to vector<2x8xf32>
    %225 = arith.mulf %220, %224 : vector<2x8xf32>
    %226 = vector.shape_cast %225 : vector<2x8xf32> to vector<2x8x1xf32>
    %227 = vector.broadcast %226 : vector<2x8x1xf32> to vector<2x8x8xf32>
    %228 = arith.mulf %227, %200 : vector<2x8x8xf32>
    %cst_58 = arith.constant dense<0.000000e+00> : vector<2x8xf32>
    %229 = vector.multi_reduction <add>, %228, %cst_58 [1] : vector<2x8x8xf32> to vector<2x8xf32>
    %230 = vector.extract_strided_slice %139 {offsets = [0, 0, 24], sizes = [2, 8, 8], strides = [1, 1, 1]} : vector<2x8x32xf32> to vector<2x8x8xf32>
    %231 = vector.extract_strided_slice %3 {offsets = [0, 24], sizes = [2, 8], strides = [1, 1]} : vector<2x32xf32> to vector<2x8xf32>
    %232 = vector.shape_cast %231 : vector<2x8xf32> to vector<2x1x8xf32>
    %233 = vector.broadcast %232 : vector<2x1x8xf32> to vector<2x8x8xf32>
    %234 = arith.mulf %230, %233 : vector<2x8x8xf32>
    %cst_59 = arith.constant dense<0.000000e+00> : vector<2x8xf32>
    %235 = vector.multi_reduction <add>, %234, %cst_59 [2] : vector<2x8x8xf32> to vector<2x8xf32>
    %236 = vector.broadcast %1 : f32 to vector<2x8xf32>
    %237 = arith.mulf %235, %236 : vector<2x8xf32>
    %cst_60 = arith.constant 0.000000e+00 : f32
    %238 = vector.broadcast %cst_60 : f32 to vector<2x8xf32>
    %239 = arith.cmpf ogt, %237, %238 : vector<2x8xf32>
    %cst_61 = arith.constant 2.000000e-01 : f32
    %240 = vector.broadcast %cst_61 : f32 to vector<2x8xf32>
    %241 = arith.mulf %240, %237 : vector<2x8xf32>
    %242 = arith.select %239, %237, %241 : vector<2x8xi1>, vector<2x8xf32>
    %243 = vector.extract_strided_slice %14 {offsets = [0, 3], sizes = [2, 1], strides = [1, 1]} : vector<2x4xf32> to vector<2x1xf32>
    %244 = vector.broadcast %243 : vector<2x1xf32> to vector<2x8xf32>
    %245 = arith.mulf %242, %244 : vector<2x8xf32>
    %cst_62 = arith.constant dense<0xFF800000> : vector<2xf32>
    %246 = vector.multi_reduction <maximumf>, %245, %cst_62 [1] : vector<2x8xf32> to vector<2xf32>
    %247 = vector.shape_cast %246 : vector<2xf32> to vector<2x1xf32>
    %248 = vector.broadcast %247 : vector<2x1xf32> to vector<2x8xf32>
    %249 = arith.subf %245, %248 : vector<2x8xf32>
    %250 = math.exp %249 : vector<2x8xf32>
    %cst_63 = arith.constant dense<0.000000e+00> : vector<2xf32>
    %251 = vector.multi_reduction <add>, %250, %cst_63 [1] : vector<2x8xf32> to vector<2xf32>
    %252 = vector.shape_cast %251 : vector<2xf32> to vector<2x1xf32>
    %253 = tpu.reciprocal %252 {approx = true} : vector<2x1xf32> -> vector<2x1xf32>
    %254 = vector.broadcast %253 : vector<2x1xf32> to vector<2x8xf32>
    %255 = arith.mulf %250, %254 : vector<2x8xf32>
    %256 = vector.shape_cast %255 : vector<2x8xf32> to vector<2x8x1xf32>
    %257 = vector.broadcast %256 : vector<2x8x1xf32> to vector<2x8x8xf32>
    %258 = arith.mulf %257, %230 : vector<2x8x8xf32>
    %cst_64 = arith.constant dense<0.000000e+00> : vector<2x8xf32>
    %259 = vector.multi_reduction <add>, %258, %cst_64 [1] : vector<2x8x8xf32> to vector<2x8xf32>
    %260 = tpu.concatenate %169, %199, %229, %259 in 1 : vector<2x8xf32>, vector<2x8xf32>, vector<2x8xf32>, vector<2x8xf32> -> vector<2x32xf32>
    %cst_65 = arith.constant dense<0.000000e+00> : vector<2x32xf32>
    %261 = tpu.matmul %3, %12, %cst_65 {dimension_numbers = #tpu.dot_dimension_numbers<[1], [0], [0], [1], [0, 0, 1, 1], [], []>} : vector<2x32xf32>, vector<32x32xf32>, vector<2x32xf32> -> vector<2x32xf32>
    %262 = vector.extract_strided_slice %261 {offsets = [0, 0], sizes = [2, 8], strides = [1, 1]} : vector<2x32xf32> to vector<2x8xf32>
    %263 = vector.extract_strided_slice %137 {offsets = [0, 0], sizes = [2, 8], strides = [1, 1]} : vector<2x32xf32> to vector<2x8xf32>
    %264 = arith.mulf %262, %263 : vector<2x8xf32>
    %cst_66 = arith.constant dense<0.000000e+00> : vector<2xf32>
    %265 = vector.multi_reduction <add>, %264, %cst_66 [1] : vector<2x8xf32> to vector<2xf32>
    %266 = vector.shape_cast %265 : vector<2xf32> to vector<2x1xf32>
    %267 = vector.extract_strided_slice %261 {offsets = [0, 0], sizes = [2, 8], strides = [1, 1]} : vector<2x32xf32> to vector<2x8xf32>
    %268 = vector.extract_strided_slice %260 {offsets = [0, 0], sizes = [2, 8], strides = [1, 1]} : vector<2x32xf32> to vector<2x8xf32>
    %269 = arith.mulf %267, %268 : vector<2x8xf32>
    %cst_67 = arith.constant dense<0.000000e+00> : vector<2xf32>
    %270 = vector.multi_reduction <add>, %269, %cst_67 [1] : vector<2x8xf32> to vector<2xf32>
    %271 = vector.shape_cast %270 : vector<2xf32> to vector<2x1xf32>
    %272 = tpu.concatenate %266, %271 in 1 : vector<2x1xf32>, vector<2x1xf32> -> vector<2x2xf32>
    %273 = vector.broadcast %1 : f32 to vector<2x2xf32>
    %274 = arith.mulf %272, %273 : vector<2x2xf32>
    %cst_68 = arith.constant dense<0xFF800000> : vector<2xf32>
    %275 = vector.multi_reduction <maximumf>, %274, %cst_68 [1] : vector<2x2xf32> to vector<2xf32>
    %276 = vector.shape_cast %275 : vector<2xf32> to vector<2x1xf32>
    %277 = vector.broadcast %276 : vector<2x1xf32> to vector<2x2xf32>
    %278 = arith.subf %274, %277 : vector<2x2xf32>
    %279 = math.exp %278 : vector<2x2xf32>
    %cst_69 = arith.constant dense<0.000000e+00> : vector<2xf32>
    %280 = vector.multi_reduction <add>, %279, %cst_69 [1] : vector<2x2xf32> to vector<2xf32>
    %281 = vector.shape_cast %280 : vector<2xf32> to vector<2x1xf32>
    %282 = tpu.reciprocal %281 {approx = true} : vector<2x1xf32> -> vector<2x1xf32>
    %283 = vector.broadcast %282 : vector<2x1xf32> to vector<2x2xf32>
    %284 = arith.mulf %279, %283 : vector<2x2xf32>
    %cst_70 = arith.constant 0.000000e+00 : f32
    %285 = vector.broadcast %cst_70 : f32 to vector<2x8xf32>
    %286 = vector.extract_strided_slice %284 {offsets = [0, 0], sizes = [2, 1], strides = [1, 1]} : vector<2x2xf32> to vector<2x1xf32>
    %287 = vector.extract_strided_slice %137 {offsets = [0, 0], sizes = [2, 8], strides = [1, 1]} : vector<2x32xf32> to vector<2x8xf32>
    %288 = vector.broadcast %286 : vector<2x1xf32> to vector<2x8xf32>
    %289 = arith.mulf %288, %287 : vector<2x8xf32>
    %290 = arith.addf %285, %289 : vector<2x8xf32>
    %291 = vector.extract_strided_slice %284 {offsets = [0, 0], sizes = [2, 1], strides = [1, 1]} : vector<2x2xf32> to vector<2x1xf32>
    %292 = vector.extract_strided_slice %284 {offsets = [0, 1], sizes = [2, 1], strides = [1, 1]} : vector<2x2xf32> to vector<2x1xf32>
    %293 = vector.extract_strided_slice %260 {offsets = [0, 0], sizes = [2, 8], strides = [1, 1]} : vector<2x32xf32> to vector<2x8xf32>
    %294 = vector.broadcast %292 : vector<2x1xf32> to vector<2x8xf32>
    %295 = arith.mulf %294, %293 : vector<2x8xf32>
    %296 = arith.addf %290, %295 : vector<2x8xf32>
    %297 = vector.extract_strided_slice %284 {offsets = [0, 1], sizes = [2, 1], strides = [1, 1]} : vector<2x2xf32> to vector<2x1xf32>
    %298 = vector.extract_strided_slice %3 {offsets = [0, 0], sizes = [2, 8], strides = [1, 1]} : vector<2x32xf32> to vector<2x8xf32>
    %299 = arith.addf %298, %296 : vector<2x8xf32>
    %300 = vector.extract_strided_slice %261 {offsets = [0, 8], sizes = [2, 8], strides = [1, 1]} : vector<2x32xf32> to vector<2x8xf32>
    %301 = vector.extract_strided_slice %137 {offsets = [0, 8], sizes = [2, 8], strides = [1, 1]} : vector<2x32xf32> to vector<2x8xf32>
    %302 = arith.mulf %300, %301 : vector<2x8xf32>
    %cst_71 = arith.constant dense<0.000000e+00> : vector<2xf32>
    %303 = vector.multi_reduction <add>, %302, %cst_71 [1] : vector<2x8xf32> to vector<2xf32>
    %304 = vector.shape_cast %303 : vector<2xf32> to vector<2x1xf32>
    %305 = vector.extract_strided_slice %261 {offsets = [0, 8], sizes = [2, 8], strides = [1, 1]} : vector<2x32xf32> to vector<2x8xf32>
    %306 = vector.extract_strided_slice %260 {offsets = [0, 8], sizes = [2, 8], strides = [1, 1]} : vector<2x32xf32> to vector<2x8xf32>
    %307 = arith.mulf %305, %306 : vector<2x8xf32>
    %cst_72 = arith.constant dense<0.000000e+00> : vector<2xf32>
    %308 = vector.multi_reduction <add>, %307, %cst_72 [1] : vector<2x8xf32> to vector<2xf32>
    %309 = vector.shape_cast %308 : vector<2xf32> to vector<2x1xf32>
    %310 = tpu.concatenate %304, %309 in 1 : vector<2x1xf32>, vector<2x1xf32> -> vector<2x2xf32>
    %311 = vector.broadcast %1 : f32 to vector<2x2xf32>
    %312 = arith.mulf %310, %311 : vector<2x2xf32>
    %cst_73 = arith.constant dense<0xFF800000> : vector<2xf32>
    %313 = vector.multi_reduction <maximumf>, %312, %cst_73 [1] : vector<2x2xf32> to vector<2xf32>
    %314 = vector.shape_cast %313 : vector<2xf32> to vector<2x1xf32>
    %315 = vector.broadcast %314 : vector<2x1xf32> to vector<2x2xf32>
    %316 = arith.subf %312, %315 : vector<2x2xf32>
    %317 = math.exp %316 : vector<2x2xf32>
    %cst_74 = arith.constant dense<0.000000e+00> : vector<2xf32>
    %318 = vector.multi_reduction <add>, %317, %cst_74 [1] : vector<2x2xf32> to vector<2xf32>
    %319 = vector.shape_cast %318 : vector<2xf32> to vector<2x1xf32>
    %320 = tpu.reciprocal %319 {approx = true} : vector<2x1xf32> -> vector<2x1xf32>
    %321 = vector.broadcast %320 : vector<2x1xf32> to vector<2x2xf32>
    %322 = arith.mulf %317, %321 : vector<2x2xf32>
    %cst_75 = arith.constant 0.000000e+00 : f32
    %323 = vector.broadcast %cst_75 : f32 to vector<2x8xf32>
    %324 = vector.extract_strided_slice %322 {offsets = [0, 0], sizes = [2, 1], strides = [1, 1]} : vector<2x2xf32> to vector<2x1xf32>
    %325 = vector.extract_strided_slice %137 {offsets = [0, 8], sizes = [2, 8], strides = [1, 1]} : vector<2x32xf32> to vector<2x8xf32>
    %326 = vector.broadcast %324 : vector<2x1xf32> to vector<2x8xf32>
    %327 = arith.mulf %326, %325 : vector<2x8xf32>
    %328 = arith.addf %323, %327 : vector<2x8xf32>
    %329 = vector.extract_strided_slice %322 {offsets = [0, 0], sizes = [2, 1], strides = [1, 1]} : vector<2x2xf32> to vector<2x1xf32>
    %330 = vector.extract_strided_slice %322 {offsets = [0, 1], sizes = [2, 1], strides = [1, 1]} : vector<2x2xf32> to vector<2x1xf32>
    %331 = vector.extract_strided_slice %260 {offsets = [0, 8], sizes = [2, 8], strides = [1, 1]} : vector<2x32xf32> to vector<2x8xf32>
    %332 = vector.broadcast %330 : vector<2x1xf32> to vector<2x8xf32>
    %333 = arith.mulf %332, %331 : vector<2x8xf32>
    %334 = arith.addf %328, %333 : vector<2x8xf32>
    %335 = vector.extract_strided_slice %322 {offsets = [0, 1], sizes = [2, 1], strides = [1, 1]} : vector<2x2xf32> to vector<2x1xf32>
    %336 = vector.extract_strided_slice %3 {offsets = [0, 8], sizes = [2, 8], strides = [1, 1]} : vector<2x32xf32> to vector<2x8xf32>
    %337 = arith.addf %336, %334 : vector<2x8xf32>
    %338 = vector.extract_strided_slice %261 {offsets = [0, 16], sizes = [2, 8], strides = [1, 1]} : vector<2x32xf32> to vector<2x8xf32>
    %339 = vector.extract_strided_slice %137 {offsets = [0, 16], sizes = [2, 8], strides = [1, 1]} : vector<2x32xf32> to vector<2x8xf32>
    %340 = arith.mulf %338, %339 : vector<2x8xf32>
    %cst_76 = arith.constant dense<0.000000e+00> : vector<2xf32>
    %341 = vector.multi_reduction <add>, %340, %cst_76 [1] : vector<2x8xf32> to vector<2xf32>
    %342 = vector.shape_cast %341 : vector<2xf32> to vector<2x1xf32>
    %343 = vector.extract_strided_slice %261 {offsets = [0, 16], sizes = [2, 8], strides = [1, 1]} : vector<2x32xf32> to vector<2x8xf32>
    %344 = vector.extract_strided_slice %260 {offsets = [0, 16], sizes = [2, 8], strides = [1, 1]} : vector<2x32xf32> to vector<2x8xf32>
    %345 = arith.mulf %343, %344 : vector<2x8xf32>
    %cst_77 = arith.constant dense<0.000000e+00> : vector<2xf32>
    %346 = vector.multi_reduction <add>, %345, %cst_77 [1] : vector<2x8xf32> to vector<2xf32>
    %347 = vector.shape_cast %346 : vector<2xf32> to vector<2x1xf32>
    %348 = tpu.concatenate %342, %347 in 1 : vector<2x1xf32>, vector<2x1xf32> -> vector<2x2xf32>
    %349 = vector.broadcast %1 : f32 to vector<2x2xf32>
    %350 = arith.mulf %348, %349 : vector<2x2xf32>
    %cst_78 = arith.constant dense<0xFF800000> : vector<2xf32>
    %351 = vector.multi_reduction <maximumf>, %350, %cst_78 [1] : vector<2x2xf32> to vector<2xf32>
    %352 = vector.shape_cast %351 : vector<2xf32> to vector<2x1xf32>
    %353 = vector.broadcast %352 : vector<2x1xf32> to vector<2x2xf32>
    %354 = arith.subf %350, %353 : vector<2x2xf32>
    %355 = math.exp %354 : vector<2x2xf32>
    %cst_79 = arith.constant dense<0.000000e+00> : vector<2xf32>
    %356 = vector.multi_reduction <add>, %355, %cst_79 [1] : vector<2x2xf32> to vector<2xf32>
    %357 = vector.shape_cast %356 : vector<2xf32> to vector<2x1xf32>
    %358 = tpu.reciprocal %357 {approx = true} : vector<2x1xf32> -> vector<2x1xf32>
    %359 = vector.broadcast %358 : vector<2x1xf32> to vector<2x2xf32>
    %360 = arith.mulf %355, %359 : vector<2x2xf32>
    %cst_80 = arith.constant 0.000000e+00 : f32
    %361 = vector.broadcast %cst_80 : f32 to vector<2x8xf32>
    %362 = vector.extract_strided_slice %360 {offsets = [0, 0], sizes = [2, 1], strides = [1, 1]} : vector<2x2xf32> to vector<2x1xf32>
    %363 = vector.extract_strided_slice %137 {offsets = [0, 16], sizes = [2, 8], strides = [1, 1]} : vector<2x32xf32> to vector<2x8xf32>
    %364 = vector.broadcast %362 : vector<2x1xf32> to vector<2x8xf32>
    %365 = arith.mulf %364, %363 : vector<2x8xf32>
    %366 = arith.addf %361, %365 : vector<2x8xf32>
    %367 = vector.extract_strided_slice %360 {offsets = [0, 0], sizes = [2, 1], strides = [1, 1]} : vector<2x2xf32> to vector<2x1xf32>
    %368 = vector.extract_strided_slice %360 {offsets = [0, 1], sizes = [2, 1], strides = [1, 1]} : vector<2x2xf32> to vector<2x1xf32>
    %369 = vector.extract_strided_slice %260 {offsets = [0, 16], sizes = [2, 8], strides = [1, 1]} : vector<2x32xf32> to vector<2x8xf32>
    %370 = vector.broadcast %368 : vector<2x1xf32> to vector<2x8xf32>
    %371 = arith.mulf %370, %369 : vector<2x8xf32>
    %372 = arith.addf %366, %371 : vector<2x8xf32>
    %373 = vector.extract_strided_slice %360 {offsets = [0, 1], sizes = [2, 1], strides = [1, 1]} : vector<2x2xf32> to vector<2x1xf32>
    %374 = vector.extract_strided_slice %3 {offsets = [0, 16], sizes = [2, 8], strides = [1, 1]} : vector<2x32xf32> to vector<2x8xf32>
    %375 = arith.addf %374, %372 : vector<2x8xf32>
    %376 = vector.extract_strided_slice %261 {offsets = [0, 24], sizes = [2, 8], strides = [1, 1]} : vector<2x32xf32> to vector<2x8xf32>
    %377 = vector.extract_strided_slice %137 {offsets = [0, 24], sizes = [2, 8], strides = [1, 1]} : vector<2x32xf32> to vector<2x8xf32>
    %378 = arith.mulf %376, %377 : vector<2x8xf32>
    %cst_81 = arith.constant dense<0.000000e+00> : vector<2xf32>
    %379 = vector.multi_reduction <add>, %378, %cst_81 [1] : vector<2x8xf32> to vector<2xf32>
    %380 = vector.shape_cast %379 : vector<2xf32> to vector<2x1xf32>
    %381 = vector.extract_strided_slice %261 {offsets = [0, 24], sizes = [2, 8], strides = [1, 1]} : vector<2x32xf32> to vector<2x8xf32>
    %382 = vector.extract_strided_slice %260 {offsets = [0, 24], sizes = [2, 8], strides = [1, 1]} : vector<2x32xf32> to vector<2x8xf32>
    %383 = arith.mulf %381, %382 : vector<2x8xf32>
    %cst_82 = arith.constant dense<0.000000e+00> : vector<2xf32>
    %384 = vector.multi_reduction <add>, %383, %cst_82 [1] : vector<2x8xf32> to vector<2xf32>
    %385 = vector.shape_cast %384 : vector<2xf32> to vector<2x1xf32>
    %386 = tpu.concatenate %380, %385 in 1 : vector<2x1xf32>, vector<2x1xf32> -> vector<2x2xf32>
    %387 = vector.broadcast %1 : f32 to vector<2x2xf32>
    %388 = arith.mulf %386, %387 : vector<2x2xf32>
    %cst_83 = arith.constant dense<0xFF800000> : vector<2xf32>
    %389 = vector.multi_reduction <maximumf>, %388, %cst_83 [1] : vector<2x2xf32> to vector<2xf32>
    %390 = vector.shape_cast %389 : vector<2xf32> to vector<2x1xf32>
    %391 = vector.broadcast %390 : vector<2x1xf32> to vector<2x2xf32>
    %392 = arith.subf %388, %391 : vector<2x2xf32>
    %393 = math.exp %392 : vector<2x2xf32>
    %cst_84 = arith.constant dense<0.000000e+00> : vector<2xf32>
    %394 = vector.multi_reduction <add>, %393, %cst_84 [1] : vector<2x2xf32> to vector<2xf32>
    %395 = vector.shape_cast %394 : vector<2xf32> to vector<2x1xf32>
    %396 = tpu.reciprocal %395 {approx = true} : vector<2x1xf32> -> vector<2x1xf32>
    %397 = vector.broadcast %396 : vector<2x1xf32> to vector<2x2xf32>
    %398 = arith.mulf %393, %397 : vector<2x2xf32>
    %cst_85 = arith.constant 0.000000e+00 : f32
    %399 = vector.broadcast %cst_85 : f32 to vector<2x8xf32>
    %400 = vector.extract_strided_slice %398 {offsets = [0, 0], sizes = [2, 1], strides = [1, 1]} : vector<2x2xf32> to vector<2x1xf32>
    %401 = vector.extract_strided_slice %137 {offsets = [0, 24], sizes = [2, 8], strides = [1, 1]} : vector<2x32xf32> to vector<2x8xf32>
    %402 = vector.broadcast %400 : vector<2x1xf32> to vector<2x8xf32>
    %403 = arith.mulf %402, %401 : vector<2x8xf32>
    %404 = arith.addf %399, %403 : vector<2x8xf32>
    %405 = vector.extract_strided_slice %398 {offsets = [0, 0], sizes = [2, 1], strides = [1, 1]} : vector<2x2xf32> to vector<2x1xf32>
    %406 = vector.extract_strided_slice %398 {offsets = [0, 1], sizes = [2, 1], strides = [1, 1]} : vector<2x2xf32> to vector<2x1xf32>
    %407 = vector.extract_strided_slice %260 {offsets = [0, 24], sizes = [2, 8], strides = [1, 1]} : vector<2x32xf32> to vector<2x8xf32>
    %408 = vector.broadcast %406 : vector<2x1xf32> to vector<2x8xf32>
    %409 = arith.mulf %408, %407 : vector<2x8xf32>
    %410 = arith.addf %404, %409 : vector<2x8xf32>
    %411 = vector.extract_strided_slice %398 {offsets = [0, 1], sizes = [2, 1], strides = [1, 1]} : vector<2x2xf32> to vector<2x1xf32>
    %412 = vector.extract_strided_slice %3 {offsets = [0, 24], sizes = [2, 8], strides = [1, 1]} : vector<2x32xf32> to vector<2x8xf32>
    %413 = arith.addf %412, %410 : vector<2x8xf32>
    %414 = tpu.concatenate %299, %337, %375, %413 in 1 : vector<2x8xf32>, vector<2x8xf32>, vector<2x8xf32>, vector<2x8xf32> -> vector<2x32xf32>
    %415 = tpu.concatenate %291, %329, %367, %405 in 1 : vector<2x1xf32>, vector<2x1xf32>, vector<2x1xf32>, vector<2x1xf32> -> vector<2x4xf32>
    %416 = tpu.concatenate %297, %335, %373, %411 in 1 : vector<2x1xf32>, vector<2x1xf32>, vector<2x1xf32>, vector<2x1xf32> -> vector<2x4xf32>
    %417 = vector.extract_strided_slice %10 {offsets = [0, 0, 0, 0], sizes = [2, 1, 8, 32], strides = [1, 1, 1, 1]} : vector<2x2x8x32xf32> to vector<2x1x8x32xf32>
    %418 = vector.shape_cast %417 : vector<2x1x8x32xf32> to vector<2x8x32xf32>
    %419 = vector.extract_strided_slice %418 {offsets = [0, 0, 0], sizes = [2, 8, 8], strides = [1, 1, 1]} : vector<2x8x32xf32> to vector<2x8x8xf32>
    %420 = vector.extract_strided_slice %414 {offsets = [0, 0], sizes = [2, 8], strides = [1, 1]} : vector<2x32xf32> to vector<2x8xf32>
    %421 = vector.shape_cast %420 : vector<2x8xf32> to vector<2x1x8xf32>
    %422 = vector.broadcast %421 : vector<2x1x8xf32> to vector<2x8x8xf32>
    %423 = arith.mulf %419, %422 : vector<2x8x8xf32>
    %cst_86 = arith.constant dense<0.000000e+00> : vector<2x8xf32>
    %424 = vector.multi_reduction <add>, %423, %cst_86 [2] : vector<2x8x8xf32> to vector<2x8xf32>
    %425 = vector.broadcast %1 : f32 to vector<2x8xf32>
    %426 = arith.mulf %424, %425 : vector<2x8xf32>
    %cst_87 = arith.constant 0.000000e+00 : f32
    %427 = vector.broadcast %cst_87 : f32 to vector<2x8xf32>
    %428 = arith.cmpf ogt, %426, %427 : vector<2x8xf32>
    %cst_88 = arith.constant 2.000000e-01 : f32
    %429 = vector.broadcast %cst_88 : f32 to vector<2x8xf32>
    %430 = arith.mulf %429, %426 : vector<2x8xf32>
    %431 = arith.select %428, %426, %430 : vector<2x8xi1>, vector<2x8xf32>
    %432 = vector.extract_strided_slice %415 {offsets = [0, 0], sizes = [2, 1], strides = [1, 1]} : vector<2x4xf32> to vector<2x1xf32>
    %433 = vector.broadcast %432 : vector<2x1xf32> to vector<2x8xf32>
    %434 = arith.mulf %431, %433 : vector<2x8xf32>
    %cst_89 = arith.constant dense<0xFF800000> : vector<2xf32>
    %435 = vector.multi_reduction <maximumf>, %434, %cst_89 [1] : vector<2x8xf32> to vector<2xf32>
    %436 = vector.shape_cast %435 : vector<2xf32> to vector<2x1xf32>
    %437 = vector.broadcast %436 : vector<2x1xf32> to vector<2x8xf32>
    %438 = arith.subf %434, %437 : vector<2x8xf32>
    %439 = math.exp %438 : vector<2x8xf32>
    %cst_90 = arith.constant dense<0.000000e+00> : vector<2xf32>
    %440 = vector.multi_reduction <add>, %439, %cst_90 [1] : vector<2x8xf32> to vector<2xf32>
    %441 = vector.shape_cast %440 : vector<2xf32> to vector<2x1xf32>
    %442 = tpu.reciprocal %441 {approx = true} : vector<2x1xf32> -> vector<2x1xf32>
    %443 = vector.broadcast %442 : vector<2x1xf32> to vector<2x8xf32>
    %444 = arith.mulf %439, %443 : vector<2x8xf32>
    %445 = vector.shape_cast %444 : vector<2x8xf32> to vector<2x8x1xf32>
    %446 = vector.broadcast %445 : vector<2x8x1xf32> to vector<2x8x8xf32>
    %447 = arith.mulf %446, %419 : vector<2x8x8xf32>
    %cst_91 = arith.constant dense<0.000000e+00> : vector<2x8xf32>
    %448 = vector.multi_reduction <add>, %447, %cst_91 [1] : vector<2x8x8xf32> to vector<2x8xf32>
    %449 = vector.extract_strided_slice %418 {offsets = [0, 0, 8], sizes = [2, 8, 8], strides = [1, 1, 1]} : vector<2x8x32xf32> to vector<2x8x8xf32>
    %450 = vector.extract_strided_slice %414 {offsets = [0, 8], sizes = [2, 8], strides = [1, 1]} : vector<2x32xf32> to vector<2x8xf32>
    %451 = vector.shape_cast %450 : vector<2x8xf32> to vector<2x1x8xf32>
    %452 = vector.broadcast %451 : vector<2x1x8xf32> to vector<2x8x8xf32>
    %453 = arith.mulf %449, %452 : vector<2x8x8xf32>
    %cst_92 = arith.constant dense<0.000000e+00> : vector<2x8xf32>
    %454 = vector.multi_reduction <add>, %453, %cst_92 [2] : vector<2x8x8xf32> to vector<2x8xf32>
    %455 = vector.broadcast %1 : f32 to vector<2x8xf32>
    %456 = arith.mulf %454, %455 : vector<2x8xf32>
    %cst_93 = arith.constant 0.000000e+00 : f32
    %457 = vector.broadcast %cst_93 : f32 to vector<2x8xf32>
    %458 = arith.cmpf ogt, %456, %457 : vector<2x8xf32>
    %cst_94 = arith.constant 2.000000e-01 : f32
    %459 = vector.broadcast %cst_94 : f32 to vector<2x8xf32>
    %460 = arith.mulf %459, %456 : vector<2x8xf32>
    %461 = arith.select %458, %456, %460 : vector<2x8xi1>, vector<2x8xf32>
    %462 = vector.extract_strided_slice %415 {offsets = [0, 1], sizes = [2, 1], strides = [1, 1]} : vector<2x4xf32> to vector<2x1xf32>
    %463 = vector.broadcast %462 : vector<2x1xf32> to vector<2x8xf32>
    %464 = arith.mulf %461, %463 : vector<2x8xf32>
    %cst_95 = arith.constant dense<0xFF800000> : vector<2xf32>
    %465 = vector.multi_reduction <maximumf>, %464, %cst_95 [1] : vector<2x8xf32> to vector<2xf32>
    %466 = vector.shape_cast %465 : vector<2xf32> to vector<2x1xf32>
    %467 = vector.broadcast %466 : vector<2x1xf32> to vector<2x8xf32>
    %468 = arith.subf %464, %467 : vector<2x8xf32>
    %469 = math.exp %468 : vector<2x8xf32>
    %cst_96 = arith.constant dense<0.000000e+00> : vector<2xf32>
    %470 = vector.multi_reduction <add>, %469, %cst_96 [1] : vector<2x8xf32> to vector<2xf32>
    %471 = vector.shape_cast %470 : vector<2xf32> to vector<2x1xf32>
    %472 = tpu.reciprocal %471 {approx = true} : vector<2x1xf32> -> vector<2x1xf32>
    %473 = vector.broadcast %472 : vector<2x1xf32> to vector<2x8xf32>
    %474 = arith.mulf %469, %473 : vector<2x8xf32>
    %475 = vector.shape_cast %474 : vector<2x8xf32> to vector<2x8x1xf32>
    %476 = vector.broadcast %475 : vector<2x8x1xf32> to vector<2x8x8xf32>
    %477 = arith.mulf %476, %449 : vector<2x8x8xf32>
    %cst_97 = arith.constant dense<0.000000e+00> : vector<2x8xf32>
    %478 = vector.multi_reduction <add>, %477, %cst_97 [1] : vector<2x8x8xf32> to vector<2x8xf32>
    %479 = vector.extract_strided_slice %418 {offsets = [0, 0, 16], sizes = [2, 8, 8], strides = [1, 1, 1]} : vector<2x8x32xf32> to vector<2x8x8xf32>
    %480 = vector.extract_strided_slice %414 {offsets = [0, 16], sizes = [2, 8], strides = [1, 1]} : vector<2x32xf32> to vector<2x8xf32>
    %481 = vector.shape_cast %480 : vector<2x8xf32> to vector<2x1x8xf32>
    %482 = vector.broadcast %481 : vector<2x1x8xf32> to vector<2x8x8xf32>
    %483 = arith.mulf %479, %482 : vector<2x8x8xf32>
    %cst_98 = arith.constant dense<0.000000e+00> : vector<2x8xf32>
    %484 = vector.multi_reduction <add>, %483, %cst_98 [2] : vector<2x8x8xf32> to vector<2x8xf32>
    %485 = vector.broadcast %1 : f32 to vector<2x8xf32>
    %486 = arith.mulf %484, %485 : vector<2x8xf32>
    %cst_99 = arith.constant 0.000000e+00 : f32
    %487 = vector.broadcast %cst_99 : f32 to vector<2x8xf32>
    %488 = arith.cmpf ogt, %486, %487 : vector<2x8xf32>
    %cst_100 = arith.constant 2.000000e-01 : f32
    %489 = vector.broadcast %cst_100 : f32 to vector<2x8xf32>
    %490 = arith.mulf %489, %486 : vector<2x8xf32>
    %491 = arith.select %488, %486, %490 : vector<2x8xi1>, vector<2x8xf32>
    %492 = vector.extract_strided_slice %415 {offsets = [0, 2], sizes = [2, 1], strides = [1, 1]} : vector<2x4xf32> to vector<2x1xf32>
    %493 = vector.broadcast %492 : vector<2x1xf32> to vector<2x8xf32>
    %494 = arith.mulf %491, %493 : vector<2x8xf32>
    %cst_101 = arith.constant dense<0xFF800000> : vector<2xf32>
    %495 = vector.multi_reduction <maximumf>, %494, %cst_101 [1] : vector<2x8xf32> to vector<2xf32>
    %496 = vector.shape_cast %495 : vector<2xf32> to vector<2x1xf32>
    %497 = vector.broadcast %496 : vector<2x1xf32> to vector<2x8xf32>
    %498 = arith.subf %494, %497 : vector<2x8xf32>
    %499 = math.exp %498 : vector<2x8xf32>
    %cst_102 = arith.constant dense<0.000000e+00> : vector<2xf32>
    %500 = vector.multi_reduction <add>, %499, %cst_102 [1] : vector<2x8xf32> to vector<2xf32>
    %501 = vector.shape_cast %500 : vector<2xf32> to vector<2x1xf32>
    %502 = tpu.reciprocal %501 {approx = true} : vector<2x1xf32> -> vector<2x1xf32>
    %503 = vector.broadcast %502 : vector<2x1xf32> to vector<2x8xf32>
    %504 = arith.mulf %499, %503 : vector<2x8xf32>
    %505 = vector.shape_cast %504 : vector<2x8xf32> to vector<2x8x1xf32>
    %506 = vector.broadcast %505 : vector<2x8x1xf32> to vector<2x8x8xf32>
    %507 = arith.mulf %506, %479 : vector<2x8x8xf32>
    %cst_103 = arith.constant dense<0.000000e+00> : vector<2x8xf32>
    %508 = vector.multi_reduction <add>, %507, %cst_103 [1] : vector<2x8x8xf32> to vector<2x8xf32>
    %509 = vector.extract_strided_slice %418 {offsets = [0, 0, 24], sizes = [2, 8, 8], strides = [1, 1, 1]} : vector<2x8x32xf32> to vector<2x8x8xf32>
    %510 = vector.extract_strided_slice %414 {offsets = [0, 24], sizes = [2, 8], strides = [1, 1]} : vector<2x32xf32> to vector<2x8xf32>
    %511 = vector.shape_cast %510 : vector<2x8xf32> to vector<2x1x8xf32>
    %512 = vector.broadcast %511 : vector<2x1x8xf32> to vector<2x8x8xf32>
    %513 = arith.mulf %509, %512 : vector<2x8x8xf32>
    %cst_104 = arith.constant dense<0.000000e+00> : vector<2x8xf32>
    %514 = vector.multi_reduction <add>, %513, %cst_104 [2] : vector<2x8x8xf32> to vector<2x8xf32>
    %515 = vector.broadcast %1 : f32 to vector<2x8xf32>
    %516 = arith.mulf %514, %515 : vector<2x8xf32>
    %cst_105 = arith.constant 0.000000e+00 : f32
    %517 = vector.broadcast %cst_105 : f32 to vector<2x8xf32>
    %518 = arith.cmpf ogt, %516, %517 : vector<2x8xf32>
    %cst_106 = arith.constant 2.000000e-01 : f32
    %519 = vector.broadcast %cst_106 : f32 to vector<2x8xf32>
    %520 = arith.mulf %519, %516 : vector<2x8xf32>
    %521 = arith.select %518, %516, %520 : vector<2x8xi1>, vector<2x8xf32>
    %522 = vector.extract_strided_slice %415 {offsets = [0, 3], sizes = [2, 1], strides = [1, 1]} : vector<2x4xf32> to vector<2x1xf32>
    %523 = vector.broadcast %522 : vector<2x1xf32> to vector<2x8xf32>
    %524 = arith.mulf %521, %523 : vector<2x8xf32>
    %cst_107 = arith.constant dense<0xFF800000> : vector<2xf32>
    %525 = vector.multi_reduction <maximumf>, %524, %cst_107 [1] : vector<2x8xf32> to vector<2xf32>
    %526 = vector.shape_cast %525 : vector<2xf32> to vector<2x1xf32>
    %527 = vector.broadcast %526 : vector<2x1xf32> to vector<2x8xf32>
    %528 = arith.subf %524, %527 : vector<2x8xf32>
    %529 = math.exp %528 : vector<2x8xf32>
    %cst_108 = arith.constant dense<0.000000e+00> : vector<2xf32>
    %530 = vector.multi_reduction <add>, %529, %cst_108 [1] : vector<2x8xf32> to vector<2xf32>
    %531 = vector.shape_cast %530 : vector<2xf32> to vector<2x1xf32>
    %532 = tpu.reciprocal %531 {approx = true} : vector<2x1xf32> -> vector<2x1xf32>
    %533 = vector.broadcast %532 : vector<2x1xf32> to vector<2x8xf32>
    %534 = arith.mulf %529, %533 : vector<2x8xf32>
    %535 = vector.shape_cast %534 : vector<2x8xf32> to vector<2x8x1xf32>
    %536 = vector.broadcast %535 : vector<2x8x1xf32> to vector<2x8x8xf32>
    %537 = arith.mulf %536, %509 : vector<2x8x8xf32>
    %cst_109 = arith.constant dense<0.000000e+00> : vector<2x8xf32>
    %538 = vector.multi_reduction <add>, %537, %cst_109 [1] : vector<2x8x8xf32> to vector<2x8xf32>
    %539 = tpu.concatenate %448, %478, %508, %538 in 1 : vector<2x8xf32>, vector<2x8xf32>, vector<2x8xf32>, vector<2x8xf32> -> vector<2x32xf32>
    %540 = vector.extract_strided_slice %10 {offsets = [0, 1, 0, 0], sizes = [2, 1, 8, 32], strides = [1, 1, 1, 1]} : vector<2x2x8x32xf32> to vector<2x1x8x32xf32>
    %541 = vector.shape_cast %540 : vector<2x1x8x32xf32> to vector<2x8x32xf32>
    %542 = vector.extract_strided_slice %541 {offsets = [0, 0, 0], sizes = [2, 8, 8], strides = [1, 1, 1]} : vector<2x8x32xf32> to vector<2x8x8xf32>
    %543 = vector.extract_strided_slice %414 {offsets = [0, 0], sizes = [2, 8], strides = [1, 1]} : vector<2x32xf32> to vector<2x8xf32>
    %544 = vector.shape_cast %543 : vector<2x8xf32> to vector<2x1x8xf32>
    %545 = vector.broadcast %544 : vector<2x1x8xf32> to vector<2x8x8xf32>
    %546 = arith.mulf %542, %545 : vector<2x8x8xf32>
    %cst_110 = arith.constant dense<0.000000e+00> : vector<2x8xf32>
    %547 = vector.multi_reduction <add>, %546, %cst_110 [2] : vector<2x8x8xf32> to vector<2x8xf32>
    %548 = vector.broadcast %1 : f32 to vector<2x8xf32>
    %549 = arith.mulf %547, %548 : vector<2x8xf32>
    %cst_111 = arith.constant 0.000000e+00 : f32
    %550 = vector.broadcast %cst_111 : f32 to vector<2x8xf32>
    %551 = arith.cmpf ogt, %549, %550 : vector<2x8xf32>
    %cst_112 = arith.constant 2.000000e-01 : f32
    %552 = vector.broadcast %cst_112 : f32 to vector<2x8xf32>
    %553 = arith.mulf %552, %549 : vector<2x8xf32>
    %554 = arith.select %551, %549, %553 : vector<2x8xi1>, vector<2x8xf32>
    %555 = vector.extract_strided_slice %416 {offsets = [0, 0], sizes = [2, 1], strides = [1, 1]} : vector<2x4xf32> to vector<2x1xf32>
    %556 = vector.broadcast %555 : vector<2x1xf32> to vector<2x8xf32>
    %557 = arith.mulf %554, %556 : vector<2x8xf32>
    %cst_113 = arith.constant dense<0xFF800000> : vector<2xf32>
    %558 = vector.multi_reduction <maximumf>, %557, %cst_113 [1] : vector<2x8xf32> to vector<2xf32>
    %559 = vector.shape_cast %558 : vector<2xf32> to vector<2x1xf32>
    %560 = vector.broadcast %559 : vector<2x1xf32> to vector<2x8xf32>
    %561 = arith.subf %557, %560 : vector<2x8xf32>
    %562 = math.exp %561 : vector<2x8xf32>
    %cst_114 = arith.constant dense<0.000000e+00> : vector<2xf32>
    %563 = vector.multi_reduction <add>, %562, %cst_114 [1] : vector<2x8xf32> to vector<2xf32>
    %564 = vector.shape_cast %563 : vector<2xf32> to vector<2x1xf32>
    %565 = tpu.reciprocal %564 {approx = true} : vector<2x1xf32> -> vector<2x1xf32>
    %566 = vector.broadcast %565 : vector<2x1xf32> to vector<2x8xf32>
    %567 = arith.mulf %562, %566 : vector<2x8xf32>
    %568 = vector.shape_cast %567 : vector<2x8xf32> to vector<2x8x1xf32>
    %569 = vector.broadcast %568 : vector<2x8x1xf32> to vector<2x8x8xf32>
    %570 = arith.mulf %569, %542 : vector<2x8x8xf32>
    %cst_115 = arith.constant dense<0.000000e+00> : vector<2x8xf32>
    %571 = vector.multi_reduction <add>, %570, %cst_115 [1] : vector<2x8x8xf32> to vector<2x8xf32>
    %572 = vector.extract_strided_slice %541 {offsets = [0, 0, 8], sizes = [2, 8, 8], strides = [1, 1, 1]} : vector<2x8x32xf32> to vector<2x8x8xf32>
    %573 = vector.extract_strided_slice %414 {offsets = [0, 8], sizes = [2, 8], strides = [1, 1]} : vector<2x32xf32> to vector<2x8xf32>
    %574 = vector.shape_cast %573 : vector<2x8xf32> to vector<2x1x8xf32>
    %575 = vector.broadcast %574 : vector<2x1x8xf32> to vector<2x8x8xf32>
    %576 = arith.mulf %572, %575 : vector<2x8x8xf32>
    %cst_116 = arith.constant dense<0.000000e+00> : vector<2x8xf32>
    %577 = vector.multi_reduction <add>, %576, %cst_116 [2] : vector<2x8x8xf32> to vector<2x8xf32>
    %578 = vector.broadcast %1 : f32 to vector<2x8xf32>
    %579 = arith.mulf %577, %578 : vector<2x8xf32>
    %cst_117 = arith.constant 0.000000e+00 : f32
    %580 = vector.broadcast %cst_117 : f32 to vector<2x8xf32>
    %581 = arith.cmpf ogt, %579, %580 : vector<2x8xf32>
    %cst_118 = arith.constant 2.000000e-01 : f32
    %582 = vector.broadcast %cst_118 : f32 to vector<2x8xf32>
    %583 = arith.mulf %582, %579 : vector<2x8xf32>
    %584 = arith.select %581, %579, %583 : vector<2x8xi1>, vector<2x8xf32>
    %585 = vector.extract_strided_slice %416 {offsets = [0, 1], sizes = [2, 1], strides = [1, 1]} : vector<2x4xf32> to vector<2x1xf32>
    %586 = vector.broadcast %585 : vector<2x1xf32> to vector<2x8xf32>
    %587 = arith.mulf %584, %586 : vector<2x8xf32>
    %cst_119 = arith.constant dense<0xFF800000> : vector<2xf32>
    %588 = vector.multi_reduction <maximumf>, %587, %cst_119 [1] : vector<2x8xf32> to vector<2xf32>
    %589 = vector.shape_cast %588 : vector<2xf32> to vector<2x1xf32>
    %590 = vector.broadcast %589 : vector<2x1xf32> to vector<2x8xf32>
    %591 = arith.subf %587, %590 : vector<2x8xf32>
    %592 = math.exp %591 : vector<2x8xf32>
    %cst_120 = arith.constant dense<0.000000e+00> : vector<2xf32>
    %593 = vector.multi_reduction <add>, %592, %cst_120 [1] : vector<2x8xf32> to vector<2xf32>
    %594 = vector.shape_cast %593 : vector<2xf32> to vector<2x1xf32>
    %595 = tpu.reciprocal %594 {approx = true} : vector<2x1xf32> -> vector<2x1xf32>
    %596 = vector.broadcast %595 : vector<2x1xf32> to vector<2x8xf32>
    %597 = arith.mulf %592, %596 : vector<2x8xf32>
    %598 = vector.shape_cast %597 : vector<2x8xf32> to vector<2x8x1xf32>
    %599 = vector.broadcast %598 : vector<2x8x1xf32> to vector<2x8x8xf32>
    %600 = arith.mulf %599, %572 : vector<2x8x8xf32>
    %cst_121 = arith.constant dense<0.000000e+00> : vector<2x8xf32>
    %601 = vector.multi_reduction <add>, %600, %cst_121 [1] : vector<2x8x8xf32> to vector<2x8xf32>
    %602 = vector.extract_strided_slice %541 {offsets = [0, 0, 16], sizes = [2, 8, 8], strides = [1, 1, 1]} : vector<2x8x32xf32> to vector<2x8x8xf32>
    %603 = vector.extract_strided_slice %414 {offsets = [0, 16], sizes = [2, 8], strides = [1, 1]} : vector<2x32xf32> to vector<2x8xf32>
    %604 = vector.shape_cast %603 : vector<2x8xf32> to vector<2x1x8xf32>
    %605 = vector.broadcast %604 : vector<2x1x8xf32> to vector<2x8x8xf32>
    %606 = arith.mulf %602, %605 : vector<2x8x8xf32>
    %cst_122 = arith.constant dense<0.000000e+00> : vector<2x8xf32>
    %607 = vector.multi_reduction <add>, %606, %cst_122 [2] : vector<2x8x8xf32> to vector<2x8xf32>
    %608 = vector.broadcast %1 : f32 to vector<2x8xf32>
    %609 = arith.mulf %607, %608 : vector<2x8xf32>
    %cst_123 = arith.constant 0.000000e+00 : f32
    %610 = vector.broadcast %cst_123 : f32 to vector<2x8xf32>
    %611 = arith.cmpf ogt, %609, %610 : vector<2x8xf32>
    %cst_124 = arith.constant 2.000000e-01 : f32
    %612 = vector.broadcast %cst_124 : f32 to vector<2x8xf32>
    %613 = arith.mulf %612, %609 : vector<2x8xf32>
    %614 = arith.select %611, %609, %613 : vector<2x8xi1>, vector<2x8xf32>
    %615 = vector.extract_strided_slice %416 {offsets = [0, 2], sizes = [2, 1], strides = [1, 1]} : vector<2x4xf32> to vector<2x1xf32>
    %616 = vector.broadcast %615 : vector<2x1xf32> to vector<2x8xf32>
    %617 = arith.mulf %614, %616 : vector<2x8xf32>
    %cst_125 = arith.constant dense<0xFF800000> : vector<2xf32>
    %618 = vector.multi_reduction <maximumf>, %617, %cst_125 [1] : vector<2x8xf32> to vector<2xf32>
    %619 = vector.shape_cast %618 : vector<2xf32> to vector<2x1xf32>
    %620 = vector.broadcast %619 : vector<2x1xf32> to vector<2x8xf32>
    %621 = arith.subf %617, %620 : vector<2x8xf32>
    %622 = math.exp %621 : vector<2x8xf32>
    %cst_126 = arith.constant dense<0.000000e+00> : vector<2xf32>
    %623 = vector.multi_reduction <add>, %622, %cst_126 [1] : vector<2x8xf32> to vector<2xf32>
    %624 = vector.shape_cast %623 : vector<2xf32> to vector<2x1xf32>
    %625 = tpu.reciprocal %624 {approx = true} : vector<2x1xf32> -> vector<2x1xf32>
    %626 = vector.broadcast %625 : vector<2x1xf32> to vector<2x8xf32>
    %627 = arith.mulf %622, %626 : vector<2x8xf32>
    %628 = vector.shape_cast %627 : vector<2x8xf32> to vector<2x8x1xf32>
    %629 = vector.broadcast %628 : vector<2x8x1xf32> to vector<2x8x8xf32>
    %630 = arith.mulf %629, %602 : vector<2x8x8xf32>
    %cst_127 = arith.constant dense<0.000000e+00> : vector<2x8xf32>
    %631 = vector.multi_reduction <add>, %630, %cst_127 [1] : vector<2x8x8xf32> to vector<2x8xf32>
    %632 = vector.extract_strided_slice %541 {offsets = [0, 0, 24], sizes = [2, 8, 8], strides = [1, 1, 1]} : vector<2x8x32xf32> to vector<2x8x8xf32>
    %633 = vector.extract_strided_slice %414 {offsets = [0, 24], sizes = [2, 8], strides = [1, 1]} : vector<2x32xf32> to vector<2x8xf32>
    %634 = vector.shape_cast %633 : vector<2x8xf32> to vector<2x1x8xf32>
    %635 = vector.broadcast %634 : vector<2x1x8xf32> to vector<2x8x8xf32>
    %636 = arith.mulf %632, %635 : vector<2x8x8xf32>
    %cst_128 = arith.constant dense<0.000000e+00> : vector<2x8xf32>
    %637 = vector.multi_reduction <add>, %636, %cst_128 [2] : vector<2x8x8xf32> to vector<2x8xf32>
    %638 = vector.broadcast %1 : f32 to vector<2x8xf32>
    %639 = arith.mulf %637, %638 : vector<2x8xf32>
    %cst_129 = arith.constant 0.000000e+00 : f32
    %640 = vector.broadcast %cst_129 : f32 to vector<2x8xf32>
    %641 = arith.cmpf ogt, %639, %640 : vector<2x8xf32>
    %cst_130 = arith.constant 2.000000e-01 : f32
    %642 = vector.broadcast %cst_130 : f32 to vector<2x8xf32>
    %643 = arith.mulf %642, %639 : vector<2x8xf32>
    %644 = arith.select %641, %639, %643 : vector<2x8xi1>, vector<2x8xf32>
    %645 = vector.extract_strided_slice %416 {offsets = [0, 3], sizes = [2, 1], strides = [1, 1]} : vector<2x4xf32> to vector<2x1xf32>
    %646 = vector.broadcast %645 : vector<2x1xf32> to vector<2x8xf32>
    %647 = arith.mulf %644, %646 : vector<2x8xf32>
    %cst_131 = arith.constant dense<0xFF800000> : vector<2xf32>
    %648 = vector.multi_reduction <maximumf>, %647, %cst_131 [1] : vector<2x8xf32> to vector<2xf32>
    %649 = vector.shape_cast %648 : vector<2xf32> to vector<2x1xf32>
    %650 = vector.broadcast %649 : vector<2x1xf32> to vector<2x8xf32>
    %651 = arith.subf %647, %650 : vector<2x8xf32>
    %652 = math.exp %651 : vector<2x8xf32>
    %cst_132 = arith.constant dense<0.000000e+00> : vector<2xf32>
    %653 = vector.multi_reduction <add>, %652, %cst_132 [1] : vector<2x8xf32> to vector<2xf32>
    %654 = vector.shape_cast %653 : vector<2xf32> to vector<2x1xf32>
    %655 = tpu.reciprocal %654 {approx = true} : vector<2x1xf32> -> vector<2x1xf32>
    %656 = vector.broadcast %655 : vector<2x1xf32> to vector<2x8xf32>
    %657 = arith.mulf %652, %656 : vector<2x8xf32>
    %658 = vector.shape_cast %657 : vector<2x8xf32> to vector<2x8x1xf32>
    %659 = vector.broadcast %658 : vector<2x8x1xf32> to vector<2x8x8xf32>
    %660 = arith.mulf %659, %632 : vector<2x8x8xf32>
    %cst_133 = arith.constant dense<0.000000e+00> : vector<2x8xf32>
    %661 = vector.multi_reduction <add>, %660, %cst_133 [1] : vector<2x8x8xf32> to vector<2x8xf32>
    %662 = tpu.concatenate %571, %601, %631, %661 in 1 : vector<2x8xf32>, vector<2x8xf32>, vector<2x8xf32>, vector<2x8xf32> -> vector<2x32xf32>
    %cst_134 = arith.constant dense<0.000000e+00> : vector<2x32xf32>
    %663 = tpu.matmul %414, %12, %cst_134 {dimension_numbers = #tpu.dot_dimension_numbers<[1], [0], [0], [1], [0, 0, 1, 1], [], []>} : vector<2x32xf32>, vector<32x32xf32>, vector<2x32xf32> -> vector<2x32xf32>
    %664 = vector.extract_strided_slice %663 {offsets = [0, 0], sizes = [2, 8], strides = [1, 1]} : vector<2x32xf32> to vector<2x8xf32>
    %665 = vector.extract_strided_slice %539 {offsets = [0, 0], sizes = [2, 8], strides = [1, 1]} : vector<2x32xf32> to vector<2x8xf32>
    %666 = arith.mulf %664, %665 : vector<2x8xf32>
    %cst_135 = arith.constant dense<0.000000e+00> : vector<2xf32>
    %667 = vector.multi_reduction <add>, %666, %cst_135 [1] : vector<2x8xf32> to vector<2xf32>
    %668 = vector.shape_cast %667 : vector<2xf32> to vector<2x1xf32>
    %669 = vector.extract_strided_slice %663 {offsets = [0, 0], sizes = [2, 8], strides = [1, 1]} : vector<2x32xf32> to vector<2x8xf32>
    %670 = vector.extract_strided_slice %662 {offsets = [0, 0], sizes = [2, 8], strides = [1, 1]} : vector<2x32xf32> to vector<2x8xf32>
    %671 = arith.mulf %669, %670 : vector<2x8xf32>
    %cst_136 = arith.constant dense<0.000000e+00> : vector<2xf32>
    %672 = vector.multi_reduction <add>, %671, %cst_136 [1] : vector<2x8xf32> to vector<2xf32>
    %673 = vector.shape_cast %672 : vector<2xf32> to vector<2x1xf32>
    %674 = tpu.concatenate %668, %673 in 1 : vector<2x1xf32>, vector<2x1xf32> -> vector<2x2xf32>
    %675 = vector.broadcast %1 : f32 to vector<2x2xf32>
    %676 = arith.mulf %674, %675 : vector<2x2xf32>
    %cst_137 = arith.constant dense<0xFF800000> : vector<2xf32>
    %677 = vector.multi_reduction <maximumf>, %676, %cst_137 [1] : vector<2x2xf32> to vector<2xf32>
    %678 = vector.shape_cast %677 : vector<2xf32> to vector<2x1xf32>
    %679 = vector.broadcast %678 : vector<2x1xf32> to vector<2x2xf32>
    %680 = arith.subf %676, %679 : vector<2x2xf32>
    %681 = math.exp %680 : vector<2x2xf32>
    %cst_138 = arith.constant dense<0.000000e+00> : vector<2xf32>
    %682 = vector.multi_reduction <add>, %681, %cst_138 [1] : vector<2x2xf32> to vector<2xf32>
    %683 = vector.shape_cast %682 : vector<2xf32> to vector<2x1xf32>
    %684 = tpu.reciprocal %683 {approx = true} : vector<2x1xf32> -> vector<2x1xf32>
    %685 = vector.broadcast %684 : vector<2x1xf32> to vector<2x2xf32>
    %686 = arith.mulf %681, %685 : vector<2x2xf32>
    %cst_139 = arith.constant 0.000000e+00 : f32
    %687 = vector.broadcast %cst_139 : f32 to vector<2x8xf32>
    %688 = vector.extract_strided_slice %686 {offsets = [0, 0], sizes = [2, 1], strides = [1, 1]} : vector<2x2xf32> to vector<2x1xf32>
    %689 = vector.extract_strided_slice %539 {offsets = [0, 0], sizes = [2, 8], strides = [1, 1]} : vector<2x32xf32> to vector<2x8xf32>
    %690 = vector.broadcast %688 : vector<2x1xf32> to vector<2x8xf32>
    %691 = arith.mulf %690, %689 : vector<2x8xf32>
    %692 = arith.addf %687, %691 : vector<2x8xf32>
    %693 = vector.extract_strided_slice %686 {offsets = [0, 1], sizes = [2, 1], strides = [1, 1]} : vector<2x2xf32> to vector<2x1xf32>
    %694 = vector.extract_strided_slice %662 {offsets = [0, 0], sizes = [2, 8], strides = [1, 1]} : vector<2x32xf32> to vector<2x8xf32>
    %695 = vector.broadcast %693 : vector<2x1xf32> to vector<2x8xf32>
    %696 = arith.mulf %695, %694 : vector<2x8xf32>
    %697 = arith.addf %692, %696 : vector<2x8xf32>
    %698 = vector.extract_strided_slice %414 {offsets = [0, 0], sizes = [2, 8], strides = [1, 1]} : vector<2x32xf32> to vector<2x8xf32>
    %699 = arith.addf %698, %697 : vector<2x8xf32>
    %700 = vector.extract_strided_slice %663 {offsets = [0, 8], sizes = [2, 8], strides = [1, 1]} : vector<2x32xf32> to vector<2x8xf32>
    %701 = vector.extract_strided_slice %539 {offsets = [0, 8], sizes = [2, 8], strides = [1, 1]} : vector<2x32xf32> to vector<2x8xf32>
    %702 = arith.mulf %700, %701 : vector<2x8xf32>
    %cst_140 = arith.constant dense<0.000000e+00> : vector<2xf32>
    %703 = vector.multi_reduction <add>, %702, %cst_140 [1] : vector<2x8xf32> to vector<2xf32>
    %704 = vector.shape_cast %703 : vector<2xf32> to vector<2x1xf32>
    %705 = vector.extract_strided_slice %663 {offsets = [0, 8], sizes = [2, 8], strides = [1, 1]} : vector<2x32xf32> to vector<2x8xf32>
    %706 = vector.extract_strided_slice %662 {offsets = [0, 8], sizes = [2, 8], strides = [1, 1]} : vector<2x32xf32> to vector<2x8xf32>
    %707 = arith.mulf %705, %706 : vector<2x8xf32>
    %cst_141 = arith.constant dense<0.000000e+00> : vector<2xf32>
    %708 = vector.multi_reduction <add>, %707, %cst_141 [1] : vector<2x8xf32> to vector<2xf32>
    %709 = vector.shape_cast %708 : vector<2xf32> to vector<2x1xf32>
    %710 = tpu.concatenate %704, %709 in 1 : vector<2x1xf32>, vector<2x1xf32> -> vector<2x2xf32>
    %711 = vector.broadcast %1 : f32 to vector<2x2xf32>
    %712 = arith.mulf %710, %711 : vector<2x2xf32>
    %cst_142 = arith.constant dense<0xFF800000> : vector<2xf32>
    %713 = vector.multi_reduction <maximumf>, %712, %cst_142 [1] : vector<2x2xf32> to vector<2xf32>
    %714 = vector.shape_cast %713 : vector<2xf32> to vector<2x1xf32>
    %715 = vector.broadcast %714 : vector<2x1xf32> to vector<2x2xf32>
    %716 = arith.subf %712, %715 : vector<2x2xf32>
    %717 = math.exp %716 : vector<2x2xf32>
    %cst_143 = arith.constant dense<0.000000e+00> : vector<2xf32>
    %718 = vector.multi_reduction <add>, %717, %cst_143 [1] : vector<2x2xf32> to vector<2xf32>
    %719 = vector.shape_cast %718 : vector<2xf32> to vector<2x1xf32>
    %720 = tpu.reciprocal %719 {approx = true} : vector<2x1xf32> -> vector<2x1xf32>
    %721 = vector.broadcast %720 : vector<2x1xf32> to vector<2x2xf32>
    %722 = arith.mulf %717, %721 : vector<2x2xf32>
    %cst_144 = arith.constant 0.000000e+00 : f32
    %723 = vector.broadcast %cst_144 : f32 to vector<2x8xf32>
    %724 = vector.extract_strided_slice %722 {offsets = [0, 0], sizes = [2, 1], strides = [1, 1]} : vector<2x2xf32> to vector<2x1xf32>
    %725 = vector.extract_strided_slice %539 {offsets = [0, 8], sizes = [2, 8], strides = [1, 1]} : vector<2x32xf32> to vector<2x8xf32>
    %726 = vector.broadcast %724 : vector<2x1xf32> to vector<2x8xf32>
    %727 = arith.mulf %726, %725 : vector<2x8xf32>
    %728 = arith.addf %723, %727 : vector<2x8xf32>
    %729 = vector.extract_strided_slice %722 {offsets = [0, 1], sizes = [2, 1], strides = [1, 1]} : vector<2x2xf32> to vector<2x1xf32>
    %730 = vector.extract_strided_slice %662 {offsets = [0, 8], sizes = [2, 8], strides = [1, 1]} : vector<2x32xf32> to vector<2x8xf32>
    %731 = vector.broadcast %729 : vector<2x1xf32> to vector<2x8xf32>
    %732 = arith.mulf %731, %730 : vector<2x8xf32>
    %733 = arith.addf %728, %732 : vector<2x8xf32>
    %734 = vector.extract_strided_slice %414 {offsets = [0, 8], sizes = [2, 8], strides = [1, 1]} : vector<2x32xf32> to vector<2x8xf32>
    %735 = arith.addf %734, %733 : vector<2x8xf32>
    %736 = vector.extract_strided_slice %663 {offsets = [0, 16], sizes = [2, 8], strides = [1, 1]} : vector<2x32xf32> to vector<2x8xf32>
    %737 = vector.extract_strided_slice %539 {offsets = [0, 16], sizes = [2, 8], strides = [1, 1]} : vector<2x32xf32> to vector<2x8xf32>
    %738 = arith.mulf %736, %737 : vector<2x8xf32>
    %cst_145 = arith.constant dense<0.000000e+00> : vector<2xf32>
    %739 = vector.multi_reduction <add>, %738, %cst_145 [1] : vector<2x8xf32> to vector<2xf32>
    %740 = vector.shape_cast %739 : vector<2xf32> to vector<2x1xf32>
    %741 = vector.extract_strided_slice %663 {offsets = [0, 16], sizes = [2, 8], strides = [1, 1]} : vector<2x32xf32> to vector<2x8xf32>
    %742 = vector.extract_strided_slice %662 {offsets = [0, 16], sizes = [2, 8], strides = [1, 1]} : vector<2x32xf32> to vector<2x8xf32>
    %743 = arith.mulf %741, %742 : vector<2x8xf32>
    %cst_146 = arith.constant dense<0.000000e+00> : vector<2xf32>
    %744 = vector.multi_reduction <add>, %743, %cst_146 [1] : vector<2x8xf32> to vector<2xf32>
    %745 = vector.shape_cast %744 : vector<2xf32> to vector<2x1xf32>
    %746 = tpu.concatenate %740, %745 in 1 : vector<2x1xf32>, vector<2x1xf32> -> vector<2x2xf32>
    %747 = vector.broadcast %1 : f32 to vector<2x2xf32>
    %748 = arith.mulf %746, %747 : vector<2x2xf32>
    %cst_147 = arith.constant dense<0xFF800000> : vector<2xf32>
    %749 = vector.multi_reduction <maximumf>, %748, %cst_147 [1] : vector<2x2xf32> to vector<2xf32>
    %750 = vector.shape_cast %749 : vector<2xf32> to vector<2x1xf32>
    %751 = vector.broadcast %750 : vector<2x1xf32> to vector<2x2xf32>
    %752 = arith.subf %748, %751 : vector<2x2xf32>
    %753 = math.exp %752 : vector<2x2xf32>
    %cst_148 = arith.constant dense<0.000000e+00> : vector<2xf32>
    %754 = vector.multi_reduction <add>, %753, %cst_148 [1] : vector<2x2xf32> to vector<2xf32>
    %755 = vector.shape_cast %754 : vector<2xf32> to vector<2x1xf32>
    %756 = tpu.reciprocal %755 {approx = true} : vector<2x1xf32> -> vector<2x1xf32>
    %757 = vector.broadcast %756 : vector<2x1xf32> to vector<2x2xf32>
    %758 = arith.mulf %753, %757 : vector<2x2xf32>
    %cst_149 = arith.constant 0.000000e+00 : f32
    %759 = vector.broadcast %cst_149 : f32 to vector<2x8xf32>
    %760 = vector.extract_strided_slice %758 {offsets = [0, 0], sizes = [2, 1], strides = [1, 1]} : vector<2x2xf32> to vector<2x1xf32>
    %761 = vector.extract_strided_slice %539 {offsets = [0, 16], sizes = [2, 8], strides = [1, 1]} : vector<2x32xf32> to vector<2x8xf32>
    %762 = vector.broadcast %760 : vector<2x1xf32> to vector<2x8xf32>
    %763 = arith.mulf %762, %761 : vector<2x8xf32>
    %764 = arith.addf %759, %763 : vector<2x8xf32>
    %765 = vector.extract_strided_slice %758 {offsets = [0, 1], sizes = [2, 1], strides = [1, 1]} : vector<2x2xf32> to vector<2x1xf32>
    %766 = vector.extract_strided_slice %662 {offsets = [0, 16], sizes = [2, 8], strides = [1, 1]} : vector<2x32xf32> to vector<2x8xf32>
    %767 = vector.broadcast %765 : vector<2x1xf32> to vector<2x8xf32>
    %768 = arith.mulf %767, %766 : vector<2x8xf32>
    %769 = arith.addf %764, %768 : vector<2x8xf32>
    %770 = vector.extract_strided_slice %414 {offsets = [0, 16], sizes = [2, 8], strides = [1, 1]} : vector<2x32xf32> to vector<2x8xf32>
    %771 = arith.addf %770, %769 : vector<2x8xf32>
    %772 = vector.extract_strided_slice %663 {offsets = [0, 24], sizes = [2, 8], strides = [1, 1]} : vector<2x32xf32> to vector<2x8xf32>
    %773 = vector.extract_strided_slice %539 {offsets = [0, 24], sizes = [2, 8], strides = [1, 1]} : vector<2x32xf32> to vector<2x8xf32>
    %774 = arith.mulf %772, %773 : vector<2x8xf32>
    %cst_150 = arith.constant dense<0.000000e+00> : vector<2xf32>
    %775 = vector.multi_reduction <add>, %774, %cst_150 [1] : vector<2x8xf32> to vector<2xf32>
    %776 = vector.shape_cast %775 : vector<2xf32> to vector<2x1xf32>
    %777 = vector.extract_strided_slice %663 {offsets = [0, 24], sizes = [2, 8], strides = [1, 1]} : vector<2x32xf32> to vector<2x8xf32>
    %778 = vector.extract_strided_slice %662 {offsets = [0, 24], sizes = [2, 8], strides = [1, 1]} : vector<2x32xf32> to vector<2x8xf32>
    %779 = arith.mulf %777, %778 : vector<2x8xf32>
    %cst_151 = arith.constant dense<0.000000e+00> : vector<2xf32>
    %780 = vector.multi_reduction <add>, %779, %cst_151 [1] : vector<2x8xf32> to vector<2xf32>
    %781 = vector.shape_cast %780 : vector<2xf32> to vector<2x1xf32>
    %782 = tpu.concatenate %776, %781 in 1 : vector<2x1xf32>, vector<2x1xf32> -> vector<2x2xf32>
    %783 = vector.broadcast %1 : f32 to vector<2x2xf32>
    %784 = arith.mulf %782, %783 : vector<2x2xf32>
    %cst_152 = arith.constant dense<0xFF800000> : vector<2xf32>
    %785 = vector.multi_reduction <maximumf>, %784, %cst_152 [1] : vector<2x2xf32> to vector<2xf32>
    %786 = vector.shape_cast %785 : vector<2xf32> to vector<2x1xf32>
    %787 = vector.broadcast %786 : vector<2x1xf32> to vector<2x2xf32>
    %788 = arith.subf %784, %787 : vector<2x2xf32>
    %789 = math.exp %788 : vector<2x2xf32>
    %cst_153 = arith.constant dense<0.000000e+00> : vector<2xf32>
    %790 = vector.multi_reduction <add>, %789, %cst_153 [1] : vector<2x2xf32> to vector<2xf32>
    %791 = vector.shape_cast %790 : vector<2xf32> to vector<2x1xf32>
    %792 = tpu.reciprocal %791 {approx = true} : vector<2x1xf32> -> vector<2x1xf32>
    %793 = vector.broadcast %792 : vector<2x1xf32> to vector<2x2xf32>
    %794 = arith.mulf %789, %793 : vector<2x2xf32>
    %cst_154 = arith.constant 0.000000e+00 : f32
    %795 = vector.broadcast %cst_154 : f32 to vector<2x8xf32>
    %796 = vector.extract_strided_slice %794 {offsets = [0, 0], sizes = [2, 1], strides = [1, 1]} : vector<2x2xf32> to vector<2x1xf32>
    %797 = vector.extract_strided_slice %539 {offsets = [0, 24], sizes = [2, 8], strides = [1, 1]} : vector<2x32xf32> to vector<2x8xf32>
    %798 = vector.broadcast %796 : vector<2x1xf32> to vector<2x8xf32>
    %799 = arith.mulf %798, %797 : vector<2x8xf32>
    %800 = arith.addf %795, %799 : vector<2x8xf32>
    %801 = vector.extract_strided_slice %794 {offsets = [0, 1], sizes = [2, 1], strides = [1, 1]} : vector<2x2xf32> to vector<2x1xf32>
    %802 = vector.extract_strided_slice %662 {offsets = [0, 24], sizes = [2, 8], strides = [1, 1]} : vector<2x32xf32> to vector<2x8xf32>
    %803 = vector.broadcast %801 : vector<2x1xf32> to vector<2x8xf32>
    %804 = arith.mulf %803, %802 : vector<2x8xf32>
    %805 = arith.addf %800, %804 : vector<2x8xf32>
    %806 = vector.extract_strided_slice %414 {offsets = [0, 24], sizes = [2, 8], strides = [1, 1]} : vector<2x32xf32> to vector<2x8xf32>
    %807 = arith.addf %806, %805 : vector<2x8xf32>
    %808 = tpu.concatenate %699, %735, %771, %807 in 1 : vector<2x8xf32>, vector<2x8xf32>, vector<2x8xf32>, vector<2x8xf32> -> vector<2x32xf32>
    %c1 = arith.constant 1 : index
    %c0_155 = arith.constant 0 : index
    %c0_156 = arith.constant 0 : index
    %809 = vector.load %arg0[%c1, %c0_155, %c0_156] : memref<2x2x32xf32, #tpu.memory_space<vmem>>, vector<1x2x32xf32>
    %810 = vector.shape_cast %809 : vector<1x2x32xf32> to vector<2x32xf32>
    %c1_157 = arith.constant 1 : index
    %c0_158 = arith.constant 0 : index
    %c0_159 = arith.constant 0 : index
    %c0_160 = arith.constant 0 : index
    %c0_161 = arith.constant 0 : index
    %811 = vector.load %arg1[%c1_157, %c0_158, %c0_159, %c0_160, %c0_161] : memref<2x2x2x8x32xf32, #tpu.memory_space<vmem>>, vector<1x2x2x8x32xf32>
    %812 = vector.shape_cast %811 : vector<1x2x2x8x32xf32> to vector<2x2x8x32xf32>
    %813 = vector.shape_cast %812 : vector<2x2x8x32xf32> to vector<32x32xf32>
    %c1_162 = arith.constant 1 : index
    %c0_163 = arith.constant 0 : index
    %c0_164 = arith.constant 0 : index
    %814 = vector.load %arg2[%c1_162, %c0_163, %c0_164] : memref<2x32x32xf32, #tpu.memory_space<vmem>>, vector<1x32x32xf32>
    %815 = vector.shape_cast %814 : vector<1x32x32xf32> to vector<32x32xf32>
    %cst_165 = arith.constant dense<0.000000e+00> : vector<32x32xf32>
    %816 = tpu.matmul %813, %815, %cst_165 {dimension_numbers = #tpu.dot_dimension_numbers<[1], [0], [0], [1], [0, 0, 1, 1], [], []>} : vector<32x32xf32>, vector<32x32xf32>, vector<32x32xf32> -> vector<32x32xf32>
    %817 = vector.shape_cast %816 : vector<32x32xf32> to vector<2x2x8x32xf32>
    %c1_166 = arith.constant 1 : index
    %c0_167 = arith.constant 0 : index
    %c0_168 = arith.constant 0 : index
    %818 = vector.load %arg3[%c1_166, %c0_167, %c0_168] : memref<2x32x32xf32, #tpu.memory_space<vmem>>, vector<1x32x32xf32>
    %819 = vector.shape_cast %818 : vector<1x32x32xf32> to vector<32x32xf32>
    %cst_169 = arith.constant 1.000000e+00 : f32
    %820 = vector.broadcast %cst_169 : f32 to vector<2x4xf32>
    %cst_170 = arith.constant 1.000000e+00 : f32
    %821 = vector.broadcast %cst_170 : f32 to vector<2x4xf32>
    %822 = vector.extract_strided_slice %817 {offsets = [0, 0, 0, 0], sizes = [2, 1, 8, 32], strides = [1, 1, 1, 1]} : vector<2x2x8x32xf32> to vector<2x1x8x32xf32>
    %823 = vector.shape_cast %822 : vector<2x1x8x32xf32> to vector<2x8x32xf32>
    %824 = vector.extract_strided_slice %823 {offsets = [0, 0, 0], sizes = [2, 8, 8], strides = [1, 1, 1]} : vector<2x8x32xf32> to vector<2x8x8xf32>
    %825 = vector.extract_strided_slice %810 {offsets = [0, 0], sizes = [2, 8], strides = [1, 1]} : vector<2x32xf32> to vector<2x8xf32>
    %826 = vector.shape_cast %825 : vector<2x8xf32> to vector<2x1x8xf32>
    %827 = vector.broadcast %826 : vector<2x1x8xf32> to vector<2x8x8xf32>
    %828 = arith.mulf %824, %827 : vector<2x8x8xf32>
    %cst_171 = arith.constant dense<0.000000e+00> : vector<2x8xf32>
    %829 = vector.multi_reduction <add>, %828, %cst_171 [2] : vector<2x8x8xf32> to vector<2x8xf32>
    %830 = vector.broadcast %1 : f32 to vector<2x8xf32>
    %831 = arith.mulf %829, %830 : vector<2x8xf32>
    %cst_172 = arith.constant 0.000000e+00 : f32
    %832 = vector.broadcast %cst_172 : f32 to vector<2x8xf32>
    %833 = arith.cmpf ogt, %831, %832 : vector<2x8xf32>
    %cst_173 = arith.constant 2.000000e-01 : f32
    %834 = vector.broadcast %cst_173 : f32 to vector<2x8xf32>
    %835 = arith.mulf %834, %831 : vector<2x8xf32>
    %836 = arith.select %833, %831, %835 : vector<2x8xi1>, vector<2x8xf32>
    %837 = vector.extract_strided_slice %820 {offsets = [0, 0], sizes = [2, 1], strides = [1, 1]} : vector<2x4xf32> to vector<2x1xf32>
    %838 = vector.broadcast %837 : vector<2x1xf32> to vector<2x8xf32>
    %839 = arith.mulf %836, %838 : vector<2x8xf32>
    %cst_174 = arith.constant dense<0xFF800000> : vector<2xf32>
    %840 = vector.multi_reduction <maximumf>, %839, %cst_174 [1] : vector<2x8xf32> to vector<2xf32>
    %841 = vector.shape_cast %840 : vector<2xf32> to vector<2x1xf32>
    %842 = vector.broadcast %841 : vector<2x1xf32> to vector<2x8xf32>
    %843 = arith.subf %839, %842 : vector<2x8xf32>
    %844 = math.exp %843 : vector<2x8xf32>
    %cst_175 = arith.constant dense<0.000000e+00> : vector<2xf32>
    %845 = vector.multi_reduction <add>, %844, %cst_175 [1] : vector<2x8xf32> to vector<2xf32>
    %846 = vector.shape_cast %845 : vector<2xf32> to vector<2x1xf32>
    %847 = tpu.reciprocal %846 {approx = true} : vector<2x1xf32> -> vector<2x1xf32>
    %848 = vector.broadcast %847 : vector<2x1xf32> to vector<2x8xf32>
    %849 = arith.mulf %844, %848 : vector<2x8xf32>
    %850 = vector.shape_cast %849 : vector<2x8xf32> to vector<2x8x1xf32>
    %851 = vector.broadcast %850 : vector<2x8x1xf32> to vector<2x8x8xf32>
    %852 = arith.mulf %851, %824 : vector<2x8x8xf32>
    %cst_176 = arith.constant dense<0.000000e+00> : vector<2x8xf32>
    %853 = vector.multi_reduction <add>, %852, %cst_176 [1] : vector<2x8x8xf32> to vector<2x8xf32>
    %854 = vector.extract_strided_slice %823 {offsets = [0, 0, 8], sizes = [2, 8, 8], strides = [1, 1, 1]} : vector<2x8x32xf32> to vector<2x8x8xf32>
    %855 = vector.extract_strided_slice %810 {offsets = [0, 8], sizes = [2, 8], strides = [1, 1]} : vector<2x32xf32> to vector<2x8xf32>
    %856 = vector.shape_cast %855 : vector<2x8xf32> to vector<2x1x8xf32>
    %857 = vector.broadcast %856 : vector<2x1x8xf32> to vector<2x8x8xf32>
    %858 = arith.mulf %854, %857 : vector<2x8x8xf32>
    %cst_177 = arith.constant dense<0.000000e+00> : vector<2x8xf32>
    %859 = vector.multi_reduction <add>, %858, %cst_177 [2] : vector<2x8x8xf32> to vector<2x8xf32>
    %860 = vector.broadcast %1 : f32 to vector<2x8xf32>
    %861 = arith.mulf %859, %860 : vector<2x8xf32>
    %cst_178 = arith.constant 0.000000e+00 : f32
    %862 = vector.broadcast %cst_178 : f32 to vector<2x8xf32>
    %863 = arith.cmpf ogt, %861, %862 : vector<2x8xf32>
    %cst_179 = arith.constant 2.000000e-01 : f32
    %864 = vector.broadcast %cst_179 : f32 to vector<2x8xf32>
    %865 = arith.mulf %864, %861 : vector<2x8xf32>
    %866 = arith.select %863, %861, %865 : vector<2x8xi1>, vector<2x8xf32>
    %867 = vector.extract_strided_slice %820 {offsets = [0, 1], sizes = [2, 1], strides = [1, 1]} : vector<2x4xf32> to vector<2x1xf32>
    %868 = vector.broadcast %867 : vector<2x1xf32> to vector<2x8xf32>
    %869 = arith.mulf %866, %868 : vector<2x8xf32>
    %cst_180 = arith.constant dense<0xFF800000> : vector<2xf32>
    %870 = vector.multi_reduction <maximumf>, %869, %cst_180 [1] : vector<2x8xf32> to vector<2xf32>
    %871 = vector.shape_cast %870 : vector<2xf32> to vector<2x1xf32>
    %872 = vector.broadcast %871 : vector<2x1xf32> to vector<2x8xf32>
    %873 = arith.subf %869, %872 : vector<2x8xf32>
    %874 = math.exp %873 : vector<2x8xf32>
    %cst_181 = arith.constant dense<0.000000e+00> : vector<2xf32>
    %875 = vector.multi_reduction <add>, %874, %cst_181 [1] : vector<2x8xf32> to vector<2xf32>
    %876 = vector.shape_cast %875 : vector<2xf32> to vector<2x1xf32>
    %877 = tpu.reciprocal %876 {approx = true} : vector<2x1xf32> -> vector<2x1xf32>
    %878 = vector.broadcast %877 : vector<2x1xf32> to vector<2x8xf32>
    %879 = arith.mulf %874, %878 : vector<2x8xf32>
    %880 = vector.shape_cast %879 : vector<2x8xf32> to vector<2x8x1xf32>
    %881 = vector.broadcast %880 : vector<2x8x1xf32> to vector<2x8x8xf32>
    %882 = arith.mulf %881, %854 : vector<2x8x8xf32>
    %cst_182 = arith.constant dense<0.000000e+00> : vector<2x8xf32>
    %883 = vector.multi_reduction <add>, %882, %cst_182 [1] : vector<2x8x8xf32> to vector<2x8xf32>
    %884 = vector.extract_strided_slice %823 {offsets = [0, 0, 16], sizes = [2, 8, 8], strides = [1, 1, 1]} : vector<2x8x32xf32> to vector<2x8x8xf32>
    %885 = vector.extract_strided_slice %810 {offsets = [0, 16], sizes = [2, 8], strides = [1, 1]} : vector<2x32xf32> to vector<2x8xf32>
    %886 = vector.shape_cast %885 : vector<2x8xf32> to vector<2x1x8xf32>
    %887 = vector.broadcast %886 : vector<2x1x8xf32> to vector<2x8x8xf32>
    %888 = arith.mulf %884, %887 : vector<2x8x8xf32>
    %cst_183 = arith.constant dense<0.000000e+00> : vector<2x8xf32>
    %889 = vector.multi_reduction <add>, %888, %cst_183 [2] : vector<2x8x8xf32> to vector<2x8xf32>
    %890 = vector.broadcast %1 : f32 to vector<2x8xf32>
    %891 = arith.mulf %889, %890 : vector<2x8xf32>
    %cst_184 = arith.constant 0.000000e+00 : f32
    %892 = vector.broadcast %cst_184 : f32 to vector<2x8xf32>
    %893 = arith.cmpf ogt, %891, %892 : vector<2x8xf32>
    %cst_185 = arith.constant 2.000000e-01 : f32
    %894 = vector.broadcast %cst_185 : f32 to vector<2x8xf32>
    %895 = arith.mulf %894, %891 : vector<2x8xf32>
    %896 = arith.select %893, %891, %895 : vector<2x8xi1>, vector<2x8xf32>
    %897 = vector.extract_strided_slice %820 {offsets = [0, 2], sizes = [2, 1], strides = [1, 1]} : vector<2x4xf32> to vector<2x1xf32>
    %898 = vector.broadcast %897 : vector<2x1xf32> to vector<2x8xf32>
    %899 = arith.mulf %896, %898 : vector<2x8xf32>
    %cst_186 = arith.constant dense<0xFF800000> : vector<2xf32>
    %900 = vector.multi_reduction <maximumf>, %899, %cst_186 [1] : vector<2x8xf32> to vector<2xf32>
    %901 = vector.shape_cast %900 : vector<2xf32> to vector<2x1xf32>
    %902 = vector.broadcast %901 : vector<2x1xf32> to vector<2x8xf32>
    %903 = arith.subf %899, %902 : vector<2x8xf32>
    %904 = math.exp %903 : vector<2x8xf32>
    %cst_187 = arith.constant dense<0.000000e+00> : vector<2xf32>
    %905 = vector.multi_reduction <add>, %904, %cst_187 [1] : vector<2x8xf32> to vector<2xf32>
    %906 = vector.shape_cast %905 : vector<2xf32> to vector<2x1xf32>
    %907 = tpu.reciprocal %906 {approx = true} : vector<2x1xf32> -> vector<2x1xf32>
    %908 = vector.broadcast %907 : vector<2x1xf32> to vector<2x8xf32>
    %909 = arith.mulf %904, %908 : vector<2x8xf32>
    %910 = vector.shape_cast %909 : vector<2x8xf32> to vector<2x8x1xf32>
    %911 = vector.broadcast %910 : vector<2x8x1xf32> to vector<2x8x8xf32>
    %912 = arith.mulf %911, %884 : vector<2x8x8xf32>
    %cst_188 = arith.constant dense<0.000000e+00> : vector<2x8xf32>
    %913 = vector.multi_reduction <add>, %912, %cst_188 [1] : vector<2x8x8xf32> to vector<2x8xf32>
    %914 = vector.extract_strided_slice %823 {offsets = [0, 0, 24], sizes = [2, 8, 8], strides = [1, 1, 1]} : vector<2x8x32xf32> to vector<2x8x8xf32>
    %915 = vector.extract_strided_slice %810 {offsets = [0, 24], sizes = [2, 8], strides = [1, 1]} : vector<2x32xf32> to vector<2x8xf32>
    %916 = vector.shape_cast %915 : vector<2x8xf32> to vector<2x1x8xf32>
    %917 = vector.broadcast %916 : vector<2x1x8xf32> to vector<2x8x8xf32>
    %918 = arith.mulf %914, %917 : vector<2x8x8xf32>
    %cst_189 = arith.constant dense<0.000000e+00> : vector<2x8xf32>
    %919 = vector.multi_reduction <add>, %918, %cst_189 [2] : vector<2x8x8xf32> to vector<2x8xf32>
    %920 = vector.broadcast %1 : f32 to vector<2x8xf32>
    %921 = arith.mulf %919, %920 : vector<2x8xf32>
    %cst_190 = arith.constant 0.000000e+00 : f32
    %922 = vector.broadcast %cst_190 : f32 to vector<2x8xf32>
    %923 = arith.cmpf ogt, %921, %922 : vector<2x8xf32>
    %cst_191 = arith.constant 2.000000e-01 : f32
    %924 = vector.broadcast %cst_191 : f32 to vector<2x8xf32>
    %925 = arith.mulf %924, %921 : vector<2x8xf32>
    %926 = arith.select %923, %921, %925 : vector<2x8xi1>, vector<2x8xf32>
    %927 = vector.extract_strided_slice %820 {offsets = [0, 3], sizes = [2, 1], strides = [1, 1]} : vector<2x4xf32> to vector<2x1xf32>
    %928 = vector.broadcast %927 : vector<2x1xf32> to vector<2x8xf32>
    %929 = arith.mulf %926, %928 : vector<2x8xf32>
    %cst_192 = arith.constant dense<0xFF800000> : vector<2xf32>
    %930 = vector.multi_reduction <maximumf>, %929, %cst_192 [1] : vector<2x8xf32> to vector<2xf32>
    %931 = vector.shape_cast %930 : vector<2xf32> to vector<2x1xf32>
    %932 = vector.broadcast %931 : vector<2x1xf32> to vector<2x8xf32>
    %933 = arith.subf %929, %932 : vector<2x8xf32>
    %934 = math.exp %933 : vector<2x8xf32>
    %cst_193 = arith.constant dense<0.000000e+00> : vector<2xf32>
    %935 = vector.multi_reduction <add>, %934, %cst_193 [1] : vector<2x8xf32> to vector<2xf32>
    %936 = vector.shape_cast %935 : vector<2xf32> to vector<2x1xf32>
    %937 = tpu.reciprocal %936 {approx = true} : vector<2x1xf32> -> vector<2x1xf32>
    %938 = vector.broadcast %937 : vector<2x1xf32> to vector<2x8xf32>
    %939 = arith.mulf %934, %938 : vector<2x8xf32>
    %940 = vector.shape_cast %939 : vector<2x8xf32> to vector<2x8x1xf32>
    %941 = vector.broadcast %940 : vector<2x8x1xf32> to vector<2x8x8xf32>
    %942 = arith.mulf %941, %914 : vector<2x8x8xf32>
    %cst_194 = arith.constant dense<0.000000e+00> : vector<2x8xf32>
    %943 = vector.multi_reduction <add>, %942, %cst_194 [1] : vector<2x8x8xf32> to vector<2x8xf32>
    %944 = tpu.concatenate %853, %883, %913, %943 in 1 : vector<2x8xf32>, vector<2x8xf32>, vector<2x8xf32>, vector<2x8xf32> -> vector<2x32xf32>
    %945 = vector.extract_strided_slice %817 {offsets = [0, 1, 0, 0], sizes = [2, 1, 8, 32], strides = [1, 1, 1, 1]} : vector<2x2x8x32xf32> to vector<2x1x8x32xf32>
    %946 = vector.shape_cast %945 : vector<2x1x8x32xf32> to vector<2x8x32xf32>
    %947 = vector.extract_strided_slice %946 {offsets = [0, 0, 0], sizes = [2, 8, 8], strides = [1, 1, 1]} : vector<2x8x32xf32> to vector<2x8x8xf32>
    %948 = vector.extract_strided_slice %810 {offsets = [0, 0], sizes = [2, 8], strides = [1, 1]} : vector<2x32xf32> to vector<2x8xf32>
    %949 = vector.shape_cast %948 : vector<2x8xf32> to vector<2x1x8xf32>
    %950 = vector.broadcast %949 : vector<2x1x8xf32> to vector<2x8x8xf32>
    %951 = arith.mulf %947, %950 : vector<2x8x8xf32>
    %cst_195 = arith.constant dense<0.000000e+00> : vector<2x8xf32>
    %952 = vector.multi_reduction <add>, %951, %cst_195 [2] : vector<2x8x8xf32> to vector<2x8xf32>
    %953 = vector.broadcast %1 : f32 to vector<2x8xf32>
    %954 = arith.mulf %952, %953 : vector<2x8xf32>
    %cst_196 = arith.constant 0.000000e+00 : f32
    %955 = vector.broadcast %cst_196 : f32 to vector<2x8xf32>
    %956 = arith.cmpf ogt, %954, %955 : vector<2x8xf32>
    %cst_197 = arith.constant 2.000000e-01 : f32
    %957 = vector.broadcast %cst_197 : f32 to vector<2x8xf32>
    %958 = arith.mulf %957, %954 : vector<2x8xf32>
    %959 = arith.select %956, %954, %958 : vector<2x8xi1>, vector<2x8xf32>
    %960 = vector.extract_strided_slice %821 {offsets = [0, 0], sizes = [2, 1], strides = [1, 1]} : vector<2x4xf32> to vector<2x1xf32>
    %961 = vector.broadcast %960 : vector<2x1xf32> to vector<2x8xf32>
    %962 = arith.mulf %959, %961 : vector<2x8xf32>
    %cst_198 = arith.constant dense<0xFF800000> : vector<2xf32>
    %963 = vector.multi_reduction <maximumf>, %962, %cst_198 [1] : vector<2x8xf32> to vector<2xf32>
    %964 = vector.shape_cast %963 : vector<2xf32> to vector<2x1xf32>
    %965 = vector.broadcast %964 : vector<2x1xf32> to vector<2x8xf32>
    %966 = arith.subf %962, %965 : vector<2x8xf32>
    %967 = math.exp %966 : vector<2x8xf32>
    %cst_199 = arith.constant dense<0.000000e+00> : vector<2xf32>
    %968 = vector.multi_reduction <add>, %967, %cst_199 [1] : vector<2x8xf32> to vector<2xf32>
    %969 = vector.shape_cast %968 : vector<2xf32> to vector<2x1xf32>
    %970 = tpu.reciprocal %969 {approx = true} : vector<2x1xf32> -> vector<2x1xf32>
    %971 = vector.broadcast %970 : vector<2x1xf32> to vector<2x8xf32>
    %972 = arith.mulf %967, %971 : vector<2x8xf32>
    %973 = vector.shape_cast %972 : vector<2x8xf32> to vector<2x8x1xf32>
    %974 = vector.broadcast %973 : vector<2x8x1xf32> to vector<2x8x8xf32>
    %975 = arith.mulf %974, %947 : vector<2x8x8xf32>
    %cst_200 = arith.constant dense<0.000000e+00> : vector<2x8xf32>
    %976 = vector.multi_reduction <add>, %975, %cst_200 [1] : vector<2x8x8xf32> to vector<2x8xf32>
    %977 = vector.extract_strided_slice %946 {offsets = [0, 0, 8], sizes = [2, 8, 8], strides = [1, 1, 1]} : vector<2x8x32xf32> to vector<2x8x8xf32>
    %978 = vector.extract_strided_slice %810 {offsets = [0, 8], sizes = [2, 8], strides = [1, 1]} : vector<2x32xf32> to vector<2x8xf32>
    %979 = vector.shape_cast %978 : vector<2x8xf32> to vector<2x1x8xf32>
    %980 = vector.broadcast %979 : vector<2x1x8xf32> to vector<2x8x8xf32>
    %981 = arith.mulf %977, %980 : vector<2x8x8xf32>
    %cst_201 = arith.constant dense<0.000000e+00> : vector<2x8xf32>
    %982 = vector.multi_reduction <add>, %981, %cst_201 [2] : vector<2x8x8xf32> to vector<2x8xf32>
    %983 = vector.broadcast %1 : f32 to vector<2x8xf32>
    %984 = arith.mulf %982, %983 : vector<2x8xf32>
    %cst_202 = arith.constant 0.000000e+00 : f32
    %985 = vector.broadcast %cst_202 : f32 to vector<2x8xf32>
    %986 = arith.cmpf ogt, %984, %985 : vector<2x8xf32>
    %cst_203 = arith.constant 2.000000e-01 : f32
    %987 = vector.broadcast %cst_203 : f32 to vector<2x8xf32>
    %988 = arith.mulf %987, %984 : vector<2x8xf32>
    %989 = arith.select %986, %984, %988 : vector<2x8xi1>, vector<2x8xf32>
    %990 = vector.extract_strided_slice %821 {offsets = [0, 1], sizes = [2, 1], strides = [1, 1]} : vector<2x4xf32> to vector<2x1xf32>
    %991 = vector.broadcast %990 : vector<2x1xf32> to vector<2x8xf32>
    %992 = arith.mulf %989, %991 : vector<2x8xf32>
    %cst_204 = arith.constant dense<0xFF800000> : vector<2xf32>
    %993 = vector.multi_reduction <maximumf>, %992, %cst_204 [1] : vector<2x8xf32> to vector<2xf32>
    %994 = vector.shape_cast %993 : vector<2xf32> to vector<2x1xf32>
    %995 = vector.broadcast %994 : vector<2x1xf32> to vector<2x8xf32>
    %996 = arith.subf %992, %995 : vector<2x8xf32>
    %997 = math.exp %996 : vector<2x8xf32>
    %cst_205 = arith.constant dense<0.000000e+00> : vector<2xf32>
    %998 = vector.multi_reduction <add>, %997, %cst_205 [1] : vector<2x8xf32> to vector<2xf32>
    %999 = vector.shape_cast %998 : vector<2xf32> to vector<2x1xf32>
    %1000 = tpu.reciprocal %999 {approx = true} : vector<2x1xf32> -> vector<2x1xf32>
    %1001 = vector.broadcast %1000 : vector<2x1xf32> to vector<2x8xf32>
    %1002 = arith.mulf %997, %1001 : vector<2x8xf32>
    %1003 = vector.shape_cast %1002 : vector<2x8xf32> to vector<2x8x1xf32>
    %1004 = vector.broadcast %1003 : vector<2x8x1xf32> to vector<2x8x8xf32>
    %1005 = arith.mulf %1004, %977 : vector<2x8x8xf32>
    %cst_206 = arith.constant dense<0.000000e+00> : vector<2x8xf32>
    %1006 = vector.multi_reduction <add>, %1005, %cst_206 [1] : vector<2x8x8xf32> to vector<2x8xf32>
    %1007 = vector.extract_strided_slice %946 {offsets = [0, 0, 16], sizes = [2, 8, 8], strides = [1, 1, 1]} : vector<2x8x32xf32> to vector<2x8x8xf32>
    %1008 = vector.extract_strided_slice %810 {offsets = [0, 16], sizes = [2, 8], strides = [1, 1]} : vector<2x32xf32> to vector<2x8xf32>
    %1009 = vector.shape_cast %1008 : vector<2x8xf32> to vector<2x1x8xf32>
    %1010 = vector.broadcast %1009 : vector<2x1x8xf32> to vector<2x8x8xf32>
    %1011 = arith.mulf %1007, %1010 : vector<2x8x8xf32>
    %cst_207 = arith.constant dense<0.000000e+00> : vector<2x8xf32>
    %1012 = vector.multi_reduction <add>, %1011, %cst_207 [2] : vector<2x8x8xf32> to vector<2x8xf32>
    %1013 = vector.broadcast %1 : f32 to vector<2x8xf32>
    %1014 = arith.mulf %1012, %1013 : vector<2x8xf32>
    %cst_208 = arith.constant 0.000000e+00 : f32
    %1015 = vector.broadcast %cst_208 : f32 to vector<2x8xf32>
    %1016 = arith.cmpf ogt, %1014, %1015 : vector<2x8xf32>
    %cst_209 = arith.constant 2.000000e-01 : f32
    %1017 = vector.broadcast %cst_209 : f32 to vector<2x8xf32>
    %1018 = arith.mulf %1017, %1014 : vector<2x8xf32>
    %1019 = arith.select %1016, %1014, %1018 : vector<2x8xi1>, vector<2x8xf32>
    %1020 = vector.extract_strided_slice %821 {offsets = [0, 2], sizes = [2, 1], strides = [1, 1]} : vector<2x4xf32> to vector<2x1xf32>
    %1021 = vector.broadcast %1020 : vector<2x1xf32> to vector<2x8xf32>
    %1022 = arith.mulf %1019, %1021 : vector<2x8xf32>
    %cst_210 = arith.constant dense<0xFF800000> : vector<2xf32>
    %1023 = vector.multi_reduction <maximumf>, %1022, %cst_210 [1] : vector<2x8xf32> to vector<2xf32>
    %1024 = vector.shape_cast %1023 : vector<2xf32> to vector<2x1xf32>
    %1025 = vector.broadcast %1024 : vector<2x1xf32> to vector<2x8xf32>
    %1026 = arith.subf %1022, %1025 : vector<2x8xf32>
    %1027 = math.exp %1026 : vector<2x8xf32>
    %cst_211 = arith.constant dense<0.000000e+00> : vector<2xf32>
    %1028 = vector.multi_reduction <add>, %1027, %cst_211 [1] : vector<2x8xf32> to vector<2xf32>
    %1029 = vector.shape_cast %1028 : vector<2xf32> to vector<2x1xf32>
    %1030 = tpu.reciprocal %1029 {approx = true} : vector<2x1xf32> -> vector<2x1xf32>
    %1031 = vector.broadcast %1030 : vector<2x1xf32> to vector<2x8xf32>
    %1032 = arith.mulf %1027, %1031 : vector<2x8xf32>
    %1033 = vector.shape_cast %1032 : vector<2x8xf32> to vector<2x8x1xf32>
    %1034 = vector.broadcast %1033 : vector<2x8x1xf32> to vector<2x8x8xf32>
    %1035 = arith.mulf %1034, %1007 : vector<2x8x8xf32>
    %cst_212 = arith.constant dense<0.000000e+00> : vector<2x8xf32>
    %1036 = vector.multi_reduction <add>, %1035, %cst_212 [1] : vector<2x8x8xf32> to vector<2x8xf32>
    %1037 = vector.extract_strided_slice %946 {offsets = [0, 0, 24], sizes = [2, 8, 8], strides = [1, 1, 1]} : vector<2x8x32xf32> to vector<2x8x8xf32>
    %1038 = vector.extract_strided_slice %810 {offsets = [0, 24], sizes = [2, 8], strides = [1, 1]} : vector<2x32xf32> to vector<2x8xf32>
    %1039 = vector.shape_cast %1038 : vector<2x8xf32> to vector<2x1x8xf32>
    %1040 = vector.broadcast %1039 : vector<2x1x8xf32> to vector<2x8x8xf32>
    %1041 = arith.mulf %1037, %1040 : vector<2x8x8xf32>
    %cst_213 = arith.constant dense<0.000000e+00> : vector<2x8xf32>
    %1042 = vector.multi_reduction <add>, %1041, %cst_213 [2] : vector<2x8x8xf32> to vector<2x8xf32>
    %1043 = vector.broadcast %1 : f32 to vector<2x8xf32>
    %1044 = arith.mulf %1042, %1043 : vector<2x8xf32>
    %cst_214 = arith.constant 0.000000e+00 : f32
    %1045 = vector.broadcast %cst_214 : f32 to vector<2x8xf32>
    %1046 = arith.cmpf ogt, %1044, %1045 : vector<2x8xf32>
    %cst_215 = arith.constant 2.000000e-01 : f32
    %1047 = vector.broadcast %cst_215 : f32 to vector<2x8xf32>
    %1048 = arith.mulf %1047, %1044 : vector<2x8xf32>
    %1049 = arith.select %1046, %1044, %1048 : vector<2x8xi1>, vector<2x8xf32>
    %1050 = vector.extract_strided_slice %821 {offsets = [0, 3], sizes = [2, 1], strides = [1, 1]} : vector<2x4xf32> to vector<2x1xf32>
    %1051 = vector.broadcast %1050 : vector<2x1xf32> to vector<2x8xf32>
    %1052 = arith.mulf %1049, %1051 : vector<2x8xf32>
    %cst_216 = arith.constant dense<0xFF800000> : vector<2xf32>
    %1053 = vector.multi_reduction <maximumf>, %1052, %cst_216 [1] : vector<2x8xf32> to vector<2xf32>
    %1054 = vector.shape_cast %1053 : vector<2xf32> to vector<2x1xf32>
    %1055 = vector.broadcast %1054 : vector<2x1xf32> to vector<2x8xf32>
    %1056 = arith.subf %1052, %1055 : vector<2x8xf32>
    %1057 = math.exp %1056 : vector<2x8xf32>
    %cst_217 = arith.constant dense<0.000000e+00> : vector<2xf32>
    %1058 = vector.multi_reduction <add>, %1057, %cst_217 [1] : vector<2x8xf32> to vector<2xf32>
    %1059 = vector.shape_cast %1058 : vector<2xf32> to vector<2x1xf32>
    %1060 = tpu.reciprocal %1059 {approx = true} : vector<2x1xf32> -> vector<2x1xf32>
    %1061 = vector.broadcast %1060 : vector<2x1xf32> to vector<2x8xf32>
    %1062 = arith.mulf %1057, %1061 : vector<2x8xf32>
    %1063 = vector.shape_cast %1062 : vector<2x8xf32> to vector<2x8x1xf32>
    %1064 = vector.broadcast %1063 : vector<2x8x1xf32> to vector<2x8x8xf32>
    %1065 = arith.mulf %1064, %1037 : vector<2x8x8xf32>
    %cst_218 = arith.constant dense<0.000000e+00> : vector<2x8xf32>
    %1066 = vector.multi_reduction <add>, %1065, %cst_218 [1] : vector<2x8x8xf32> to vector<2x8xf32>
    %1067 = tpu.concatenate %976, %1006, %1036, %1066 in 1 : vector<2x8xf32>, vector<2x8xf32>, vector<2x8xf32>, vector<2x8xf32> -> vector<2x32xf32>
    %cst_219 = arith.constant dense<0.000000e+00> : vector<2x32xf32>
    %1068 = tpu.matmul %810, %819, %cst_219 {dimension_numbers = #tpu.dot_dimension_numbers<[1], [0], [0], [1], [0, 0, 1, 1], [], []>} : vector<2x32xf32>, vector<32x32xf32>, vector<2x32xf32> -> vector<2x32xf32>
    %1069 = vector.extract_strided_slice %1068 {offsets = [0, 0], sizes = [2, 8], strides = [1, 1]} : vector<2x32xf32> to vector<2x8xf32>
    %1070 = vector.extract_strided_slice %944 {offsets = [0, 0], sizes = [2, 8], strides = [1, 1]} : vector<2x32xf32> to vector<2x8xf32>
    %1071 = arith.mulf %1069, %1070 : vector<2x8xf32>
    %cst_220 = arith.constant dense<0.000000e+00> : vector<2xf32>
    %1072 = vector.multi_reduction <add>, %1071, %cst_220 [1] : vector<2x8xf32> to vector<2xf32>
    %1073 = vector.shape_cast %1072 : vector<2xf32> to vector<2x1xf32>
    %1074 = vector.extract_strided_slice %1068 {offsets = [0, 0], sizes = [2, 8], strides = [1, 1]} : vector<2x32xf32> to vector<2x8xf32>
    %1075 = vector.extract_strided_slice %1067 {offsets = [0, 0], sizes = [2, 8], strides = [1, 1]} : vector<2x32xf32> to vector<2x8xf32>
    %1076 = arith.mulf %1074, %1075 : vector<2x8xf32>
    %cst_221 = arith.constant dense<0.000000e+00> : vector<2xf32>
    %1077 = vector.multi_reduction <add>, %1076, %cst_221 [1] : vector<2x8xf32> to vector<2xf32>
    %1078 = vector.shape_cast %1077 : vector<2xf32> to vector<2x1xf32>
    %1079 = tpu.concatenate %1073, %1078 in 1 : vector<2x1xf32>, vector<2x1xf32> -> vector<2x2xf32>
    %1080 = vector.broadcast %1 : f32 to vector<2x2xf32>
    %1081 = arith.mulf %1079, %1080 : vector<2x2xf32>
    %cst_222 = arith.constant dense<0xFF800000> : vector<2xf32>
    %1082 = vector.multi_reduction <maximumf>, %1081, %cst_222 [1] : vector<2x2xf32> to vector<2xf32>
    %1083 = vector.shape_cast %1082 : vector<2xf32> to vector<2x1xf32>
    %1084 = vector.broadcast %1083 : vector<2x1xf32> to vector<2x2xf32>
    %1085 = arith.subf %1081, %1084 : vector<2x2xf32>
    %1086 = math.exp %1085 : vector<2x2xf32>
    %cst_223 = arith.constant dense<0.000000e+00> : vector<2xf32>
    %1087 = vector.multi_reduction <add>, %1086, %cst_223 [1] : vector<2x2xf32> to vector<2xf32>
    %1088 = vector.shape_cast %1087 : vector<2xf32> to vector<2x1xf32>
    %1089 = tpu.reciprocal %1088 {approx = true} : vector<2x1xf32> -> vector<2x1xf32>
    %1090 = vector.broadcast %1089 : vector<2x1xf32> to vector<2x2xf32>
    %1091 = arith.mulf %1086, %1090 : vector<2x2xf32>
    %cst_224 = arith.constant 0.000000e+00 : f32
    %1092 = vector.broadcast %cst_224 : f32 to vector<2x8xf32>
    %1093 = vector.extract_strided_slice %1091 {offsets = [0, 0], sizes = [2, 1], strides = [1, 1]} : vector<2x2xf32> to vector<2x1xf32>
    %1094 = vector.extract_strided_slice %944 {offsets = [0, 0], sizes = [2, 8], strides = [1, 1]} : vector<2x32xf32> to vector<2x8xf32>
    %1095 = vector.broadcast %1093 : vector<2x1xf32> to vector<2x8xf32>
    %1096 = arith.mulf %1095, %1094 : vector<2x8xf32>
    %1097 = arith.addf %1092, %1096 : vector<2x8xf32>
    %1098 = vector.extract_strided_slice %1091 {offsets = [0, 0], sizes = [2, 1], strides = [1, 1]} : vector<2x2xf32> to vector<2x1xf32>
    %1099 = vector.extract_strided_slice %1091 {offsets = [0, 1], sizes = [2, 1], strides = [1, 1]} : vector<2x2xf32> to vector<2x1xf32>
    %1100 = vector.extract_strided_slice %1067 {offsets = [0, 0], sizes = [2, 8], strides = [1, 1]} : vector<2x32xf32> to vector<2x8xf32>
    %1101 = vector.broadcast %1099 : vector<2x1xf32> to vector<2x8xf32>
    %1102 = arith.mulf %1101, %1100 : vector<2x8xf32>
    %1103 = arith.addf %1097, %1102 : vector<2x8xf32>
    %1104 = vector.extract_strided_slice %1091 {offsets = [0, 1], sizes = [2, 1], strides = [1, 1]} : vector<2x2xf32> to vector<2x1xf32>
    %1105 = vector.extract_strided_slice %810 {offsets = [0, 0], sizes = [2, 8], strides = [1, 1]} : vector<2x32xf32> to vector<2x8xf32>
    %1106 = arith.addf %1105, %1103 : vector<2x8xf32>
    %1107 = vector.extract_strided_slice %1068 {offsets = [0, 8], sizes = [2, 8], strides = [1, 1]} : vector<2x32xf32> to vector<2x8xf32>
    %1108 = vector.extract_strided_slice %944 {offsets = [0, 8], sizes = [2, 8], strides = [1, 1]} : vector<2x32xf32> to vector<2x8xf32>
    %1109 = arith.mulf %1107, %1108 : vector<2x8xf32>
    %cst_225 = arith.constant dense<0.000000e+00> : vector<2xf32>
    %1110 = vector.multi_reduction <add>, %1109, %cst_225 [1] : vector<2x8xf32> to vector<2xf32>
    %1111 = vector.shape_cast %1110 : vector<2xf32> to vector<2x1xf32>
    %1112 = vector.extract_strided_slice %1068 {offsets = [0, 8], sizes = [2, 8], strides = [1, 1]} : vector<2x32xf32> to vector<2x8xf32>
    %1113 = vector.extract_strided_slice %1067 {offsets = [0, 8], sizes = [2, 8], strides = [1, 1]} : vector<2x32xf32> to vector<2x8xf32>
    %1114 = arith.mulf %1112, %1113 : vector<2x8xf32>
    %cst_226 = arith.constant dense<0.000000e+00> : vector<2xf32>
    %1115 = vector.multi_reduction <add>, %1114, %cst_226 [1] : vector<2x8xf32> to vector<2xf32>
    %1116 = vector.shape_cast %1115 : vector<2xf32> to vector<2x1xf32>
    %1117 = tpu.concatenate %1111, %1116 in 1 : vector<2x1xf32>, vector<2x1xf32> -> vector<2x2xf32>
    %1118 = vector.broadcast %1 : f32 to vector<2x2xf32>
    %1119 = arith.mulf %1117, %1118 : vector<2x2xf32>
    %cst_227 = arith.constant dense<0xFF800000> : vector<2xf32>
    %1120 = vector.multi_reduction <maximumf>, %1119, %cst_227 [1] : vector<2x2xf32> to vector<2xf32>
    %1121 = vector.shape_cast %1120 : vector<2xf32> to vector<2x1xf32>
    %1122 = vector.broadcast %1121 : vector<2x1xf32> to vector<2x2xf32>
    %1123 = arith.subf %1119, %1122 : vector<2x2xf32>
    %1124 = math.exp %1123 : vector<2x2xf32>
    %cst_228 = arith.constant dense<0.000000e+00> : vector<2xf32>
    %1125 = vector.multi_reduction <add>, %1124, %cst_228 [1] : vector<2x2xf32> to vector<2xf32>
    %1126 = vector.shape_cast %1125 : vector<2xf32> to vector<2x1xf32>
    %1127 = tpu.reciprocal %1126 {approx = true} : vector<2x1xf32> -> vector<2x1xf32>
    %1128 = vector.broadcast %1127 : vector<2x1xf32> to vector<2x2xf32>
    %1129 = arith.mulf %1124, %1128 : vector<2x2xf32>
    %cst_229 = arith.constant 0.000000e+00 : f32
    %1130 = vector.broadcast %cst_229 : f32 to vector<2x8xf32>
    %1131 = vector.extract_strided_slice %1129 {offsets = [0, 0], sizes = [2, 1], strides = [1, 1]} : vector<2x2xf32> to vector<2x1xf32>
    %1132 = vector.extract_strided_slice %944 {offsets = [0, 8], sizes = [2, 8], strides = [1, 1]} : vector<2x32xf32> to vector<2x8xf32>
    %1133 = vector.broadcast %1131 : vector<2x1xf32> to vector<2x8xf32>
    %1134 = arith.mulf %1133, %1132 : vector<2x8xf32>
    %1135 = arith.addf %1130, %1134 : vector<2x8xf32>
    %1136 = vector.extract_strided_slice %1129 {offsets = [0, 0], sizes = [2, 1], strides = [1, 1]} : vector<2x2xf32> to vector<2x1xf32>
    %1137 = vector.extract_strided_slice %1129 {offsets = [0, 1], sizes = [2, 1], strides = [1, 1]} : vector<2x2xf32> to vector<2x1xf32>
    %1138 = vector.extract_strided_slice %1067 {offsets = [0, 8], sizes = [2, 8], strides = [1, 1]} : vector<2x32xf32> to vector<2x8xf32>
    %1139 = vector.broadcast %1137 : vector<2x1xf32> to vector<2x8xf32>
    %1140 = arith.mulf %1139, %1138 : vector<2x8xf32>
    %1141 = arith.addf %1135, %1140 : vector<2x8xf32>
    %1142 = vector.extract_strided_slice %1129 {offsets = [0, 1], sizes = [2, 1], strides = [1, 1]} : vector<2x2xf32> to vector<2x1xf32>
    %1143 = vector.extract_strided_slice %810 {offsets = [0, 8], sizes = [2, 8], strides = [1, 1]} : vector<2x32xf32> to vector<2x8xf32>
    %1144 = arith.addf %1143, %1141 : vector<2x8xf32>
    %1145 = vector.extract_strided_slice %1068 {offsets = [0, 16], sizes = [2, 8], strides = [1, 1]} : vector<2x32xf32> to vector<2x8xf32>
    %1146 = vector.extract_strided_slice %944 {offsets = [0, 16], sizes = [2, 8], strides = [1, 1]} : vector<2x32xf32> to vector<2x8xf32>
    %1147 = arith.mulf %1145, %1146 : vector<2x8xf32>
    %cst_230 = arith.constant dense<0.000000e+00> : vector<2xf32>
    %1148 = vector.multi_reduction <add>, %1147, %cst_230 [1] : vector<2x8xf32> to vector<2xf32>
    %1149 = vector.shape_cast %1148 : vector<2xf32> to vector<2x1xf32>
    %1150 = vector.extract_strided_slice %1068 {offsets = [0, 16], sizes = [2, 8], strides = [1, 1]} : vector<2x32xf32> to vector<2x8xf32>
    %1151 = vector.extract_strided_slice %1067 {offsets = [0, 16], sizes = [2, 8], strides = [1, 1]} : vector<2x32xf32> to vector<2x8xf32>
    %1152 = arith.mulf %1150, %1151 : vector<2x8xf32>
    %cst_231 = arith.constant dense<0.000000e+00> : vector<2xf32>
    %1153 = vector.multi_reduction <add>, %1152, %cst_231 [1] : vector<2x8xf32> to vector<2xf32>
    %1154 = vector.shape_cast %1153 : vector<2xf32> to vector<2x1xf32>
    %1155 = tpu.concatenate %1149, %1154 in 1 : vector<2x1xf32>, vector<2x1xf32> -> vector<2x2xf32>
    %1156 = vector.broadcast %1 : f32 to vector<2x2xf32>
    %1157 = arith.mulf %1155, %1156 : vector<2x2xf32>
    %cst_232 = arith.constant dense<0xFF800000> : vector<2xf32>
    %1158 = vector.multi_reduction <maximumf>, %1157, %cst_232 [1] : vector<2x2xf32> to vector<2xf32>
    %1159 = vector.shape_cast %1158 : vector<2xf32> to vector<2x1xf32>
    %1160 = vector.broadcast %1159 : vector<2x1xf32> to vector<2x2xf32>
    %1161 = arith.subf %1157, %1160 : vector<2x2xf32>
    %1162 = math.exp %1161 : vector<2x2xf32>
    %cst_233 = arith.constant dense<0.000000e+00> : vector<2xf32>
    %1163 = vector.multi_reduction <add>, %1162, %cst_233 [1] : vector<2x2xf32> to vector<2xf32>
    %1164 = vector.shape_cast %1163 : vector<2xf32> to vector<2x1xf32>
    %1165 = tpu.reciprocal %1164 {approx = true} : vector<2x1xf32> -> vector<2x1xf32>
    %1166 = vector.broadcast %1165 : vector<2x1xf32> to vector<2x2xf32>
    %1167 = arith.mulf %1162, %1166 : vector<2x2xf32>
    %cst_234 = arith.constant 0.000000e+00 : f32
    %1168 = vector.broadcast %cst_234 : f32 to vector<2x8xf32>
    %1169 = vector.extract_strided_slice %1167 {offsets = [0, 0], sizes = [2, 1], strides = [1, 1]} : vector<2x2xf32> to vector<2x1xf32>
    %1170 = vector.extract_strided_slice %944 {offsets = [0, 16], sizes = [2, 8], strides = [1, 1]} : vector<2x32xf32> to vector<2x8xf32>
    %1171 = vector.broadcast %1169 : vector<2x1xf32> to vector<2x8xf32>
    %1172 = arith.mulf %1171, %1170 : vector<2x8xf32>
    %1173 = arith.addf %1168, %1172 : vector<2x8xf32>
    %1174 = vector.extract_strided_slice %1167 {offsets = [0, 0], sizes = [2, 1], strides = [1, 1]} : vector<2x2xf32> to vector<2x1xf32>
    %1175 = vector.extract_strided_slice %1167 {offsets = [0, 1], sizes = [2, 1], strides = [1, 1]} : vector<2x2xf32> to vector<2x1xf32>
    %1176 = vector.extract_strided_slice %1067 {offsets = [0, 16], sizes = [2, 8], strides = [1, 1]} : vector<2x32xf32> to vector<2x8xf32>
    %1177 = vector.broadcast %1175 : vector<2x1xf32> to vector<2x8xf32>
    %1178 = arith.mulf %1177, %1176 : vector<2x8xf32>
    %1179 = arith.addf %1173, %1178 : vector<2x8xf32>
    %1180 = vector.extract_strided_slice %1167 {offsets = [0, 1], sizes = [2, 1], strides = [1, 1]} : vector<2x2xf32> to vector<2x1xf32>
    %1181 = vector.extract_strided_slice %810 {offsets = [0, 16], sizes = [2, 8], strides = [1, 1]} : vector<2x32xf32> to vector<2x8xf32>
    %1182 = arith.addf %1181, %1179 : vector<2x8xf32>
    %1183 = vector.extract_strided_slice %1068 {offsets = [0, 24], sizes = [2, 8], strides = [1, 1]} : vector<2x32xf32> to vector<2x8xf32>
    %1184 = vector.extract_strided_slice %944 {offsets = [0, 24], sizes = [2, 8], strides = [1, 1]} : vector<2x32xf32> to vector<2x8xf32>
    %1185 = arith.mulf %1183, %1184 : vector<2x8xf32>
    %cst_235 = arith.constant dense<0.000000e+00> : vector<2xf32>
    %1186 = vector.multi_reduction <add>, %1185, %cst_235 [1] : vector<2x8xf32> to vector<2xf32>
    %1187 = vector.shape_cast %1186 : vector<2xf32> to vector<2x1xf32>
    %1188 = vector.extract_strided_slice %1068 {offsets = [0, 24], sizes = [2, 8], strides = [1, 1]} : vector<2x32xf32> to vector<2x8xf32>
    %1189 = vector.extract_strided_slice %1067 {offsets = [0, 24], sizes = [2, 8], strides = [1, 1]} : vector<2x32xf32> to vector<2x8xf32>
    %1190 = arith.mulf %1188, %1189 : vector<2x8xf32>
    %cst_236 = arith.constant dense<0.000000e+00> : vector<2xf32>
    %1191 = vector.multi_reduction <add>, %1190, %cst_236 [1] : vector<2x8xf32> to vector<2xf32>
    %1192 = vector.shape_cast %1191 : vector<2xf32> to vector<2x1xf32>
    %1193 = tpu.concatenate %1187, %1192 in 1 : vector<2x1xf32>, vector<2x1xf32> -> vector<2x2xf32>
    %1194 = vector.broadcast %1 : f32 to vector<2x2xf32>
    %1195 = arith.mulf %1193, %1194 : vector<2x2xf32>
    %cst_237 = arith.constant dense<0xFF800000> : vector<2xf32>
    %1196 = vector.multi_reduction <maximumf>, %1195, %cst_237 [1] : vector<2x2xf32> to vector<2xf32>
    %1197 = vector.shape_cast %1196 : vector<2xf32> to vector<2x1xf32>
    %1198 = vector.broadcast %1197 : vector<2x1xf32> to vector<2x2xf32>
    %1199 = arith.subf %1195, %1198 : vector<2x2xf32>
    %1200 = math.exp %1199 : vector<2x2xf32>
    %cst_238 = arith.constant dense<0.000000e+00> : vector<2xf32>
    %1201 = vector.multi_reduction <add>, %1200, %cst_238 [1] : vector<2x2xf32> to vector<2xf32>
    %1202 = vector.shape_cast %1201 : vector<2xf32> to vector<2x1xf32>
    %1203 = tpu.reciprocal %1202 {approx = true} : vector<2x1xf32> -> vector<2x1xf32>
    %1204 = vector.broadcast %1203 : vector<2x1xf32> to vector<2x2xf32>
    %1205 = arith.mulf %1200, %1204 : vector<2x2xf32>
    %cst_239 = arith.constant 0.000000e+00 : f32
    %1206 = vector.broadcast %cst_239 : f32 to vector<2x8xf32>
    %1207 = vector.extract_strided_slice %1205 {offsets = [0, 0], sizes = [2, 1], strides = [1, 1]} : vector<2x2xf32> to vector<2x1xf32>
    %1208 = vector.extract_strided_slice %944 {offsets = [0, 24], sizes = [2, 8], strides = [1, 1]} : vector<2x32xf32> to vector<2x8xf32>
    %1209 = vector.broadcast %1207 : vector<2x1xf32> to vector<2x8xf32>
    %1210 = arith.mulf %1209, %1208 : vector<2x8xf32>
    %1211 = arith.addf %1206, %1210 : vector<2x8xf32>
    %1212 = vector.extract_strided_slice %1205 {offsets = [0, 0], sizes = [2, 1], strides = [1, 1]} : vector<2x2xf32> to vector<2x1xf32>
    %1213 = vector.extract_strided_slice %1205 {offsets = [0, 1], sizes = [2, 1], strides = [1, 1]} : vector<2x2xf32> to vector<2x1xf32>
    %1214 = vector.extract_strided_slice %1067 {offsets = [0, 24], sizes = [2, 8], strides = [1, 1]} : vector<2x32xf32> to vector<2x8xf32>
    %1215 = vector.broadcast %1213 : vector<2x1xf32> to vector<2x8xf32>
    %1216 = arith.mulf %1215, %1214 : vector<2x8xf32>
    %1217 = arith.addf %1211, %1216 : vector<2x8xf32>
    %1218 = vector.extract_strided_slice %1205 {offsets = [0, 1], sizes = [2, 1], strides = [1, 1]} : vector<2x2xf32> to vector<2x1xf32>
    %1219 = vector.extract_strided_slice %810 {offsets = [0, 24], sizes = [2, 8], strides = [1, 1]} : vector<2x32xf32> to vector<2x8xf32>
    %1220 = arith.addf %1219, %1217 : vector<2x8xf32>
    %1221 = tpu.concatenate %1106, %1144, %1182, %1220 in 1 : vector<2x8xf32>, vector<2x8xf32>, vector<2x8xf32>, vector<2x8xf32> -> vector<2x32xf32>
    %1222 = tpu.concatenate %1098, %1136, %1174, %1212 in 1 : vector<2x1xf32>, vector<2x1xf32>, vector<2x1xf32>, vector<2x1xf32> -> vector<2x4xf32>
    %1223 = tpu.concatenate %1104, %1142, %1180, %1218 in 1 : vector<2x1xf32>, vector<2x1xf32>, vector<2x1xf32>, vector<2x1xf32> -> vector<2x4xf32>
    %1224 = vector.extract_strided_slice %817 {offsets = [0, 0, 0, 0], sizes = [2, 1, 8, 32], strides = [1, 1, 1, 1]} : vector<2x2x8x32xf32> to vector<2x1x8x32xf32>
    %1225 = vector.shape_cast %1224 : vector<2x1x8x32xf32> to vector<2x8x32xf32>
    %1226 = vector.extract_strided_slice %1225 {offsets = [0, 0, 0], sizes = [2, 8, 8], strides = [1, 1, 1]} : vector<2x8x32xf32> to vector<2x8x8xf32>
    %1227 = vector.extract_strided_slice %1221 {offsets = [0, 0], sizes = [2, 8], strides = [1, 1]} : vector<2x32xf32> to vector<2x8xf32>
    %1228 = vector.shape_cast %1227 : vector<2x8xf32> to vector<2x1x8xf32>
    %1229 = vector.broadcast %1228 : vector<2x1x8xf32> to vector<2x8x8xf32>
    %1230 = arith.mulf %1226, %1229 : vector<2x8x8xf32>
    %cst_240 = arith.constant dense<0.000000e+00> : vector<2x8xf32>
    %1231 = vector.multi_reduction <add>, %1230, %cst_240 [2] : vector<2x8x8xf32> to vector<2x8xf32>
    %1232 = vector.broadcast %1 : f32 to vector<2x8xf32>
    %1233 = arith.mulf %1231, %1232 : vector<2x8xf32>
    %cst_241 = arith.constant 0.000000e+00 : f32
    %1234 = vector.broadcast %cst_241 : f32 to vector<2x8xf32>
    %1235 = arith.cmpf ogt, %1233, %1234 : vector<2x8xf32>
    %cst_242 = arith.constant 2.000000e-01 : f32
    %1236 = vector.broadcast %cst_242 : f32 to vector<2x8xf32>
    %1237 = arith.mulf %1236, %1233 : vector<2x8xf32>
    %1238 = arith.select %1235, %1233, %1237 : vector<2x8xi1>, vector<2x8xf32>
    %1239 = vector.extract_strided_slice %1222 {offsets = [0, 0], sizes = [2, 1], strides = [1, 1]} : vector<2x4xf32> to vector<2x1xf32>
    %1240 = vector.broadcast %1239 : vector<2x1xf32> to vector<2x8xf32>
    %1241 = arith.mulf %1238, %1240 : vector<2x8xf32>
    %cst_243 = arith.constant dense<0xFF800000> : vector<2xf32>
    %1242 = vector.multi_reduction <maximumf>, %1241, %cst_243 [1] : vector<2x8xf32> to vector<2xf32>
    %1243 = vector.shape_cast %1242 : vector<2xf32> to vector<2x1xf32>
    %1244 = vector.broadcast %1243 : vector<2x1xf32> to vector<2x8xf32>
    %1245 = arith.subf %1241, %1244 : vector<2x8xf32>
    %1246 = math.exp %1245 : vector<2x8xf32>
    %cst_244 = arith.constant dense<0.000000e+00> : vector<2xf32>
    %1247 = vector.multi_reduction <add>, %1246, %cst_244 [1] : vector<2x8xf32> to vector<2xf32>
    %1248 = vector.shape_cast %1247 : vector<2xf32> to vector<2x1xf32>
    %1249 = tpu.reciprocal %1248 {approx = true} : vector<2x1xf32> -> vector<2x1xf32>
    %1250 = vector.broadcast %1249 : vector<2x1xf32> to vector<2x8xf32>
    %1251 = arith.mulf %1246, %1250 : vector<2x8xf32>
    %1252 = vector.shape_cast %1251 : vector<2x8xf32> to vector<2x8x1xf32>
    %1253 = vector.broadcast %1252 : vector<2x8x1xf32> to vector<2x8x8xf32>
    %1254 = arith.mulf %1253, %1226 : vector<2x8x8xf32>
    %cst_245 = arith.constant dense<0.000000e+00> : vector<2x8xf32>
    %1255 = vector.multi_reduction <add>, %1254, %cst_245 [1] : vector<2x8x8xf32> to vector<2x8xf32>
    %1256 = vector.extract_strided_slice %1225 {offsets = [0, 0, 8], sizes = [2, 8, 8], strides = [1, 1, 1]} : vector<2x8x32xf32> to vector<2x8x8xf32>
    %1257 = vector.extract_strided_slice %1221 {offsets = [0, 8], sizes = [2, 8], strides = [1, 1]} : vector<2x32xf32> to vector<2x8xf32>
    %1258 = vector.shape_cast %1257 : vector<2x8xf32> to vector<2x1x8xf32>
    %1259 = vector.broadcast %1258 : vector<2x1x8xf32> to vector<2x8x8xf32>
    %1260 = arith.mulf %1256, %1259 : vector<2x8x8xf32>
    %cst_246 = arith.constant dense<0.000000e+00> : vector<2x8xf32>
    %1261 = vector.multi_reduction <add>, %1260, %cst_246 [2] : vector<2x8x8xf32> to vector<2x8xf32>
    %1262 = vector.broadcast %1 : f32 to vector<2x8xf32>
    %1263 = arith.mulf %1261, %1262 : vector<2x8xf32>
    %cst_247 = arith.constant 0.000000e+00 : f32
    %1264 = vector.broadcast %cst_247 : f32 to vector<2x8xf32>
    %1265 = arith.cmpf ogt, %1263, %1264 : vector<2x8xf32>
    %cst_248 = arith.constant 2.000000e-01 : f32
    %1266 = vector.broadcast %cst_248 : f32 to vector<2x8xf32>
    %1267 = arith.mulf %1266, %1263 : vector<2x8xf32>
    %1268 = arith.select %1265, %1263, %1267 : vector<2x8xi1>, vector<2x8xf32>
    %1269 = vector.extract_strided_slice %1222 {offsets = [0, 1], sizes = [2, 1], strides = [1, 1]} : vector<2x4xf32> to vector<2x1xf32>
    %1270 = vector.broadcast %1269 : vector<2x1xf32> to vector<2x8xf32>
    %1271 = arith.mulf %1268, %1270 : vector<2x8xf32>
    %cst_249 = arith.constant dense<0xFF800000> : vector<2xf32>
    %1272 = vector.multi_reduction <maximumf>, %1271, %cst_249 [1] : vector<2x8xf32> to vector<2xf32>
    %1273 = vector.shape_cast %1272 : vector<2xf32> to vector<2x1xf32>
    %1274 = vector.broadcast %1273 : vector<2x1xf32> to vector<2x8xf32>
    %1275 = arith.subf %1271, %1274 : vector<2x8xf32>
    %1276 = math.exp %1275 : vector<2x8xf32>
    %cst_250 = arith.constant dense<0.000000e+00> : vector<2xf32>
    %1277 = vector.multi_reduction <add>, %1276, %cst_250 [1] : vector<2x8xf32> to vector<2xf32>
    %1278 = vector.shape_cast %1277 : vector<2xf32> to vector<2x1xf32>
    %1279 = tpu.reciprocal %1278 {approx = true} : vector<2x1xf32> -> vector<2x1xf32>
    %1280 = vector.broadcast %1279 : vector<2x1xf32> to vector<2x8xf32>
    %1281 = arith.mulf %1276, %1280 : vector<2x8xf32>
    %1282 = vector.shape_cast %1281 : vector<2x8xf32> to vector<2x8x1xf32>
    %1283 = vector.broadcast %1282 : vector<2x8x1xf32> to vector<2x8x8xf32>
    %1284 = arith.mulf %1283, %1256 : vector<2x8x8xf32>
    %cst_251 = arith.constant dense<0.000000e+00> : vector<2x8xf32>
    %1285 = vector.multi_reduction <add>, %1284, %cst_251 [1] : vector<2x8x8xf32> to vector<2x8xf32>
    %1286 = vector.extract_strided_slice %1225 {offsets = [0, 0, 16], sizes = [2, 8, 8], strides = [1, 1, 1]} : vector<2x8x32xf32> to vector<2x8x8xf32>
    %1287 = vector.extract_strided_slice %1221 {offsets = [0, 16], sizes = [2, 8], strides = [1, 1]} : vector<2x32xf32> to vector<2x8xf32>
    %1288 = vector.shape_cast %1287 : vector<2x8xf32> to vector<2x1x8xf32>
    %1289 = vector.broadcast %1288 : vector<2x1x8xf32> to vector<2x8x8xf32>
    %1290 = arith.mulf %1286, %1289 : vector<2x8x8xf32>
    %cst_252 = arith.constant dense<0.000000e+00> : vector<2x8xf32>
    %1291 = vector.multi_reduction <add>, %1290, %cst_252 [2] : vector<2x8x8xf32> to vector<2x8xf32>
    %1292 = vector.broadcast %1 : f32 to vector<2x8xf32>
    %1293 = arith.mulf %1291, %1292 : vector<2x8xf32>
    %cst_253 = arith.constant 0.000000e+00 : f32
    %1294 = vector.broadcast %cst_253 : f32 to vector<2x8xf32>
    %1295 = arith.cmpf ogt, %1293, %1294 : vector<2x8xf32>
    %cst_254 = arith.constant 2.000000e-01 : f32
    %1296 = vector.broadcast %cst_254 : f32 to vector<2x8xf32>
    %1297 = arith.mulf %1296, %1293 : vector<2x8xf32>
    %1298 = arith.select %1295, %1293, %1297 : vector<2x8xi1>, vector<2x8xf32>
    %1299 = vector.extract_strided_slice %1222 {offsets = [0, 2], sizes = [2, 1], strides = [1, 1]} : vector<2x4xf32> to vector<2x1xf32>
    %1300 = vector.broadcast %1299 : vector<2x1xf32> to vector<2x8xf32>
    %1301 = arith.mulf %1298, %1300 : vector<2x8xf32>
    %cst_255 = arith.constant dense<0xFF800000> : vector<2xf32>
    %1302 = vector.multi_reduction <maximumf>, %1301, %cst_255 [1] : vector<2x8xf32> to vector<2xf32>
    %1303 = vector.shape_cast %1302 : vector<2xf32> to vector<2x1xf32>
    %1304 = vector.broadcast %1303 : vector<2x1xf32> to vector<2x8xf32>
    %1305 = arith.subf %1301, %1304 : vector<2x8xf32>
    %1306 = math.exp %1305 : vector<2x8xf32>
    %cst_256 = arith.constant dense<0.000000e+00> : vector<2xf32>
    %1307 = vector.multi_reduction <add>, %1306, %cst_256 [1] : vector<2x8xf32> to vector<2xf32>
    %1308 = vector.shape_cast %1307 : vector<2xf32> to vector<2x1xf32>
    %1309 = tpu.reciprocal %1308 {approx = true} : vector<2x1xf32> -> vector<2x1xf32>
    %1310 = vector.broadcast %1309 : vector<2x1xf32> to vector<2x8xf32>
    %1311 = arith.mulf %1306, %1310 : vector<2x8xf32>
    %1312 = vector.shape_cast %1311 : vector<2x8xf32> to vector<2x8x1xf32>
    %1313 = vector.broadcast %1312 : vector<2x8x1xf32> to vector<2x8x8xf32>
    %1314 = arith.mulf %1313, %1286 : vector<2x8x8xf32>
    %cst_257 = arith.constant dense<0.000000e+00> : vector<2x8xf32>
    %1315 = vector.multi_reduction <add>, %1314, %cst_257 [1] : vector<2x8x8xf32> to vector<2x8xf32>
    %1316 = vector.extract_strided_slice %1225 {offsets = [0, 0, 24], sizes = [2, 8, 8], strides = [1, 1, 1]} : vector<2x8x32xf32> to vector<2x8x8xf32>
    %1317 = vector.extract_strided_slice %1221 {offsets = [0, 24], sizes = [2, 8], strides = [1, 1]} : vector<2x32xf32> to vector<2x8xf32>
    %1318 = vector.shape_cast %1317 : vector<2x8xf32> to vector<2x1x8xf32>
    %1319 = vector.broadcast %1318 : vector<2x1x8xf32> to vector<2x8x8xf32>
    %1320 = arith.mulf %1316, %1319 : vector<2x8x8xf32>
    %cst_258 = arith.constant dense<0.000000e+00> : vector<2x8xf32>
    %1321 = vector.multi_reduction <add>, %1320, %cst_258 [2] : vector<2x8x8xf32> to vector<2x8xf32>
    %1322 = vector.broadcast %1 : f32 to vector<2x8xf32>
    %1323 = arith.mulf %1321, %1322 : vector<2x8xf32>
    %cst_259 = arith.constant 0.000000e+00 : f32
    %1324 = vector.broadcast %cst_259 : f32 to vector<2x8xf32>
    %1325 = arith.cmpf ogt, %1323, %1324 : vector<2x8xf32>
    %cst_260 = arith.constant 2.000000e-01 : f32
    %1326 = vector.broadcast %cst_260 : f32 to vector<2x8xf32>
    %1327 = arith.mulf %1326, %1323 : vector<2x8xf32>
    %1328 = arith.select %1325, %1323, %1327 : vector<2x8xi1>, vector<2x8xf32>
    %1329 = vector.extract_strided_slice %1222 {offsets = [0, 3], sizes = [2, 1], strides = [1, 1]} : vector<2x4xf32> to vector<2x1xf32>
    %1330 = vector.broadcast %1329 : vector<2x1xf32> to vector<2x8xf32>
    %1331 = arith.mulf %1328, %1330 : vector<2x8xf32>
    %cst_261 = arith.constant dense<0xFF800000> : vector<2xf32>
    %1332 = vector.multi_reduction <maximumf>, %1331, %cst_261 [1] : vector<2x8xf32> to vector<2xf32>
    %1333 = vector.shape_cast %1332 : vector<2xf32> to vector<2x1xf32>
    %1334 = vector.broadcast %1333 : vector<2x1xf32> to vector<2x8xf32>
    %1335 = arith.subf %1331, %1334 : vector<2x8xf32>
    %1336 = math.exp %1335 : vector<2x8xf32>
    %cst_262 = arith.constant dense<0.000000e+00> : vector<2xf32>
    %1337 = vector.multi_reduction <add>, %1336, %cst_262 [1] : vector<2x8xf32> to vector<2xf32>
    %1338 = vector.shape_cast %1337 : vector<2xf32> to vector<2x1xf32>
    %1339 = tpu.reciprocal %1338 {approx = true} : vector<2x1xf32> -> vector<2x1xf32>
    %1340 = vector.broadcast %1339 : vector<2x1xf32> to vector<2x8xf32>
    %1341 = arith.mulf %1336, %1340 : vector<2x8xf32>
    %1342 = vector.shape_cast %1341 : vector<2x8xf32> to vector<2x8x1xf32>
    %1343 = vector.broadcast %1342 : vector<2x8x1xf32> to vector<2x8x8xf32>
    %1344 = arith.mulf %1343, %1316 : vector<2x8x8xf32>
    %cst_263 = arith.constant dense<0.000000e+00> : vector<2x8xf32>
    %1345 = vector.multi_reduction <add>, %1344, %cst_263 [1] : vector<2x8x8xf32> to vector<2x8xf32>
    %1346 = tpu.concatenate %1255, %1285, %1315, %1345 in 1 : vector<2x8xf32>, vector<2x8xf32>, vector<2x8xf32>, vector<2x8xf32> -> vector<2x32xf32>
    %1347 = vector.extract_strided_slice %817 {offsets = [0, 1, 0, 0], sizes = [2, 1, 8, 32], strides = [1, 1, 1, 1]} : vector<2x2x8x32xf32> to vector<2x1x8x32xf32>
    %1348 = vector.shape_cast %1347 : vector<2x1x8x32xf32> to vector<2x8x32xf32>
    %1349 = vector.extract_strided_slice %1348 {offsets = [0, 0, 0], sizes = [2, 8, 8], strides = [1, 1, 1]} : vector<2x8x32xf32> to vector<2x8x8xf32>
    %1350 = vector.extract_strided_slice %1221 {offsets = [0, 0], sizes = [2, 8], strides = [1, 1]} : vector<2x32xf32> to vector<2x8xf32>
    %1351 = vector.shape_cast %1350 : vector<2x8xf32> to vector<2x1x8xf32>
    %1352 = vector.broadcast %1351 : vector<2x1x8xf32> to vector<2x8x8xf32>
    %1353 = arith.mulf %1349, %1352 : vector<2x8x8xf32>
    %cst_264 = arith.constant dense<0.000000e+00> : vector<2x8xf32>
    %1354 = vector.multi_reduction <add>, %1353, %cst_264 [2] : vector<2x8x8xf32> to vector<2x8xf32>
    %1355 = vector.broadcast %1 : f32 to vector<2x8xf32>
    %1356 = arith.mulf %1354, %1355 : vector<2x8xf32>
    %cst_265 = arith.constant 0.000000e+00 : f32
    %1357 = vector.broadcast %cst_265 : f32 to vector<2x8xf32>
    %1358 = arith.cmpf ogt, %1356, %1357 : vector<2x8xf32>
    %cst_266 = arith.constant 2.000000e-01 : f32
    %1359 = vector.broadcast %cst_266 : f32 to vector<2x8xf32>
    %1360 = arith.mulf %1359, %1356 : vector<2x8xf32>
    %1361 = arith.select %1358, %1356, %1360 : vector<2x8xi1>, vector<2x8xf32>
    %1362 = vector.extract_strided_slice %1223 {offsets = [0, 0], sizes = [2, 1], strides = [1, 1]} : vector<2x4xf32> to vector<2x1xf32>
    %1363 = vector.broadcast %1362 : vector<2x1xf32> to vector<2x8xf32>
    %1364 = arith.mulf %1361, %1363 : vector<2x8xf32>
    %cst_267 = arith.constant dense<0xFF800000> : vector<2xf32>
    %1365 = vector.multi_reduction <maximumf>, %1364, %cst_267 [1] : vector<2x8xf32> to vector<2xf32>
    %1366 = vector.shape_cast %1365 : vector<2xf32> to vector<2x1xf32>
    %1367 = vector.broadcast %1366 : vector<2x1xf32> to vector<2x8xf32>
    %1368 = arith.subf %1364, %1367 : vector<2x8xf32>
    %1369 = math.exp %1368 : vector<2x8xf32>
    %cst_268 = arith.constant dense<0.000000e+00> : vector<2xf32>
    %1370 = vector.multi_reduction <add>, %1369, %cst_268 [1] : vector<2x8xf32> to vector<2xf32>
    %1371 = vector.shape_cast %1370 : vector<2xf32> to vector<2x1xf32>
    %1372 = tpu.reciprocal %1371 {approx = true} : vector<2x1xf32> -> vector<2x1xf32>
    %1373 = vector.broadcast %1372 : vector<2x1xf32> to vector<2x8xf32>
    %1374 = arith.mulf %1369, %1373 : vector<2x8xf32>
    %1375 = vector.shape_cast %1374 : vector<2x8xf32> to vector<2x8x1xf32>
    %1376 = vector.broadcast %1375 : vector<2x8x1xf32> to vector<2x8x8xf32>
    %1377 = arith.mulf %1376, %1349 : vector<2x8x8xf32>
    %cst_269 = arith.constant dense<0.000000e+00> : vector<2x8xf32>
    %1378 = vector.multi_reduction <add>, %1377, %cst_269 [1] : vector<2x8x8xf32> to vector<2x8xf32>
    %1379 = vector.extract_strided_slice %1348 {offsets = [0, 0, 8], sizes = [2, 8, 8], strides = [1, 1, 1]} : vector<2x8x32xf32> to vector<2x8x8xf32>
    %1380 = vector.extract_strided_slice %1221 {offsets = [0, 8], sizes = [2, 8], strides = [1, 1]} : vector<2x32xf32> to vector<2x8xf32>
    %1381 = vector.shape_cast %1380 : vector<2x8xf32> to vector<2x1x8xf32>
    %1382 = vector.broadcast %1381 : vector<2x1x8xf32> to vector<2x8x8xf32>
    %1383 = arith.mulf %1379, %1382 : vector<2x8x8xf32>
    %cst_270 = arith.constant dense<0.000000e+00> : vector<2x8xf32>
    %1384 = vector.multi_reduction <add>, %1383, %cst_270 [2] : vector<2x8x8xf32> to vector<2x8xf32>
    %1385 = vector.broadcast %1 : f32 to vector<2x8xf32>
    %1386 = arith.mulf %1384, %1385 : vector<2x8xf32>
    %cst_271 = arith.constant 0.000000e+00 : f32
    %1387 = vector.broadcast %cst_271 : f32 to vector<2x8xf32>
    %1388 = arith.cmpf ogt, %1386, %1387 : vector<2x8xf32>
    %cst_272 = arith.constant 2.000000e-01 : f32
    %1389 = vector.broadcast %cst_272 : f32 to vector<2x8xf32>
    %1390 = arith.mulf %1389, %1386 : vector<2x8xf32>
    %1391 = arith.select %1388, %1386, %1390 : vector<2x8xi1>, vector<2x8xf32>
    %1392 = vector.extract_strided_slice %1223 {offsets = [0, 1], sizes = [2, 1], strides = [1, 1]} : vector<2x4xf32> to vector<2x1xf32>
    %1393 = vector.broadcast %1392 : vector<2x1xf32> to vector<2x8xf32>
    %1394 = arith.mulf %1391, %1393 : vector<2x8xf32>
    %cst_273 = arith.constant dense<0xFF800000> : vector<2xf32>
    %1395 = vector.multi_reduction <maximumf>, %1394, %cst_273 [1] : vector<2x8xf32> to vector<2xf32>
    %1396 = vector.shape_cast %1395 : vector<2xf32> to vector<2x1xf32>
    %1397 = vector.broadcast %1396 : vector<2x1xf32> to vector<2x8xf32>
    %1398 = arith.subf %1394, %1397 : vector<2x8xf32>
    %1399 = math.exp %1398 : vector<2x8xf32>
    %cst_274 = arith.constant dense<0.000000e+00> : vector<2xf32>
    %1400 = vector.multi_reduction <add>, %1399, %cst_274 [1] : vector<2x8xf32> to vector<2xf32>
    %1401 = vector.shape_cast %1400 : vector<2xf32> to vector<2x1xf32>
    %1402 = tpu.reciprocal %1401 {approx = true} : vector<2x1xf32> -> vector<2x1xf32>
    %1403 = vector.broadcast %1402 : vector<2x1xf32> to vector<2x8xf32>
    %1404 = arith.mulf %1399, %1403 : vector<2x8xf32>
    %1405 = vector.shape_cast %1404 : vector<2x8xf32> to vector<2x8x1xf32>
    %1406 = vector.broadcast %1405 : vector<2x8x1xf32> to vector<2x8x8xf32>
    %1407 = arith.mulf %1406, %1379 : vector<2x8x8xf32>
    %cst_275 = arith.constant dense<0.000000e+00> : vector<2x8xf32>
    %1408 = vector.multi_reduction <add>, %1407, %cst_275 [1] : vector<2x8x8xf32> to vector<2x8xf32>
    %1409 = vector.extract_strided_slice %1348 {offsets = [0, 0, 16], sizes = [2, 8, 8], strides = [1, 1, 1]} : vector<2x8x32xf32> to vector<2x8x8xf32>
    %1410 = vector.extract_strided_slice %1221 {offsets = [0, 16], sizes = [2, 8], strides = [1, 1]} : vector<2x32xf32> to vector<2x8xf32>
    %1411 = vector.shape_cast %1410 : vector<2x8xf32> to vector<2x1x8xf32>
    %1412 = vector.broadcast %1411 : vector<2x1x8xf32> to vector<2x8x8xf32>
    %1413 = arith.mulf %1409, %1412 : vector<2x8x8xf32>
    %cst_276 = arith.constant dense<0.000000e+00> : vector<2x8xf32>
    %1414 = vector.multi_reduction <add>, %1413, %cst_276 [2] : vector<2x8x8xf32> to vector<2x8xf32>
    %1415 = vector.broadcast %1 : f32 to vector<2x8xf32>
    %1416 = arith.mulf %1414, %1415 : vector<2x8xf32>
    %cst_277 = arith.constant 0.000000e+00 : f32
    %1417 = vector.broadcast %cst_277 : f32 to vector<2x8xf32>
    %1418 = arith.cmpf ogt, %1416, %1417 : vector<2x8xf32>
    %cst_278 = arith.constant 2.000000e-01 : f32
    %1419 = vector.broadcast %cst_278 : f32 to vector<2x8xf32>
    %1420 = arith.mulf %1419, %1416 : vector<2x8xf32>
    %1421 = arith.select %1418, %1416, %1420 : vector<2x8xi1>, vector<2x8xf32>
    %1422 = vector.extract_strided_slice %1223 {offsets = [0, 2], sizes = [2, 1], strides = [1, 1]} : vector<2x4xf32> to vector<2x1xf32>
    %1423 = vector.broadcast %1422 : vector<2x1xf32> to vector<2x8xf32>
    %1424 = arith.mulf %1421, %1423 : vector<2x8xf32>
    %cst_279 = arith.constant dense<0xFF800000> : vector<2xf32>
    %1425 = vector.multi_reduction <maximumf>, %1424, %cst_279 [1] : vector<2x8xf32> to vector<2xf32>
    %1426 = vector.shape_cast %1425 : vector<2xf32> to vector<2x1xf32>
    %1427 = vector.broadcast %1426 : vector<2x1xf32> to vector<2x8xf32>
    %1428 = arith.subf %1424, %1427 : vector<2x8xf32>
    %1429 = math.exp %1428 : vector<2x8xf32>
    %cst_280 = arith.constant dense<0.000000e+00> : vector<2xf32>
    %1430 = vector.multi_reduction <add>, %1429, %cst_280 [1] : vector<2x8xf32> to vector<2xf32>
    %1431 = vector.shape_cast %1430 : vector<2xf32> to vector<2x1xf32>
    %1432 = tpu.reciprocal %1431 {approx = true} : vector<2x1xf32> -> vector<2x1xf32>
    %1433 = vector.broadcast %1432 : vector<2x1xf32> to vector<2x8xf32>
    %1434 = arith.mulf %1429, %1433 : vector<2x8xf32>
    %1435 = vector.shape_cast %1434 : vector<2x8xf32> to vector<2x8x1xf32>
    %1436 = vector.broadcast %1435 : vector<2x8x1xf32> to vector<2x8x8xf32>
    %1437 = arith.mulf %1436, %1409 : vector<2x8x8xf32>
    %cst_281 = arith.constant dense<0.000000e+00> : vector<2x8xf32>
    %1438 = vector.multi_reduction <add>, %1437, %cst_281 [1] : vector<2x8x8xf32> to vector<2x8xf32>
    %1439 = vector.extract_strided_slice %1348 {offsets = [0, 0, 24], sizes = [2, 8, 8], strides = [1, 1, 1]} : vector<2x8x32xf32> to vector<2x8x8xf32>
    %1440 = vector.extract_strided_slice %1221 {offsets = [0, 24], sizes = [2, 8], strides = [1, 1]} : vector<2x32xf32> to vector<2x8xf32>
    %1441 = vector.shape_cast %1440 : vector<2x8xf32> to vector<2x1x8xf32>
    %1442 = vector.broadcast %1441 : vector<2x1x8xf32> to vector<2x8x8xf32>
    %1443 = arith.mulf %1439, %1442 : vector<2x8x8xf32>
    %cst_282 = arith.constant dense<0.000000e+00> : vector<2x8xf32>
    %1444 = vector.multi_reduction <add>, %1443, %cst_282 [2] : vector<2x8x8xf32> to vector<2x8xf32>
    %1445 = vector.broadcast %1 : f32 to vector<2x8xf32>
    %1446 = arith.mulf %1444, %1445 : vector<2x8xf32>
    %cst_283 = arith.constant 0.000000e+00 : f32
    %1447 = vector.broadcast %cst_283 : f32 to vector<2x8xf32>
    %1448 = arith.cmpf ogt, %1446, %1447 : vector<2x8xf32>
    %cst_284 = arith.constant 2.000000e-01 : f32
    %1449 = vector.broadcast %cst_284 : f32 to vector<2x8xf32>
    %1450 = arith.mulf %1449, %1446 : vector<2x8xf32>
    %1451 = arith.select %1448, %1446, %1450 : vector<2x8xi1>, vector<2x8xf32>
    %1452 = vector.extract_strided_slice %1223 {offsets = [0, 3], sizes = [2, 1], strides = [1, 1]} : vector<2x4xf32> to vector<2x1xf32>
    %1453 = vector.broadcast %1452 : vector<2x1xf32> to vector<2x8xf32>
    %1454 = arith.mulf %1451, %1453 : vector<2x8xf32>
    %cst_285 = arith.constant dense<0xFF800000> : vector<2xf32>
    %1455 = vector.multi_reduction <maximumf>, %1454, %cst_285 [1] : vector<2x8xf32> to vector<2xf32>
    %1456 = vector.shape_cast %1455 : vector<2xf32> to vector<2x1xf32>
    %1457 = vector.broadcast %1456 : vector<2x1xf32> to vector<2x8xf32>
    %1458 = arith.subf %1454, %1457 : vector<2x8xf32>
    %1459 = math.exp %1458 : vector<2x8xf32>
    %cst_286 = arith.constant dense<0.000000e+00> : vector<2xf32>
    %1460 = vector.multi_reduction <add>, %1459, %cst_286 [1] : vector<2x8xf32> to vector<2xf32>
    %1461 = vector.shape_cast %1460 : vector<2xf32> to vector<2x1xf32>
    %1462 = tpu.reciprocal %1461 {approx = true} : vector<2x1xf32> -> vector<2x1xf32>
    %1463 = vector.broadcast %1462 : vector<2x1xf32> to vector<2x8xf32>
    %1464 = arith.mulf %1459, %1463 : vector<2x8xf32>
    %1465 = vector.shape_cast %1464 : vector<2x8xf32> to vector<2x8x1xf32>
    %1466 = vector.broadcast %1465 : vector<2x8x1xf32> to vector<2x8x8xf32>
    %1467 = arith.mulf %1466, %1439 : vector<2x8x8xf32>
    %cst_287 = arith.constant dense<0.000000e+00> : vector<2x8xf32>
    %1468 = vector.multi_reduction <add>, %1467, %cst_287 [1] : vector<2x8x8xf32> to vector<2x8xf32>
    %1469 = tpu.concatenate %1378, %1408, %1438, %1468 in 1 : vector<2x8xf32>, vector<2x8xf32>, vector<2x8xf32>, vector<2x8xf32> -> vector<2x32xf32>
    %cst_288 = arith.constant dense<0.000000e+00> : vector<2x32xf32>
    %1470 = tpu.matmul %1221, %819, %cst_288 {dimension_numbers = #tpu.dot_dimension_numbers<[1], [0], [0], [1], [0, 0, 1, 1], [], []>} : vector<2x32xf32>, vector<32x32xf32>, vector<2x32xf32> -> vector<2x32xf32>
    %1471 = vector.extract_strided_slice %1470 {offsets = [0, 0], sizes = [2, 8], strides = [1, 1]} : vector<2x32xf32> to vector<2x8xf32>
    %1472 = vector.extract_strided_slice %1346 {offsets = [0, 0], sizes = [2, 8], strides = [1, 1]} : vector<2x32xf32> to vector<2x8xf32>
    %1473 = arith.mulf %1471, %1472 : vector<2x8xf32>
    %cst_289 = arith.constant dense<0.000000e+00> : vector<2xf32>
    %1474 = vector.multi_reduction <add>, %1473, %cst_289 [1] : vector<2x8xf32> to vector<2xf32>
    %1475 = vector.shape_cast %1474 : vector<2xf32> to vector<2x1xf32>
    %1476 = vector.extract_strided_slice %1470 {offsets = [0, 0], sizes = [2, 8], strides = [1, 1]} : vector<2x32xf32> to vector<2x8xf32>
    %1477 = vector.extract_strided_slice %1469 {offsets = [0, 0], sizes = [2, 8], strides = [1, 1]} : vector<2x32xf32> to vector<2x8xf32>
    %1478 = arith.mulf %1476, %1477 : vector<2x8xf32>
    %cst_290 = arith.constant dense<0.000000e+00> : vector<2xf32>
    %1479 = vector.multi_reduction <add>, %1478, %cst_290 [1] : vector<2x8xf32> to vector<2xf32>
    %1480 = vector.shape_cast %1479 : vector<2xf32> to vector<2x1xf32>
    %1481 = tpu.concatenate %1475, %1480 in 1 : vector<2x1xf32>, vector<2x1xf32> -> vector<2x2xf32>
    %1482 = vector.broadcast %1 : f32 to vector<2x2xf32>
    %1483 = arith.mulf %1481, %1482 : vector<2x2xf32>
    %cst_291 = arith.constant dense<0xFF800000> : vector<2xf32>
    %1484 = vector.multi_reduction <maximumf>, %1483, %cst_291 [1] : vector<2x2xf32> to vector<2xf32>
    %1485 = vector.shape_cast %1484 : vector<2xf32> to vector<2x1xf32>
    %1486 = vector.broadcast %1485 : vector<2x1xf32> to vector<2x2xf32>
    %1487 = arith.subf %1483, %1486 : vector<2x2xf32>
    %1488 = math.exp %1487 : vector<2x2xf32>
    %cst_292 = arith.constant dense<0.000000e+00> : vector<2xf32>
    %1489 = vector.multi_reduction <add>, %1488, %cst_292 [1] : vector<2x2xf32> to vector<2xf32>
    %1490 = vector.shape_cast %1489 : vector<2xf32> to vector<2x1xf32>
    %1491 = tpu.reciprocal %1490 {approx = true} : vector<2x1xf32> -> vector<2x1xf32>
    %1492 = vector.broadcast %1491 : vector<2x1xf32> to vector<2x2xf32>
    %1493 = arith.mulf %1488, %1492 : vector<2x2xf32>
    %cst_293 = arith.constant 0.000000e+00 : f32
    %1494 = vector.broadcast %cst_293 : f32 to vector<2x8xf32>
    %1495 = vector.extract_strided_slice %1493 {offsets = [0, 0], sizes = [2, 1], strides = [1, 1]} : vector<2x2xf32> to vector<2x1xf32>
    %1496 = vector.extract_strided_slice %1346 {offsets = [0, 0], sizes = [2, 8], strides = [1, 1]} : vector<2x32xf32> to vector<2x8xf32>
    %1497 = vector.broadcast %1495 : vector<2x1xf32> to vector<2x8xf32>
    %1498 = arith.mulf %1497, %1496 : vector<2x8xf32>
    %1499 = arith.addf %1494, %1498 : vector<2x8xf32>
    %1500 = vector.extract_strided_slice %1493 {offsets = [0, 1], sizes = [2, 1], strides = [1, 1]} : vector<2x2xf32> to vector<2x1xf32>
    %1501 = vector.extract_strided_slice %1469 {offsets = [0, 0], sizes = [2, 8], strides = [1, 1]} : vector<2x32xf32> to vector<2x8xf32>
    %1502 = vector.broadcast %1500 : vector<2x1xf32> to vector<2x8xf32>
    %1503 = arith.mulf %1502, %1501 : vector<2x8xf32>
    %1504 = arith.addf %1499, %1503 : vector<2x8xf32>
    %1505 = vector.extract_strided_slice %1221 {offsets = [0, 0], sizes = [2, 8], strides = [1, 1]} : vector<2x32xf32> to vector<2x8xf32>
    %1506 = arith.addf %1505, %1504 : vector<2x8xf32>
    %1507 = vector.extract_strided_slice %1470 {offsets = [0, 8], sizes = [2, 8], strides = [1, 1]} : vector<2x32xf32> to vector<2x8xf32>
    %1508 = vector.extract_strided_slice %1346 {offsets = [0, 8], sizes = [2, 8], strides = [1, 1]} : vector<2x32xf32> to vector<2x8xf32>
    %1509 = arith.mulf %1507, %1508 : vector<2x8xf32>
    %cst_294 = arith.constant dense<0.000000e+00> : vector<2xf32>
    %1510 = vector.multi_reduction <add>, %1509, %cst_294 [1] : vector<2x8xf32> to vector<2xf32>
    %1511 = vector.shape_cast %1510 : vector<2xf32> to vector<2x1xf32>
    %1512 = vector.extract_strided_slice %1470 {offsets = [0, 8], sizes = [2, 8], strides = [1, 1]} : vector<2x32xf32> to vector<2x8xf32>
    %1513 = vector.extract_strided_slice %1469 {offsets = [0, 8], sizes = [2, 8], strides = [1, 1]} : vector<2x32xf32> to vector<2x8xf32>
    %1514 = arith.mulf %1512, %1513 : vector<2x8xf32>
    %cst_295 = arith.constant dense<0.000000e+00> : vector<2xf32>
    %1515 = vector.multi_reduction <add>, %1514, %cst_295 [1] : vector<2x8xf32> to vector<2xf32>
    %1516 = vector.shape_cast %1515 : vector<2xf32> to vector<2x1xf32>
    %1517 = tpu.concatenate %1511, %1516 in 1 : vector<2x1xf32>, vector<2x1xf32> -> vector<2x2xf32>
    %1518 = vector.broadcast %1 : f32 to vector<2x2xf32>
    %1519 = arith.mulf %1517, %1518 : vector<2x2xf32>
    %cst_296 = arith.constant dense<0xFF800000> : vector<2xf32>
    %1520 = vector.multi_reduction <maximumf>, %1519, %cst_296 [1] : vector<2x2xf32> to vector<2xf32>
    %1521 = vector.shape_cast %1520 : vector<2xf32> to vector<2x1xf32>
    %1522 = vector.broadcast %1521 : vector<2x1xf32> to vector<2x2xf32>
    %1523 = arith.subf %1519, %1522 : vector<2x2xf32>
    %1524 = math.exp %1523 : vector<2x2xf32>
    %cst_297 = arith.constant dense<0.000000e+00> : vector<2xf32>
    %1525 = vector.multi_reduction <add>, %1524, %cst_297 [1] : vector<2x2xf32> to vector<2xf32>
    %1526 = vector.shape_cast %1525 : vector<2xf32> to vector<2x1xf32>
    %1527 = tpu.reciprocal %1526 {approx = true} : vector<2x1xf32> -> vector<2x1xf32>
    %1528 = vector.broadcast %1527 : vector<2x1xf32> to vector<2x2xf32>
    %1529 = arith.mulf %1524, %1528 : vector<2x2xf32>
    %cst_298 = arith.constant 0.000000e+00 : f32
    %1530 = vector.broadcast %cst_298 : f32 to vector<2x8xf32>
    %1531 = vector.extract_strided_slice %1529 {offsets = [0, 0], sizes = [2, 1], strides = [1, 1]} : vector<2x2xf32> to vector<2x1xf32>
    %1532 = vector.extract_strided_slice %1346 {offsets = [0, 8], sizes = [2, 8], strides = [1, 1]} : vector<2x32xf32> to vector<2x8xf32>
    %1533 = vector.broadcast %1531 : vector<2x1xf32> to vector<2x8xf32>
    %1534 = arith.mulf %1533, %1532 : vector<2x8xf32>
    %1535 = arith.addf %1530, %1534 : vector<2x8xf32>
    %1536 = vector.extract_strided_slice %1529 {offsets = [0, 1], sizes = [2, 1], strides = [1, 1]} : vector<2x2xf32> to vector<2x1xf32>
    %1537 = vector.extract_strided_slice %1469 {offsets = [0, 8], sizes = [2, 8], strides = [1, 1]} : vector<2x32xf32> to vector<2x8xf32>
    %1538 = vector.broadcast %1536 : vector<2x1xf32> to vector<2x8xf32>
    %1539 = arith.mulf %1538, %1537 : vector<2x8xf32>
    %1540 = arith.addf %1535, %1539 : vector<2x8xf32>
    %1541 = vector.extract_strided_slice %1221 {offsets = [0, 8], sizes = [2, 8], strides = [1, 1]} : vector<2x32xf32> to vector<2x8xf32>
    %1542 = arith.addf %1541, %1540 : vector<2x8xf32>
    %1543 = vector.extract_strided_slice %1470 {offsets = [0, 16], sizes = [2, 8], strides = [1, 1]} : vector<2x32xf32> to vector<2x8xf32>
    %1544 = vector.extract_strided_slice %1346 {offsets = [0, 16], sizes = [2, 8], strides = [1, 1]} : vector<2x32xf32> to vector<2x8xf32>
    %1545 = arith.mulf %1543, %1544 : vector<2x8xf32>
    %cst_299 = arith.constant dense<0.000000e+00> : vector<2xf32>
    %1546 = vector.multi_reduction <add>, %1545, %cst_299 [1] : vector<2x8xf32> to vector<2xf32>
    %1547 = vector.shape_cast %1546 : vector<2xf32> to vector<2x1xf32>
    %1548 = vector.extract_strided_slice %1470 {offsets = [0, 16], sizes = [2, 8], strides = [1, 1]} : vector<2x32xf32> to vector<2x8xf32>
    %1549 = vector.extract_strided_slice %1469 {offsets = [0, 16], sizes = [2, 8], strides = [1, 1]} : vector<2x32xf32> to vector<2x8xf32>
    %1550 = arith.mulf %1548, %1549 : vector<2x8xf32>
    %cst_300 = arith.constant dense<0.000000e+00> : vector<2xf32>
    %1551 = vector.multi_reduction <add>, %1550, %cst_300 [1] : vector<2x8xf32> to vector<2xf32>
    %1552 = vector.shape_cast %1551 : vector<2xf32> to vector<2x1xf32>
    %1553 = tpu.concatenate %1547, %1552 in 1 : vector<2x1xf32>, vector<2x1xf32> -> vector<2x2xf32>
    %1554 = vector.broadcast %1 : f32 to vector<2x2xf32>
    %1555 = arith.mulf %1553, %1554 : vector<2x2xf32>
    %cst_301 = arith.constant dense<0xFF800000> : vector<2xf32>
    %1556 = vector.multi_reduction <maximumf>, %1555, %cst_301 [1] : vector<2x2xf32> to vector<2xf32>
    %1557 = vector.shape_cast %1556 : vector<2xf32> to vector<2x1xf32>
    %1558 = vector.broadcast %1557 : vector<2x1xf32> to vector<2x2xf32>
    %1559 = arith.subf %1555, %1558 : vector<2x2xf32>
    %1560 = math.exp %1559 : vector<2x2xf32>
    %cst_302 = arith.constant dense<0.000000e+00> : vector<2xf32>
    %1561 = vector.multi_reduction <add>, %1560, %cst_302 [1] : vector<2x2xf32> to vector<2xf32>
    %1562 = vector.shape_cast %1561 : vector<2xf32> to vector<2x1xf32>
    %1563 = tpu.reciprocal %1562 {approx = true} : vector<2x1xf32> -> vector<2x1xf32>
    %1564 = vector.broadcast %1563 : vector<2x1xf32> to vector<2x2xf32>
    %1565 = arith.mulf %1560, %1564 : vector<2x2xf32>
    %cst_303 = arith.constant 0.000000e+00 : f32
    %1566 = vector.broadcast %cst_303 : f32 to vector<2x8xf32>
    %1567 = vector.extract_strided_slice %1565 {offsets = [0, 0], sizes = [2, 1], strides = [1, 1]} : vector<2x2xf32> to vector<2x1xf32>
    %1568 = vector.extract_strided_slice %1346 {offsets = [0, 16], sizes = [2, 8], strides = [1, 1]} : vector<2x32xf32> to vector<2x8xf32>
    %1569 = vector.broadcast %1567 : vector<2x1xf32> to vector<2x8xf32>
    %1570 = arith.mulf %1569, %1568 : vector<2x8xf32>
    %1571 = arith.addf %1566, %1570 : vector<2x8xf32>
    %1572 = vector.extract_strided_slice %1565 {offsets = [0, 1], sizes = [2, 1], strides = [1, 1]} : vector<2x2xf32> to vector<2x1xf32>
    %1573 = vector.extract_strided_slice %1469 {offsets = [0, 16], sizes = [2, 8], strides = [1, 1]} : vector<2x32xf32> to vector<2x8xf32>
    %1574 = vector.broadcast %1572 : vector<2x1xf32> to vector<2x8xf32>
    %1575 = arith.mulf %1574, %1573 : vector<2x8xf32>
    %1576 = arith.addf %1571, %1575 : vector<2x8xf32>
    %1577 = vector.extract_strided_slice %1221 {offsets = [0, 16], sizes = [2, 8], strides = [1, 1]} : vector<2x32xf32> to vector<2x8xf32>
    %1578 = arith.addf %1577, %1576 : vector<2x8xf32>
    %1579 = vector.extract_strided_slice %1470 {offsets = [0, 24], sizes = [2, 8], strides = [1, 1]} : vector<2x32xf32> to vector<2x8xf32>
    %1580 = vector.extract_strided_slice %1346 {offsets = [0, 24], sizes = [2, 8], strides = [1, 1]} : vector<2x32xf32> to vector<2x8xf32>
    %1581 = arith.mulf %1579, %1580 : vector<2x8xf32>
    %cst_304 = arith.constant dense<0.000000e+00> : vector<2xf32>
    %1582 = vector.multi_reduction <add>, %1581, %cst_304 [1] : vector<2x8xf32> to vector<2xf32>
    %1583 = vector.shape_cast %1582 : vector<2xf32> to vector<2x1xf32>
    %1584 = vector.extract_strided_slice %1470 {offsets = [0, 24], sizes = [2, 8], strides = [1, 1]} : vector<2x32xf32> to vector<2x8xf32>
    %1585 = vector.extract_strided_slice %1469 {offsets = [0, 24], sizes = [2, 8], strides = [1, 1]} : vector<2x32xf32> to vector<2x8xf32>
    %1586 = arith.mulf %1584, %1585 : vector<2x8xf32>
    %cst_305 = arith.constant dense<0.000000e+00> : vector<2xf32>
    %1587 = vector.multi_reduction <add>, %1586, %cst_305 [1] : vector<2x8xf32> to vector<2xf32>
    %1588 = vector.shape_cast %1587 : vector<2xf32> to vector<2x1xf32>
    %1589 = tpu.concatenate %1583, %1588 in 1 : vector<2x1xf32>, vector<2x1xf32> -> vector<2x2xf32>
    %1590 = vector.broadcast %1 : f32 to vector<2x2xf32>
    %1591 = arith.mulf %1589, %1590 : vector<2x2xf32>
    %cst_306 = arith.constant dense<0xFF800000> : vector<2xf32>
    %1592 = vector.multi_reduction <maximumf>, %1591, %cst_306 [1] : vector<2x2xf32> to vector<2xf32>
    %1593 = vector.shape_cast %1592 : vector<2xf32> to vector<2x1xf32>
    %1594 = vector.broadcast %1593 : vector<2x1xf32> to vector<2x2xf32>
    %1595 = arith.subf %1591, %1594 : vector<2x2xf32>
    %1596 = math.exp %1595 : vector<2x2xf32>
    %cst_307 = arith.constant dense<0.000000e+00> : vector<2xf32>
    %1597 = vector.multi_reduction <add>, %1596, %cst_307 [1] : vector<2x2xf32> to vector<2xf32>
    %1598 = vector.shape_cast %1597 : vector<2xf32> to vector<2x1xf32>
    %1599 = tpu.reciprocal %1598 {approx = true} : vector<2x1xf32> -> vector<2x1xf32>
    %1600 = vector.broadcast %1599 : vector<2x1xf32> to vector<2x2xf32>
    %1601 = arith.mulf %1596, %1600 : vector<2x2xf32>
    %cst_308 = arith.constant 0.000000e+00 : f32
    %1602 = vector.broadcast %cst_308 : f32 to vector<2x8xf32>
    %1603 = vector.extract_strided_slice %1601 {offsets = [0, 0], sizes = [2, 1], strides = [1, 1]} : vector<2x2xf32> to vector<2x1xf32>
    %1604 = vector.extract_strided_slice %1346 {offsets = [0, 24], sizes = [2, 8], strides = [1, 1]} : vector<2x32xf32> to vector<2x8xf32>
    %1605 = vector.broadcast %1603 : vector<2x1xf32> to vector<2x8xf32>
    %1606 = arith.mulf %1605, %1604 : vector<2x8xf32>
    %1607 = arith.addf %1602, %1606 : vector<2x8xf32>
    %1608 = vector.extract_strided_slice %1601 {offsets = [0, 1], sizes = [2, 1], strides = [1, 1]} : vector<2x2xf32> to vector<2x1xf32>
    %1609 = vector.extract_strided_slice %1469 {offsets = [0, 24], sizes = [2, 8], strides = [1, 1]} : vector<2x32xf32> to vector<2x8xf32>
    %1610 = vector.broadcast %1608 : vector<2x1xf32> to vector<2x8xf32>
    %1611 = arith.mulf %1610, %1609 : vector<2x8xf32>
    %1612 = arith.addf %1607, %1611 : vector<2x8xf32>
    %1613 = vector.extract_strided_slice %1221 {offsets = [0, 24], sizes = [2, 8], strides = [1, 1]} : vector<2x32xf32> to vector<2x8xf32>
    %1614 = arith.addf %1613, %1612 : vector<2x8xf32>
    %1615 = tpu.concatenate %1506, %1542, %1578, %1614 in 1 : vector<2x8xf32>, vector<2x8xf32>, vector<2x8xf32>, vector<2x8xf32> -> vector<2x32xf32>
    %1616 = arith.mulf %808, %1615 : vector<2x32xf32>
    %c0_309 = arith.constant 0 : index
    %c0_310 = arith.constant 0 : index
    %1617 = vector.load %arg4[%c0_309, %c0_310] : memref<1x4xf32, #tpu.memory_space<vmem>>, vector<1x4xf32>
    %cst_311 = arith.constant dense<0xFF800000> : vector<1xf32>
    %1618 = vector.multi_reduction <maximumf>, %1617, %cst_311 [1] : vector<1x4xf32> to vector<1xf32>
    %1619 = vector.shape_cast %1618 : vector<1xf32> to vector<1x1xf32>
    %1620 = vector.broadcast %1619 : vector<1x1xf32> to vector<1x4xf32>
    %1621 = arith.subf %1617, %1620 : vector<1x4xf32>
    %1622 = math.exp %1621 : vector<1x4xf32>
    %cst_312 = arith.constant dense<0.000000e+00> : vector<1xf32>
    %1623 = vector.multi_reduction <add>, %1622, %cst_312 [1] : vector<1x4xf32> to vector<1xf32>
    %1624 = vector.shape_cast %1623 : vector<1xf32> to vector<1x1xf32>
    %1625 = tpu.reciprocal %1624 {approx = true} : vector<1x1xf32> -> vector<1x1xf32>
    %1626 = vector.broadcast %1625 : vector<1x1xf32> to vector<1x4xf32>
    %1627 = arith.mulf %1622, %1626 : vector<1x4xf32>
    %cst_313 = arith.constant 0.000000e+00 : f32
    %1628 = vector.broadcast %cst_313 : f32 to vector<2x1xf32>
    %1629 = vector.extract_strided_slice %1627 {offsets = [0, 0], sizes = [1, 1], strides = [1, 1]} : vector<1x4xf32> to vector<1x1xf32>
    %1630 = vector.extract_strided_slice %1616 {offsets = [0, 0], sizes = [2, 8], strides = [1, 1]} : vector<2x32xf32> to vector<2x8xf32>
    %cst_314 = arith.constant dense<0.000000e+00> : vector<2xf32>
    %1631 = vector.multi_reduction <add>, %1630, %cst_314 [1] : vector<2x8xf32> to vector<2xf32>
    %1632 = vector.shape_cast %1631 : vector<2xf32> to vector<2x1xf32>
    %1633 = vector.broadcast %1629 : vector<1x1xf32> to vector<2x1xf32>
    %1634 = arith.mulf %1633, %1632 : vector<2x1xf32>
    %1635 = arith.addf %1628, %1634 : vector<2x1xf32>
    %1636 = vector.extract_strided_slice %1627 {offsets = [0, 1], sizes = [1, 1], strides = [1, 1]} : vector<1x4xf32> to vector<1x1xf32>
    %1637 = vector.extract_strided_slice %1616 {offsets = [0, 8], sizes = [2, 8], strides = [1, 1]} : vector<2x32xf32> to vector<2x8xf32>
    %cst_315 = arith.constant dense<0.000000e+00> : vector<2xf32>
    %1638 = vector.multi_reduction <add>, %1637, %cst_315 [1] : vector<2x8xf32> to vector<2xf32>
    %1639 = vector.shape_cast %1638 : vector<2xf32> to vector<2x1xf32>
    %1640 = vector.broadcast %1636 : vector<1x1xf32> to vector<2x1xf32>
    %1641 = arith.mulf %1640, %1639 : vector<2x1xf32>
    %1642 = arith.addf %1635, %1641 : vector<2x1xf32>
    %1643 = vector.extract_strided_slice %1627 {offsets = [0, 2], sizes = [1, 1], strides = [1, 1]} : vector<1x4xf32> to vector<1x1xf32>
    %1644 = vector.extract_strided_slice %1616 {offsets = [0, 16], sizes = [2, 8], strides = [1, 1]} : vector<2x32xf32> to vector<2x8xf32>
    %cst_316 = arith.constant dense<0.000000e+00> : vector<2xf32>
    %1645 = vector.multi_reduction <add>, %1644, %cst_316 [1] : vector<2x8xf32> to vector<2xf32>
    %1646 = vector.shape_cast %1645 : vector<2xf32> to vector<2x1xf32>
    %1647 = vector.broadcast %1643 : vector<1x1xf32> to vector<2x1xf32>
    %1648 = arith.mulf %1647, %1646 : vector<2x1xf32>
    %1649 = arith.addf %1642, %1648 : vector<2x1xf32>
    %1650 = vector.extract_strided_slice %1627 {offsets = [0, 3], sizes = [1, 1], strides = [1, 1]} : vector<1x4xf32> to vector<1x1xf32>
    %1651 = vector.extract_strided_slice %1616 {offsets = [0, 24], sizes = [2, 8], strides = [1, 1]} : vector<2x32xf32> to vector<2x8xf32>
    %cst_317 = arith.constant dense<0.000000e+00> : vector<2xf32>
    %1652 = vector.multi_reduction <add>, %1651, %cst_317 [1] : vector<2x8xf32> to vector<2xf32>
    %1653 = vector.shape_cast %1652 : vector<2xf32> to vector<2x1xf32>
    %1654 = vector.broadcast %1650 : vector<1x1xf32> to vector<2x1xf32>
    %1655 = arith.mulf %1654, %1653 : vector<2x1xf32>
    %1656 = arith.addf %1649, %1655 : vector<2x1xf32>
    %cst_318 = arith.constant 0.000000e+00 : f32
    %1657 = vector.broadcast %cst_318 : f32 to vector<6x1xf32>
    %1658 = tpu.concatenate %1656, %1657 in 0 : vector<2x1xf32>, vector<6x1xf32> -> vector<8x1xf32>
    %1659 = vector.shape_cast %1658 : vector<8x1xf32> to vector<8x1xf32>
    %1660 = vector.broadcast %1659 : vector<8x1xf32> to vector<8x128xf32>
    %c0_319 = arith.constant 0 : index
    %c0_320 = arith.constant 0 : index
    %1661 = vector.load %arg5[%c0_319, %c0_320] : memref<8x128xf32, #tpu.memory_space<vmem>>, vector<8x128xf32>
    tpu.vector_store %arg5[%c0_319, %c0_320], %1660 {strides = array<i32>} : memref<8x128xf32, #tpu.memory_space<vmem>>, vector<8x128xf32>,
    return
  }
}

</mosaic_0001>

<llo_original>
// kernel: tpu_custom_call.1
$region0: #{tpu_custom_call.1}
  #allocation0 [shape = 'u32[]', space=smem, size = 0x4, offset = 0x4, fixed_abs, tag = 'smem constant byte address 0x4 - core index']
  #allocation1 [shape = 'u32[144,128]{1,0:T(1,128)}', space=vmem, size = 0x12000, scoped, tag = 'internal scratch']
  %s0 = inlined_call_operand.hbm [shape: f32[2,2,32], index: 0, kind: input, shape index: {}]
  %s1 = inlined_call_operand.hbm [shape: f32[2,2,2,8,32], index: 1, kind: input, shape index: {}]
  %s2 = inlined_call_operand.hbm [shape: f32[2,32,32], index: 2, kind: input, shape index: {}]
  %s3 = inlined_call_operand.hbm [shape: f32[2,32,32], index: 3, kind: input, shape index: {}]
  %s4 = inlined_call_operand.vmem [shape: f32[1,4], index: 4, kind: input, shape index: {}]
  %s5 = inlined_call_operand.hbm [shape: f32[8,128], index: 5, kind: output, shape index: {}]
  %s6 = sld [smem:[#allocation0]]
  $region46: #{tpu_custom_call.1} parent=0
    _
  %s8 = ssub.s32 1, %s6
  %s9 = scalar_select 0, %s8, %s6
  $region1: #{tpu_custom_call.1} parent=0
    #allocation2 [shape = 'u8[2048]{0}', space=vmem, size = 0x800, scoped, tag = 'input window, operand 0, single buffered']
    #allocation3 [shape = 's32[1]{0}', space=sflag, size = 0x4, scoped, tag = 'scoped memory for tpu_custom_call.1']
    #allocation4 [shape = 's32[1]{0}', space=sflag, size = 0x4, scoped, tag = 'scoped memory for tpu_custom_call.1']
    #allocation5 [shape = 'u8[32768]{0}', space=vmem, size = 0x8000, scoped, tag = 'input window, operand 1, single buffered']
    #allocation6 [shape = 's32[1]{0}', space=sflag, size = 0x4, scoped, tag = 'scoped memory for tpu_custom_call.1']
    #allocation7 [shape = 'u8[32768]{0}', space=vmem, size = 0x8000, scoped, tag = 'input window, operand 2, single buffered']
    #allocation8 [shape = 'u8[32768]{0}', space=vmem, size = 0x8000, scoped, tag = 'input window, operand 3, single buffered']
    #allocation9 [shape = 's32[1]{0}', space=sflag, size = 0x4, scoped, tag = 'scoped memory for tpu_custom_call.1']
    #allocation10 [shape = 'u8[4096]{0}', space=vmem, size = 0x1000, scoped, tag = 'output window, operand 0, single buffered']
    %10 = vsyncpa [#allocation3], 0
    %11 = vsyncpa [#allocation6], 0
    %12 = vsyncpa [#allocation9], 0
    %13 = vsyncpa [#allocation4], 0
    // Predicated region
    $region2: #{tpu_custom_call.1} parent=1 // pred_check
      _
    $region3: #{tpu_custom_call.1} parent=1 // pred_check_branch
      %15 = sbr.rel (0) target = $region5
    $region4: #{tpu_custom_call.1} parent=1 // pred_region
      %s17 = ssub.s32 64, 64
      %18 = vsyncadd [#allocation3], %s17
      %s19 = sshll.u32 [#allocation2], 4
      %s20 = int_to_ptr.vmem [resolvable:$true] %s19
      %25 = dma.hbm_to_vmem [thread:$0]  %s0, 64, %s20, [#allocation3], 32, 32, 2
    $region5: #{tpu_custom_call.1} parent=1 // pred_fallthru
      _
    // Predicated region
    $region6: #{tpu_custom_call.1} parent=1 // pred_check
      _
    $region7: #{tpu_custom_call.1} parent=1 // pred_check_branch
      %27 = sbr.rel (0) target = $region9
    $region8: #{tpu_custom_call.1} parent=1 // pred_region
      %s29 = ssub.s32 1024, 1024
      %30 = vsyncadd [#allocation6], %s29
      %s31 = sshll.u32 [#allocation5], 4
      %s32 = int_to_ptr.vmem [resolvable:$true] %s31
      %37 = dma.hbm_to_vmem [thread:$0]  %s1, 1024, %s32, [#allocation6], 128, 128, 8
    $region9: #{tpu_custom_call.1} parent=1 // pred_fallthru
      _
    // Predicated region
    $region10: #{tpu_custom_call.1} parent=1 // pred_check
      _
    $region11: #{tpu_custom_call.1} parent=1 // pred_check_branch
      %39 = sbr.rel (0) target = $region13
    $region12: #{tpu_custom_call.1} parent=1 // pred_region
      %s41 = ssub.s32 1024, 1024
      %42 = vsyncadd [#allocation6], %s41
      %s43 = sshll.u32 [#allocation7], 4
      %s44 = int_to_ptr.vmem [resolvable:$true] %s43
      %49 = dma.hbm_to_vmem [thread:$0]  %s2, 1024, %s44, [#allocation6], 128, 128, 8
    $region13: #{tpu_custom_call.1} parent=1 // pred_fallthru
      _
    // Predicated region
    $region14: #{tpu_custom_call.1} parent=1 // pred_check
      _
    $region15: #{tpu_custom_call.1} parent=1 // pred_check_branch
      %51 = sbr.rel (0) target = $region17
    $region16: #{tpu_custom_call.1} parent=1 // pred_region
      %s53 = ssub.s32 1024, 1024
      %54 = vsyncadd [#allocation9], %s53
      %s55 = sshll.u32 [#allocation8], 4
      %s56 = int_to_ptr.vmem [resolvable:$true] %s55
      %61 = dma.hbm_to_vmem [thread:$0]  %s3, 1024, %s56, [#allocation9], 128, 128, 8
    $region17: #{tpu_custom_call.1} parent=1 // pred_fallthru
      _
    // Predicated region
    $region18: #{tpu_custom_call.1} parent=1 // pred_check
      _
    $region19: #{tpu_custom_call.1} parent=1 // pred_check_branch
      %63 = sbr.rel (0) target = $region21
    $region20: #{tpu_custom_call.1} parent=1 // pred_region
      _
    $region21: #{tpu_custom_call.1} parent=1 // pred_fallthru
      _
    // Predicated region
    $region22: #{tpu_custom_call.1} parent=1 // pred_check
      _
    $region23: #{tpu_custom_call.1} parent=1 // pred_check_branch
      %65 = sbr.rel (0) target = $region25
    $region24: #{tpu_custom_call.1} parent=1 // pred_region
      %66 = dma.done [#allocation3], 64
    $region25: #{tpu_custom_call.1} parent=1 // pred_fallthru
      _
    // Predicated region
    $region26: #{tpu_custom_call.1} parent=1 // pred_check
      _
    $region27: #{tpu_custom_call.1} parent=1 // pred_check_branch
      %68 = sbr.rel (0) target = $region29
    $region28: #{tpu_custom_call.1} parent=1 // pred_region
      %69 = dma.done [#allocation6], 1024
    $region29: #{tpu_custom_call.1} parent=1 // pred_fallthru
      _
    // Predicated region
    $region30: #{tpu_custom_call.1} parent=1 // pred_check
      _
    $region31: #{tpu_custom_call.1} parent=1 // pred_check_branch
      %71 = sbr.rel (0) target = $region33
    $region32: #{tpu_custom_call.1} parent=1 // pred_region
      %72 = dma.done [#allocation6], 1024
    $region33: #{tpu_custom_call.1} parent=1 // pred_fallthru
      _
    // Predicated region
    $region34: #{tpu_custom_call.1} parent=1 // pred_check
      _
    $region35: #{tpu_custom_call.1} parent=1 // pred_check_branch
      %74 = sbr.rel (0) target = $region37
    $region36: #{tpu_custom_call.1} parent=1 // pred_region
      %75 = dma.done [#allocation9], 1024
    $region37: #{tpu_custom_call.1} parent=1 // pred_fallthru
      _
    %v76 = vld [vmem:[#allocation2] sm:$0x3]
    %v77 = vld [vmem:[#allocation5] sm:$0xff]
    %v78 = vld [vmem:[#allocation5 + $0x8] sm:$0xff]
    %v79 = vld [vmem:[#allocation5 + $0x10] sm:$0xff]
    %v80 = vld [vmem:[#allocation5 + $0x18] sm:$0xff]
    %v81 = vld [vmem:[#allocation7] sm:$0xff]
    %v82 = vld [vmem:[#allocation7 + $0x8] sm:$0xff]
    %v83 = vld [vmem:[#allocation7 + $0x10] sm:$0xff]
    %v84 = vld [vmem:[#allocation7 + $0x18] sm:$0xff]
    %vm85 = vcmask 261120
    %v87 = vsel %vm85, %v77, 0
    %v90 = vsel %vm85, %v78, 0
    %v93 = vsel %vm85, %v79, 0
    %v96 = vsel %vm85, %v80, 0
    %98 = vmatprep.subr.mxu0 0.0
    %99 = vmatpush1.msra.mxu0 %v81
    %100 = vmatprep.subr.mxu0 0.0
    %101 = vmatpush1.msra.mxu0 %v82
    %102 = vmatprep.subr.mxu0 0.0
    %103 = vmatpush1.msra.mxu0 %v83
    %104 = vmatprep.subr.mxu0 0.0
    %105 = vmatpush1.msra.mxu0 %v84
    %106 = vmatprep.subr.mxu0 0.0
    %107 = vmatpush1.msra.mxu0 0.0
    %108 = vmatprep.subr.mxu0 0.0
    %109 = vmatpush1.msra.mxu0 0.0
    %110 = vmatprep.subr.mxu0 0.0
    %111 = vmatpush1.msra.mxu0 0.0
    %112 = vmatprep.subr.mxu0 0.0
    %113 = vmatpush1.msra.mxu0 0.0
    %114 = vmatprep.subr.mxu0 0.0
    %115 = vmatpush1.msra.mxu0 0.0
    %116 = vmatprep.subr.mxu0 0.0
    %117 = vmatpush1.msra.mxu0 0.0
    %118 = vmatprep.subr.mxu0 0.0
    %119 = vmatpush1.msra.mxu0 0.0
    %120 = vmatprep.subr.mxu0 0.0
    %121 = vmatpush1.msra.mxu0 0.0
    %122 = vmatprep.subr.mxu0 0.0
    %123 = vmatpush1.msra.mxu0 0.0
    %124 = vmatprep.subr.mxu0 0.0
    %125 = vmatpush1.msra.mxu0 0.0
    %126 = vmatprep.subr.mxu0 0.0
    %127 = vmatpush1.msra.mxu0 0.0
    %128 = vmatprep.subr.mxu0 0.0
    %129 = vmatpush1.msra.mxu0 0.0
    %130 = vmatprep.subr.mxu0 0.0
    %131 = vmatpush1.msra.mxu0 0.0
    %132 = vmatprep.subr.mxu0 0.0
    %133 = vmatpush1.msra.mxu0 0.0
    %134 = vmatprep.subr.mxu0 0.0
    %135 = vmatpush1.msra.mxu0 0.0
    %136 = vmatprep.subr.mxu0 0.0
    %137 = vmatpush1.msra.mxu0 0.0
    %138 = vmatprep.subr.mxu0 0.0
    %139 = vmatpush1.msra.mxu0 0.0
    %140 = vmatprep.subr.mxu0 0.0
    %141 = vmatpush1.msra.mxu0 0.0
    %142 = vmatprep.subr.mxu0 0.0
    %143 = vmatpush1.msra.mxu0 0.0
    %144 = vmatprep.subr.mxu0 0.0
    %145 = vmatpush1.msra.mxu0 0.0
    %146 = vmatprep.subr.mxu0 0.0
    %147 = vmatpush1.msra.mxu0 0.0
    %148 = vmatprep.subr.mxu0 0.0
    %149 = vmatpush1.msra.mxu0 0.0
    %150 = vmatprep.subr.mxu0 0.0
    %151 = vmatpush1.msra.mxu0 0.0
    %152 = vmatprep.subr.mxu0 0.0
    %153 = vmatpush1.msra.mxu0 0.0
    %154 = vmatprep.subr.mxu0 0.0
    %155 = vmatpush1.msra.mxu0 0.0
    %156 = vmatprep.subr.mxu0 0.0
    %157 = vmatpush1.msra.mxu0 0.0
    %158 = vmatprep.subr.mxu0 0.0
    %159 = vmatpush1.msra.mxu0 0.0
    %160 = vmatprep.subr.mxu0 0.0
    %161 = vmatpush1.msra.mxu0 0.0
    %162 = vmatprep.mubr.f32.mxu0 0.0
    %163 = vmatmul.mubr.f32.gmra.mrb[0].mxu0 %v87
    %v164 = vpop.f32.mrb[0].mxu0
    %v165 = vadd.f32 0.0, %v164
    %v166 = vpop.f32.mrb[0].mxu0
    %167 = vmatprep.mubr.f32.mxu0 0.0
    %168 = vmatmul.mubr.f32.gmra.mrb[0].mxu0 %v90
    %v169 = vpop.f32.mrb[0].mxu0
    %v170 = vadd.f32 0.0, %v169
    %v171 = vpop.f32.mrb[0].mxu0
    %172 = vmatprep.mubr.f32.mxu0 0.0
    %173 = vmatmul.mubr.f32.gmra.mrb[0].mxu0 %v93
    %v174 = vpop.f32.mrb[0].mxu0
    %v175 = vadd.f32 0.0, %v174
    %v176 = vpop.f32.mrb[0].mxu0
    %177 = vmatprep.mubr.f32.mxu0 0.0
    %178 = vmatmul.mubr.f32.gmra.mrb[0].mxu0 %v96
    %v179 = vpop.f32.mrb[0].mxu0
    %v180 = vadd.f32 0.0, %v179
    %v181 = vpop.f32.mrb[0].mxu0
    %182 = vdwg.mxu0
    %v183 = vld [vmem:[#allocation8] sm:$0xff]
    %v184 = vld [vmem:[#allocation8 + $0x8] sm:$0xff]
    %v185 = vld [vmem:[#allocation8 + $0x10] sm:$0xff]
    %v186 = vld [vmem:[#allocation8 + $0x18] sm:$0xff]
    %v189 = vunpack.c.l.s4 1966171168
    %v190 = vunpack.c.0.s8 %v189
    %v191 = vlaneseq
    %v192 = vshrl.u32 %v191, 7
    %v193 = vsub.s32 %v190, %v192
    %v194 = vrot.slane %v76, %v193
    %v195 = vcombine.high %v194, %v194
    %v197 = vunpack.c.l.s4 1966171168
    %v198 = vunpack.c.0.s8 %v197
    %v199 = vlaneseq
    %v200 = vshrl.u32 %v199, 7
    %v201 = vsub.s32 %v198, %v200
    %v202 = vrot.slane %v194, %v201
    %v204 = vunpack.c.l.s4 1966171168
    %v205 = vunpack.c.0.s8 %v204
    %v206 = vlaneseq
    %v207 = vshrl.u32 %v206, 7
    %v208 = vsub.s32 %v205, %v207
    %v209 = vrot.slane %v195, %v208
    %v210 = vlaneseq
    %v211 = vshrl.u32 %v210, 7
    %v212 = vsub.s32 0, %v211
    %v213 = vrot.slane %v202, %v212
    %v214 = vlaneseq
    %v215 = vshrl.u32 %v214, 7
    %v216 = vsub.s32 0, %v215
    %v217 = vrot.slane %v209, %v216
    %v220 = vmul.f32 %v165, %v213
    %v221 = vmul.f32 %v175, %v217
    %vm222 = vcmask 64512
    %v223 = vsel %vm222, %v220, 0.0
    %224 = vadd.xlane.f32.xlu0 %v223
    %v225 = vpop.xlane.xlu0 %224
    %v226 = vsel %vm222, %v221, 0.0
    %227 = vadd.xlane.f32.xlu0 %v226
    %v228 = vpop.xlane.xlu0 %227
    %v229 = vmul.f32 %v225, 0.35355338
    %v230 = vmul.f32 %v228, 0.35355338
    %vm231 = vcmp.gt.f32.partialorder %v229, 0.0
    %vm232 = vcmp.gt.f32.partialorder %v230, 0.0
    %v233 = vmul.f32 %v229, 0.2
    %v234 = vmul.f32 %v230, 0.2
    %v235 = vsel %vm231, %v229, %v233
    %v236 = vsel %vm232, %v230, %v234
    %v239 = vlaneseq
    %v240 = vand.u32 %v239, 127
    %v241 = vlaneseq
    %v242 = vshrl.u32 %v241, 7
    %v243 = vsub.s32 %v240, %v242
    %v244 = vrot.slane %v235, %v243
    %v245 = vlaneseq
    %v246 = vshrl.u32 %v245, 7
    %v247 = vsub.s32 %v240, %v246
    %v248 = vrot.slane %v236, %v247
    %vm249 = vcmask 1041409
    %v250 = vsel %vm249, %v248, %v244
    %vm252 = vcmask 58368
    %v253 = vsel %vm252, %v250, -inf
    %254 = vmax.xlane.f32.xlu0 %v253
    %v255 = vpop.xlane.xlu0 %254
    %v257 = vlaneseq
    %v258 = vshrl.u32 %v257, 7
    %v259 = vsub.s32 0, %v258
    %v260 = vrot.slane %v255, %v259
    %v261 = vlaneseq
    %v262 = vshrl.u32 %v261, 7
    %v263 = vsub.s32 1, %v262
    %v264 = vrot.slane %v255, %v263
    %v267 = vsub.f32 %v235, %v260
    %v268 = vsub.f32 %v236, %v264
    %v269 = vmul.f32 %v267, 1.442695
    %v270 = vpow.pop %v269
    %v271 = vmul.f32 %v268, 1.442695
    %v272 = vpow.pop %v271
    %275 = vset.pattern.permute.xlu0 0
    %276 = vperm.xlu0 %275, %v270
    %v277 = vpop.permute.xlu0 %276
    %278 = vset.pattern.permute.xlu0 0
    %279 = vperm.xlu0 %278, %v272
    %v280 = vpop.permute.xlu0 %279
    %v281 = vlaneseq
    %v282 = vshrl.u32 %v281, 7
    %v283 = vsub.s32 %v240, %v282
    %v284 = vrot.slane %v277, %v283
    %v285 = vlaneseq
    %v286 = vshrl.u32 %v285, 7
    %v287 = vsub.s32 %v240, %v286
    %v288 = vrot.slane %v280, %v287
    %v289 = vsel %vm249, %v288, %v284
    %v291 = vsel %vm252, %v289, 0.0
    %292 = vadd.xlane.f32.xlu0 %v291
    %v293 = vpop.xlane.xlu0 %292
    %v294 = vrcp.pop %v293
    %v296 = vlaneseq
    %v297 = vshrl.u32 %v296, 7
    %v298 = vsub.s32 0, %v297
    %v299 = vrot.slane %v294, %v298
    %v300 = vlaneseq
    %v301 = vshrl.u32 %v300, 7
    %v302 = vsub.s32 1, %v301
    %v303 = vrot.slane %v294, %v302
    %v306 = vmul.f32 %v270, %v299
    %v307 = vmul.f32 %v272, %v303
    %309 = vset.pattern.permute.xlu0 0
    %310 = vperm.xlu0 %309, %v306
    %v311 = vpop.permute.xlu0 %310
    %314 = vset.pattern.permute.xlu0 0
    %315 = vperm.xlu0 %314, %v307
    %v316 = vpop.permute.xlu0 %315
    %v318 = vmul.f32 %v311, %v165
    %v319 = vmul.f32 %v316, %v175
    %v320 = vsel %vm222, %v318, 0.0
    %v321 = vrot.slane %v320, 4
    %v322 = vadd.f32 %v320, %v321
    %v323 = vrot.slane %v322, 2
    %v324 = vadd.f32 %v322, %v323
    %v325 = vrot.slane %v324, 1
    %v326 = vadd.f32 %v324, %v325
    %v327 = vsel %vm222, %v319, 0.0
    %v328 = vrot.slane %v327, 4
    %v329 = vadd.f32 %v327, %v328
    %v330 = vrot.slane %v329, 2
    %v331 = vadd.f32 %v329, %v330
    %v332 = vrot.slane %v331, 1
    %v333 = vadd.f32 %v331, %v332
    %336 = vrot.lane.b32.xlu0 %v220, 120
    %v337 = vpop.permute.xlu0 %336
    %338 = vrot.lane.b32.xlu0 %v221, 120
    %v339 = vpop.permute.xlu0 %338
    %v342 = vsel %vm222, %v337, 0.0
    %343 = vadd.xlane.f32.xlu0 %v342
    %v344 = vpop.xlane.xlu0 %343
    %v345 = vsel %vm222, %v339, 0.0
    %346 = vadd.xlane.f32.xlu0 %v345
    %v347 = vpop.xlane.xlu0 %346
    %v348 = vmul.f32 %v344, 0.35355338
    %v349 = vmul.f32 %v347, 0.35355338
    %vm350 = vcmp.gt.f32.partialorder %v348, 0.0
    %vm351 = vcmp.gt.f32.partialorder %v349, 0.0
    %v352 = vmul.f32 %v348, 0.2
    %v353 = vmul.f32 %v349, 0.2
    %v354 = vsel %vm350, %v348, %v352
    %v355 = vsel %vm351, %v349, %v353
    %v358 = vlaneseq
    %v359 = vshrl.u32 %v358, 7
    %v360 = vsub.s32 %v240, %v359
    %v361 = vrot.slane %v354, %v360
    %v362 = vlaneseq
    %v363 = vshrl.u32 %v362, 7
    %v364 = vsub.s32 %v240, %v363
    %v365 = vrot.slane %v355, %v364
    %v366 = vsel %vm249, %v365, %v361
    %v368 = vsel %vm252, %v366, -inf
    %369 = vmax.xlane.f32.xlu0 %v368
    %v370 = vpop.xlane.xlu0 %369
    %v372 = vlaneseq
    %v373 = vshrl.u32 %v372, 7
    %v374 = vsub.s32 0, %v373
    %v375 = vrot.slane %v370, %v374
    %v376 = vlaneseq
    %v377 = vshrl.u32 %v376, 7
    %v378 = vsub.s32 1, %v377
    %v379 = vrot.slane %v370, %v378
    %v382 = vsub.f32 %v354, %v375
    %v383 = vsub.f32 %v355, %v379
    %v384 = vmul.f32 %v382, 1.442695
    %v385 = vpow.pop %v384
    %v386 = vmul.f32 %v383, 1.442695
    %v387 = vpow.pop %v386
    %390 = vset.pattern.permute.xlu0 0
    %391 = vperm.xlu0 %390, %v385
    %v392 = vpop.permute.xlu0 %391
    %393 = vset.pattern.permute.xlu0 0
    %394 = vperm.xlu0 %393, %v387
    %v395 = vpop.permute.xlu0 %394
    %v396 = vlaneseq
    %v397 = vshrl.u32 %v396, 7
    %v398 = vsub.s32 %v240, %v397
    %v399 = vrot.slane %v392, %v398
    %v400 = vlaneseq
    %v401 = vshrl.u32 %v400, 7
    %v402 = vsub.s32 %v240, %v401
    %v403 = vrot.slane %v395, %v402
    %v404 = vsel %vm249, %v403, %v399
    %v406 = vsel %vm252, %v404, 0.0
    %407 = vadd.xlane.f32.xlu0 %v406
    %v408 = vpop.xlane.xlu0 %407
    %v409 = vrcp.pop %v408
    %v411 = vlaneseq
    %v412 = vshrl.u32 %v411, 7
    %v413 = vsub.s32 0, %v412
    %v414 = vrot.slane %v409, %v413
    %v415 = vlaneseq
    %v416 = vshrl.u32 %v415, 7
    %v417 = vsub.s32 1, %v416
    %v418 = vrot.slane %v409, %v417
    %v421 = vmul.f32 %v385, %v414
    %v422 = vmul.f32 %v387, %v418
    %424 = vset.pattern.permute.xlu0 0
    %425 = vperm.xlu0 %424, %v421
    %v426 = vpop.permute.xlu0 %425
    %429 = vset.pattern.permute.xlu0 0
    %430 = vperm.xlu0 %429, %v422
    %v431 = vpop.permute.xlu0 %430
    %v433 = vmul.f32 %v426, %v165
    %v434 = vmul.f32 %v431, %v175
    %vm435 = vcmask 130112
    %v436 = vsel %vm435, %v433, 0.0
    %v437 = vrot.slane %v436, 4
    %v438 = vadd.f32 %v436, %v437
    %v439 = vrot.slane %v438, 2
    %v440 = vadd.f32 %v438, %v439
    %v441 = vrot.slane %v440, 1
    %v442 = vadd.f32 %v440, %v441
    %v443 = vsel %vm435, %v434, 0.0
    %v444 = vrot.slane %v443, 4
    %v445 = vadd.f32 %v443, %v444
    %v446 = vrot.slane %v445, 2
    %v447 = vadd.f32 %v445, %v446
    %v448 = vrot.slane %v447, 1
    %v449 = vadd.f32 %v447, %v448
    %450 = vrot.lane.b32.xlu0 %v220, 112
    %v451 = vpop.permute.xlu0 %450
    %452 = vrot.lane.b32.xlu0 %v221, 112
    %v453 = vpop.permute.xlu0 %452
    %v456 = vsel %vm222, %v451, 0.0
    %457 = vadd.xlane.f32.xlu0 %v456
    %v458 = vpop.xlane.xlu0 %457
    %v459 = vsel %vm222, %v453, 0.0
    %460 = vadd.xlane.f32.xlu0 %v459
    %v461 = vpop.xlane.xlu0 %460
    %v462 = vmul.f32 %v458, 0.35355338
    %v463 = vmul.f32 %v461, 0.35355338
    %vm464 = vcmp.gt.f32.partialorder %v462, 0.0
    %vm465 = vcmp.gt.f32.partialorder %v463, 0.0
    %v466 = vmul.f32 %v462, 0.2
    %v467 = vmul.f32 %v463, 0.2
    %v468 = vsel %vm464, %v462, %v466
    %v469 = vsel %vm465, %v463, %v467
    %v472 = vlaneseq
    %v473 = vshrl.u32 %v472, 7
    %v474 = vsub.s32 %v240, %v473
    %v475 = vrot.slane %v468, %v474
    %v476 = vlaneseq
    %v477 = vshrl.u32 %v476, 7
    %v478 = vsub.s32 %v240, %v477
    %v479 = vrot.slane %v469, %v478
    %v480 = vsel %vm249, %v479, %v475
    %v482 = vsel %vm252, %v480, -inf
    %483 = vmax.xlane.f32.xlu0 %v482
    %v484 = vpop.xlane.xlu0 %483
    %v486 = vlaneseq
    %v487 = vshrl.u32 %v486, 7
    %v488 = vsub.s32 0, %v487
    %v489 = vrot.slane %v484, %v488
    %v490 = vlaneseq
    %v491 = vshrl.u32 %v490, 7
    %v492 = vsub.s32 1, %v491
    %v493 = vrot.slane %v484, %v492
    %v496 = vsub.f32 %v468, %v489
    %v497 = vsub.f32 %v469, %v493
    %v498 = vmul.f32 %v496, 1.442695
    %v499 = vpow.pop %v498
    %v500 = vmul.f32 %v497, 1.442695
    %v501 = vpow.pop %v500
    %504 = vset.pattern.permute.xlu0 0
    %505 = vperm.xlu0 %504, %v499
    %v506 = vpop.permute.xlu0 %505
    %507 = vset.pattern.permute.xlu0 0
    %508 = vperm.xlu0 %507, %v501
    %v509 = vpop.permute.xlu0 %508
    %v510 = vlaneseq
    %v511 = vshrl.u32 %v510, 7
    %v512 = vsub.s32 %v240, %v511
    %v513 = vrot.slane %v506, %v512
    %v514 = vlaneseq
    %v515 = vshrl.u32 %v514, 7
    %v516 = vsub.s32 %v240, %v515
    %v517 = vrot.slane %v509, %v516
    %v518 = vsel %vm249, %v517, %v513
    %v520 = vsel %vm252, %v518, 0.0
    %521 = vadd.xlane.f32.xlu0 %v520
    %v522 = vpop.xlane.xlu0 %521
    %v523 = vrcp.pop %v522
    %v525 = vlaneseq
    %v526 = vshrl.u32 %v525, 7
    %v527 = vsub.s32 0, %v526
    %v528 = vrot.slane %v523, %v527
    %v529 = vlaneseq
    %v530 = vshrl.u32 %v529, 7
    %v531 = vsub.s32 1, %v530
    %v532 = vrot.slane %v523, %v531
    %v535 = vmul.f32 %v499, %v528
    %v536 = vmul.f32 %v501, %v532
    %538 = vset.pattern.permute.xlu0 0
    %539 = vperm.xlu0 %538, %v535
    %v540 = vpop.permute.xlu0 %539
    %543 = vset.pattern.permute.xlu0 0
    %544 = vperm.xlu0 %543, %v536
    %v545 = vpop.permute.xlu0 %544
    %v547 = vmul.f32 %v540, %v165
    %v548 = vmul.f32 %v545, %v175
    %vm549 = vcmask 195712
    %v550 = vsel %vm549, %v547, 0.0
    %v551 = vrot.slane %v550, 4
    %v552 = vadd.f32 %v550, %v551
    %v553 = vrot.slane %v552, 2
    %v554 = vadd.f32 %v552, %v553
    %v555 = vrot.slane %v554, 1
    %v556 = vadd.f32 %v554, %v555
    %v557 = vsel %vm549, %v548, 0.0
    %v558 = vrot.slane %v557, 4
    %v559 = vadd.f32 %v557, %v558
    %v560 = vrot.slane %v559, 2
    %v561 = vadd.f32 %v559, %v560
    %v562 = vrot.slane %v561, 1
    %v563 = vadd.f32 %v561, %v562
    %564 = vrot.lane.b32.xlu0 %v220, 104
    %v565 = vpop.permute.xlu0 %564
    %566 = vrot.lane.b32.xlu0 %v221, 104
    %v567 = vpop.permute.xlu0 %566
    %v570 = vsel %vm222, %v565, 0.0
    %571 = vadd.xlane.f32.xlu0 %v570
    %v572 = vpop.xlane.xlu0 %571
    %v573 = vsel %vm222, %v567, 0.0
    %574 = vadd.xlane.f32.xlu0 %v573
    %v575 = vpop.xlane.xlu0 %574
    %v576 = vmul.f32 %v572, 0.35355338
    %v577 = vmul.f32 %v575, 0.35355338
    %vm578 = vcmp.gt.f32.partialorder %v576, 0.0
    %vm579 = vcmp.gt.f32.partialorder %v577, 0.0
    %v580 = vmul.f32 %v576, 0.2
    %v581 = vmul.f32 %v577, 0.2
    %v582 = vsel %vm578, %v576, %v580
    %v583 = vsel %vm579, %v577, %v581
    %v586 = vlaneseq
    %v587 = vshrl.u32 %v586, 7
    %v588 = vsub.s32 %v240, %v587
    %v589 = vrot.slane %v582, %v588
    %v590 = vlaneseq
    %v591 = vshrl.u32 %v590, 7
    %v592 = vsub.s32 %v240, %v591
    %v593 = vrot.slane %v583, %v592
    %v594 = vsel %vm249, %v593, %v589
    %v596 = vsel %vm252, %v594, -inf
    %597 = vmax.xlane.f32.xlu0 %v596
    %v598 = vpop.xlane.xlu0 %597
    %v600 = vlaneseq
    %v601 = vshrl.u32 %v600, 7
    %v602 = vsub.s32 0, %v601
    %v603 = vrot.slane %v598, %v602
    %v604 = vlaneseq
    %v605 = vshrl.u32 %v604, 7
    %v606 = vsub.s32 1, %v605
    %v607 = vrot.slane %v598, %v606
    %v610 = vsub.f32 %v582, %v603
    %v611 = vsub.f32 %v583, %v607
    %v612 = vmul.f32 %v610, 1.442695
    %v613 = vpow.pop %v612
    %v614 = vmul.f32 %v611, 1.442695
    %v615 = vpow.pop %v614
    %618 = vset.pattern.permute.xlu0 0
    %619 = vperm.xlu0 %618, %v613
    %v620 = vpop.permute.xlu0 %619
    %621 = vset.pattern.permute.xlu0 0
    %622 = vperm.xlu0 %621, %v615
    %v623 = vpop.permute.xlu0 %622
    %v624 = vlaneseq
    %v625 = vshrl.u32 %v624, 7
    %v626 = vsub.s32 %v240, %v625
    %v627 = vrot.slane %v620, %v626
    %v628 = vlaneseq
    %v629 = vshrl.u32 %v628, 7
    %v630 = vsub.s32 %v240, %v629
    %v631 = vrot.slane %v623, %v630
    %v632 = vsel %vm249, %v631, %v627
    %v634 = vsel %vm252, %v632, 0.0
    %635 = vadd.xlane.f32.xlu0 %v634
    %v636 = vpop.xlane.xlu0 %635
    %v637 = vrcp.pop %v636
    %v639 = vlaneseq
    %v640 = vshrl.u32 %v639, 7
    %v641 = vsub.s32 0, %v640
    %v642 = vrot.slane %v637, %v641
    %v643 = vlaneseq
    %v644 = vshrl.u32 %v643, 7
    %v645 = vsub.s32 1, %v644
    %v646 = vrot.slane %v637, %v645
    %v649 = vmul.f32 %v613, %v642
    %v650 = vmul.f32 %v615, %v646
    %652 = vset.pattern.permute.xlu0 0
    %653 = vperm.xlu0 %652, %v649
    %v654 = vpop.permute.xlu0 %653
    %657 = vset.pattern.permute.xlu0 0
    %658 = vperm.xlu0 %657, %v650
    %v659 = vpop.permute.xlu0 %658
    %v661 = vmul.f32 %v654, %v165
    %v662 = vmul.f32 %v659, %v175
    %vm663 = vcmask 261312
    %v664 = vsel %vm663, %v661, 0.0
    %v665 = vrot.slane %v664, 4
    %v666 = vadd.f32 %v664, %v665
    %v667 = vrot.slane %v666, 2
    %v668 = vadd.f32 %v666, %v667
    %v669 = vrot.slane %v668, 1
    %v670 = vadd.f32 %v668, %v669
    %v671 = vsel %vm663, %v662, 0.0
    %v672 = vrot.slane %v671, 4
    %v673 = vadd.f32 %v671, %v672
    %v674 = vrot.slane %v673, 2
    %v675 = vadd.f32 %v673, %v674
    %v676 = vrot.slane %v675, 1
    %v677 = vadd.f32 %v675, %v676
    %v680 = vsel %vm249, %v333, %v326
    %v684 = vsel %vm249, %v449, %v442
    %v688 = vsel %vm249, %v563, %v556
    %v692 = vsel %vm249, %v677, %v670
    %v694 = vsel %vm222, %v680, %v684
    %vm695 = vcmask 130048
    %v696 = vsel %vm695, %v694, %v688
    %vm697 = vcmask 195584
    %v698 = vsel %vm697, %v696, %v692
    %v699 = vmul.f32 %v170, %v213
    %v700 = vmul.f32 %v180, %v217
    %v701 = vsel %vm222, %v699, 0.0
    %702 = vadd.xlane.f32.xlu0 %v701
    %v703 = vpop.xlane.xlu0 %702
    %v704 = vsel %vm222, %v700, 0.0
    %705 = vadd.xlane.f32.xlu0 %v704
    %v706 = vpop.xlane.xlu0 %705
    %v707 = vmul.f32 %v703, 0.35355338
    %v708 = vmul.f32 %v706, 0.35355338
    %vm709 = vcmp.gt.f32.partialorder %v707, 0.0
    %vm710 = vcmp.gt.f32.partialorder %v708, 0.0
    %v711 = vmul.f32 %v707, 0.2
    %v712 = vmul.f32 %v708, 0.2
    %v713 = vsel %vm709, %v707, %v711
    %v714 = vsel %vm710, %v708, %v712
    %v717 = vlaneseq
    %v718 = vshrl.u32 %v717, 7
    %v719 = vsub.s32 %v240, %v718
    %v720 = vrot.slane %v713, %v719
    %v721 = vlaneseq
    %v722 = vshrl.u32 %v721, 7
    %v723 = vsub.s32 %v240, %v722
    %v724 = vrot.slane %v714, %v723
    %v725 = vsel %vm249, %v724, %v720
    %v727 = vsel %vm252, %v725, -inf
    %728 = vmax.xlane.f32.xlu0 %v727
    %v729 = vpop.xlane.xlu0 %728
    %v731 = vlaneseq
    %v732 = vshrl.u32 %v731, 7
    %v733 = vsub.s32 0, %v732
    %v734 = vrot.slane %v729, %v733
    %v735 = vlaneseq
    %v736 = vshrl.u32 %v735, 7
    %v737 = vsub.s32 1, %v736
    %v738 = vrot.slane %v729, %v737
    %v741 = vsub.f32 %v713, %v734
    %v742 = vsub.f32 %v714, %v738
    %v743 = vmul.f32 %v741, 1.442695
    %v744 = vpow.pop %v743
    %v745 = vmul.f32 %v742, 1.442695
    %v746 = vpow.pop %v745
    %749 = vset.pattern.permute.xlu0 0
    %750 = vperm.xlu0 %749, %v744
    %v751 = vpop.permute.xlu0 %750
    %752 = vset.pattern.permute.xlu0 0
    %753 = vperm.xlu0 %752, %v746
    %v754 = vpop.permute.xlu0 %753
    %v755 = vlaneseq
    %v756 = vshrl.u32 %v755, 7
    %v757 = vsub.s32 %v240, %v756
    %v758 = vrot.slane %v751, %v757
    %v759 = vlaneseq
    %v760 = vshrl.u32 %v759, 7
    %v761 = vsub.s32 %v240, %v760
    %v762 = vrot.slane %v754, %v761
    %v763 = vsel %vm249, %v762, %v758
    %v765 = vsel %vm252, %v763, 0.0
    %766 = vadd.xlane.f32.xlu0 %v765
    %v767 = vpop.xlane.xlu0 %766
    %v768 = vrcp.pop %v767
    %v770 = vlaneseq
    %v771 = vshrl.u32 %v770, 7
    %v772 = vsub.s32 0, %v771
    %v773 = vrot.slane %v768, %v772
    %v774 = vlaneseq
    %v775 = vshrl.u32 %v774, 7
    %v776 = vsub.s32 1, %v775
    %v777 = vrot.slane %v768, %v776
    %v780 = vmul.f32 %v744, %v773
    %v781 = vmul.f32 %v746, %v777
    %783 = vset.pattern.permute.xlu0 0
    %784 = vperm.xlu0 %783, %v780
    %v785 = vpop.permute.xlu0 %784
    %788 = vset.pattern.permute.xlu0 0
    %789 = vperm.xlu0 %788, %v781
    %v790 = vpop.permute.xlu0 %789
    %v792 = vmul.f32 %v785, %v170
    %v793 = vmul.f32 %v790, %v180
    %v794 = vsel %vm222, %v792, 0.0
    %v795 = vrot.slane %v794, 4
    %v796 = vadd.f32 %v794, %v795
    %v797 = vrot.slane %v796, 2
    %v798 = vadd.f32 %v796, %v797
    %v799 = vrot.slane %v798, 1
    %v800 = vadd.f32 %v798, %v799
    %v801 = vsel %vm222, %v793, 0.0
    %v802 = vrot.slane %v801, 4
    %v803 = vadd.f32 %v801, %v802
    %v804 = vrot.slane %v803, 2
    %v805 = vadd.f32 %v803, %v804
    %v806 = vrot.slane %v805, 1
    %v807 = vadd.f32 %v805, %v806
    %810 = vrot.lane.b32.xlu0 %v699, 120
    %v811 = vpop.permute.xlu0 %810
    %812 = vrot.lane.b32.xlu0 %v700, 120
    %v813 = vpop.permute.xlu0 %812
    %v816 = vsel %vm222, %v811, 0.0
    %817 = vadd.xlane.f32.xlu0 %v816
    %v818 = vpop.xlane.xlu0 %817
    %v819 = vsel %vm222, %v813, 0.0
    %820 = vadd.xlane.f32.xlu0 %v819
    %v821 = vpop.xlane.xlu0 %820
    %v822 = vmul.f32 %v818, 0.35355338
    %v823 = vmul.f32 %v821, 0.35355338
    %vm824 = vcmp.gt.f32.partialorder %v822, 0.0
    %vm825 = vcmp.gt.f32.partialorder %v823, 0.0
    %v826 = vmul.f32 %v822, 0.2
    %v827 = vmul.f32 %v823, 0.2
    %v828 = vsel %vm824, %v822, %v826
    %v829 = vsel %vm825, %v823, %v827
    %v832 = vlaneseq
    %v833 = vshrl.u32 %v832, 7
    %v834 = vsub.s32 %v240, %v833
    %v835 = vrot.slane %v828, %v834
    %v836 = vlaneseq
    %v837 = vshrl.u32 %v836, 7
    %v838 = vsub.s32 %v240, %v837
    %v839 = vrot.slane %v829, %v838
    %v840 = vsel %vm249, %v839, %v835
    %v842 = vsel %vm252, %v840, -inf
    %843 = vmax.xlane.f32.xlu0 %v842
    %v844 = vpop.xlane.xlu0 %843
    %v846 = vlaneseq
    %v847 = vshrl.u32 %v846, 7
    %v848 = vsub.s32 0, %v847
    %v849 = vrot.slane %v844, %v848
    %v850 = vlaneseq
    %v851 = vshrl.u32 %v850, 7
    %v852 = vsub.s32 1, %v851
    %v853 = vrot.slane %v844, %v852
    %v856 = vsub.f32 %v828, %v849
    %v857 = vsub.f32 %v829, %v853
    %v858 = vmul.f32 %v856, 1.442695
    %v859 = vpow.pop %v858
    %v860 = vmul.f32 %v857, 1.442695
    %v861 = vpow.pop %v860
    %864 = vset.pattern.permute.xlu0 0
    %865 = vperm.xlu0 %864, %v859
    %v866 = vpop.permute.xlu0 %865
    %867 = vset.pattern.permute.xlu0 0
    %868 = vperm.xlu0 %867, %v861
    %v869 = vpop.permute.xlu0 %868
    %v870 = vlaneseq
    %v871 = vshrl.u32 %v870, 7
    %v872 = vsub.s32 %v240, %v871
    %v873 = vrot.slane %v866, %v872
    %v874 = vlaneseq
    %v875 = vshrl.u32 %v874, 7
    %v876 = vsub.s32 %v240, %v875
    %v877 = vrot.slane %v869, %v876
    %v878 = vsel %vm249, %v877, %v873
    %v880 = vsel %vm252, %v878, 0.0
    %881 = vadd.xlane.f32.xlu0 %v880
    %v882 = vpop.xlane.xlu0 %881
    %v883 = vrcp.pop %v882
    %v885 = vlaneseq
    %v886 = vshrl.u32 %v885, 7
    %v887 = vsub.s32 0, %v886
    %v888 = vrot.slane %v883, %v887
    %v889 = vlaneseq
    %v890 = vshrl.u32 %v889, 7
    %v891 = vsub.s32 1, %v890
    %v892 = vrot.slane %v883, %v891
    %v895 = vmul.f32 %v859, %v888
    %v896 = vmul.f32 %v861, %v892
    %898 = vset.pattern.permute.xlu0 0
    %899 = vperm.xlu0 %898, %v895
    %v900 = vpop.permute.xlu0 %899
    %903 = vset.pattern.permute.xlu0 0
    %904 = vperm.xlu0 %903, %v896
    %v905 = vpop.permute.xlu0 %904
    %v907 = vmul.f32 %v900, %v170
    %v908 = vmul.f32 %v905, %v180
    %v909 = vsel %vm435, %v907, 0.0
    %v910 = vrot.slane %v909, 4
    %v911 = vadd.f32 %v909, %v910
    %v912 = vrot.slane %v911, 2
    %v913 = vadd.f32 %v911, %v912
    %v914 = vrot.slane %v913, 1
    %v915 = vadd.f32 %v913, %v914
    %v916 = vsel %vm435, %v908, 0.0
    %v917 = vrot.slane %v916, 4
    %v918 = vadd.f32 %v916, %v917
    %v919 = vrot.slane %v918, 2
    %v920 = vadd.f32 %v918, %v919
    %v921 = vrot.slane %v920, 1
    %v922 = vadd.f32 %v920, %v921
    %923 = vrot.lane.b32.xlu0 %v699, 112
    %v924 = vpop.permute.xlu0 %923
    %925 = vrot.lane.b32.xlu0 %v700, 112
    %v926 = vpop.permute.xlu0 %925
    %v929 = vsel %vm222, %v924, 0.0
    %930 = vadd.xlane.f32.xlu0 %v929
    %v931 = vpop.xlane.xlu0 %930
    %v932 = vsel %vm222, %v926, 0.0
    %933 = vadd.xlane.f32.xlu0 %v932
    %v934 = vpop.xlane.xlu0 %933
    %v935 = vmul.f32 %v931, 0.35355338
    %v936 = vmul.f32 %v934, 0.35355338
    %vm937 = vcmp.gt.f32.partialorder %v935, 0.0
    %vm938 = vcmp.gt.f32.partialorder %v936, 0.0
    %v939 = vmul.f32 %v935, 0.2
    %v940 = vmul.f32 %v936, 0.2
    %v941 = vsel %vm937, %v935, %v939
    %v942 = vsel %vm938, %v936, %v940
    %v945 = vlaneseq
    %v946 = vshrl.u32 %v945, 7
    %v947 = vsub.s32 %v240, %v946
    %v948 = vrot.slane %v941, %v947
    %v949 = vlaneseq
    %v950 = vshrl.u32 %v949, 7
    %v951 = vsub.s32 %v240, %v950
    %v952 = vrot.slane %v942, %v951
    %v953 = vsel %vm249, %v952, %v948
    %v955 = vsel %vm252, %v953, -inf
    %956 = vmax.xlane.f32.xlu0 %v955
    %v957 = vpop.xlane.xlu0 %956
    %v959 = vlaneseq
    %v960 = vshrl.u32 %v959, 7
    %v961 = vsub.s32 0, %v960
    %v962 = vrot.slane %v957, %v961
    %v963 = vlaneseq
    %v964 = vshrl.u32 %v963, 7
    %v965 = vsub.s32 1, %v964
    %v966 = vrot.slane %v957, %v965
    %v969 = vsub.f32 %v941, %v962
    %v970 = vsub.f32 %v942, %v966
    %v971 = vmul.f32 %v969, 1.442695
    %v972 = vpow.pop %v971
    %v973 = vmul.f32 %v970, 1.442695
    %v974 = vpow.pop %v973
    %977 = vset.pattern.permute.xlu0 0
    %978 = vperm.xlu0 %977, %v972
    %v979 = vpop.permute.xlu0 %978
    %980 = vset.pattern.permute.xlu0 0
    %981 = vperm.xlu0 %980, %v974
    %v982 = vpop.permute.xlu0 %981
    %v983 = vlaneseq
    %v984 = vshrl.u32 %v983, 7
    %v985 = vsub.s32 %v240, %v984
    %v986 = vrot.slane %v979, %v985
    %v987 = vlaneseq
    %v988 = vshrl.u32 %v987, 7
    %v989 = vsub.s32 %v240, %v988
    %v990 = vrot.slane %v982, %v989
    %v991 = vsel %vm249, %v990, %v986
    %v993 = vsel %vm252, %v991, 0.0
    %994 = vadd.xlane.f32.xlu0 %v993
    %v995 = vpop.xlane.xlu0 %994
    %v996 = vrcp.pop %v995
    %v998 = vlaneseq
    %v999 = vshrl.u32 %v998, 7
    %v1000 = vsub.s32 0, %v999
    %v1001 = vrot.slane %v996, %v1000
    %v1002 = vlaneseq
    %v1003 = vshrl.u32 %v1002, 7
    %v1004 = vsub.s32 1, %v1003
    %v1005 = vrot.slane %v996, %v1004
    %v1008 = vmul.f32 %v972, %v1001
    %v1009 = vmul.f32 %v974, %v1005
    %1011 = vset.pattern.permute.xlu0 0
    %1012 = vperm.xlu0 %1011, %v1008
    %v1013 = vpop.permute.xlu0 %1012
    %1016 = vset.pattern.permute.xlu0 0
    %1017 = vperm.xlu0 %1016, %v1009
    %v1018 = vpop.permute.xlu0 %1017
    %v1020 = vmul.f32 %v1013, %v170
    %v1021 = vmul.f32 %v1018, %v180
    %v1022 = vsel %vm549, %v1020, 0.0
    %v1023 = vrot.slane %v1022, 4
    %v1024 = vadd.f32 %v1022, %v1023
    %v1025 = vrot.slane %v1024, 2
    %v1026 = vadd.f32 %v1024, %v1025
    %v1027 = vrot.slane %v1026, 1
    %v1028 = vadd.f32 %v1026, %v1027
    %v1029 = vsel %vm549, %v1021, 0.0
    %v1030 = vrot.slane %v1029, 4
    %v1031 = vadd.f32 %v1029, %v1030
    %v1032 = vrot.slane %v1031, 2
    %v1033 = vadd.f32 %v1031, %v1032
    %v1034 = vrot.slane %v1033, 1
    %v1035 = vadd.f32 %v1033, %v1034
    %1036 = vrot.lane.b32.xlu0 %v699, 104
    %v1037 = vpop.permute.xlu0 %1036
    %1038 = vrot.lane.b32.xlu0 %v700, 104
    %v1039 = vpop.permute.xlu0 %1038
    %v1042 = vsel %vm222, %v1037, 0.0
    %1043 = vadd.xlane.f32.xlu0 %v1042
    %v1044 = vpop.xlane.xlu0 %1043
    %v1045 = vsel %vm222, %v1039, 0.0
    %1046 = vadd.xlane.f32.xlu0 %v1045
    %v1047 = vpop.xlane.xlu0 %1046
    %v1048 = vmul.f32 %v1044, 0.35355338
    %v1049 = vmul.f32 %v1047, 0.35355338
    %vm1050 = vcmp.gt.f32.partialorder %v1048, 0.0
    %vm1051 = vcmp.gt.f32.partialorder %v1049, 0.0
    %v1052 = vmul.f32 %v1048, 0.2
    %v1053 = vmul.f32 %v1049, 0.2
    %v1054 = vsel %vm1050, %v1048, %v1052
    %v1055 = vsel %vm1051, %v1049, %v1053
    %v1058 = vlaneseq
    %v1059 = vshrl.u32 %v1058, 7
    %v1060 = vsub.s32 %v240, %v1059
    %v1061 = vrot.slane %v1054, %v1060
    %v1062 = vlaneseq
    %v1063 = vshrl.u32 %v1062, 7
    %v1064 = vsub.s32 %v240, %v1063
    %v1065 = vrot.slane %v1055, %v1064
    %v1066 = vsel %vm249, %v1065, %v1061
    %v1068 = vsel %vm252, %v1066, -inf
    %1069 = vmax.xlane.f32.xlu0 %v1068
    %v1070 = vpop.xlane.xlu0 %1069
    %v1072 = vlaneseq
    %v1073 = vshrl.u32 %v1072, 7
    %v1074 = vsub.s32 0, %v1073
    %v1075 = vrot.slane %v1070, %v1074
    %v1076 = vlaneseq
    %v1077 = vshrl.u32 %v1076, 7
    %v1078 = vsub.s32 1, %v1077
    %v1079 = vrot.slane %v1070, %v1078
    %v1082 = vsub.f32 %v1054, %v1075
    %v1083 = vsub.f32 %v1055, %v1079
    %v1084 = vmul.f32 %v1082, 1.442695
    %v1085 = vpow.pop %v1084
    %v1086 = vmul.f32 %v1083, 1.442695
    %v1087 = vpow.pop %v1086
    %1090 = vset.pattern.permute.xlu0 0
    %1091 = vperm.xlu0 %1090, %v1085
    %v1092 = vpop.permute.xlu0 %1091
    %1093 = vset.pattern.permute.xlu0 0
    %1094 = vperm.xlu0 %1093, %v1087
    %v1095 = vpop.permute.xlu0 %1094
    %v1096 = vlaneseq
    %v1097 = vshrl.u32 %v1096, 7
    %v1098 = vsub.s32 %v240, %v1097
    %v1099 = vrot.slane %v1092, %v1098
    %v1100 = vlaneseq
    %v1101 = vshrl.u32 %v1100, 7
    %v1102 = vsub.s32 %v240, %v1101
    %v1103 = vrot.slane %v1095, %v1102
    %v1104 = vsel %vm249, %v1103, %v1099
    %v1106 = vsel %vm252, %v1104, 0.0
    %1107 = vadd.xlane.f32.xlu0 %v1106
    %v1108 = vpop.xlane.xlu0 %1107
    %v1109 = vrcp.pop %v1108
    %v1111 = vlaneseq
    %v1112 = vshrl.u32 %v1111, 7
    %v1113 = vsub.s32 0, %v1112
    %v1114 = vrot.slane %v1109, %v1113
    %v1115 = vlaneseq
    %v1116 = vshrl.u32 %v1115, 7
    %v1117 = vsub.s32 1, %v1116
    %v1118 = vrot.slane %v1109, %v1117
    %v1121 = vmul.f32 %v1085, %v1114
    %v1122 = vmul.f32 %v1087, %v1118
    %1124 = vset.pattern.permute.xlu0 0
    %1125 = vperm.xlu0 %1124, %v1121
    %v1126 = vpop.permute.xlu0 %1125
    %1129 = vset.pattern.permute.xlu0 0
    %1130 = vperm.xlu0 %1129, %v1122
    %v1131 = vpop.permute.xlu0 %1130
    %v1133 = vmul.f32 %v1126, %v170
    %v1134 = vmul.f32 %v1131, %v180
    %v1135 = vsel %vm663, %v1133, 0.0
    %v1136 = vrot.slane %v1135, 4
    %v1137 = vadd.f32 %v1135, %v1136
    %v1138 = vrot.slane %v1137, 2
    %v1139 = vadd.f32 %v1137, %v1138
    %v1140 = vrot.slane %v1139, 1
    %v1141 = vadd.f32 %v1139, %v1140
    %v1142 = vsel %vm663, %v1134, 0.0
    %v1143 = vrot.slane %v1142, 4
    %v1144 = vadd.f32 %v1142, %v1143
    %v1145 = vrot.slane %v1144, 2
    %v1146 = vadd.f32 %v1144, %v1145
    %v1147 = vrot.slane %v1146, 1
    %v1148 = vadd.f32 %v1146, %v1147
    %v1151 = vsel %vm249, %v807, %v800
    %v1155 = vsel %vm249, %v922, %v915
    %v1159 = vsel %vm249, %v1035, %v1028
    %v1163 = vsel %vm249, %v1148, %v1141
    %v1165 = vsel %vm222, %v1151, %v1155
    %v1166 = vsel %vm695, %v1165, %v1159
    %v1167 = vsel %vm697, %v1166, %v1163
    %v1168 = vsel %vm85, %v76, 0
    %1170 = vmatprep.subr.mxu0 0.0
    %1171 = vmatpush1.msra.mxu0 %v183
    %1172 = vmatprep.subr.mxu0 0.0
    %1173 = vmatpush1.msra.mxu0 %v184
    %1174 = vmatprep.subr.mxu0 0.0
    %1175 = vmatpush1.msra.mxu0 %v185
    %1176 = vmatprep.subr.mxu0 0.0
    %1177 = vmatpush1.msra.mxu0 %v186
    %1178 = vmatprep.subr.mxu0 0.0
    %1179 = vmatpush1.msra.mxu0 0.0
    %1180 = vmatprep.subr.mxu0 0.0
    %1181 = vmatpush1.msra.mxu0 0.0
    %1182 = vmatprep.subr.mxu0 0.0
    %1183 = vmatpush1.msra.mxu0 0.0
    %1184 = vmatprep.subr.mxu0 0.0
    %1185 = vmatpush1.msra.mxu0 0.0
    %1186 = vmatprep.subr.mxu0 0.0
    %1187 = vmatpush1.msra.mxu0 0.0
    %1188 = vmatprep.subr.mxu0 0.0
    %1189 = vmatpush1.msra.mxu0 0.0
    %1190 = vmatprep.subr.mxu0 0.0
    %1191 = vmatpush1.msra.mxu0 0.0
    %1192 = vmatprep.subr.mxu0 0.0
    %1193 = vmatpush1.msra.mxu0 0.0
    %1194 = vmatprep.subr.mxu0 0.0
    %1195 = vmatpush1.msra.mxu0 0.0
    %1196 = vmatprep.subr.mxu0 0.0
    %1197 = vmatpush1.msra.mxu0 0.0
    %1198 = vmatprep.subr.mxu0 0.0
    %1199 = vmatpush1.msra.mxu0 0.0
    %1200 = vmatprep.subr.mxu0 0.0
    %1201 = vmatpush1.msra.mxu0 0.0
    %1202 = vmatprep.subr.mxu0 0.0
    %1203 = vmatpush1.msra.mxu0 0.0
    %1204 = vmatprep.subr.mxu0 0.0
    %1205 = vmatpush1.msra.mxu0 0.0
    %1206 = vmatprep.subr.mxu0 0.0
    %1207 = vmatpush1.msra.mxu0 0.0
    %1208 = vmatprep.subr.mxu0 0.0
    %1209 = vmatpush1.msra.mxu0 0.0
    %1210 = vmatprep.subr.mxu0 0.0
    %1211 = vmatpush1.msra.mxu0 0.0
    %1212 = vmatprep.subr.mxu0 0.0
    %1213 = vmatpush1.msra.mxu0 0.0
    %1214 = vmatprep.subr.mxu0 0.0
    %1215 = vmatpush1.msra.mxu0 0.0
    %1216 = vmatprep.subr.mxu0 0.0
    %1217 = vmatpush1.msra.mxu0 0.0
    %1218 = vmatprep.subr.mxu0 0.0
    %1219 = vmatpush1.msra.mxu0 0.0
    %1220 = vmatprep.subr.mxu0 0.0
    %1221 = vmatpush1.msra.mxu0 0.0
    %1222 = vmatprep.subr.mxu0 0.0
    %1223 = vmatpush1.msra.mxu0 0.0
    %1224 = vmatprep.subr.mxu0 0.0
    %1225 = vmatpush1.msra.mxu0 0.0
    %1226 = vmatprep.subr.mxu0 0.0
    %1227 = vmatpush1.msra.mxu0 0.0
    %1228 = vmatprep.subr.mxu0 0.0
    %1229 = vmatpush1.msra.mxu0 0.0
    %1230 = vmatprep.subr.mxu0 0.0
    %1231 = vmatpush1.msra.mxu0 0.0
    %1232 = vmatprep.subr.mxu0 0.0
    %1233 = vmatpush1.msra.mxu0 0.0
    %1234 = vmatprep.mubr.f32.mxu0 0.0
    %1235 = vmatmul.mubr.f32.gmra.mrb[0].mxu0 %v1168
    %v1236 = vpop.f32.mrb[0].mxu0
    %v1237 = vadd.f32 0.0, %v1236
    %v1238 = vpop.f32.mrb[0].mxu0
    %1239 = vdwg.mxu0
    %v1240 = vmul.f32 %v1237, %v698
    %v1241 = vsel %vm252, %v1240, 0.0
    %1242 = vadd.xlane.f32.xlu0 %v1241
    %v1243 = vpop.xlane.xlu0 %1242
    %v1244 = vmul.f32 %v1237, %v1167
    %v1245 = vsel %vm252, %v1244, 0.0
    %1246 = vadd.xlane.f32.xlu0 %v1245
    %v1247 = vpop.xlane.xlu0 %1246
    %vm1248 = vcmask 7168
    %v1249 = vsel %vm1248, %v1243, %v1247
    %v1250 = vmul.f32 %v1249, 0.35355338
    %vm1251 = vcmask 9216
    %v1252 = vsel %vm1251, %v1250, -inf
    %1253 = vmax.xlane.f32.xlu0 %v1252
    %v1254 = vpop.xlane.xlu0 %1253
    %v1255 = vsub.f32 %v1250, %v1254
    %v1256 = vmul.f32 %v1255, 1.442695
    %v1257 = vpow.pop %v1256
    %v1258 = vsel %vm1251, %v1257, 0.0
    %1259 = vadd.xlane.f32.xlu0 %v1258
    %v1260 = vpop.xlane.xlu0 %1259
    %v1261 = vrcp.pop %v1260
    %v1262 = vmul.f32 %v1257, %v1261
    %1264 = vset.pattern.permute.xlu0 0
    %1265 = vperm.xlu0 %1264, %v1262
    %v1266 = vpop.permute.xlu0 %1265
    %v1268 = vmul.f32 %v1266, %v698
    %v1269 = vadd.f32 %v1268, 0.0
    %1270 = vset.pattern.permute.xlu0 1
    %1271 = vperm.xlu0 %1270, %v1262
    %v1272 = vpop.permute.xlu0 %1271
    %v1274 = vmul.f32 %v1272, %v1167
    %v1275 = vadd.f32 %v1269, %v1274
    %v1276 = vadd.f32 %v76, %v1275
    %1278 = vrot.lane.b32.xlu0 %v1240, 120
    %v1279 = vpop.permute.xlu0 %1278
    %v1281 = vsel %vm252, %v1279, 0.0
    %1282 = vadd.xlane.f32.xlu0 %v1281
    %v1283 = vpop.xlane.xlu0 %1282
    %1285 = vrot.lane.b32.xlu0 %v1244, 120
    %v1286 = vpop.permute.xlu0 %1285
    %v1288 = vsel %vm252, %v1286, 0.0
    %1289 = vadd.xlane.f32.xlu0 %v1288
    %v1290 = vpop.xlane.xlu0 %1289
    %v1291 = vsel %vm1248, %v1283, %v1290
    %v1292 = vmul.f32 %v1291, 0.35355338
    %v1293 = vsel %vm1251, %v1292, -inf
    %1294 = vmax.xlane.f32.xlu0 %v1293
    %v1295 = vpop.xlane.xlu0 %1294
    %v1296 = vsub.f32 %v1292, %v1295
    %v1297 = vmul.f32 %v1296, 1.442695
    %v1298 = vpow.pop %v1297
    %v1299 = vsel %vm1251, %v1298, 0.0
    %1300 = vadd.xlane.f32.xlu0 %v1299
    %v1301 = vpop.xlane.xlu0 %1300
    %v1302 = vrcp.pop %v1301
    %v1303 = vmul.f32 %v1298, %v1302
    %1305 = vset.pattern.permute.xlu0 0
    %1306 = vperm.xlu0 %1305, %v1303
    %v1307 = vpop.permute.xlu0 %1306
    %v1309 = vmul.f32 %v1307, %v698
    %v1310 = vadd.f32 %v1309, 0.0
    %1311 = vset.pattern.permute.xlu0 1
    %1312 = vperm.xlu0 %1311, %v1303
    %v1313 = vpop.permute.xlu0 %1312
    %v1315 = vmul.f32 %v1313, %v1167
    %v1316 = vadd.f32 %v1310, %v1315
    %v1317 = vadd.f32 %v76, %v1316
    %1318 = vrot.lane.b32.xlu0 %v1240, 112
    %v1319 = vpop.permute.xlu0 %1318
    %v1321 = vsel %vm252, %v1319, 0.0
    %1322 = vadd.xlane.f32.xlu0 %v1321
    %v1323 = vpop.xlane.xlu0 %1322
    %1324 = vrot.lane.b32.xlu0 %v1244, 112
    %v1325 = vpop.permute.xlu0 %1324
    %v1327 = vsel %vm252, %v1325, 0.0
    %1328 = vadd.xlane.f32.xlu0 %v1327
    %v1329 = vpop.xlane.xlu0 %1328
    %v1330 = vsel %vm1248, %v1323, %v1329
    %v1331 = vmul.f32 %v1330, 0.35355338
    %v1332 = vsel %vm1251, %v1331, -inf
    %1333 = vmax.xlane.f32.xlu0 %v1332
    %v1334 = vpop.xlane.xlu0 %1333
    %v1335 = vsub.f32 %v1331, %v1334
    %v1336 = vmul.f32 %v1335, 1.442695
    %v1337 = vpow.pop %v1336
    %v1338 = vsel %vm1251, %v1337, 0.0
    %1339 = vadd.xlane.f32.xlu0 %v1338
    %v1340 = vpop.xlane.xlu0 %1339
    %v1341 = vrcp.pop %v1340
    %v1342 = vmul.f32 %v1337, %v1341
    %1344 = vset.pattern.permute.xlu0 0
    %1345 = vperm.xlu0 %1344, %v1342
    %v1346 = vpop.permute.xlu0 %1345
    %v1348 = vmul.f32 %v1346, %v698
    %v1349 = vadd.f32 %v1348, 0.0
    %1350 = vset.pattern.permute.xlu0 1
    %1351 = vperm.xlu0 %1350, %v1342
    %v1352 = vpop.permute.xlu0 %1351
    %v1354 = vmul.f32 %v1352, %v1167
    %v1355 = vadd.f32 %v1349, %v1354
    %v1356 = vadd.f32 %v76, %v1355
    %1357 = vrot.lane.b32.xlu0 %v1240, 104
    %v1358 = vpop.permute.xlu0 %1357
    %v1360 = vsel %vm252, %v1358, 0.0
    %1361 = vadd.xlane.f32.xlu0 %v1360
    %v1362 = vpop.xlane.xlu0 %1361
    %1363 = vrot.lane.b32.xlu0 %v1244, 104
    %v1364 = vpop.permute.xlu0 %1363
    %v1366 = vsel %vm252, %v1364, 0.0
    %1367 = vadd.xlane.f32.xlu0 %v1366
    %v1368 = vpop.xlane.xlu0 %1367
    %v1369 = vsel %vm1248, %v1362, %v1368
    %v1370 = vmul.f32 %v1369, 0.35355338
    %v1371 = vsel %vm1251, %v1370, -inf
    %1372 = vmax.xlane.f32.xlu0 %v1371
    %v1373 = vpop.xlane.xlu0 %1372
    %v1374 = vsub.f32 %v1370, %v1373
    %v1375 = vmul.f32 %v1374, 1.442695
    %v1376 = vpow.pop %v1375
    %v1377 = vsel %vm1251, %v1376, 0.0
    %1378 = vadd.xlane.f32.xlu0 %v1377
    %v1379 = vpop.xlane.xlu0 %1378
    %v1380 = vrcp.pop %v1379
    %v1381 = vmul.f32 %v1376, %v1380
    %1383 = vset.pattern.permute.xlu0 0
    %1384 = vperm.xlu0 %1383, %v1381
    %v1385 = vpop.permute.xlu0 %1384
    %v1387 = vmul.f32 %v1385, %v698
    %v1388 = vadd.f32 %v1387, 0.0
    %1389 = vset.pattern.permute.xlu0 1
    %1390 = vperm.xlu0 %1389, %v1381
    %v1391 = vpop.permute.xlu0 %1390
    %v1393 = vmul.f32 %v1391, %v1167
    %v1394 = vadd.f32 %v1388, %v1393
    %v1395 = vadd.f32 %v76, %v1394
    %v1396 = vsel %vm222, %v1276, %v1317
    %v1397 = vsel %vm695, %v1396, %v1356
    %v1398 = vsel %vm697, %v1397, %v1395
    %1399 = vrot.lane.b32.xlu0 %v1303, 1
    %v1400 = vpop.permute.xlu0 %1399
    %1402 = vrot.lane.b32.xlu0 %v1342, 2
    %v1403 = vpop.permute.xlu0 %1402
    %1405 = vrot.lane.b32.xlu0 %v1381, 3
    %v1406 = vpop.permute.xlu0 %1405
    %v1408 = vsel %vm1248, %v1262, %v1400
    %vm1409 = vcmask 15360
    %v1410 = vsel %vm1409, %v1408, %v1403
    %vm1411 = vcmask 23552
    %v1412 = vsel %vm1411, %v1410, %v1406
    %1413 = vrot.lane.b32.xlu0 %v1262, 127
    %v1414 = vpop.permute.xlu0 %1413
    %1416 = vrot.lane.b32.xlu0 %v1342, 1
    %v1417 = vpop.permute.xlu0 %1416
    %1419 = vrot.lane.b32.xlu0 %v1381, 2
    %v1420 = vpop.permute.xlu0 %1419
    %v1422 = vsel %vm1248, %v1414, %v1303
    %v1423 = vsel %vm1409, %v1422, %v1417
    %v1424 = vsel %vm1411, %v1423, %v1420
    %v1427 = vunpack.c.l.s4 1966171168
    %v1428 = vunpack.c.0.s8 %v1427
    %v1429 = vlaneseq
    %v1430 = vshrl.u32 %v1429, 7
    %v1431 = vsub.s32 %v1428, %v1430
    %v1432 = vrot.slane %v1398, %v1431
    %v1433 = vcombine.high %v1432, %v1432
    %v1435 = vunpack.c.l.s4 1966171168
    %v1436 = vunpack.c.0.s8 %v1435
    %v1437 = vlaneseq
    %v1438 = vshrl.u32 %v1437, 7
    %v1439 = vsub.s32 %v1436, %v1438
    %v1440 = vrot.slane %v1432, %v1439
    %v1442 = vunpack.c.l.s4 1966171168
    %v1443 = vunpack.c.0.s8 %v1442
    %v1444 = vlaneseq
    %v1445 = vshrl.u32 %v1444, 7
    %v1446 = vsub.s32 %v1443, %v1445
    %v1447 = vrot.slane %v1433, %v1446
    %v1448 = vlaneseq
    %v1449 = vshrl.u32 %v1448, 7
    %v1450 = vsub.s32 0, %v1449
    %v1451 = vrot.slane %v1440, %v1450
    %v1452 = vlaneseq
    %v1453 = vshrl.u32 %v1452, 7
    %v1454 = vsub.s32 0, %v1453
    %v1455 = vrot.slane %v1447, %v1454
    %v1458 = vmul.f32 %v165, %v1451
    %v1459 = vmul.f32 %v175, %v1455
    %v1460 = vsel %vm222, %v1458, 0.0
    %1461 = vadd.xlane.f32.xlu0 %v1460
    %v1462 = vpop.xlane.xlu0 %1461
    %v1463 = vsel %vm222, %v1459, 0.0
    %1464 = vadd.xlane.f32.xlu0 %v1463
    %v1465 = vpop.xlane.xlu0 %1464
    %v1466 = vmul.f32 %v1462, 0.35355338
    %v1467 = vmul.f32 %v1465, 0.35355338
    %vm1468 = vcmp.gt.f32.partialorder %v1466, 0.0
    %vm1469 = vcmp.gt.f32.partialorder %v1467, 0.0
    %v1470 = vmul.f32 %v1466, 0.2
    %v1471 = vmul.f32 %v1467, 0.2
    %v1472 = vsel %vm1468, %v1466, %v1470
    %v1473 = vsel %vm1469, %v1467, %v1471
    %1475 = vset.pattern.permute.xlu0 0
    %1476 = vperm.xlu0 %1475, %v1412
    %v1477 = vpop.permute.xlu0 %1476
    %v1478 = vlaneseq
    %v1479 = vshrl.u32 %v1478, 7
    %v1480 = vsub.s32 0, %v1479
    %v1481 = vrot.slane %v1477, %v1480
    %v1482 = vlaneseq
    %v1483 = vshrl.u32 %v1482, 7
    %v1484 = vsub.s32 1, %v1483
    %v1485 = vrot.slane %v1477, %v1484
    %v1488 = vmul.f32 %v1472, %v1481
    %v1489 = vmul.f32 %v1473, %v1485
    %1492 = vset.pattern.permute.xlu0 0
    %1493 = vperm.xlu0 %1492, %v1488
    %v1494 = vpop.permute.xlu0 %1493
    %1495 = vset.pattern.permute.xlu0 0
    %1496 = vperm.xlu0 %1495, %v1489
    %v1497 = vpop.permute.xlu0 %1496
    %v1498 = vlaneseq
    %v1499 = vshrl.u32 %v1498, 7
    %v1500 = vsub.s32 %v240, %v1499
    %v1501 = vrot.slane %v1494, %v1500
    %v1502 = vlaneseq
    %v1503 = vshrl.u32 %v1502, 7
    %v1504 = vsub.s32 %v240, %v1503
    %v1505 = vrot.slane %v1497, %v1504
    %v1506 = vsel %vm249, %v1505, %v1501
    %v1508 = vsel %vm252, %v1506, -inf
    %1509 = vmax.xlane.f32.xlu0 %v1508
    %v1510 = vpop.xlane.xlu0 %1509
    %v1512 = vlaneseq
    %v1513 = vshrl.u32 %v1512, 7
    %v1514 = vsub.s32 0, %v1513
    %v1515 = vrot.slane %v1510, %v1514
    %v1516 = vlaneseq
    %v1517 = vshrl.u32 %v1516, 7
    %v1518 = vsub.s32 1, %v1517
    %v1519 = vrot.slane %v1510, %v1518
    %v1522 = vsub.f32 %v1488, %v1515
    %v1523 = vsub.f32 %v1489, %v1519
    %v1524 = vmul.f32 %v1522, 1.442695
    %v1525 = vpow.pop %v1524
    %v1526 = vmul.f32 %v1523, 1.442695
    %v1527 = vpow.pop %v1526
    %1530 = vset.pattern.permute.xlu0 0
    %1531 = vperm.xlu0 %1530, %v1525
    %v1532 = vpop.permute.xlu0 %1531
    %1533 = vset.pattern.permute.xlu0 0
    %1534 = vperm.xlu0 %1533, %v1527
    %v1535 = vpop.permute.xlu0 %1534
    %v1536 = vlaneseq
    %v1537 = vshrl.u32 %v1536, 7
    %v1538 = vsub.s32 %v240, %v1537
    %v1539 = vrot.slane %v1532, %v1538
    %v1540 = vlaneseq
    %v1541 = vshrl.u32 %v1540, 7
    %v1542 = vsub.s32 %v240, %v1541
    %v1543 = vrot.slane %v1535, %v1542
    %v1544 = vsel %vm249, %v1543, %v1539
    %v1546 = vsel %vm252, %v1544, 0.0
    %1547 = vadd.xlane.f32.xlu0 %v1546
    %v1548 = vpop.xlane.xlu0 %1547
    %v1549 = vrcp.pop %v1548
    %v1551 = vlaneseq
    %v1552 = vshrl.u32 %v1551, 7
    %v1553 = vsub.s32 0, %v1552
    %v1554 = vrot.slane %v1549, %v1553
    %v1555 = vlaneseq
    %v1556 = vshrl.u32 %v1555, 7
    %v1557 = vsub.s32 1, %v1556
    %v1558 = vrot.slane %v1549, %v1557
    %v1561 = vmul.f32 %v1525, %v1554
    %v1562 = vmul.f32 %v1527, %v1558
    %1564 = vset.pattern.permute.xlu0 0
    %1565 = vperm.xlu0 %1564, %v1561
    %v1566 = vpop.permute.xlu0 %1565
    %1569 = vset.pattern.permute.xlu0 0
    %1570 = vperm.xlu0 %1569, %v1562
    %v1571 = vpop.permute.xlu0 %1570
    %v1573 = vmul.f32 %v1566, %v165
    %v1574 = vmul.f32 %v1571, %v175
    %v1575 = vsel %vm222, %v1573, 0.0
    %v1576 = vrot.slane %v1575, 4
    %v1577 = vadd.f32 %v1575, %v1576
    %v1578 = vrot.slane %v1577, 2
    %v1579 = vadd.f32 %v1577, %v1578
    %v1580 = vrot.slane %v1579, 1
    %v1581 = vadd.f32 %v1579, %v1580
    %v1582 = vsel %vm222, %v1574, 0.0
    %v1583 = vrot.slane %v1582, 4
    %v1584 = vadd.f32 %v1582, %v1583
    %v1585 = vrot.slane %v1584, 2
    %v1586 = vadd.f32 %v1584, %v1585
    %v1587 = vrot.slane %v1586, 1
    %v1588 = vadd.f32 %v1586, %v1587
    %1591 = vrot.lane.b32.xlu0 %v1458, 120
    %v1592 = vpop.permute.xlu0 %1591
    %1593 = vrot.lane.b32.xlu0 %v1459, 120
    %v1594 = vpop.permute.xlu0 %1593
    %v1597 = vsel %vm222, %v1592, 0.0
    %1598 = vadd.xlane.f32.xlu0 %v1597
    %v1599 = vpop.xlane.xlu0 %1598
    %v1600 = vsel %vm222, %v1594, 0.0
    %1601 = vadd.xlane.f32.xlu0 %v1600
    %v1602 = vpop.xlane.xlu0 %1601
    %v1603 = vmul.f32 %v1599, 0.35355338
    %v1604 = vmul.f32 %v1602, 0.35355338
    %vm1605 = vcmp.gt.f32.partialorder %v1603, 0.0
    %vm1606 = vcmp.gt.f32.partialorder %v1604, 0.0
    %v1607 = vmul.f32 %v1603, 0.2
    %v1608 = vmul.f32 %v1604, 0.2
    %v1609 = vsel %vm1605, %v1603, %v1607
    %v1610 = vsel %vm1606, %v1604, %v1608
    %1611 = vset.pattern.permute.xlu0 1
    %1612 = vperm.xlu0 %1611, %v1412
    %v1613 = vpop.permute.xlu0 %1612
    %v1614 = vlaneseq
    %v1615 = vshrl.u32 %v1614, 7
    %v1616 = vsub.s32 0, %v1615
    %v1617 = vrot.slane %v1613, %v1616
    %v1618 = vlaneseq
    %v1619 = vshrl.u32 %v1618, 7
    %v1620 = vsub.s32 1, %v1619
    %v1621 = vrot.slane %v1613, %v1620
    %v1624 = vmul.f32 %v1609, %v1617
    %v1625 = vmul.f32 %v1610, %v1621
    %1628 = vset.pattern.permute.xlu0 0
    %1629 = vperm.xlu0 %1628, %v1624
    %v1630 = vpop.permute.xlu0 %1629
    %1631 = vset.pattern.permute.xlu0 0
    %1632 = vperm.xlu0 %1631, %v1625
    %v1633 = vpop.permute.xlu0 %1632
    %v1634 = vlaneseq
    %v1635 = vshrl.u32 %v1634, 7
    %v1636 = vsub.s32 %v240, %v1635
    %v1637 = vrot.slane %v1630, %v1636
    %v1638 = vlaneseq
    %v1639 = vshrl.u32 %v1638, 7
    %v1640 = vsub.s32 %v240, %v1639
    %v1641 = vrot.slane %v1633, %v1640
    %v1642 = vsel %vm249, %v1641, %v1637
    %v1644 = vsel %vm252, %v1642, -inf
    %1645 = vmax.xlane.f32.xlu0 %v1644
    %v1646 = vpop.xlane.xlu0 %1645
    %v1648 = vlaneseq
    %v1649 = vshrl.u32 %v1648, 7
    %v1650 = vsub.s32 0, %v1649
    %v1651 = vrot.slane %v1646, %v1650
    %v1652 = vlaneseq
    %v1653 = vshrl.u32 %v1652, 7
    %v1654 = vsub.s32 1, %v1653
    %v1655 = vrot.slane %v1646, %v1654
    %v1658 = vsub.f32 %v1624, %v1651
    %v1659 = vsub.f32 %v1625, %v1655
    %v1660 = vmul.f32 %v1658, 1.442695
    %v1661 = vpow.pop %v1660
    %v1662 = vmul.f32 %v1659, 1.442695
    %v1663 = vpow.pop %v1662
    %1666 = vset.pattern.permute.xlu0 0
    %1667 = vperm.xlu0 %1666, %v1661
    %v1668 = vpop.permute.xlu0 %1667
    %1669 = vset.pattern.permute.xlu0 0
    %1670 = vperm.xlu0 %1669, %v1663
    %v1671 = vpop.permute.xlu0 %1670
    %v1672 = vlaneseq
    %v1673 = vshrl.u32 %v1672, 7
    %v1674 = vsub.s32 %v240, %v1673
    %v1675 = vrot.slane %v1668, %v1674
    %v1676 = vlaneseq
    %v1677 = vshrl.u32 %v1676, 7
    %v1678 = vsub.s32 %v240, %v1677
    %v1679 = vrot.slane %v1671, %v1678
    %v1680 = vsel %vm249, %v1679, %v1675
    %v1682 = vsel %vm252, %v1680, 0.0
    %1683 = vadd.xlane.f32.xlu0 %v1682
    %v1684 = vpop.xlane.xlu0 %1683
    %v1685 = vrcp.pop %v1684
    %v1687 = vlaneseq
    %v1688 = vshrl.u32 %v1687, 7
    %v1689 = vsub.s32 0, %v1688
    %v1690 = vrot.slane %v1685, %v1689
    %v1691 = vlaneseq
    %v1692 = vshrl.u32 %v1691, 7
    %v1693 = vsub.s32 1, %v1692
    %v1694 = vrot.slane %v1685, %v1693
    %v1697 = vmul.f32 %v1661, %v1690
    %v1698 = vmul.f32 %v1663, %v1694
    %1700 = vset.pattern.permute.xlu0 0
    %1701 = vperm.xlu0 %1700, %v1697
    %v1702 = vpop.permute.xlu0 %1701
    %1705 = vset.pattern.permute.xlu0 0
    %1706 = vperm.xlu0 %1705, %v1698
    %v1707 = vpop.permute.xlu0 %1706
    %v1709 = vmul.f32 %v1702, %v165
    %v1710 = vmul.f32 %v1707, %v175
    %v1711 = vsel %vm435, %v1709, 0.0
    %v1712 = vrot.slane %v1711, 4
    %v1713 = vadd.f32 %v1711, %v1712
    %v1714 = vrot.slane %v1713, 2
    %v1715 = vadd.f32 %v1713, %v1714
    %v1716 = vrot.slane %v1715, 1
    %v1717 = vadd.f32 %v1715, %v1716
    %v1718 = vsel %vm435, %v1710, 0.0
    %v1719 = vrot.slane %v1718, 4
    %v1720 = vadd.f32 %v1718, %v1719
    %v1721 = vrot.slane %v1720, 2
    %v1722 = vadd.f32 %v1720, %v1721
    %v1723 = vrot.slane %v1722, 1
    %v1724 = vadd.f32 %v1722, %v1723
    %1725 = vrot.lane.b32.xlu0 %v1458, 112
    %v1726 = vpop.permute.xlu0 %1725
    %1727 = vrot.lane.b32.xlu0 %v1459, 112
    %v1728 = vpop.permute.xlu0 %1727
    %v1731 = vsel %vm222, %v1726, 0.0
    %1732 = vadd.xlane.f32.xlu0 %v1731
    %v1733 = vpop.xlane.xlu0 %1732
    %v1734 = vsel %vm222, %v1728, 0.0
    %1735 = vadd.xlane.f32.xlu0 %v1734
    %v1736 = vpop.xlane.xlu0 %1735
    %v1737 = vmul.f32 %v1733, 0.35355338
    %v1738 = vmul.f32 %v1736, 0.35355338
    %vm1739 = vcmp.gt.f32.partialorder %v1737, 0.0
    %vm1740 = vcmp.gt.f32.partialorder %v1738, 0.0
    %v1741 = vmul.f32 %v1737, 0.2
    %v1742 = vmul.f32 %v1738, 0.2
    %v1743 = vsel %vm1739, %v1737, %v1741
    %v1744 = vsel %vm1740, %v1738, %v1742
    %1745 = vset.pattern.permute.xlu0 2
    %1746 = vperm.xlu0 %1745, %v1412
    %v1747 = vpop.permute.xlu0 %1746
    %v1748 = vlaneseq
    %v1749 = vshrl.u32 %v1748, 7
    %v1750 = vsub.s32 0, %v1749
    %v1751 = vrot.slane %v1747, %v1750
    %v1752 = vlaneseq
    %v1753 = vshrl.u32 %v1752, 7
    %v1754 = vsub.s32 1, %v1753
    %v1755 = vrot.slane %v1747, %v1754
    %v1758 = vmul.f32 %v1743, %v1751
    %v1759 = vmul.f32 %v1744, %v1755
    %1762 = vset.pattern.permute.xlu0 0
    %1763 = vperm.xlu0 %1762, %v1758
    %v1764 = vpop.permute.xlu0 %1763
    %1765 = vset.pattern.permute.xlu0 0
    %1766 = vperm.xlu0 %1765, %v1759
    %v1767 = vpop.permute.xlu0 %1766
    %v1768 = vlaneseq
    %v1769 = vshrl.u32 %v1768, 7
    %v1770 = vsub.s32 %v240, %v1769
    %v1771 = vrot.slane %v1764, %v1770
    %v1772 = vlaneseq
    %v1773 = vshrl.u32 %v1772, 7
    %v1774 = vsub.s32 %v240, %v1773
    %v1775 = vrot.slane %v1767, %v1774
    %v1776 = vsel %vm249, %v1775, %v1771
    %v1778 = vsel %vm252, %v1776, -inf
    %1779 = vmax.xlane.f32.xlu0 %v1778
    %v1780 = vpop.xlane.xlu0 %1779
    %v1782 = vlaneseq
    %v1783 = vshrl.u32 %v1782, 7
    %v1784 = vsub.s32 0, %v1783
    %v1785 = vrot.slane %v1780, %v1784
    %v1786 = vlaneseq
    %v1787 = vshrl.u32 %v1786, 7
    %v1788 = vsub.s32 1, %v1787
    %v1789 = vrot.slane %v1780, %v1788
    %v1792 = vsub.f32 %v1758, %v1785
    %v1793 = vsub.f32 %v1759, %v1789
    %v1794 = vmul.f32 %v1792, 1.442695
    %v1795 = vpow.pop %v1794
    %v1796 = vmul.f32 %v1793, 1.442695
    %v1797 = vpow.pop %v1796
    %1800 = vset.pattern.permute.xlu0 0
    %1801 = vperm.xlu0 %1800, %v1795
    %v1802 = vpop.permute.xlu0 %1801
    %1803 = vset.pattern.permute.xlu0 0
    %1804 = vperm.xlu0 %1803, %v1797
    %v1805 = vpop.permute.xlu0 %1804
    %v1806 = vlaneseq
    %v1807 = vshrl.u32 %v1806, 7
    %v1808 = vsub.s32 %v240, %v1807
    %v1809 = vrot.slane %v1802, %v1808
    %v1810 = vlaneseq
    %v1811 = vshrl.u32 %v1810, 7
    %v1812 = vsub.s32 %v240, %v1811
    %v1813 = vrot.slane %v1805, %v1812
    %v1814 = vsel %vm249, %v1813, %v1809
    %v1816 = vsel %vm252, %v1814, 0.0
    %1817 = vadd.xlane.f32.xlu0 %v1816
    %v1818 = vpop.xlane.xlu0 %1817
    %v1819 = vrcp.pop %v1818
    %v1821 = vlaneseq
    %v1822 = vshrl.u32 %v1821, 7
    %v1823 = vsub.s32 0, %v1822
    %v1824 = vrot.slane %v1819, %v1823
    %v1825 = vlaneseq
    %v1826 = vshrl.u32 %v1825, 7
    %v1827 = vsub.s32 1, %v1826
    %v1828 = vrot.slane %v1819, %v1827
    %v1831 = vmul.f32 %v1795, %v1824
    %v1832 = vmul.f32 %v1797, %v1828
    %1834 = vset.pattern.permute.xlu0 0
    %1835 = vperm.xlu0 %1834, %v1831
    %v1836 = vpop.permute.xlu0 %1835
    %1839 = vset.pattern.permute.xlu0 0
    %1840 = vperm.xlu0 %1839, %v1832
    %v1841 = vpop.permute.xlu0 %1840
    %v1843 = vmul.f32 %v1836, %v165
    %v1844 = vmul.f32 %v1841, %v175
    %v1845 = vsel %vm549, %v1843, 0.0
    %v1846 = vrot.slane %v1845, 4
    %v1847 = vadd.f32 %v1845, %v1846
    %v1848 = vrot.slane %v1847, 2
    %v1849 = vadd.f32 %v1847, %v1848
    %v1850 = vrot.slane %v1849, 1
    %v1851 = vadd.f32 %v1849, %v1850
    %v1852 = vsel %vm549, %v1844, 0.0
    %v1853 = vrot.slane %v1852, 4
    %v1854 = vadd.f32 %v1852, %v1853
    %v1855 = vrot.slane %v1854, 2
    %v1856 = vadd.f32 %v1854, %v1855
    %v1857 = vrot.slane %v1856, 1
    %v1858 = vadd.f32 %v1856, %v1857
    %1859 = vrot.lane.b32.xlu0 %v1458, 104
    %v1860 = vpop.permute.xlu0 %1859
    %1861 = vrot.lane.b32.xlu0 %v1459, 104
    %v1862 = vpop.permute.xlu0 %1861
    %v1865 = vsel %vm222, %v1860, 0.0
    %1866 = vadd.xlane.f32.xlu0 %v1865
    %v1867 = vpop.xlane.xlu0 %1866
    %v1868 = vsel %vm222, %v1862, 0.0
    %1869 = vadd.xlane.f32.xlu0 %v1868
    %v1870 = vpop.xlane.xlu0 %1869
    %v1871 = vmul.f32 %v1867, 0.35355338
    %v1872 = vmul.f32 %v1870, 0.35355338
    %vm1873 = vcmp.gt.f32.partialorder %v1871, 0.0
    %vm1874 = vcmp.gt.f32.partialorder %v1872, 0.0
    %v1875 = vmul.f32 %v1871, 0.2
    %v1876 = vmul.f32 %v1872, 0.2
    %v1877 = vsel %vm1873, %v1871, %v1875
    %v1878 = vsel %vm1874, %v1872, %v1876
    %1879 = vset.pattern.permute.xlu0 3
    %1880 = vperm.xlu0 %1879, %v1412
    %v1881 = vpop.permute.xlu0 %1880
    %v1882 = vlaneseq
    %v1883 = vshrl.u32 %v1882, 7
    %v1884 = vsub.s32 0, %v1883
    %v1885 = vrot.slane %v1881, %v1884
    %v1886 = vlaneseq
    %v1887 = vshrl.u32 %v1886, 7
    %v1888 = vsub.s32 1, %v1887
    %v1889 = vrot.slane %v1881, %v1888
    %v1892 = vmul.f32 %v1877, %v1885
    %v1893 = vmul.f32 %v1878, %v1889
    %1896 = vset.pattern.permute.xlu0 0
    %1897 = vperm.xlu0 %1896, %v1892
    %v1898 = vpop.permute.xlu0 %1897
    %1899 = vset.pattern.permute.xlu0 0
    %1900 = vperm.xlu0 %1899, %v1893
    %v1901 = vpop.permute.xlu0 %1900
    %v1902 = vlaneseq
    %v1903 = vshrl.u32 %v1902, 7
    %v1904 = vsub.s32 %v240, %v1903
    %v1905 = vrot.slane %v1898, %v1904
    %v1906 = vlaneseq
    %v1907 = vshrl.u32 %v1906, 7
    %v1908 = vsub.s32 %v240, %v1907
    %v1909 = vrot.slane %v1901, %v1908
    %v1910 = vsel %vm249, %v1909, %v1905
    %v1912 = vsel %vm252, %v1910, -inf
    %1913 = vmax.xlane.f32.xlu0 %v1912
    %v1914 = vpop.xlane.xlu0 %1913
    %v1916 = vlaneseq
    %v1917 = vshrl.u32 %v1916, 7
    %v1918 = vsub.s32 0, %v1917
    %v1919 = vrot.slane %v1914, %v1918
    %v1920 = vlaneseq
    %v1921 = vshrl.u32 %v1920, 7
    %v1922 = vsub.s32 1, %v1921
    %v1923 = vrot.slane %v1914, %v1922
    %v1926 = vsub.f32 %v1892, %v1919
    %v1927 = vsub.f32 %v1893, %v1923
    %v1928 = vmul.f32 %v1926, 1.442695
    %v1929 = vpow.pop %v1928
    %v1930 = vmul.f32 %v1927, 1.442695
    %v1931 = vpow.pop %v1930
    %1934 = vset.pattern.permute.xlu0 0
    %1935 = vperm.xlu0 %1934, %v1929
    %v1936 = vpop.permute.xlu0 %1935
    %1937 = vset.pattern.permute.xlu0 0
    %1938 = vperm.xlu0 %1937, %v1931
    %v1939 = vpop.permute.xlu0 %1938
    %v1940 = vlaneseq
    %v1941 = vshrl.u32 %v1940, 7
    %v1942 = vsub.s32 %v240, %v1941
    %v1943 = vrot.slane %v1936, %v1942
    %v1944 = vlaneseq
    %v1945 = vshrl.u32 %v1944, 7
    %v1946 = vsub.s32 %v240, %v1945
    %v1947 = vrot.slane %v1939, %v1946
    %v1948 = vsel %vm249, %v1947, %v1943
    %v1950 = vsel %vm252, %v1948, 0.0
    %1951 = vadd.xlane.f32.xlu0 %v1950
    %v1952 = vpop.xlane.xlu0 %1951
    %v1953 = vrcp.pop %v1952
    %v1955 = vlaneseq
    %v1956 = vshrl.u32 %v1955, 7
    %v1957 = vsub.s32 0, %v1956
    %v1958 = vrot.slane %v1953, %v1957
    %v1959 = vlaneseq
    %v1960 = vshrl.u32 %v1959, 7
    %v1961 = vsub.s32 1, %v1960
    %v1962 = vrot.slane %v1953, %v1961
    %v1965 = vmul.f32 %v1929, %v1958
    %v1966 = vmul.f32 %v1931, %v1962
    %1968 = vset.pattern.permute.xlu0 0
    %1969 = vperm.xlu0 %1968, %v1965
    %v1970 = vpop.permute.xlu0 %1969
    %1973 = vset.pattern.permute.xlu0 0
    %1974 = vperm.xlu0 %1973, %v1966
    %v1975 = vpop.permute.xlu0 %1974
    %v1977 = vmul.f32 %v1970, %v165
    %v1978 = vmul.f32 %v1975, %v175
    %v1979 = vsel %vm663, %v1977, 0.0
    %v1980 = vrot.slane %v1979, 4
    %v1981 = vadd.f32 %v1979, %v1980
    %v1982 = vrot.slane %v1981, 2
    %v1983 = vadd.f32 %v1981, %v1982
    %v1984 = vrot.slane %v1983, 1
    %v1985 = vadd.f32 %v1983, %v1984
    %v1986 = vsel %vm663, %v1978, 0.0
    %v1987 = vrot.slane %v1986, 4
    %v1988 = vadd.f32 %v1986, %v1987
    %v1989 = vrot.slane %v1988, 2
    %v1990 = vadd.f32 %v1988, %v1989
    %v1991 = vrot.slane %v1990, 1
    %v1992 = vadd.f32 %v1990, %v1991
    %v1995 = vsel %vm249, %v1588, %v1581
    %v1999 = vsel %vm249, %v1724, %v1717
    %v2003 = vsel %vm249, %v1858, %v1851
    %v2007 = vsel %vm249, %v1992, %v1985
    %v2009 = vsel %vm222, %v1995, %v1999
    %v2010 = vsel %vm695, %v2009, %v2003
    %v2011 = vsel %vm697, %v2010, %v2007
    %v2012 = vmul.f32 %v170, %v1451
    %v2013 = vmul.f32 %v180, %v1455
    %v2014 = vsel %vm222, %v2012, 0.0
    %2015 = vadd.xlane.f32.xlu0 %v2014
    %v2016 = vpop.xlane.xlu0 %2015
    %v2017 = vsel %vm222, %v2013, 0.0
    %2018 = vadd.xlane.f32.xlu0 %v2017
    %v2019 = vpop.xlane.xlu0 %2018
    %v2020 = vmul.f32 %v2016, 0.35355338
    %v2021 = vmul.f32 %v2019, 0.35355338
    %vm2022 = vcmp.gt.f32.partialorder %v2020, 0.0
    %vm2023 = vcmp.gt.f32.partialorder %v2021, 0.0
    %v2024 = vmul.f32 %v2020, 0.2
    %v2025 = vmul.f32 %v2021, 0.2
    %v2026 = vsel %vm2022, %v2020, %v2024
    %v2027 = vsel %vm2023, %v2021, %v2025
    %2029 = vset.pattern.permute.xlu0 0
    %2030 = vperm.xlu0 %2029, %v1424
    %v2031 = vpop.permute.xlu0 %2030
    %v2032 = vlaneseq
    %v2033 = vshrl.u32 %v2032, 7
    %v2034 = vsub.s32 0, %v2033
    %v2035 = vrot.slane %v2031, %v2034
    %v2036 = vlaneseq
    %v2037 = vshrl.u32 %v2036, 7
    %v2038 = vsub.s32 1, %v2037
    %v2039 = vrot.slane %v2031, %v2038
    %v2042 = vmul.f32 %v2026, %v2035
    %v2043 = vmul.f32 %v2027, %v2039
    %2046 = vset.pattern.permute.xlu0 0
    %2047 = vperm.xlu0 %2046, %v2042
    %v2048 = vpop.permute.xlu0 %2047
    %2049 = vset.pattern.permute.xlu0 0
    %2050 = vperm.xlu0 %2049, %v2043
    %v2051 = vpop.permute.xlu0 %2050
    %v2052 = vlaneseq
    %v2053 = vshrl.u32 %v2052, 7
    %v2054 = vsub.s32 %v240, %v2053
    %v2055 = vrot.slane %v2048, %v2054
    %v2056 = vlaneseq
    %v2057 = vshrl.u32 %v2056, 7
    %v2058 = vsub.s32 %v240, %v2057
    %v2059 = vrot.slane %v2051, %v2058
    %v2060 = vsel %vm249, %v2059, %v2055
    %v2062 = vsel %vm252, %v2060, -inf
    %2063 = vmax.xlane.f32.xlu0 %v2062
    %v2064 = vpop.xlane.xlu0 %2063
    %v2066 = vlaneseq
    %v2067 = vshrl.u32 %v2066, 7
    %v2068 = vsub.s32 0, %v2067
    %v2069 = vrot.slane %v2064, %v2068
    %v2070 = vlaneseq
    %v2071 = vshrl.u32 %v2070, 7
    %v2072 = vsub.s32 1, %v2071
    %v2073 = vrot.slane %v2064, %v2072
    %v2076 = vsub.f32 %v2042, %v2069
    %v2077 = vsub.f32 %v2043, %v2073
    %v2078 = vmul.f32 %v2076, 1.442695
    %v2079 = vpow.pop %v2078
    %v2080 = vmul.f32 %v2077, 1.442695
    %v2081 = vpow.pop %v2080
    %2084 = vset.pattern.permute.xlu0 0
    %2085 = vperm.xlu0 %2084, %v2079
    %v2086 = vpop.permute.xlu0 %2085
    %2087 = vset.pattern.permute.xlu0 0
    %2088 = vperm.xlu0 %2087, %v2081
    %v2089 = vpop.permute.xlu0 %2088
    %v2090 = vlaneseq
    %v2091 = vshrl.u32 %v2090, 7
    %v2092 = vsub.s32 %v240, %v2091
    %v2093 = vrot.slane %v2086, %v2092
    %v2094 = vlaneseq
    %v2095 = vshrl.u32 %v2094, 7
    %v2096 = vsub.s32 %v240, %v2095
    %v2097 = vrot.slane %v2089, %v2096
    %v2098 = vsel %vm249, %v2097, %v2093
    %v2100 = vsel %vm252, %v2098, 0.0
    %2101 = vadd.xlane.f32.xlu0 %v2100
    %v2102 = vpop.xlane.xlu0 %2101
    %v2103 = vrcp.pop %v2102
    %v2105 = vlaneseq
    %v2106 = vshrl.u32 %v2105, 7
    %v2107 = vsub.s32 0, %v2106
    %v2108 = vrot.slane %v2103, %v2107
    %v2109 = vlaneseq
    %v2110 = vshrl.u32 %v2109, 7
    %v2111 = vsub.s32 1, %v2110
    %v2112 = vrot.slane %v2103, %v2111
    %v2115 = vmul.f32 %v2079, %v2108
    %v2116 = vmul.f32 %v2081, %v2112
    %2118 = vset.pattern.permute.xlu0 0
    %2119 = vperm.xlu0 %2118, %v2115
    %v2120 = vpop.permute.xlu0 %2119
    %2123 = vset.pattern.permute.xlu0 0
    %2124 = vperm.xlu0 %2123, %v2116
    %v2125 = vpop.permute.xlu0 %2124
    %v2127 = vmul.f32 %v2120, %v170
    %v2128 = vmul.f32 %v2125, %v180
    %v2129 = vsel %vm222, %v2127, 0.0
    %v2130 = vrot.slane %v2129, 4
    %v2131 = vadd.f32 %v2129, %v2130
    %v2132 = vrot.slane %v2131, 2
    %v2133 = vadd.f32 %v2131, %v2132
    %v2134 = vrot.slane %v2133, 1
    %v2135 = vadd.f32 %v2133, %v2134
    %v2136 = vsel %vm222, %v2128, 0.0
    %v2137 = vrot.slane %v2136, 4
    %v2138 = vadd.f32 %v2136, %v2137
    %v2139 = vrot.slane %v2138, 2
    %v2140 = vadd.f32 %v2138, %v2139
    %v2141 = vrot.slane %v2140, 1
    %v2142 = vadd.f32 %v2140, %v2141
    %2145 = vrot.lane.b32.xlu0 %v2012, 120
    %v2146 = vpop.permute.xlu0 %2145
    %2147 = vrot.lane.b32.xlu0 %v2013, 120
    %v2148 = vpop.permute.xlu0 %2147
    %v2151 = vsel %vm222, %v2146, 0.0
    %2152 = vadd.xlane.f32.xlu0 %v2151
    %v2153 = vpop.xlane.xlu0 %2152
    %v2154 = vsel %vm222, %v2148, 0.0
    %2155 = vadd.xlane.f32.xlu0 %v2154
    %v2156 = vpop.xlane.xlu0 %2155
    %v2157 = vmul.f32 %v2153, 0.35355338
    %v2158 = vmul.f32 %v2156, 0.35355338
    %vm2159 = vcmp.gt.f32.partialorder %v2157, 0.0
    %vm2160 = vcmp.gt.f32.partialorder %v2158, 0.0
    %v2161 = vmul.f32 %v2157, 0.2
    %v2162 = vmul.f32 %v2158, 0.2
    %v2163 = vsel %vm2159, %v2157, %v2161
    %v2164 = vsel %vm2160, %v2158, %v2162
    %2165 = vset.pattern.permute.xlu0 1
    %2166 = vperm.xlu0 %2165, %v1424
    %v2167 = vpop.permute.xlu0 %2166
    %v2168 = vlaneseq
    %v2169 = vshrl.u32 %v2168, 7
    %v2170 = vsub.s32 0, %v2169
    %v2171 = vrot.slane %v2167, %v2170
    %v2172 = vlaneseq
    %v2173 = vshrl.u32 %v2172, 7
    %v2174 = vsub.s32 1, %v2173
    %v2175 = vrot.slane %v2167, %v2174
    %v2178 = vmul.f32 %v2163, %v2171
    %v2179 = vmul.f32 %v2164, %v2175
    %2182 = vset.pattern.permute.xlu0 0
    %2183 = vperm.xlu0 %2182, %v2178
    %v2184 = vpop.permute.xlu0 %2183
    %2185 = vset.pattern.permute.xlu0 0
    %2186 = vperm.xlu0 %2185, %v2179
    %v2187 = vpop.permute.xlu0 %2186
    %v2188 = vlaneseq
    %v2189 = vshrl.u32 %v2188, 7
    %v2190 = vsub.s32 %v240, %v2189
    %v2191 = vrot.slane %v2184, %v2190
    %v2192 = vlaneseq
    %v2193 = vshrl.u32 %v2192, 7
    %v2194 = vsub.s32 %v240, %v2193
    %v2195 = vrot.slane %v2187, %v2194
    %v2196 = vsel %vm249, %v2195, %v2191
    %v2198 = vsel %vm252, %v2196, -inf
    %2199 = vmax.xlane.f32.xlu0 %v2198
    %v2200 = vpop.xlane.xlu0 %2199
    %v2202 = vlaneseq
    %v2203 = vshrl.u32 %v2202, 7
    %v2204 = vsub.s32 0, %v2203
    %v2205 = vrot.slane %v2200, %v2204
    %v2206 = vlaneseq
    %v2207 = vshrl.u32 %v2206, 7
    %v2208 = vsub.s32 1, %v2207
    %v2209 = vrot.slane %v2200, %v2208
    %v2212 = vsub.f32 %v2178, %v2205
    %v2213 = vsub.f32 %v2179, %v2209
    %v2214 = vmul.f32 %v2212, 1.442695
    %v2215 = vpow.pop %v2214
    %v2216 = vmul.f32 %v2213, 1.442695
    %v2217 = vpow.pop %v2216
    %2220 = vset.pattern.permute.xlu0 0
    %2221 = vperm.xlu0 %2220, %v2215
    %v2222 = vpop.permute.xlu0 %2221
    %2223 = vset.pattern.permute.xlu0 0
    %2224 = vperm.xlu0 %2223, %v2217
    %v2225 = vpop.permute.xlu0 %2224
    %v2226 = vlaneseq
    %v2227 = vshrl.u32 %v2226, 7
    %v2228 = vsub.s32 %v240, %v2227
    %v2229 = vrot.slane %v2222, %v2228
    %v2230 = vlaneseq
    %v2231 = vshrl.u32 %v2230, 7
    %v2232 = vsub.s32 %v240, %v2231
    %v2233 = vrot.slane %v2225, %v2232
    %v2234 = vsel %vm249, %v2233, %v2229
    %v2236 = vsel %vm252, %v2234, 0.0
    %2237 = vadd.xlane.f32.xlu0 %v2236
    %v2238 = vpop.xlane.xlu0 %2237
    %v2239 = vrcp.pop %v2238
    %v2241 = vlaneseq
    %v2242 = vshrl.u32 %v2241, 7
    %v2243 = vsub.s32 0, %v2242
    %v2244 = vrot.slane %v2239, %v2243
    %v2245 = vlaneseq
    %v2246 = vshrl.u32 %v2245, 7
    %v2247 = vsub.s32 1, %v2246
    %v2248 = vrot.slane %v2239, %v2247
    %v2251 = vmul.f32 %v2215, %v2244
    %v2252 = vmul.f32 %v2217, %v2248
    %2254 = vset.pattern.permute.xlu0 0
    %2255 = vperm.xlu0 %2254, %v2251
    %v2256 = vpop.permute.xlu0 %2255
    %2259 = vset.pattern.permute.xlu0 0
    %2260 = vperm.xlu0 %2259, %v2252
    %v2261 = vpop.permute.xlu0 %2260
    %v2263 = vmul.f32 %v2256, %v170
    %v2264 = vmul.f32 %v2261, %v180
    %v2265 = vsel %vm435, %v2263, 0.0
    %v2266 = vrot.slane %v2265, 4
    %v2267 = vadd.f32 %v2265, %v2266
    %v2268 = vrot.slane %v2267, 2
    %v2269 = vadd.f32 %v2267, %v2268
    %v2270 = vrot.slane %v2269, 1
    %v2271 = vadd.f32 %v2269, %v2270
    %v2272 = vsel %vm435, %v2264, 0.0
    %v2273 = vrot.slane %v2272, 4
    %v2274 = vadd.f32 %v2272, %v2273
    %v2275 = vrot.slane %v2274, 2
    %v2276 = vadd.f32 %v2274, %v2275
    %v2277 = vrot.slane %v2276, 1
    %v2278 = vadd.f32 %v2276, %v2277
    %2279 = vrot.lane.b32.xlu0 %v2012, 112
    %v2280 = vpop.permute.xlu0 %2279
    %2281 = vrot.lane.b32.xlu0 %v2013, 112
    %v2282 = vpop.permute.xlu0 %2281
    %v2285 = vsel %vm222, %v2280, 0.0
    %2286 = vadd.xlane.f32.xlu0 %v2285
    %v2287 = vpop.xlane.xlu0 %2286
    %v2288 = vsel %vm222, %v2282, 0.0
    %2289 = vadd.xlane.f32.xlu0 %v2288
    %v2290 = vpop.xlane.xlu0 %2289
    %v2291 = vmul.f32 %v2287, 0.35355338
    %v2292 = vmul.f32 %v2290, 0.35355338
    %vm2293 = vcmp.gt.f32.partialorder %v2291, 0.0
    %vm2294 = vcmp.gt.f32.partialorder %v2292, 0.0
    %v2295 = vmul.f32 %v2291, 0.2
    %v2296 = vmul.f32 %v2292, 0.2
    %v2297 = vsel %vm2293, %v2291, %v2295
    %v2298 = vsel %vm2294, %v2292, %v2296
    %2299 = vset.pattern.permute.xlu0 2
    %2300 = vperm.xlu0 %2299, %v1424
    %v2301 = vpop.permute.xlu0 %2300
    %v2302 = vlaneseq
    %v2303 = vshrl.u32 %v2302, 7
    %v2304 = vsub.s32 0, %v2303
    %v2305 = vrot.slane %v2301, %v2304
    %v2306 = vlaneseq
    %v2307 = vshrl.u32 %v2306, 7
    %v2308 = vsub.s32 1, %v2307
    %v2309 = vrot.slane %v2301, %v2308
    %v2312 = vmul.f32 %v2297, %v2305
    %v2313 = vmul.f32 %v2298, %v2309
    %2316 = vset.pattern.permute.xlu0 0
    %2317 = vperm.xlu0 %2316, %v2312
    %v2318 = vpop.permute.xlu0 %2317
    %2319 = vset.pattern.permute.xlu0 0
    %2320 = vperm.xlu0 %2319, %v2313
    %v2321 = vpop.permute.xlu0 %2320
    %v2322 = vlaneseq
    %v2323 = vshrl.u32 %v2322, 7
    %v2324 = vsub.s32 %v240, %v2323
    %v2325 = vrot.slane %v2318, %v2324
    %v2326 = vlaneseq
    %v2327 = vshrl.u32 %v2326, 7
    %v2328 = vsub.s32 %v240, %v2327
    %v2329 = vrot.slane %v2321, %v2328
    %v2330 = vsel %vm249, %v2329, %v2325
    %v2332 = vsel %vm252, %v2330, -inf
    %2333 = vmax.xlane.f32.xlu0 %v2332
    %v2334 = vpop.xlane.xlu0 %2333
    %v2336 = vlaneseq
    %v2337 = vshrl.u32 %v2336, 7
    %v2338 = vsub.s32 0, %v2337
    %v2339 = vrot.slane %v2334, %v2338
    %v2340 = vlaneseq
    %v2341 = vshrl.u32 %v2340, 7
    %v2342 = vsub.s32 1, %v2341
    %v2343 = vrot.slane %v2334, %v2342
    %v2346 = vsub.f32 %v2312, %v2339
    %v2347 = vsub.f32 %v2313, %v2343
    %v2348 = vmul.f32 %v2346, 1.442695
    %v2349 = vpow.pop %v2348
    %v2350 = vmul.f32 %v2347, 1.442695
    %v2351 = vpow.pop %v2350
    %2354 = vset.pattern.permute.xlu0 0
    %2355 = vperm.xlu0 %2354, %v2349
    %v2356 = vpop.permute.xlu0 %2355
    %2357 = vset.pattern.permute.xlu0 0
    %2358 = vperm.xlu0 %2357, %v2351
    %v2359 = vpop.permute.xlu0 %2358
    %v2360 = vlaneseq
    %v2361 = vshrl.u32 %v2360, 7
    %v2362 = vsub.s32 %v240, %v2361
    %v2363 = vrot.slane %v2356, %v2362
    %v2364 = vlaneseq
    %v2365 = vshrl.u32 %v2364, 7
    %v2366 = vsub.s32 %v240, %v2365
    %v2367 = vrot.slane %v2359, %v2366
    %v2368 = vsel %vm249, %v2367, %v2363
    %v2370 = vsel %vm252, %v2368, 0.0
    %2371 = vadd.xlane.f32.xlu0 %v2370
    %v2372 = vpop.xlane.xlu0 %2371
    %v2373 = vrcp.pop %v2372
    %v2375 = vlaneseq
    %v2376 = vshrl.u32 %v2375, 7
    %v2377 = vsub.s32 0, %v2376
    %v2378 = vrot.slane %v2373, %v2377
    %v2379 = vlaneseq
    %v2380 = vshrl.u32 %v2379, 7
    %v2381 = vsub.s32 1, %v2380
    %v2382 = vrot.slane %v2373, %v2381
    %v2385 = vmul.f32 %v2349, %v2378
    %v2386 = vmul.f32 %v2351, %v2382
    %2388 = vset.pattern.permute.xlu0 0
    %2389 = vperm.xlu0 %2388, %v2385
    %v2390 = vpop.permute.xlu0 %2389
    %2393 = vset.pattern.permute.xlu0 0
    %2394 = vperm.xlu0 %2393, %v2386
    %v2395 = vpop.permute.xlu0 %2394
    %v2397 = vmul.f32 %v2390, %v170
    %v2398 = vmul.f32 %v2395, %v180
    %v2399 = vsel %vm549, %v2397, 0.0
    %v2400 = vrot.slane %v2399, 4
    %v2401 = vadd.f32 %v2399, %v2400
    %v2402 = vrot.slane %v2401, 2
    %v2403 = vadd.f32 %v2401, %v2402
    %v2404 = vrot.slane %v2403, 1
    %v2405 = vadd.f32 %v2403, %v2404
    %v2406 = vsel %vm549, %v2398, 0.0
    %v2407 = vrot.slane %v2406, 4
    %v2408 = vadd.f32 %v2406, %v2407
    %v2409 = vrot.slane %v2408, 2
    %v2410 = vadd.f32 %v2408, %v2409
    %v2411 = vrot.slane %v2410, 1
    %v2412 = vadd.f32 %v2410, %v2411
    %2413 = vrot.lane.b32.xlu0 %v2012, 104
    %v2414 = vpop.permute.xlu0 %2413
    %2415 = vrot.lane.b32.xlu0 %v2013, 104
    %v2416 = vpop.permute.xlu0 %2415
    %v2419 = vsel %vm222, %v2414, 0.0
    %2420 = vadd.xlane.f32.xlu0 %v2419
    %v2421 = vpop.xlane.xlu0 %2420
    %v2422 = vsel %vm222, %v2416, 0.0
    %2423 = vadd.xlane.f32.xlu0 %v2422
    %v2424 = vpop.xlane.xlu0 %2423
    %v2425 = vmul.f32 %v2421, 0.35355338
    %v2426 = vmul.f32 %v2424, 0.35355338
    %vm2427 = vcmp.gt.f32.partialorder %v2425, 0.0
    %vm2428 = vcmp.gt.f32.partialorder %v2426, 0.0
    %v2429 = vmul.f32 %v2425, 0.2
    %v2430 = vmul.f32 %v2426, 0.2
    %v2431 = vsel %vm2427, %v2425, %v2429
    %v2432 = vsel %vm2428, %v2426, %v2430
    %2433 = vset.pattern.permute.xlu0 3
    %2434 = vperm.xlu0 %2433, %v1424
    %v2435 = vpop.permute.xlu0 %2434
    %v2436 = vlaneseq
    %v2437 = vshrl.u32 %v2436, 7
    %v2438 = vsub.s32 0, %v2437
    %v2439 = vrot.slane %v2435, %v2438
    %v2440 = vlaneseq
    %v2441 = vshrl.u32 %v2440, 7
    %v2442 = vsub.s32 1, %v2441
    %v2443 = vrot.slane %v2435, %v2442
    %v2446 = vmul.f32 %v2431, %v2439
    %v2447 = vmul.f32 %v2432, %v2443
    %2450 = vset.pattern.permute.xlu0 0
    %2451 = vperm.xlu0 %2450, %v2446
    %v2452 = vpop.permute.xlu0 %2451
    %2453 = vset.pattern.permute.xlu0 0
    %2454 = vperm.xlu0 %2453, %v2447
    %v2455 = vpop.permute.xlu0 %2454
    %v2456 = vlaneseq
    %v2457 = vshrl.u32 %v2456, 7
    %v2458 = vsub.s32 %v240, %v2457
    %v2459 = vrot.slane %v2452, %v2458
    %v2460 = vlaneseq
    %v2461 = vshrl.u32 %v2460, 7
    %v2462 = vsub.s32 %v240, %v2461
    %v2463 = vrot.slane %v2455, %v2462
    %v2464 = vsel %vm249, %v2463, %v2459
    %v2466 = vsel %vm252, %v2464, -inf
    %2467 = vmax.xlane.f32.xlu0 %v2466
    %v2468 = vpop.xlane.xlu0 %2467
    %v2470 = vlaneseq
    %v2471 = vshrl.u32 %v2470, 7
    %v2472 = vsub.s32 0, %v2471
    %v2473 = vrot.slane %v2468, %v2472
    %v2474 = vlaneseq
    %v2475 = vshrl.u32 %v2474, 7
    %v2476 = vsub.s32 1, %v2475
    %v2477 = vrot.slane %v2468, %v2476
    %v2480 = vsub.f32 %v2446, %v2473
    %v2481 = vsub.f32 %v2447, %v2477
    %v2482 = vmul.f32 %v2480, 1.442695
    %v2483 = vpow.pop %v2482
    %v2484 = vmul.f32 %v2481, 1.442695
    %v2485 = vpow.pop %v2484
    %2488 = vset.pattern.permute.xlu0 0
    %2489 = vperm.xlu0 %2488, %v2483
    %v2490 = vpop.permute.xlu0 %2489
    %2491 = vset.pattern.permute.xlu0 0
    %2492 = vperm.xlu0 %2491, %v2485
    %v2493 = vpop.permute.xlu0 %2492
    %v2494 = vlaneseq
    %v2495 = vshrl.u32 %v2494, 7
    %v2496 = vsub.s32 %v240, %v2495
    %v2497 = vrot.slane %v2490, %v2496
    %v2498 = vlaneseq
    %v2499 = vshrl.u32 %v2498, 7
    %v2500 = vsub.s32 %v240, %v2499
    %v2501 = vrot.slane %v2493, %v2500
    %v2502 = vsel %vm249, %v2501, %v2497
    %v2504 = vsel %vm252, %v2502, 0.0
    %2505 = vadd.xlane.f32.xlu0 %v2504
    %v2506 = vpop.xlane.xlu0 %2505
    %v2507 = vrcp.pop %v2506
    %v2509 = vlaneseq
    %v2510 = vshrl.u32 %v2509, 7
    %v2511 = vsub.s32 0, %v2510
    %v2512 = vrot.slane %v2507, %v2511
    %v2513 = vlaneseq
    %v2514 = vshrl.u32 %v2513, 7
    %v2515 = vsub.s32 1, %v2514
    %v2516 = vrot.slane %v2507, %v2515
    %v2519 = vmul.f32 %v2483, %v2512
    %v2520 = vmul.f32 %v2485, %v2516
    %2522 = vset.pattern.permute.xlu0 0
    %2523 = vperm.xlu0 %2522, %v2519
    %v2524 = vpop.permute.xlu0 %2523
    %2527 = vset.pattern.permute.xlu0 0
    %2528 = vperm.xlu0 %2527, %v2520
    %v2529 = vpop.permute.xlu0 %2528
    %v2531 = vmul.f32 %v2524, %v170
    %v2532 = vmul.f32 %v2529, %v180
    %v2533 = vsel %vm663, %v2531, 0.0
    %v2534 = vrot.slane %v2533, 4
    %v2535 = vadd.f32 %v2533, %v2534
    %v2536 = vrot.slane %v2535, 2
    %v2537 = vadd.f32 %v2535, %v2536
    %v2538 = vrot.slane %v2537, 1
    %v2539 = vadd.f32 %v2537, %v2538
    %v2540 = vsel %vm663, %v2532, 0.0
    %v2541 = vrot.slane %v2540, 4
    %v2542 = vadd.f32 %v2540, %v2541
    %v2543 = vrot.slane %v2542, 2
    %v2544 = vadd.f32 %v2542, %v2543
    %v2545 = vrot.slane %v2544, 1
    %v2546 = vadd.f32 %v2544, %v2545
    %v2549 = vsel %vm249, %v2142, %v2135
    %v2553 = vsel %vm249, %v2278, %v2271
    %v2557 = vsel %vm249, %v2412, %v2405
    %v2561 = vsel %vm249, %v2546, %v2539
    %v2563 = vsel %vm222, %v2549, %v2553
    %v2564 = vsel %vm695, %v2563, %v2557
    %v2565 = vsel %vm697, %v2564, %v2561
    %v2566 = vsel %vm85, %v1398, 0
    %2568 = vmatprep.subr.mxu0 0.0
    %2569 = vmatpush1.msra.mxu0 %v183
    %2570 = vmatprep.subr.mxu0 0.0
    %2571 = vmatpush1.msra.mxu0 %v184
    %2572 = vmatprep.subr.mxu0 0.0
    %2573 = vmatpush1.msra.mxu0 %v185
    %2574 = vmatprep.subr.mxu0 0.0
    %2575 = vmatpush1.msra.mxu0 %v186
    %2576 = vmatprep.subr.mxu0 0.0
    %2577 = vmatpush1.msra.mxu0 0.0
    %2578 = vmatprep.subr.mxu0 0.0
    %2579 = vmatpush1.msra.mxu0 0.0
    %2580 = vmatprep.subr.mxu0 0.0
    %2581 = vmatpush1.msra.mxu0 0.0
    %2582 = vmatprep.subr.mxu0 0.0
    %2583 = vmatpush1.msra.mxu0 0.0
    %2584 = vmatprep.subr.mxu0 0.0
    %2585 = vmatpush1.msra.mxu0 0.0
    %2586 = vmatprep.subr.mxu0 0.0
    %2587 = vmatpush1.msra.mxu0 0.0
    %2588 = vmatprep.subr.mxu0 0.0
    %2589 = vmatpush1.msra.mxu0 0.0
    %2590 = vmatprep.subr.mxu0 0.0
    %2591 = vmatpush1.msra.mxu0 0.0
    %2592 = vmatprep.subr.mxu0 0.0
    %2593 = vmatpush1.msra.mxu0 0.0
    %2594 = vmatprep.subr.mxu0 0.0
    %2595 = vmatpush1.msra.mxu0 0.0
    %2596 = vmatprep.subr.mxu0 0.0
    %2597 = vmatpush1.msra.mxu0 0.0
    %2598 = vmatprep.subr.mxu0 0.0
    %2599 = vmatpush1.msra.mxu0 0.0
    %2600 = vmatprep.subr.mxu0 0.0
    %2601 = vmatpush1.msra.mxu0 0.0
    %2602 = vmatprep.subr.mxu0 0.0
    %2603 = vmatpush1.msra.mxu0 0.0
    %2604 = vmatprep.subr.mxu0 0.0
    %2605 = vmatpush1.msra.mxu0 0.0
    %2606 = vmatprep.subr.mxu0 0.0
    %2607 = vmatpush1.msra.mxu0 0.0
    %2608 = vmatprep.subr.mxu0 0.0
    %2609 = vmatpush1.msra.mxu0 0.0
    %2610 = vmatprep.subr.mxu0 0.0
    %2611 = vmatpush1.msra.mxu0 0.0
    %2612 = vmatprep.subr.mxu0 0.0
    %2613 = vmatpush1.msra.mxu0 0.0
    %2614 = vmatprep.subr.mxu0 0.0
    %2615 = vmatpush1.msra.mxu0 0.0
    %2616 = vmatprep.subr.mxu0 0.0
    %2617 = vmatpush1.msra.mxu0 0.0
    %2618 = vmatprep.subr.mxu0 0.0
    %2619 = vmatpush1.msra.mxu0 0.0
    %2620 = vmatprep.subr.mxu0 0.0
    %2621 = vmatpush1.msra.mxu0 0.0
    %2622 = vmatprep.subr.mxu0 0.0
    %2623 = vmatpush1.msra.mxu0 0.0
    %2624 = vmatprep.subr.mxu0 0.0
    %2625 = vmatpush1.msra.mxu0 0.0
    %2626 = vmatprep.subr.mxu0 0.0
    %2627 = vmatpush1.msra.mxu0 0.0
    %2628 = vmatprep.subr.mxu0 0.0
    %2629 = vmatpush1.msra.mxu0 0.0
    %2630 = vmatprep.subr.mxu0 0.0
    %2631 = vmatpush1.msra.mxu0 0.0
    %2632 = vmatprep.mubr.f32.mxu0 0.0
    %2633 = vmatmul.mubr.f32.gmra.mrb[0].mxu0 %v2566
    %v2634 = vpop.f32.mrb[0].mxu0
    %v2635 = vadd.f32 0.0, %v2634
    %v2636 = vpop.f32.mrb[0].mxu0
    %2637 = vdwg.mxu0
    %v2638 = vmul.f32 %v2635, %v2011
    %v2639 = vsel %vm252, %v2638, 0.0
    %2640 = vadd.xlane.f32.xlu0 %v2639
    %v2641 = vpop.xlane.xlu0 %2640
    %v2642 = vmul.f32 %v2635, %v2565
    %v2643 = vsel %vm252, %v2642, 0.0
    %2644 = vadd.xlane.f32.xlu0 %v2643
    %v2645 = vpop.xlane.xlu0 %2644
    %v2646 = vsel %vm1248, %v2641, %v2645
    %v2647 = vmul.f32 %v2646, 0.35355338
    %v2648 = vsel %vm1251, %v2647, -inf
    %2649 = vmax.xlane.f32.xlu0 %v2648
    %v2650 = vpop.xlane.xlu0 %2649
    %v2651 = vsub.f32 %v2647, %v2650
    %v2652 = vmul.f32 %v2651, 1.442695
    %v2653 = vpow.pop %v2652
    %v2654 = vsel %vm1251, %v2653, 0.0
    %2655 = vadd.xlane.f32.xlu0 %v2654
    %v2656 = vpop.xlane.xlu0 %2655
    %v2657 = vrcp.pop %v2656
    %v2658 = vmul.f32 %v2653, %v2657
    %2660 = vset.pattern.permute.xlu0 0
    %2661 = vperm.xlu0 %2660, %v2658
    %v2662 = vpop.permute.xlu0 %2661
    %v2664 = vmul.f32 %v2662, %v2011
    %v2665 = vadd.f32 %v2664, 0.0
    %2666 = vset.pattern.permute.xlu0 1
    %2667 = vperm.xlu0 %2666, %v2658
    %v2668 = vpop.permute.xlu0 %2667
    %v2670 = vmul.f32 %v2668, %v2565
    %v2671 = vadd.f32 %v2665, %v2670
    %v2672 = vadd.f32 %v1398, %v2671
    %2674 = vrot.lane.b32.xlu0 %v2638, 120
    %v2675 = vpop.permute.xlu0 %2674
    %v2677 = vsel %vm252, %v2675, 0.0
    %2678 = vadd.xlane.f32.xlu0 %v2677
    %v2679 = vpop.xlane.xlu0 %2678
    %2681 = vrot.lane.b32.xlu0 %v2642, 120
    %v2682 = vpop.permute.xlu0 %2681
    %v2684 = vsel %vm252, %v2682, 0.0
    %2685 = vadd.xlane.f32.xlu0 %v2684
    %v2686 = vpop.xlane.xlu0 %2685
    %v2687 = vsel %vm1248, %v2679, %v2686
    %v2688 = vmul.f32 %v2687, 0.35355338
    %v2689 = vsel %vm1251, %v2688, -inf
    %2690 = vmax.xlane.f32.xlu0 %v2689
    %v2691 = vpop.xlane.xlu0 %2690
    %v2692 = vsub.f32 %v2688, %v2691
    %v2693 = vmul.f32 %v2692, 1.442695
    %v2694 = vpow.pop %v2693
    %v2695 = vsel %vm1251, %v2694, 0.0
    %2696 = vadd.xlane.f32.xlu0 %v2695
    %v2697 = vpop.xlane.xlu0 %2696
    %v2698 = vrcp.pop %v2697
    %v2699 = vmul.f32 %v2694, %v2698
    %2701 = vset.pattern.permute.xlu0 0
    %2702 = vperm.xlu0 %2701, %v2699
    %v2703 = vpop.permute.xlu0 %2702
    %v2705 = vmul.f32 %v2703, %v2011
    %v2706 = vadd.f32 %v2705, 0.0
    %2707 = vset.pattern.permute.xlu0 1
    %2708 = vperm.xlu0 %2707, %v2699
    %v2709 = vpop.permute.xlu0 %2708
    %v2711 = vmul.f32 %v2709, %v2565
    %v2712 = vadd.f32 %v2706, %v2711
    %v2713 = vadd.f32 %v1398, %v2712
    %2714 = vrot.lane.b32.xlu0 %v2638, 112
    %v2715 = vpop.permute.xlu0 %2714
    %v2717 = vsel %vm252, %v2715, 0.0
    %2718 = vadd.xlane.f32.xlu0 %v2717
    %v2719 = vpop.xlane.xlu0 %2718
    %2720 = vrot.lane.b32.xlu0 %v2642, 112
    %v2721 = vpop.permute.xlu0 %2720
    %v2723 = vsel %vm252, %v2721, 0.0
    %2724 = vadd.xlane.f32.xlu0 %v2723
    %v2725 = vpop.xlane.xlu0 %2724
    %v2726 = vsel %vm1248, %v2719, %v2725
    %v2727 = vmul.f32 %v2726, 0.35355338
    %v2728 = vsel %vm1251, %v2727, -inf
    %2729 = vmax.xlane.f32.xlu0 %v2728
    %v2730 = vpop.xlane.xlu0 %2729
    %v2731 = vsub.f32 %v2727, %v2730
    %v2732 = vmul.f32 %v2731, 1.442695
    %v2733 = vpow.pop %v2732
    %v2734 = vsel %vm1251, %v2733, 0.0
    %2735 = vadd.xlane.f32.xlu0 %v2734
    %v2736 = vpop.xlane.xlu0 %2735
    %v2737 = vrcp.pop %v2736
    %v2738 = vmul.f32 %v2733, %v2737
    %2740 = vset.pattern.permute.xlu0 0
    %2741 = vperm.xlu0 %2740, %v2738
    %v2742 = vpop.permute.xlu0 %2741
    %v2744 = vmul.f32 %v2742, %v2011
    %v2745 = vadd.f32 %v2744, 0.0
    %2746 = vset.pattern.permute.xlu0 1
    %2747 = vperm.xlu0 %2746, %v2738
    %v2748 = vpop.permute.xlu0 %2747
    %v2750 = vmul.f32 %v2748, %v2565
    %v2751 = vadd.f32 %v2745, %v2750
    %v2752 = vadd.f32 %v1398, %v2751
    %2753 = vrot.lane.b32.xlu0 %v2638, 104
    %v2754 = vpop.permute.xlu0 %2753
    %v2756 = vsel %vm252, %v2754, 0.0
    %2757 = vadd.xlane.f32.xlu0 %v2756
    %v2758 = vpop.xlane.xlu0 %2757
    %2759 = vrot.lane.b32.xlu0 %v2642, 104
    %v2760 = vpop.permute.xlu0 %2759
    %v2762 = vsel %vm252, %v2760, 0.0
    %2763 = vadd.xlane.f32.xlu0 %v2762
    %v2764 = vpop.xlane.xlu0 %2763
    %v2765 = vsel %vm1248, %v2758, %v2764
    %v2766 = vmul.f32 %v2765, 0.35355338
    %v2767 = vsel %vm1251, %v2766, -inf
    %2768 = vmax.xlane.f32.xlu0 %v2767
    %v2769 = vpop.xlane.xlu0 %2768
    %v2770 = vsub.f32 %v2766, %v2769
    %v2771 = vmul.f32 %v2770, 1.442695
    %v2772 = vpow.pop %v2771
    %v2773 = vsel %vm1251, %v2772, 0.0
    %2774 = vadd.xlane.f32.xlu0 %v2773
    %v2775 = vpop.xlane.xlu0 %2774
    %v2776 = vrcp.pop %v2775
    %v2777 = vmul.f32 %v2772, %v2776
    %2779 = vset.pattern.permute.xlu0 0
    %2780 = vperm.xlu0 %2779, %v2777
    %v2781 = vpop.permute.xlu0 %2780
    %v2783 = vmul.f32 %v2781, %v2011
    %v2784 = vadd.f32 %v2783, 0.0
    %2785 = vset.pattern.permute.xlu0 1
    %2786 = vperm.xlu0 %2785, %v2777
    %v2787 = vpop.permute.xlu0 %2786
    %v2789 = vmul.f32 %v2787, %v2565
    %v2790 = vadd.f32 %v2784, %v2789
    %v2791 = vadd.f32 %v1398, %v2790
    %v2792 = vsel %vm222, %v2672, %v2713
    %v2793 = vsel %vm695, %v2792, %v2752
    %v2794 = vsel %vm697, %v2793, %v2791
    %s2795 = scalar_lea.vmem [#allocation2], 2
    %v2796 = vld [vmem:[%s2795] sm:$0x3]
    %s2797 = scalar_lea.vmem [#allocation5], 32
    %v2798 = vld [vmem:[%s2797] sm:$0xff]
    %v2799 = vld [vmem:[%s2797 + $0x8] sm:$0xff]
    %v2800 = vld [vmem:[%s2797 + $0x10] sm:$0xff]
    %v2801 = vld [vmem:[%s2797 + $0x18] sm:$0xff]
    %s2802 = scalar_lea.vmem [#allocation7], 32
    %v2803 = vld [vmem:[%s2802] sm:$0xff]
    %v2804 = vld [vmem:[%s2802 + $0x8] sm:$0xff]
    %v2805 = vld [vmem:[%s2802 + $0x10] sm:$0xff]
    %v2806 = vld [vmem:[%s2802 + $0x18] sm:$0xff]
    %v2808 = vsel %vm85, %v2798, 0
    %v2811 = vsel %vm85, %v2799, 0
    %v2814 = vsel %vm85, %v2800, 0
    %v2817 = vsel %vm85, %v2801, 0
    %2819 = vmatprep.subr.mxu0 0.0
    %2820 = vmatpush1.msra.mxu0 %v2803
    %2821 = vmatprep.subr.mxu0 0.0
    %2822 = vmatpush1.msra.mxu0 %v2804
    %2823 = vmatprep.subr.mxu0 0.0
    %2824 = vmatpush1.msra.mxu0 %v2805
    %2825 = vmatprep.subr.mxu0 0.0
    %2826 = vmatpush1.msra.mxu0 %v2806
    %2827 = vmatprep.subr.mxu0 0.0
    %2828 = vmatpush1.msra.mxu0 0.0
    %2829 = vmatprep.subr.mxu0 0.0
    %2830 = vmatpush1.msra.mxu0 0.0
    %2831 = vmatprep.subr.mxu0 0.0
    %2832 = vmatpush1.msra.mxu0 0.0
    %2833 = vmatprep.subr.mxu0 0.0
    %2834 = vmatpush1.msra.mxu0 0.0
    %2835 = vmatprep.subr.mxu0 0.0
    %2836 = vmatpush1.msra.mxu0 0.0
    %2837 = vmatprep.subr.mxu0 0.0
    %2838 = vmatpush1.msra.mxu0 0.0
    %2839 = vmatprep.subr.mxu0 0.0
    %2840 = vmatpush1.msra.mxu0 0.0
    %2841 = vmatprep.subr.mxu0 0.0
    %2842 = vmatpush1.msra.mxu0 0.0
    %2843 = vmatprep.subr.mxu0 0.0
    %2844 = vmatpush1.msra.mxu0 0.0
    %2845 = vmatprep.subr.mxu0 0.0
    %2846 = vmatpush1.msra.mxu0 0.0
    %2847 = vmatprep.subr.mxu0 0.0
    %2848 = vmatpush1.msra.mxu0 0.0
    %2849 = vmatprep.subr.mxu0 0.0
    %2850 = vmatpush1.msra.mxu0 0.0
    %2851 = vmatprep.subr.mxu0 0.0
    %2852 = vmatpush1.msra.mxu0 0.0
    %2853 = vmatprep.subr.mxu0 0.0
    %2854 = vmatpush1.msra.mxu0 0.0
    %2855 = vmatprep.subr.mxu0 0.0
    %2856 = vmatpush1.msra.mxu0 0.0
    %2857 = vmatprep.subr.mxu0 0.0
    %2858 = vmatpush1.msra.mxu0 0.0
    %2859 = vmatprep.subr.mxu0 0.0
    %2860 = vmatpush1.msra.mxu0 0.0
    %2861 = vmatprep.subr.mxu0 0.0
    %2862 = vmatpush1.msra.mxu0 0.0
    %2863 = vmatprep.subr.mxu0 0.0
    %2864 = vmatpush1.msra.mxu0 0.0
    %2865 = vmatprep.subr.mxu0 0.0
    %2866 = vmatpush1.msra.mxu0 0.0
    %2867 = vmatprep.subr.mxu0 0.0
    %2868 = vmatpush1.msra.mxu0 0.0
    %2869 = vmatprep.subr.mxu0 0.0
    %2870 = vmatpush1.msra.mxu0 0.0
    %2871 = vmatprep.subr.mxu0 0.0
    %2872 = vmatpush1.msra.mxu0 0.0
    %2873 = vmatprep.subr.mxu0 0.0
    %2874 = vmatpush1.msra.mxu0 0.0
    %2875 = vmatprep.subr.mxu0 0.0
    %2876 = vmatpush1.msra.mxu0 0.0
    %2877 = vmatprep.subr.mxu0 0.0
    %2878 = vmatpush1.msra.mxu0 0.0
    %2879 = vmatprep.subr.mxu0 0.0
    %2880 = vmatpush1.msra.mxu0 0.0
    %2881 = vmatprep.subr.mxu0 0.0
    %2882 = vmatpush1.msra.mxu0 0.0
    %2883 = vmatprep.mubr.f32.mxu0 0.0
    %2884 = vmatmul.mubr.f32.gmra.mrb[0].mxu0 %v2808
    %v2885 = vpop.f32.mrb[0].mxu0
    %v2886 = vadd.f32 0.0, %v2885
    %v2887 = vpop.f32.mrb[0].mxu0
    %2888 = vmatprep.mubr.f32.mxu0 0.0
    %2889 = vmatmul.mubr.f32.gmra.mrb[0].mxu0 %v2811
    %v2890 = vpop.f32.mrb[0].mxu0
    %v2891 = vadd.f32 0.0, %v2890
    %v2892 = vpop.f32.mrb[0].mxu0
    %2893 = vmatprep.mubr.f32.mxu0 0.0
    %2894 = vmatmul.mubr.f32.gmra.mrb[0].mxu0 %v2814
    %v2895 = vpop.f32.mrb[0].mxu0
    %v2896 = vadd.f32 0.0, %v2895
    %v2897 = vpop.f32.mrb[0].mxu0
    %2898 = vmatprep.mubr.f32.mxu0 0.0
    %2899 = vmatmul.mubr.f32.gmra.mrb[0].mxu0 %v2817
    %v2900 = vpop.f32.mrb[0].mxu0
    %v2901 = vadd.f32 0.0, %v2900
    %v2902 = vpop.f32.mrb[0].mxu0
    %2903 = vdwg.mxu0
    %s2904 = scalar_lea.vmem [#allocation8], 32
    %v2905 = vld [vmem:[%s2904] sm:$0xff]
    %v2906 = vld [vmem:[%s2904 + $0x8] sm:$0xff]
    %v2907 = vld [vmem:[%s2904 + $0x10] sm:$0xff]
    %v2908 = vld [vmem:[%s2904 + $0x18] sm:$0xff]
    %v2911 = vunpack.c.l.s4 1966171168
    %v2912 = vunpack.c.0.s8 %v2911
    %v2913 = vlaneseq
    %v2914 = vshrl.u32 %v2913, 7
    %v2915 = vsub.s32 %v2912, %v2914
    %v2916 = vrot.slane %v2796, %v2915
    %v2917 = vcombine.high %v2916, %v2916
    %v2919 = vunpack.c.l.s4 1966171168
    %v2920 = vunpack.c.0.s8 %v2919
    %v2921 = vlaneseq
    %v2922 = vshrl.u32 %v2921, 7
    %v2923 = vsub.s32 %v2920, %v2922
    %v2924 = vrot.slane %v2916, %v2923
    %v2926 = vunpack.c.l.s4 1966171168
    %v2927 = vunpack.c.0.s8 %v2926
    %v2928 = vlaneseq
    %v2929 = vshrl.u32 %v2928, 7
    %v2930 = vsub.s32 %v2927, %v2929
    %v2931 = vrot.slane %v2917, %v2930
    %v2932 = vlaneseq
    %v2933 = vshrl.u32 %v2932, 7
    %v2934 = vsub.s32 0, %v2933
    %v2935 = vrot.slane %v2924, %v2934
    %v2936 = vlaneseq
    %v2937 = vshrl.u32 %v2936, 7
    %v2938 = vsub.s32 0, %v2937
    %v2939 = vrot.slane %v2931, %v2938
    %v2942 = vmul.f32 %v2886, %v2935
    %v2943 = vmul.f32 %v2896, %v2939
    %v2944 = vsel %vm222, %v2942, 0.0
    %2945 = vadd.xlane.f32.xlu0 %v2944
    %v2946 = vpop.xlane.xlu0 %2945
    %v2947 = vsel %vm222, %v2943, 0.0
    %2948 = vadd.xlane.f32.xlu0 %v2947
    %v2949 = vpop.xlane.xlu0 %2948
    %v2950 = vmul.f32 %v2946, 0.35355338
    %v2951 = vmul.f32 %v2949, 0.35355338
    %vm2952 = vcmp.gt.f32.partialorder %v2950, 0.0
    %vm2953 = vcmp.gt.f32.partialorder %v2951, 0.0
    %v2954 = vmul.f32 %v2950, 0.2
    %v2955 = vmul.f32 %v2951, 0.2
    %v2956 = vsel %vm2952, %v2950, %v2954
    %v2957 = vsel %vm2953, %v2951, %v2955
    %v2960 = vlaneseq
    %v2961 = vshrl.u32 %v2960, 7
    %v2962 = vsub.s32 %v240, %v2961
    %v2963 = vrot.slane %v2956, %v2962
    %v2964 = vlaneseq
    %v2965 = vshrl.u32 %v2964, 7
    %v2966 = vsub.s32 %v240, %v2965
    %v2967 = vrot.slane %v2957, %v2966
    %v2968 = vsel %vm249, %v2967, %v2963
    %v2970 = vsel %vm252, %v2968, -inf
    %2971 = vmax.xlane.f32.xlu0 %v2970
    %v2972 = vpop.xlane.xlu0 %2971
    %v2974 = vlaneseq
    %v2975 = vshrl.u32 %v2974, 7
    %v2976 = vsub.s32 0, %v2975
    %v2977 = vrot.slane %v2972, %v2976
    %v2978 = vlaneseq
    %v2979 = vshrl.u32 %v2978, 7
    %v2980 = vsub.s32 1, %v2979
    %v2981 = vrot.slane %v2972, %v2980
    %v2984 = vsub.f32 %v2956, %v2977
    %v2985 = vsub.f32 %v2957, %v2981
    %v2986 = vmul.f32 %v2984, 1.442695
    %v2987 = vpow.pop %v2986
    %v2988 = vmul.f32 %v2985, 1.442695
    %v2989 = vpow.pop %v2988
    %2992 = vset.pattern.permute.xlu0 0
    %2993 = vperm.xlu0 %2992, %v2987
    %v2994 = vpop.permute.xlu0 %2993
    %2995 = vset.pattern.permute.xlu0 0
    %2996 = vperm.xlu0 %2995, %v2989
    %v2997 = vpop.permute.xlu0 %2996
    %v2998 = vlaneseq
    %v2999 = vshrl.u32 %v2998, 7
    %v3000 = vsub.s32 %v240, %v2999
    %v3001 = vrot.slane %v2994, %v3000
    %v3002 = vlaneseq
    %v3003 = vshrl.u32 %v3002, 7
    %v3004 = vsub.s32 %v240, %v3003
    %v3005 = vrot.slane %v2997, %v3004
    %v3006 = vsel %vm249, %v3005, %v3001
    %v3008 = vsel %vm252, %v3006, 0.0
    %3009 = vadd.xlane.f32.xlu0 %v3008
    %v3010 = vpop.xlane.xlu0 %3009
    %v3011 = vrcp.pop %v3010
    %v3013 = vlaneseq
    %v3014 = vshrl.u32 %v3013, 7
    %v3015 = vsub.s32 0, %v3014
    %v3016 = vrot.slane %v3011, %v3015
    %v3017 = vlaneseq
    %v3018 = vshrl.u32 %v3017, 7
    %v3019 = vsub.s32 1, %v3018
    %v3020 = vrot.slane %v3011, %v3019
    %v3023 = vmul.f32 %v2987, %v3016
    %v3024 = vmul.f32 %v2989, %v3020
    %3026 = vset.pattern.permute.xlu0 0
    %3027 = vperm.xlu0 %3026, %v3023
    %v3028 = vpop.permute.xlu0 %3027
    %3031 = vset.pattern.permute.xlu0 0
    %3032 = vperm.xlu0 %3031, %v3024
    %v3033 = vpop.permute.xlu0 %3032
    %v3035 = vmul.f32 %v3028, %v2886
    %v3036 = vmul.f32 %v3033, %v2896
    %v3037 = vsel %vm222, %v3035, 0.0
    %v3038 = vrot.slane %v3037, 4
    %v3039 = vadd.f32 %v3037, %v3038
    %v3040 = vrot.slane %v3039, 2
    %v3041 = vadd.f32 %v3039, %v3040
    %v3042 = vrot.slane %v3041, 1
    %v3043 = vadd.f32 %v3041, %v3042
    %v3044 = vsel %vm222, %v3036, 0.0
    %v3045 = vrot.slane %v3044, 4
    %v3046 = vadd.f32 %v3044, %v3045
    %v3047 = vrot.slane %v3046, 2
    %v3048 = vadd.f32 %v3046, %v3047
    %v3049 = vrot.slane %v3048, 1
    %v3050 = vadd.f32 %v3048, %v3049
    %3053 = vrot.lane.b32.xlu0 %v2942, 120
    %v3054 = vpop.permute.xlu0 %3053
    %3055 = vrot.lane.b32.xlu0 %v2943, 120
    %v3056 = vpop.permute.xlu0 %3055
    %v3059 = vsel %vm222, %v3054, 0.0
    %3060 = vadd.xlane.f32.xlu0 %v3059
    %v3061 = vpop.xlane.xlu0 %3060
    %v3062 = vsel %vm222, %v3056, 0.0
    %3063 = vadd.xlane.f32.xlu0 %v3062
    %v3064 = vpop.xlane.xlu0 %3063
    %v3065 = vmul.f32 %v3061, 0.35355338
    %v3066 = vmul.f32 %v3064, 0.35355338
    %vm3067 = vcmp.gt.f32.partialorder %v3065, 0.0
    %vm3068 = vcmp.gt.f32.partialorder %v3066, 0.0
    %v3069 = vmul.f32 %v3065, 0.2
    %v3070 = vmul.f32 %v3066, 0.2
    %v3071 = vsel %vm3067, %v3065, %v3069
    %v3072 = vsel %vm3068, %v3066, %v3070
    %v3075 = vlaneseq
    %v3076 = vshrl.u32 %v3075, 7
    %v3077 = vsub.s32 %v240, %v3076
    %v3078 = vrot.slane %v3071, %v3077
    %v3079 = vlaneseq
    %v3080 = vshrl.u32 %v3079, 7
    %v3081 = vsub.s32 %v240, %v3080
    %v3082 = vrot.slane %v3072, %v3081
    %v3083 = vsel %vm249, %v3082, %v3078
    %v3085 = vsel %vm252, %v3083, -inf
    %3086 = vmax.xlane.f32.xlu0 %v3085
    %v3087 = vpop.xlane.xlu0 %3086
    %v3089 = vlaneseq
    %v3090 = vshrl.u32 %v3089, 7
    %v3091 = vsub.s32 0, %v3090
    %v3092 = vrot.slane %v3087, %v3091
    %v3093 = vlaneseq
    %v3094 = vshrl.u32 %v3093, 7
    %v3095 = vsub.s32 1, %v3094
    %v3096 = vrot.slane %v3087, %v3095
    %v3099 = vsub.f32 %v3071, %v3092
    %v3100 = vsub.f32 %v3072, %v3096
    %v3101 = vmul.f32 %v3099, 1.442695
    %v3102 = vpow.pop %v3101
    %v3103 = vmul.f32 %v3100, 1.442695
    %v3104 = vpow.pop %v3103
    %3107 = vset.pattern.permute.xlu0 0
    %3108 = vperm.xlu0 %3107, %v3102
    %v3109 = vpop.permute.xlu0 %3108
    %3110 = vset.pattern.permute.xlu0 0
    %3111 = vperm.xlu0 %3110, %v3104
    %v3112 = vpop.permute.xlu0 %3111
    %v3113 = vlaneseq
    %v3114 = vshrl.u32 %v3113, 7
    %v3115 = vsub.s32 %v240, %v3114
    %v3116 = vrot.slane %v3109, %v3115
    %v3117 = vlaneseq
    %v3118 = vshrl.u32 %v3117, 7
    %v3119 = vsub.s32 %v240, %v3118
    %v3120 = vrot.slane %v3112, %v3119
    %v3121 = vsel %vm249, %v3120, %v3116
    %v3123 = vsel %vm252, %v3121, 0.0
    %3124 = vadd.xlane.f32.xlu0 %v3123
    %v3125 = vpop.xlane.xlu0 %3124
    %v3126 = vrcp.pop %v3125
    %v3128 = vlaneseq
    %v3129 = vshrl.u32 %v3128, 7
    %v3130 = vsub.s32 0, %v3129
    %v3131 = vrot.slane %v3126, %v3130
    %v3132 = vlaneseq
    %v3133 = vshrl.u32 %v3132, 7
    %v3134 = vsub.s32 1, %v3133
    %v3135 = vrot.slane %v3126, %v3134
    %v3138 = vmul.f32 %v3102, %v3131
    %v3139 = vmul.f32 %v3104, %v3135
    %3141 = vset.pattern.permute.xlu0 0
    %3142 = vperm.xlu0 %3141, %v3138
    %v3143 = vpop.permute.xlu0 %3142
    %3146 = vset.pattern.permute.xlu0 0
    %3147 = vperm.xlu0 %3146, %v3139
    %v3148 = vpop.permute.xlu0 %3147
    %v3150 = vmul.f32 %v3143, %v2886
    %v3151 = vmul.f32 %v3148, %v2896
    %v3152 = vsel %vm435, %v3150, 0.0
    %v3153 = vrot.slane %v3152, 4
    %v3154 = vadd.f32 %v3152, %v3153
    %v3155 = vrot.slane %v3154, 2
    %v3156 = vadd.f32 %v3154, %v3155
    %v3157 = vrot.slane %v3156, 1
    %v3158 = vadd.f32 %v3156, %v3157
    %v3159 = vsel %vm435, %v3151, 0.0
    %v3160 = vrot.slane %v3159, 4
    %v3161 = vadd.f32 %v3159, %v3160
    %v3162 = vrot.slane %v3161, 2
    %v3163 = vadd.f32 %v3161, %v3162
    %v3164 = vrot.slane %v3163, 1
    %v3165 = vadd.f32 %v3163, %v3164
    %3166 = vrot.lane.b32.xlu0 %v2942, 112
    %v3167 = vpop.permute.xlu0 %3166
    %3168 = vrot.lane.b32.xlu0 %v2943, 112
    %v3169 = vpop.permute.xlu0 %3168
    %v3172 = vsel %vm222, %v3167, 0.0
    %3173 = vadd.xlane.f32.xlu0 %v3172
    %v3174 = vpop.xlane.xlu0 %3173
    %v3175 = vsel %vm222, %v3169, 0.0
    %3176 = vadd.xlane.f32.xlu0 %v3175
    %v3177 = vpop.xlane.xlu0 %3176
    %v3178 = vmul.f32 %v3174, 0.35355338
    %v3179 = vmul.f32 %v3177, 0.35355338
    %vm3180 = vcmp.gt.f32.partialorder %v3178, 0.0
    %vm3181 = vcmp.gt.f32.partialorder %v3179, 0.0
    %v3182 = vmul.f32 %v3178, 0.2
    %v3183 = vmul.f32 %v3179, 0.2
    %v3184 = vsel %vm3180, %v3178, %v3182
    %v3185 = vsel %vm3181, %v3179, %v3183
    %v3188 = vlaneseq
    %v3189 = vshrl.u32 %v3188, 7
    %v3190 = vsub.s32 %v240, %v3189
    %v3191 = vrot.slane %v3184, %v3190
    %v3192 = vlaneseq
    %v3193 = vshrl.u32 %v3192, 7
    %v3194 = vsub.s32 %v240, %v3193
    %v3195 = vrot.slane %v3185, %v3194
    %v3196 = vsel %vm249, %v3195, %v3191
    %v3198 = vsel %vm252, %v3196, -inf
    %3199 = vmax.xlane.f32.xlu0 %v3198
    %v3200 = vpop.xlane.xlu0 %3199
    %v3202 = vlaneseq
    %v3203 = vshrl.u32 %v3202, 7
    %v3204 = vsub.s32 0, %v3203
    %v3205 = vrot.slane %v3200, %v3204
    %v3206 = vlaneseq
    %v3207 = vshrl.u32 %v3206, 7
    %v3208 = vsub.s32 1, %v3207
    %v3209 = vrot.slane %v3200, %v3208
    %v3212 = vsub.f32 %v3184, %v3205
    %v3213 = vsub.f32 %v3185, %v3209
    %v3214 = vmul.f32 %v3212, 1.442695
    %v3215 = vpow.pop %v3214
    %v3216 = vmul.f32 %v3213, 1.442695
    %v3217 = vpow.pop %v3216
    %3220 = vset.pattern.permute.xlu0 0
    %3221 = vperm.xlu0 %3220, %v3215
    %v3222 = vpop.permute.xlu0 %3221
    %3223 = vset.pattern.permute.xlu0 0
    %3224 = vperm.xlu0 %3223, %v3217
    %v3225 = vpop.permute.xlu0 %3224
    %v3226 = vlaneseq
    %v3227 = vshrl.u32 %v3226, 7
    %v3228 = vsub.s32 %v240, %v3227
    %v3229 = vrot.slane %v3222, %v3228
    %v3230 = vlaneseq
    %v3231 = vshrl.u32 %v3230, 7
    %v3232 = vsub.s32 %v240, %v3231
    %v3233 = vrot.slane %v3225, %v3232
    %v3234 = vsel %vm249, %v3233, %v3229
    %v3236 = vsel %vm252, %v3234, 0.0
    %3237 = vadd.xlane.f32.xlu0 %v3236
    %v3238 = vpop.xlane.xlu0 %3237
    %v3239 = vrcp.pop %v3238
    %v3241 = vlaneseq
    %v3242 = vshrl.u32 %v3241, 7
    %v3243 = vsub.s32 0, %v3242
    %v3244 = vrot.slane %v3239, %v3243
    %v3245 = vlaneseq
    %v3246 = vshrl.u32 %v3245, 7
    %v3247 = vsub.s32 1, %v3246
    %v3248 = vrot.slane %v3239, %v3247
    %v3251 = vmul.f32 %v3215, %v3244
    %v3252 = vmul.f32 %v3217, %v3248
    %3254 = vset.pattern.permute.xlu0 0
    %3255 = vperm.xlu0 %3254, %v3251
    %v3256 = vpop.permute.xlu0 %3255
    %3259 = vset.pattern.permute.xlu0 0
    %3260 = vperm.xlu0 %3259, %v3252
    %v3261 = vpop.permute.xlu0 %3260
    %v3263 = vmul.f32 %v3256, %v2886
    %v3264 = vmul.f32 %v3261, %v2896
    %v3265 = vsel %vm549, %v3263, 0.0
    %v3266 = vrot.slane %v3265, 4
    %v3267 = vadd.f32 %v3265, %v3266
    %v3268 = vrot.slane %v3267, 2
    %v3269 = vadd.f32 %v3267, %v3268
    %v3270 = vrot.slane %v3269, 1
    %v3271 = vadd.f32 %v3269, %v3270
    %v3272 = vsel %vm549, %v3264, 0.0
    %v3273 = vrot.slane %v3272, 4
    %v3274 = vadd.f32 %v3272, %v3273
    %v3275 = vrot.slane %v3274, 2
    %v3276 = vadd.f32 %v3274, %v3275
    %v3277 = vrot.slane %v3276, 1
    %v3278 = vadd.f32 %v3276, %v3277
    %3279 = vrot.lane.b32.xlu0 %v2942, 104
    %v3280 = vpop.permute.xlu0 %3279
    %3281 = vrot.lane.b32.xlu0 %v2943, 104
    %v3282 = vpop.permute.xlu0 %3281
    %v3285 = vsel %vm222, %v3280, 0.0
    %3286 = vadd.xlane.f32.xlu0 %v3285
    %v3287 = vpop.xlane.xlu0 %3286
    %v3288 = vsel %vm222, %v3282, 0.0
    %3289 = vadd.xlane.f32.xlu0 %v3288
    %v3290 = vpop.xlane.xlu0 %3289
    %v3291 = vmul.f32 %v3287, 0.35355338
    %v3292 = vmul.f32 %v3290, 0.35355338
    %vm3293 = vcmp.gt.f32.partialorder %v3291, 0.0
    %vm3294 = vcmp.gt.f32.partialorder %v3292, 0.0
    %v3295 = vmul.f32 %v3291, 0.2
    %v3296 = vmul.f32 %v3292, 0.2
    %v3297 = vsel %vm3293, %v3291, %v3295
    %v3298 = vsel %vm3294, %v3292, %v3296
    %v3301 = vlaneseq
    %v3302 = vshrl.u32 %v3301, 7
    %v3303 = vsub.s32 %v240, %v3302
    %v3304 = vrot.slane %v3297, %v3303
    %v3305 = vlaneseq
    %v3306 = vshrl.u32 %v3305, 7
    %v3307 = vsub.s32 %v240, %v3306
    %v3308 = vrot.slane %v3298, %v3307
    %v3309 = vsel %vm249, %v3308, %v3304
    %v3311 = vsel %vm252, %v3309, -inf
    %3312 = vmax.xlane.f32.xlu0 %v3311
    %v3313 = vpop.xlane.xlu0 %3312
    %v3315 = vlaneseq
    %v3316 = vshrl.u32 %v3315, 7
    %v3317 = vsub.s32 0, %v3316
    %v3318 = vrot.slane %v3313, %v3317
    %v3319 = vlaneseq
    %v3320 = vshrl.u32 %v3319, 7
    %v3321 = vsub.s32 1, %v3320
    %v3322 = vrot.slane %v3313, %v3321
    %v3325 = vsub.f32 %v3297, %v3318
    %v3326 = vsub.f32 %v3298, %v3322
    %v3327 = vmul.f32 %v3325, 1.442695
    %v3328 = vpow.pop %v3327
    %v3329 = vmul.f32 %v3326, 1.442695
    %v3330 = vpow.pop %v3329
    %3333 = vset.pattern.permute.xlu0 0
    %3334 = vperm.xlu0 %3333, %v3328
    %v3335 = vpop.permute.xlu0 %3334
    %3336 = vset.pattern.permute.xlu0 0
    %3337 = vperm.xlu0 %3336, %v3330
    %v3338 = vpop.permute.xlu0 %3337
    %v3339 = vlaneseq
    %v3340 = vshrl.u32 %v3339, 7
    %v3341 = vsub.s32 %v240, %v3340
    %v3342 = vrot.slane %v3335, %v3341
    %v3343 = vlaneseq
    %v3344 = vshrl.u32 %v3343, 7
    %v3345 = vsub.s32 %v240, %v3344
    %v3346 = vrot.slane %v3338, %v3345
    %v3347 = vsel %vm249, %v3346, %v3342
    %v3349 = vsel %vm252, %v3347, 0.0
    %3350 = vadd.xlane.f32.xlu0 %v3349
    %v3351 = vpop.xlane.xlu0 %3350
    %v3352 = vrcp.pop %v3351
    %v3354 = vlaneseq
    %v3355 = vshrl.u32 %v3354, 7
    %v3356 = vsub.s32 0, %v3355
    %v3357 = vrot.slane %v3352, %v3356
    %v3358 = vlaneseq
    %v3359 = vshrl.u32 %v3358, 7
    %v3360 = vsub.s32 1, %v3359
    %v3361 = vrot.slane %v3352, %v3360
    %v3364 = vmul.f32 %v3328, %v3357
    %v3365 = vmul.f32 %v3330, %v3361
    %3367 = vset.pattern.permute.xlu0 0
    %3368 = vperm.xlu0 %3367, %v3364
    %v3369 = vpop.permute.xlu0 %3368
    %3372 = vset.pattern.permute.xlu0 0
    %3373 = vperm.xlu0 %3372, %v3365
    %v3374 = vpop.permute.xlu0 %3373
    %v3376 = vmul.f32 %v3369, %v2886
    %v3377 = vmul.f32 %v3374, %v2896
    %v3378 = vsel %vm663, %v3376, 0.0
    %v3379 = vrot.slane %v3378, 4
    %v3380 = vadd.f32 %v3378, %v3379
    %v3381 = vrot.slane %v3380, 2
    %v3382 = vadd.f32 %v3380, %v3381
    %v3383 = vrot.slane %v3382, 1
    %v3384 = vadd.f32 %v3382, %v3383
    %v3385 = vsel %vm663, %v3377, 0.0
    %v3386 = vrot.slane %v3385, 4
    %v3387 = vadd.f32 %v3385, %v3386
    %v3388 = vrot.slane %v3387, 2
    %v3389 = vadd.f32 %v3387, %v3388
    %v3390 = vrot.slane %v3389, 1
    %v3391 = vadd.f32 %v3389, %v3390
    %v3394 = vsel %vm249, %v3050, %v3043
    %v3398 = vsel %vm249, %v3165, %v3158
    %v3402 = vsel %vm249, %v3278, %v3271
    %v3406 = vsel %vm249, %v3391, %v3384
    %v3408 = vsel %vm222, %v3394, %v3398
    %v3409 = vsel %vm695, %v3408, %v3402
    %v3410 = vsel %vm697, %v3409, %v3406
    %v3411 = vmul.f32 %v2891, %v2935
    %v3412 = vmul.f32 %v2901, %v2939
    %v3413 = vsel %vm222, %v3411, 0.0
    %3414 = vadd.xlane.f32.xlu0 %v3413
    %v3415 = vpop.xlane.xlu0 %3414
    %v3416 = vsel %vm222, %v3412, 0.0
    %3417 = vadd.xlane.f32.xlu0 %v3416
    %v3418 = vpop.xlane.xlu0 %3417
    %v3419 = vmul.f32 %v3415, 0.35355338
    %v3420 = vmul.f32 %v3418, 0.35355338
    %vm3421 = vcmp.gt.f32.partialorder %v3419, 0.0
    %vm3422 = vcmp.gt.f32.partialorder %v3420, 0.0
    %v3423 = vmul.f32 %v3419, 0.2
    %v3424 = vmul.f32 %v3420, 0.2
    %v3425 = vsel %vm3421, %v3419, %v3423
    %v3426 = vsel %vm3422, %v3420, %v3424
    %v3429 = vlaneseq
    %v3430 = vshrl.u32 %v3429, 7
    %v3431 = vsub.s32 %v240, %v3430
    %v3432 = vrot.slane %v3425, %v3431
    %v3433 = vlaneseq
    %v3434 = vshrl.u32 %v3433, 7
    %v3435 = vsub.s32 %v240, %v3434
    %v3436 = vrot.slane %v3426, %v3435
    %v3437 = vsel %vm249, %v3436, %v3432
    %v3439 = vsel %vm252, %v3437, -inf
    %3440 = vmax.xlane.f32.xlu0 %v3439
    %v3441 = vpop.xlane.xlu0 %3440
    %v3443 = vlaneseq
    %v3444 = vshrl.u32 %v3443, 7
    %v3445 = vsub.s32 0, %v3444
    %v3446 = vrot.slane %v3441, %v3445
    %v3447 = vlaneseq
    %v3448 = vshrl.u32 %v3447, 7
    %v3449 = vsub.s32 1, %v3448
    %v3450 = vrot.slane %v3441, %v3449
    %v3453 = vsub.f32 %v3425, %v3446
    %v3454 = vsub.f32 %v3426, %v3450
    %v3455 = vmul.f32 %v3453, 1.442695
    %v3456 = vpow.pop %v3455
    %v3457 = vmul.f32 %v3454, 1.442695
    %v3458 = vpow.pop %v3457
    %3461 = vset.pattern.permute.xlu0 0
    %3462 = vperm.xlu0 %3461, %v3456
    %v3463 = vpop.permute.xlu0 %3462
    %3464 = vset.pattern.permute.xlu0 0
    %3465 = vperm.xlu0 %3464, %v3458
    %v3466 = vpop.permute.xlu0 %3465
    %v3467 = vlaneseq
    %v3468 = vshrl.u32 %v3467, 7
    %v3469 = vsub.s32 %v240, %v3468
    %v3470 = vrot.slane %v3463, %v3469
    %v3471 = vlaneseq
    %v3472 = vshrl.u32 %v3471, 7
    %v3473 = vsub.s32 %v240, %v3472
    %v3474 = vrot.slane %v3466, %v3473
    %v3475 = vsel %vm249, %v3474, %v3470
    %v3477 = vsel %vm252, %v3475, 0.0
    %3478 = vadd.xlane.f32.xlu0 %v3477
    %v3479 = vpop.xlane.xlu0 %3478
    %v3480 = vrcp.pop %v3479
    %v3482 = vlaneseq
    %v3483 = vshrl.u32 %v3482, 7
    %v3484 = vsub.s32 0, %v3483
    %v3485 = vrot.slane %v3480, %v3484
    %v3486 = vlaneseq
    %v3487 = vshrl.u32 %v3486, 7
    %v3488 = vsub.s32 1, %v3487
    %v3489 = vrot.slane %v3480, %v3488
    %v3492 = vmul.f32 %v3456, %v3485
    %v3493 = vmul.f32 %v3458, %v3489
    %3495 = vset.pattern.permute.xlu0 0
    %3496 = vperm.xlu0 %3495, %v3492
    %v3497 = vpop.permute.xlu0 %3496
    %3500 = vset.pattern.permute.xlu0 0
    %3501 = vperm.xlu0 %3500, %v3493
    %v3502 = vpop.permute.xlu0 %3501
    %v3504 = vmul.f32 %v3497, %v2891
    %v3505 = vmul.f32 %v3502, %v2901
    %v3506 = vsel %vm222, %v3504, 0.0
    %v3507 = vrot.slane %v3506, 4
    %v3508 = vadd.f32 %v3506, %v3507
    %v3509 = vrot.slane %v3508, 2
    %v3510 = vadd.f32 %v3508, %v3509
    %v3511 = vrot.slane %v3510, 1
    %v3512 = vadd.f32 %v3510, %v3511
    %v3513 = vsel %vm222, %v3505, 0.0
    %v3514 = vrot.slane %v3513, 4
    %v3515 = vadd.f32 %v3513, %v3514
    %v3516 = vrot.slane %v3515, 2
    %v3517 = vadd.f32 %v3515, %v3516
    %v3518 = vrot.slane %v3517, 1
    %v3519 = vadd.f32 %v3517, %v3518
    %3522 = vrot.lane.b32.xlu0 %v3411, 120
    %v3523 = vpop.permute.xlu0 %3522
    %3524 = vrot.lane.b32.xlu0 %v3412, 120
    %v3525 = vpop.permute.xlu0 %3524
    %v3528 = vsel %vm222, %v3523, 0.0
    %3529 = vadd.xlane.f32.xlu0 %v3528
    %v3530 = vpop.xlane.xlu0 %3529
    %v3531 = vsel %vm222, %v3525, 0.0
    %3532 = vadd.xlane.f32.xlu0 %v3531
    %v3533 = vpop.xlane.xlu0 %3532
    %v3534 = vmul.f32 %v3530, 0.35355338
    %v3535 = vmul.f32 %v3533, 0.35355338
    %vm3536 = vcmp.gt.f32.partialorder %v3534, 0.0
    %vm3537 = vcmp.gt.f32.partialorder %v3535, 0.0
    %v3538 = vmul.f32 %v3534, 0.2
    %v3539 = vmul.f32 %v3535, 0.2
    %v3540 = vsel %vm3536, %v3534, %v3538
    %v3541 = vsel %vm3537, %v3535, %v3539
    %v3544 = vlaneseq
    %v3545 = vshrl.u32 %v3544, 7
    %v3546 = vsub.s32 %v240, %v3545
    %v3547 = vrot.slane %v3540, %v3546
    %v3548 = vlaneseq
    %v3549 = vshrl.u32 %v3548, 7
    %v3550 = vsub.s32 %v240, %v3549
    %v3551 = vrot.slane %v3541, %v3550
    %v3552 = vsel %vm249, %v3551, %v3547
    %v3554 = vsel %vm252, %v3552, -inf
    %3555 = vmax.xlane.f32.xlu0 %v3554
    %v3556 = vpop.xlane.xlu0 %3555
    %v3558 = vlaneseq
    %v3559 = vshrl.u32 %v3558, 7
    %v3560 = vsub.s32 0, %v3559
    %v3561 = vrot.slane %v3556, %v3560
    %v3562 = vlaneseq
    %v3563 = vshrl.u32 %v3562, 7
    %v3564 = vsub.s32 1, %v3563
    %v3565 = vrot.slane %v3556, %v3564
    %v3568 = vsub.f32 %v3540, %v3561
    %v3569 = vsub.f32 %v3541, %v3565
    %v3570 = vmul.f32 %v3568, 1.442695
    %v3571 = vpow.pop %v3570
    %v3572 = vmul.f32 %v3569, 1.442695
    %v3573 = vpow.pop %v3572
    %3576 = vset.pattern.permute.xlu0 0
    %3577 = vperm.xlu0 %3576, %v3571
    %v3578 = vpop.permute.xlu0 %3577
    %3579 = vset.pattern.permute.xlu0 0
    %3580 = vperm.xlu0 %3579, %v3573
    %v3581 = vpop.permute.xlu0 %3580
    %v3582 = vlaneseq
    %v3583 = vshrl.u32 %v3582, 7
    %v3584 = vsub.s32 %v240, %v3583
    %v3585 = vrot.slane %v3578, %v3584
    %v3586 = vlaneseq
    %v3587 = vshrl.u32 %v3586, 7
    %v3588 = vsub.s32 %v240, %v3587
    %v3589 = vrot.slane %v3581, %v3588
    %v3590 = vsel %vm249, %v3589, %v3585
    %v3592 = vsel %vm252, %v3590, 0.0
    %3593 = vadd.xlane.f32.xlu0 %v3592
    %v3594 = vpop.xlane.xlu0 %3593
    %v3595 = vrcp.pop %v3594
    %v3597 = vlaneseq
    %v3598 = vshrl.u32 %v3597, 7
    %v3599 = vsub.s32 0, %v3598
    %v3600 = vrot.slane %v3595, %v3599
    %v3601 = vlaneseq
    %v3602 = vshrl.u32 %v3601, 7
    %v3603 = vsub.s32 1, %v3602
    %v3604 = vrot.slane %v3595, %v3603
    %v3607 = vmul.f32 %v3571, %v3600
    %v3608 = vmul.f32 %v3573, %v3604
    %3610 = vset.pattern.permute.xlu0 0
    %3611 = vperm.xlu0 %3610, %v3607
    %v3612 = vpop.permute.xlu0 %3611
    %3615 = vset.pattern.permute.xlu0 0
    %3616 = vperm.xlu0 %3615, %v3608
    %v3617 = vpop.permute.xlu0 %3616
    %v3619 = vmul.f32 %v3612, %v2891
    %v3620 = vmul.f32 %v3617, %v2901
    %v3621 = vsel %vm435, %v3619, 0.0
    %v3622 = vrot.slane %v3621, 4
    %v3623 = vadd.f32 %v3621, %v3622
    %v3624 = vrot.slane %v3623, 2
    %v3625 = vadd.f32 %v3623, %v3624
    %v3626 = vrot.slane %v3625, 1
    %v3627 = vadd.f32 %v3625, %v3626
    %v3628 = vsel %vm435, %v3620, 0.0
    %v3629 = vrot.slane %v3628, 4
    %v3630 = vadd.f32 %v3628, %v3629
    %v3631 = vrot.slane %v3630, 2
    %v3632 = vadd.f32 %v3630, %v3631
    %v3633 = vrot.slane %v3632, 1
    %v3634 = vadd.f32 %v3632, %v3633
    %3635 = vrot.lane.b32.xlu0 %v3411, 112
    %v3636 = vpop.permute.xlu0 %3635
    %3637 = vrot.lane.b32.xlu0 %v3412, 112
    %v3638 = vpop.permute.xlu0 %3637
    %v3641 = vsel %vm222, %v3636, 0.0
    %3642 = vadd.xlane.f32.xlu0 %v3641
    %v3643 = vpop.xlane.xlu0 %3642
    %v3644 = vsel %vm222, %v3638, 0.0
    %3645 = vadd.xlane.f32.xlu0 %v3644
    %v3646 = vpop.xlane.xlu0 %3645
    %v3647 = vmul.f32 %v3643, 0.35355338
    %v3648 = vmul.f32 %v3646, 0.35355338
    %vm3649 = vcmp.gt.f32.partialorder %v3647, 0.0
    %vm3650 = vcmp.gt.f32.partialorder %v3648, 0.0
    %v3651 = vmul.f32 %v3647, 0.2
    %v3652 = vmul.f32 %v3648, 0.2
    %v3653 = vsel %vm3649, %v3647, %v3651
    %v3654 = vsel %vm3650, %v3648, %v3652
    %v3657 = vlaneseq
    %v3658 = vshrl.u32 %v3657, 7
    %v3659 = vsub.s32 %v240, %v3658
    %v3660 = vrot.slane %v3653, %v3659
    %v3661 = vlaneseq
    %v3662 = vshrl.u32 %v3661, 7
    %v3663 = vsub.s32 %v240, %v3662
    %v3664 = vrot.slane %v3654, %v3663
    %v3665 = vsel %vm249, %v3664, %v3660
    %v3667 = vsel %vm252, %v3665, -inf
    %3668 = vmax.xlane.f32.xlu0 %v3667
    %v3669 = vpop.xlane.xlu0 %3668
    %v3671 = vlaneseq
    %v3672 = vshrl.u32 %v3671, 7
    %v3673 = vsub.s32 0, %v3672
    %v3674 = vrot.slane %v3669, %v3673
    %v3675 = vlaneseq
    %v3676 = vshrl.u32 %v3675, 7
    %v3677 = vsub.s32 1, %v3676
    %v3678 = vrot.slane %v3669, %v3677
    %v3681 = vsub.f32 %v3653, %v3674
    %v3682 = vsub.f32 %v3654, %v3678
    %v3683 = vmul.f32 %v3681, 1.442695
    %v3684 = vpow.pop %v3683
    %v3685 = vmul.f32 %v3682, 1.442695
    %v3686 = vpow.pop %v3685
    %3689 = vset.pattern.permute.xlu0 0
    %3690 = vperm.xlu0 %3689, %v3684
    %v3691 = vpop.permute.xlu0 %3690
    %3692 = vset.pattern.permute.xlu0 0
    %3693 = vperm.xlu0 %3692, %v3686
    %v3694 = vpop.permute.xlu0 %3693
    %v3695 = vlaneseq
    %v3696 = vshrl.u32 %v3695, 7
    %v3697 = vsub.s32 %v240, %v3696
    %v3698 = vrot.slane %v3691, %v3697
    %v3699 = vlaneseq
    %v3700 = vshrl.u32 %v3699, 7
    %v3701 = vsub.s32 %v240, %v3700
    %v3702 = vrot.slane %v3694, %v3701
    %v3703 = vsel %vm249, %v3702, %v3698
    %v3705 = vsel %vm252, %v3703, 0.0
    %3706 = vadd.xlane.f32.xlu0 %v3705
    %v3707 = vpop.xlane.xlu0 %3706
    %v3708 = vrcp.pop %v3707
    %v3710 = vlaneseq
    %v3711 = vshrl.u32 %v3710, 7
    %v3712 = vsub.s32 0, %v3711
    %v3713 = vrot.slane %v3708, %v3712
    %v3714 = vlaneseq
    %v3715 = vshrl.u32 %v3714, 7
    %v3716 = vsub.s32 1, %v3715
    %v3717 = vrot.slane %v3708, %v3716
    %v3720 = vmul.f32 %v3684, %v3713
    %v3721 = vmul.f32 %v3686, %v3717
    %3723 = vset.pattern.permute.xlu0 0
    %3724 = vperm.xlu0 %3723, %v3720
    %v3725 = vpop.permute.xlu0 %3724
    %3728 = vset.pattern.permute.xlu0 0
    %3729 = vperm.xlu0 %3728, %v3721
    %v3730 = vpop.permute.xlu0 %3729
    %v3732 = vmul.f32 %v3725, %v2891
    %v3733 = vmul.f32 %v3730, %v2901
    %v3734 = vsel %vm549, %v3732, 0.0
    %v3735 = vrot.slane %v3734, 4
    %v3736 = vadd.f32 %v3734, %v3735
    %v3737 = vrot.slane %v3736, 2
    %v3738 = vadd.f32 %v3736, %v3737
    %v3739 = vrot.slane %v3738, 1
    %v3740 = vadd.f32 %v3738, %v3739
    %v3741 = vsel %vm549, %v3733, 0.0
    %v3742 = vrot.slane %v3741, 4
    %v3743 = vadd.f32 %v3741, %v3742
    %v3744 = vrot.slane %v3743, 2
    %v3745 = vadd.f32 %v3743, %v3744
    %v3746 = vrot.slane %v3745, 1
    %v3747 = vadd.f32 %v3745, %v3746
    %3748 = vrot.lane.b32.xlu0 %v3411, 104
    %v3749 = vpop.permute.xlu0 %3748
    %3750 = vrot.lane.b32.xlu0 %v3412, 104
    %v3751 = vpop.permute.xlu0 %3750
    %v3754 = vsel %vm222, %v3749, 0.0
    %3755 = vadd.xlane.f32.xlu0 %v3754
    %v3756 = vpop.xlane.xlu0 %3755
    %v3757 = vsel %vm222, %v3751, 0.0
    %3758 = vadd.xlane.f32.xlu0 %v3757
    %v3759 = vpop.xlane.xlu0 %3758
    %v3760 = vmul.f32 %v3756, 0.35355338
    %v3761 = vmul.f32 %v3759, 0.35355338
    %vm3762 = vcmp.gt.f32.partialorder %v3760, 0.0
    %vm3763 = vcmp.gt.f32.partialorder %v3761, 0.0
    %v3764 = vmul.f32 %v3760, 0.2
    %v3765 = vmul.f32 %v3761, 0.2
    %v3766 = vsel %vm3762, %v3760, %v3764
    %v3767 = vsel %vm3763, %v3761, %v3765
    %v3770 = vlaneseq
    %v3771 = vshrl.u32 %v3770, 7
    %v3772 = vsub.s32 %v240, %v3771
    %v3773 = vrot.slane %v3766, %v3772
    %v3774 = vlaneseq
    %v3775 = vshrl.u32 %v3774, 7
    %v3776 = vsub.s32 %v240, %v3775
    %v3777 = vrot.slane %v3767, %v3776
    %v3778 = vsel %vm249, %v3777, %v3773
    %v3780 = vsel %vm252, %v3778, -inf
    %3781 = vmax.xlane.f32.xlu0 %v3780
    %v3782 = vpop.xlane.xlu0 %3781
    %v3784 = vlaneseq
    %v3785 = vshrl.u32 %v3784, 7
    %v3786 = vsub.s32 0, %v3785
    %v3787 = vrot.slane %v3782, %v3786
    %v3788 = vlaneseq
    %v3789 = vshrl.u32 %v3788, 7
    %v3790 = vsub.s32 1, %v3789
    %v3791 = vrot.slane %v3782, %v3790
    %v3794 = vsub.f32 %v3766, %v3787
    %v3795 = vsub.f32 %v3767, %v3791
    %v3796 = vmul.f32 %v3794, 1.442695
    %v3797 = vpow.pop %v3796
    %v3798 = vmul.f32 %v3795, 1.442695
    %v3799 = vpow.pop %v3798
    %3802 = vset.pattern.permute.xlu0 0
    %3803 = vperm.xlu0 %3802, %v3797
    %v3804 = vpop.permute.xlu0 %3803
    %3805 = vset.pattern.permute.xlu0 0
    %3806 = vperm.xlu0 %3805, %v3799
    %v3807 = vpop.permute.xlu0 %3806
    %v3808 = vlaneseq
    %v3809 = vshrl.u32 %v3808, 7
    %v3810 = vsub.s32 %v240, %v3809
    %v3811 = vrot.slane %v3804, %v3810
    %v3812 = vlaneseq
    %v3813 = vshrl.u32 %v3812, 7
    %v3814 = vsub.s32 %v240, %v3813
    %v3815 = vrot.slane %v3807, %v3814
    %v3816 = vsel %vm249, %v3815, %v3811
    %v3818 = vsel %vm252, %v3816, 0.0
    %3819 = vadd.xlane.f32.xlu0 %v3818
    %v3820 = vpop.xlane.xlu0 %3819
    %v3821 = vrcp.pop %v3820
    %v3823 = vlaneseq
    %v3824 = vshrl.u32 %v3823, 7
    %v3825 = vsub.s32 0, %v3824
    %v3826 = vrot.slane %v3821, %v3825
    %v3827 = vlaneseq
    %v3828 = vshrl.u32 %v3827, 7
    %v3829 = vsub.s32 1, %v3828
    %v3830 = vrot.slane %v3821, %v3829
    %v3833 = vmul.f32 %v3797, %v3826
    %v3834 = vmul.f32 %v3799, %v3830
    %3836 = vset.pattern.permute.xlu0 0
    %3837 = vperm.xlu0 %3836, %v3833
    %v3838 = vpop.permute.xlu0 %3837
    %3841 = vset.pattern.permute.xlu0 0
    %3842 = vperm.xlu0 %3841, %v3834
    %v3843 = vpop.permute.xlu0 %3842
    %v3845 = vmul.f32 %v3838, %v2891
    %v3846 = vmul.f32 %v3843, %v2901
    %v3847 = vsel %vm663, %v3845, 0.0
    %v3848 = vrot.slane %v3847, 4
    %v3849 = vadd.f32 %v3847, %v3848
    %v3850 = vrot.slane %v3849, 2
    %v3851 = vadd.f32 %v3849, %v3850
    %v3852 = vrot.slane %v3851, 1
    %v3853 = vadd.f32 %v3851, %v3852
    %v3854 = vsel %vm663, %v3846, 0.0
    %v3855 = vrot.slane %v3854, 4
    %v3856 = vadd.f32 %v3854, %v3855
    %v3857 = vrot.slane %v3856, 2
    %v3858 = vadd.f32 %v3856, %v3857
    %v3859 = vrot.slane %v3858, 1
    %v3860 = vadd.f32 %v3858, %v3859
    %v3863 = vsel %vm249, %v3519, %v3512
    %v3867 = vsel %vm249, %v3634, %v3627
    %v3871 = vsel %vm249, %v3747, %v3740
    %v3875 = vsel %vm249, %v3860, %v3853
    %v3877 = vsel %vm222, %v3863, %v3867
    %v3878 = vsel %vm695, %v3877, %v3871
    %v3879 = vsel %vm697, %v3878, %v3875
    %v3880 = vsel %vm85, %v2796, 0
    %3882 = vmatprep.subr.mxu0 0.0
    %3883 = vmatpush1.msra.mxu0 %v2905
    %3884 = vmatprep.subr.mxu0 0.0
    %3885 = vmatpush1.msra.mxu0 %v2906
    %3886 = vmatprep.subr.mxu0 0.0
    %3887 = vmatpush1.msra.mxu0 %v2907
    %3888 = vmatprep.subr.mxu0 0.0
    %3889 = vmatpush1.msra.mxu0 %v2908
    %3890 = vmatprep.subr.mxu0 0.0
    %3891 = vmatpush1.msra.mxu0 0.0
    %3892 = vmatprep.subr.mxu0 0.0
    %3893 = vmatpush1.msra.mxu0 0.0
    %3894 = vmatprep.subr.mxu0 0.0
    %3895 = vmatpush1.msra.mxu0 0.0
    %3896 = vmatprep.subr.mxu0 0.0
    %3897 = vmatpush1.msra.mxu0 0.0
    %3898 = vmatprep.subr.mxu0 0.0
    %3899 = vmatpush1.msra.mxu0 0.0
    %3900 = vmatprep.subr.mxu0 0.0
    %3901 = vmatpush1.msra.mxu0 0.0
    %3902 = vmatprep.subr.mxu0 0.0
    %3903 = vmatpush1.msra.mxu0 0.0
    %3904 = vmatprep.subr.mxu0 0.0
    %3905 = vmatpush1.msra.mxu0 0.0
    %3906 = vmatprep.subr.mxu0 0.0
    %3907 = vmatpush1.msra.mxu0 0.0
    %3908 = vmatprep.subr.mxu0 0.0
    %3909 = vmatpush1.msra.mxu0 0.0
    %3910 = vmatprep.subr.mxu0 0.0
    %3911 = vmatpush1.msra.mxu0 0.0
    %3912 = vmatprep.subr.mxu0 0.0
    %3913 = vmatpush1.msra.mxu0 0.0
    %3914 = vmatprep.subr.mxu0 0.0
    %3915 = vmatpush1.msra.mxu0 0.0
    %3916 = vmatprep.subr.mxu0 0.0
    %3917 = vmatpush1.msra.mxu0 0.0
    %3918 = vmatprep.subr.mxu0 0.0
    %3919 = vmatpush1.msra.mxu0 0.0
    %3920 = vmatprep.subr.mxu0 0.0
    %3921 = vmatpush1.msra.mxu0 0.0
    %3922 = vmatprep.subr.mxu0 0.0
    %3923 = vmatpush1.msra.mxu0 0.0
    %3924 = vmatprep.subr.mxu0 0.0
    %3925 = vmatpush1.msra.mxu0 0.0
    %3926 = vmatprep.subr.mxu0 0.0
    %3927 = vmatpush1.msra.mxu0 0.0
    %3928 = vmatprep.subr.mxu0 0.0
    %3929 = vmatpush1.msra.mxu0 0.0
    %3930 = vmatprep.subr.mxu0 0.0
    %3931 = vmatpush1.msra.mxu0 0.0
    %3932 = vmatprep.subr.mxu0 0.0
    %3933 = vmatpush1.msra.mxu0 0.0
    %3934 = vmatprep.subr.mxu0 0.0
    %3935 = vmatpush1.msra.mxu0 0.0
    %3936 = vmatprep.subr.mxu0 0.0
    %3937 = vmatpush1.msra.mxu0 0.0
    %3938 = vmatprep.subr.mxu0 0.0
    %3939 = vmatpush1.msra.mxu0 0.0
    %3940 = vmatprep.subr.mxu0 0.0
    %3941 = vmatpush1.msra.mxu0 0.0
    %3942 = vmatprep.subr.mxu0 0.0
    %3943 = vmatpush1.msra.mxu0 0.0
    %3944 = vmatprep.subr.mxu0 0.0
    %3945 = vmatpush1.msra.mxu0 0.0
    %3946 = vmatprep.mubr.f32.mxu0 0.0
    %3947 = vmatmul.mubr.f32.gmra.mrb[0].mxu0 %v3880
    %v3948 = vpop.f32.mrb[0].mxu0
    %v3949 = vadd.f32 0.0, %v3948
    %v3950 = vpop.f32.mrb[0].mxu0
    %3951 = vdwg.mxu0
    %v3952 = vmul.f32 %v3949, %v3410
    %v3953 = vsel %vm252, %v3952, 0.0
    %3954 = vadd.xlane.f32.xlu0 %v3953
    %v3955 = vpop.xlane.xlu0 %3954
    %v3956 = vmul.f32 %v3949, %v3879
    %v3957 = vsel %vm252, %v3956, 0.0
    %3958 = vadd.xlane.f32.xlu0 %v3957
    %v3959 = vpop.xlane.xlu0 %3958
    %v3960 = vsel %vm1248, %v3955, %v3959
    %v3961 = vmul.f32 %v3960, 0.35355338
    %v3962 = vsel %vm1251, %v3961, -inf
    %3963 = vmax.xlane.f32.xlu0 %v3962
    %v3964 = vpop.xlane.xlu0 %3963
    %v3965 = vsub.f32 %v3961, %v3964
    %v3966 = vmul.f32 %v3965, 1.442695
    %v3967 = vpow.pop %v3966
    %v3968 = vsel %vm1251, %v3967, 0.0
    %3969 = vadd.xlane.f32.xlu0 %v3968
    %v3970 = vpop.xlane.xlu0 %3969
    %v3971 = vrcp.pop %v3970
    %v3972 = vmul.f32 %v3967, %v3971
    %3974 = vset.pattern.permute.xlu0 0
    %3975 = vperm.xlu0 %3974, %v3972
    %v3976 = vpop.permute.xlu0 %3975
    %v3978 = vmul.f32 %v3976, %v3410
    %v3979 = vadd.f32 %v3978, 0.0
    %3980 = vset.pattern.permute.xlu0 1
    %3981 = vperm.xlu0 %3980, %v3972
    %v3982 = vpop.permute.xlu0 %3981
    %v3984 = vmul.f32 %v3982, %v3879
    %v3985 = vadd.f32 %v3979, %v3984
    %v3986 = vadd.f32 %v2796, %v3985
    %3988 = vrot.lane.b32.xlu0 %v3952, 120
    %v3989 = vpop.permute.xlu0 %3988
    %v3991 = vsel %vm252, %v3989, 0.0
    %3992 = vadd.xlane.f32.xlu0 %v3991
    %v3993 = vpop.xlane.xlu0 %3992
    %3995 = vrot.lane.b32.xlu0 %v3956, 120
    %v3996 = vpop.permute.xlu0 %3995
    %v3998 = vsel %vm252, %v3996, 0.0
    %3999 = vadd.xlane.f32.xlu0 %v3998
    %v4000 = vpop.xlane.xlu0 %3999
    %v4001 = vsel %vm1248, %v3993, %v4000
    %v4002 = vmul.f32 %v4001, 0.35355338
    %v4003 = vsel %vm1251, %v4002, -inf
    %4004 = vmax.xlane.f32.xlu0 %v4003
    %v4005 = vpop.xlane.xlu0 %4004
    %v4006 = vsub.f32 %v4002, %v4005
    %v4007 = vmul.f32 %v4006, 1.442695
    %v4008 = vpow.pop %v4007
    %v4009 = vsel %vm1251, %v4008, 0.0
    %4010 = vadd.xlane.f32.xlu0 %v4009
    %v4011 = vpop.xlane.xlu0 %4010
    %v4012 = vrcp.pop %v4011
    %v4013 = vmul.f32 %v4008, %v4012
    %4015 = vset.pattern.permute.xlu0 0
    %4016 = vperm.xlu0 %4015, %v4013
    %v4017 = vpop.permute.xlu0 %4016
    %v4019 = vmul.f32 %v4017, %v3410
    %v4020 = vadd.f32 %v4019, 0.0
    %4021 = vset.pattern.permute.xlu0 1
    %4022 = vperm.xlu0 %4021, %v4013
    %v4023 = vpop.permute.xlu0 %4022
    %v4025 = vmul.f32 %v4023, %v3879
    %v4026 = vadd.f32 %v4020, %v4025
    %v4027 = vadd.f32 %v2796, %v4026
    %4028 = vrot.lane.b32.xlu0 %v3952, 112
    %v4029 = vpop.permute.xlu0 %4028
    %v4031 = vsel %vm252, %v4029, 0.0
    %4032 = vadd.xlane.f32.xlu0 %v4031
    %v4033 = vpop.xlane.xlu0 %4032
    %4034 = vrot.lane.b32.xlu0 %v3956, 112
    %v4035 = vpop.permute.xlu0 %4034
    %v4037 = vsel %vm252, %v4035, 0.0
    %4038 = vadd.xlane.f32.xlu0 %v4037
    %v4039 = vpop.xlane.xlu0 %4038
    %v4040 = vsel %vm1248, %v4033, %v4039
    %v4041 = vmul.f32 %v4040, 0.35355338
    %v4042 = vsel %vm1251, %v4041, -inf
    %4043 = vmax.xlane.f32.xlu0 %v4042
    %v4044 = vpop.xlane.xlu0 %4043
    %v4045 = vsub.f32 %v4041, %v4044
    %v4046 = vmul.f32 %v4045, 1.442695
    %v4047 = vpow.pop %v4046
    %v4048 = vsel %vm1251, %v4047, 0.0
    %4049 = vadd.xlane.f32.xlu0 %v4048
    %v4050 = vpop.xlane.xlu0 %4049
    %v4051 = vrcp.pop %v4050
    %v4052 = vmul.f32 %v4047, %v4051
    %4054 = vset.pattern.permute.xlu0 0
    %4055 = vperm.xlu0 %4054, %v4052
    %v4056 = vpop.permute.xlu0 %4055
    %v4058 = vmul.f32 %v4056, %v3410
    %v4059 = vadd.f32 %v4058, 0.0
    %4060 = vset.pattern.permute.xlu0 1
    %4061 = vperm.xlu0 %4060, %v4052
    %v4062 = vpop.permute.xlu0 %4061
    %v4064 = vmul.f32 %v4062, %v3879
    %v4065 = vadd.f32 %v4059, %v4064
    %v4066 = vadd.f32 %v2796, %v4065
    %4067 = vrot.lane.b32.xlu0 %v3952, 104
    %v4068 = vpop.permute.xlu0 %4067
    %v4070 = vsel %vm252, %v4068, 0.0
    %4071 = vadd.xlane.f32.xlu0 %v4070
    %v4072 = vpop.xlane.xlu0 %4071
    %4073 = vrot.lane.b32.xlu0 %v3956, 104
    %v4074 = vpop.permute.xlu0 %4073
    %v4076 = vsel %vm252, %v4074, 0.0
    %4077 = vadd.xlane.f32.xlu0 %v4076
    %v4078 = vpop.xlane.xlu0 %4077
    %v4079 = vsel %vm1248, %v4072, %v4078
    %v4080 = vmul.f32 %v4079, 0.35355338
    %v4081 = vsel %vm1251, %v4080, -inf
    %4082 = vmax.xlane.f32.xlu0 %v4081
    %v4083 = vpop.xlane.xlu0 %4082
    %v4084 = vsub.f32 %v4080, %v4083
    %v4085 = vmul.f32 %v4084, 1.442695
    %v4086 = vpow.pop %v4085
    %v4087 = vsel %vm1251, %v4086, 0.0
    %4088 = vadd.xlane.f32.xlu0 %v4087
    %v4089 = vpop.xlane.xlu0 %4088
    %v4090 = vrcp.pop %v4089
    %v4091 = vmul.f32 %v4086, %v4090
    %4093 = vset.pattern.permute.xlu0 0
    %4094 = vperm.xlu0 %4093, %v4091
    %v4095 = vpop.permute.xlu0 %4094
    %v4097 = vmul.f32 %v4095, %v3410
    %v4098 = vadd.f32 %v4097, 0.0
    %4099 = vset.pattern.permute.xlu0 1
    %4100 = vperm.xlu0 %4099, %v4091
    %v4101 = vpop.permute.xlu0 %4100
    %v4103 = vmul.f32 %v4101, %v3879
    %v4104 = vadd.f32 %v4098, %v4103
    %v4105 = vadd.f32 %v2796, %v4104
    %v4106 = vsel %vm222, %v3986, %v4027
    %v4107 = vsel %vm695, %v4106, %v4066
    %v4108 = vsel %vm697, %v4107, %v4105
    %4109 = vrot.lane.b32.xlu0 %v4013, 1
    %v4110 = vpop.permute.xlu0 %4109
    %4112 = vrot.lane.b32.xlu0 %v4052, 2
    %v4113 = vpop.permute.xlu0 %4112
    %4115 = vrot.lane.b32.xlu0 %v4091, 3
    %v4116 = vpop.permute.xlu0 %4115
    %v4118 = vsel %vm1248, %v3972, %v4110
    %v4119 = vsel %vm1409, %v4118, %v4113
    %v4120 = vsel %vm1411, %v4119, %v4116
    %4121 = vrot.lane.b32.xlu0 %v3972, 127
    %v4122 = vpop.permute.xlu0 %4121
    %4124 = vrot.lane.b32.xlu0 %v4052, 1
    %v4125 = vpop.permute.xlu0 %4124
    %4127 = vrot.lane.b32.xlu0 %v4091, 2
    %v4128 = vpop.permute.xlu0 %4127
    %v4130 = vsel %vm1248, %v4122, %v4013
    %v4131 = vsel %vm1409, %v4130, %v4125
    %v4132 = vsel %vm1411, %v4131, %v4128
    %v4135 = vunpack.c.l.s4 1966171168
    %v4136 = vunpack.c.0.s8 %v4135
    %v4137 = vlaneseq
    %v4138 = vshrl.u32 %v4137, 7
    %v4139 = vsub.s32 %v4136, %v4138
    %v4140 = vrot.slane %v4108, %v4139
    %v4141 = vcombine.high %v4140, %v4140
    %v4143 = vunpack.c.l.s4 1966171168
    %v4144 = vunpack.c.0.s8 %v4143
    %v4145 = vlaneseq
    %v4146 = vshrl.u32 %v4145, 7
    %v4147 = vsub.s32 %v4144, %v4146
    %v4148 = vrot.slane %v4140, %v4147
    %v4150 = vunpack.c.l.s4 1966171168
    %v4151 = vunpack.c.0.s8 %v4150
    %v4152 = vlaneseq
    %v4153 = vshrl.u32 %v4152, 7
    %v4154 = vsub.s32 %v4151, %v4153
    %v4155 = vrot.slane %v4141, %v4154
    %v4156 = vlaneseq
    %v4157 = vshrl.u32 %v4156, 7
    %v4158 = vsub.s32 0, %v4157
    %v4159 = vrot.slane %v4148, %v4158
    %v4160 = vlaneseq
    %v4161 = vshrl.u32 %v4160, 7
    %v4162 = vsub.s32 0, %v4161
    %v4163 = vrot.slane %v4155, %v4162
    %v4166 = vmul.f32 %v2886, %v4159
    %v4167 = vmul.f32 %v2896, %v4163
    %v4168 = vsel %vm222, %v4166, 0.0
    %4169 = vadd.xlane.f32.xlu0 %v4168
    %v4170 = vpop.xlane.xlu0 %4169
    %v4171 = vsel %vm222, %v4167, 0.0
    %4172 = vadd.xlane.f32.xlu0 %v4171
    %v4173 = vpop.xlane.xlu0 %4172
    %v4174 = vmul.f32 %v4170, 0.35355338
    %v4175 = vmul.f32 %v4173, 0.35355338
    %vm4176 = vcmp.gt.f32.partialorder %v4174, 0.0
    %vm4177 = vcmp.gt.f32.partialorder %v4175, 0.0
    %v4178 = vmul.f32 %v4174, 0.2
    %v4179 = vmul.f32 %v4175, 0.2
    %v4180 = vsel %vm4176, %v4174, %v4178
    %v4181 = vsel %vm4177, %v4175, %v4179
    %4183 = vset.pattern.permute.xlu0 0
    %4184 = vperm.xlu0 %4183, %v4120
    %v4185 = vpop.permute.xlu0 %4184
    %v4186 = vlaneseq
    %v4187 = vshrl.u32 %v4186, 7
    %v4188 = vsub.s32 0, %v4187
    %v4189 = vrot.slane %v4185, %v4188
    %v4190 = vlaneseq
    %v4191 = vshrl.u32 %v4190, 7
    %v4192 = vsub.s32 1, %v4191
    %v4193 = vrot.slane %v4185, %v4192
    %v4196 = vmul.f32 %v4180, %v4189
    %v4197 = vmul.f32 %v4181, %v4193
    %4200 = vset.pattern.permute.xlu0 0
    %4201 = vperm.xlu0 %4200, %v4196
    %v4202 = vpop.permute.xlu0 %4201
    %4203 = vset.pattern.permute.xlu0 0
    %4204 = vperm.xlu0 %4203, %v4197
    %v4205 = vpop.permute.xlu0 %4204
    %v4206 = vlaneseq
    %v4207 = vshrl.u32 %v4206, 7
    %v4208 = vsub.s32 %v240, %v4207
    %v4209 = vrot.slane %v4202, %v4208
    %v4210 = vlaneseq
    %v4211 = vshrl.u32 %v4210, 7
    %v4212 = vsub.s32 %v240, %v4211
    %v4213 = vrot.slane %v4205, %v4212
    %v4214 = vsel %vm249, %v4213, %v4209
    %v4216 = vsel %vm252, %v4214, -inf
    %4217 = vmax.xlane.f32.xlu0 %v4216
    %v4218 = vpop.xlane.xlu0 %4217
    %v4220 = vlaneseq
    %v4221 = vshrl.u32 %v4220, 7
    %v4222 = vsub.s32 0, %v4221
    %v4223 = vrot.slane %v4218, %v4222
    %v4224 = vlaneseq
    %v4225 = vshrl.u32 %v4224, 7
    %v4226 = vsub.s32 1, %v4225
    %v4227 = vrot.slane %v4218, %v4226
    %v4230 = vsub.f32 %v4196, %v4223
    %v4231 = vsub.f32 %v4197, %v4227
    %v4232 = vmul.f32 %v4230, 1.442695
    %v4233 = vpow.pop %v4232
    %v4234 = vmul.f32 %v4231, 1.442695
    %v4235 = vpow.pop %v4234
    %4238 = vset.pattern.permute.xlu0 0
    %4239 = vperm.xlu0 %4238, %v4233
    %v4240 = vpop.permute.xlu0 %4239
    %4241 = vset.pattern.permute.xlu0 0
    %4242 = vperm.xlu0 %4241, %v4235
    %v4243 = vpop.permute.xlu0 %4242
    %v4244 = vlaneseq
    %v4245 = vshrl.u32 %v4244, 7
    %v4246 = vsub.s32 %v240, %v4245
    %v4247 = vrot.slane %v4240, %v4246
    %v4248 = vlaneseq
    %v4249 = vshrl.u32 %v4248, 7
    %v4250 = vsub.s32 %v240, %v4249
    %v4251 = vrot.slane %v4243, %v4250
    %v4252 = vsel %vm249, %v4251, %v4247
    %v4254 = vsel %vm252, %v4252, 0.0
    %4255 = vadd.xlane.f32.xlu0 %v4254
    %v4256 = vpop.xlane.xlu0 %4255
    %v4257 = vrcp.pop %v4256
    %v4259 = vlaneseq
    %v4260 = vshrl.u32 %v4259, 7
    %v4261 = vsub.s32 0, %v4260
    %v4262 = vrot.slane %v4257, %v4261
    %v4263 = vlaneseq
    %v4264 = vshrl.u32 %v4263, 7
    %v4265 = vsub.s32 1, %v4264
    %v4266 = vrot.slane %v4257, %v4265
    %v4269 = vmul.f32 %v4233, %v4262
    %v4270 = vmul.f32 %v4235, %v4266
    %4272 = vset.pattern.permute.xlu0 0
    %4273 = vperm.xlu0 %4272, %v4269
    %v4274 = vpop.permute.xlu0 %4273
    %4277 = vset.pattern.permute.xlu0 0
    %4278 = vperm.xlu0 %4277, %v4270
    %v4279 = vpop.permute.xlu0 %4278
    %v4281 = vmul.f32 %v4274, %v2886
    %v4282 = vmul.f32 %v4279, %v2896
    %v4283 = vsel %vm222, %v4281, 0.0
    %v4284 = vrot.slane %v4283, 4
    %v4285 = vadd.f32 %v4283, %v4284
    %v4286 = vrot.slane %v4285, 2
    %v4287 = vadd.f32 %v4285, %v4286
    %v4288 = vrot.slane %v4287, 1
    %v4289 = vadd.f32 %v4287, %v4288
    %v4290 = vsel %vm222, %v4282, 0.0
    %v4291 = vrot.slane %v4290, 4
    %v4292 = vadd.f32 %v4290, %v4291
    %v4293 = vrot.slane %v4292, 2
    %v4294 = vadd.f32 %v4292, %v4293
    %v4295 = vrot.slane %v4294, 1
    %v4296 = vadd.f32 %v4294, %v4295
    %4299 = vrot.lane.b32.xlu0 %v4166, 120
    %v4300 = vpop.permute.xlu0 %4299
    %4301 = vrot.lane.b32.xlu0 %v4167, 120
    %v4302 = vpop.permute.xlu0 %4301
    %v4305 = vsel %vm222, %v4300, 0.0
    %4306 = vadd.xlane.f32.xlu0 %v4305
    %v4307 = vpop.xlane.xlu0 %4306
    %v4308 = vsel %vm222, %v4302, 0.0
    %4309 = vadd.xlane.f32.xlu0 %v4308
    %v4310 = vpop.xlane.xlu0 %4309
    %v4311 = vmul.f32 %v4307, 0.35355338
    %v4312 = vmul.f32 %v4310, 0.35355338
    %vm4313 = vcmp.gt.f32.partialorder %v4311, 0.0
    %vm4314 = vcmp.gt.f32.partialorder %v4312, 0.0
    %v4315 = vmul.f32 %v4311, 0.2
    %v4316 = vmul.f32 %v4312, 0.2
    %v4317 = vsel %vm4313, %v4311, %v4315
    %v4318 = vsel %vm4314, %v4312, %v4316
    %4319 = vset.pattern.permute.xlu0 1
    %4320 = vperm.xlu0 %4319, %v4120
    %v4321 = vpop.permute.xlu0 %4320
    %v4322 = vlaneseq
    %v4323 = vshrl.u32 %v4322, 7
    %v4324 = vsub.s32 0, %v4323
    %v4325 = vrot.slane %v4321, %v4324
    %v4326 = vlaneseq
    %v4327 = vshrl.u32 %v4326, 7
    %v4328 = vsub.s32 1, %v4327
    %v4329 = vrot.slane %v4321, %v4328
    %v4332 = vmul.f32 %v4317, %v4325
    %v4333 = vmul.f32 %v4318, %v4329
    %4336 = vset.pattern.permute.xlu0 0
    %4337 = vperm.xlu0 %4336, %v4332
    %v4338 = vpop.permute.xlu0 %4337
    %4339 = vset.pattern.permute.xlu0 0
    %4340 = vperm.xlu0 %4339, %v4333
    %v4341 = vpop.permute.xlu0 %4340
    %v4342 = vlaneseq
    %v4343 = vshrl.u32 %v4342, 7
    %v4344 = vsub.s32 %v240, %v4343
    %v4345 = vrot.slane %v4338, %v4344
    %v4346 = vlaneseq
    %v4347 = vshrl.u32 %v4346, 7
    %v4348 = vsub.s32 %v240, %v4347
    %v4349 = vrot.slane %v4341, %v4348
    %v4350 = vsel %vm249, %v4349, %v4345
    %v4352 = vsel %vm252, %v4350, -inf
    %4353 = vmax.xlane.f32.xlu0 %v4352
    %v4354 = vpop.xlane.xlu0 %4353
    %v4356 = vlaneseq
    %v4357 = vshrl.u32 %v4356, 7
    %v4358 = vsub.s32 0, %v4357
    %v4359 = vrot.slane %v4354, %v4358
    %v4360 = vlaneseq
    %v4361 = vshrl.u32 %v4360, 7
    %v4362 = vsub.s32 1, %v4361
    %v4363 = vrot.slane %v4354, %v4362
    %v4366 = vsub.f32 %v4332, %v4359
    %v4367 = vsub.f32 %v4333, %v4363
    %v4368 = vmul.f32 %v4366, 1.442695
    %v4369 = vpow.pop %v4368
    %v4370 = vmul.f32 %v4367, 1.442695
    %v4371 = vpow.pop %v4370
    %4374 = vset.pattern.permute.xlu0 0
    %4375 = vperm.xlu0 %4374, %v4369
    %v4376 = vpop.permute.xlu0 %4375
    %4377 = vset.pattern.permute.xlu0 0
    %4378 = vperm.xlu0 %4377, %v4371
    %v4379 = vpop.permute.xlu0 %4378
    %v4380 = vlaneseq
    %v4381 = vshrl.u32 %v4380, 7
    %v4382 = vsub.s32 %v240, %v4381
    %v4383 = vrot.slane %v4376, %v4382
    %v4384 = vlaneseq
    %v4385 = vshrl.u32 %v4384, 7
    %v4386 = vsub.s32 %v240, %v4385
    %v4387 = vrot.slane %v4379, %v4386
    %v4388 = vsel %vm249, %v4387, %v4383
    %v4390 = vsel %vm252, %v4388, 0.0
    %4391 = vadd.xlane.f32.xlu0 %v4390
    %v4392 = vpop.xlane.xlu0 %4391
    %v4393 = vrcp.pop %v4392
    %v4395 = vlaneseq
    %v4396 = vshrl.u32 %v4395, 7
    %v4397 = vsub.s32 0, %v4396
    %v4398 = vrot.slane %v4393, %v4397
    %v4399 = vlaneseq
    %v4400 = vshrl.u32 %v4399, 7
    %v4401 = vsub.s32 1, %v4400
    %v4402 = vrot.slane %v4393, %v4401
    %v4405 = vmul.f32 %v4369, %v4398
    %v4406 = vmul.f32 %v4371, %v4402
    %4408 = vset.pattern.permute.xlu0 0
    %4409 = vperm.xlu0 %4408, %v4405
    %v4410 = vpop.permute.xlu0 %4409
    %4413 = vset.pattern.permute.xlu0 0
    %4414 = vperm.xlu0 %4413, %v4406
    %v4415 = vpop.permute.xlu0 %4414
    %v4417 = vmul.f32 %v4410, %v2886
    %v4418 = vmul.f32 %v4415, %v2896
    %v4419 = vsel %vm435, %v4417, 0.0
    %v4420 = vrot.slane %v4419, 4
    %v4421 = vadd.f32 %v4419, %v4420
    %v4422 = vrot.slane %v4421, 2
    %v4423 = vadd.f32 %v4421, %v4422
    %v4424 = vrot.slane %v4423, 1
    %v4425 = vadd.f32 %v4423, %v4424
    %v4426 = vsel %vm435, %v4418, 0.0
    %v4427 = vrot.slane %v4426, 4
    %v4428 = vadd.f32 %v4426, %v4427
    %v4429 = vrot.slane %v4428, 2
    %v4430 = vadd.f32 %v4428, %v4429
    %v4431 = vrot.slane %v4430, 1
    %v4432 = vadd.f32 %v4430, %v4431
    %4433 = vrot.lane.b32.xlu0 %v4166, 112
    %v4434 = vpop.permute.xlu0 %4433
    %4435 = vrot.lane.b32.xlu0 %v4167, 112
    %v4436 = vpop.permute.xlu0 %4435
    %v4439 = vsel %vm222, %v4434, 0.0
    %4440 = vadd.xlane.f32.xlu0 %v4439
    %v4441 = vpop.xlane.xlu0 %4440
    %v4442 = vsel %vm222, %v4436, 0.0
    %4443 = vadd.xlane.f32.xlu0 %v4442
    %v4444 = vpop.xlane.xlu0 %4443
    %v4445 = vmul.f32 %v4441, 0.35355338
    %v4446 = vmul.f32 %v4444, 0.35355338
    %vm4447 = vcmp.gt.f32.partialorder %v4445, 0.0
    %vm4448 = vcmp.gt.f32.partialorder %v4446, 0.0
    %v4449 = vmul.f32 %v4445, 0.2
    %v4450 = vmul.f32 %v4446, 0.2
    %v4451 = vsel %vm4447, %v4445, %v4449
    %v4452 = vsel %vm4448, %v4446, %v4450
    %4453 = vset.pattern.permute.xlu0 2
    %4454 = vperm.xlu0 %4453, %v4120
    %v4455 = vpop.permute.xlu0 %4454
    %v4456 = vlaneseq
    %v4457 = vshrl.u32 %v4456, 7
    %v4458 = vsub.s32 0, %v4457
    %v4459 = vrot.slane %v4455, %v4458
    %v4460 = vlaneseq
    %v4461 = vshrl.u32 %v4460, 7
    %v4462 = vsub.s32 1, %v4461
    %v4463 = vrot.slane %v4455, %v4462
    %v4466 = vmul.f32 %v4451, %v4459
    %v4467 = vmul.f32 %v4452, %v4463
    %4470 = vset.pattern.permute.xlu0 0
    %4471 = vperm.xlu0 %4470, %v4466
    %v4472 = vpop.permute.xlu0 %4471
    %4473 = vset.pattern.permute.xlu0 0
    %4474 = vperm.xlu0 %4473, %v4467
    %v4475 = vpop.permute.xlu0 %4474
    %v4476 = vlaneseq
    %v4477 = vshrl.u32 %v4476, 7
    %v4478 = vsub.s32 %v240, %v4477
    %v4479 = vrot.slane %v4472, %v4478
    %v4480 = vlaneseq
    %v4481 = vshrl.u32 %v4480, 7
    %v4482 = vsub.s32 %v240, %v4481
    %v4483 = vrot.slane %v4475, %v4482
    %v4484 = vsel %vm249, %v4483, %v4479
    %v4486 = vsel %vm252, %v4484, -inf
    %4487 = vmax.xlane.f32.xlu0 %v4486
    %v4488 = vpop.xlane.xlu0 %4487
    %v4490 = vlaneseq
    %v4491 = vshrl.u32 %v4490, 7
    %v4492 = vsub.s32 0, %v4491
    %v4493 = vrot.slane %v4488, %v4492
    %v4494 = vlaneseq
    %v4495 = vshrl.u32 %v4494, 7
    %v4496 = vsub.s32 1, %v4495
    %v4497 = vrot.slane %v4488, %v4496
    %v4500 = vsub.f32 %v4466, %v4493
    %v4501 = vsub.f32 %v4467, %v4497
    %v4502 = vmul.f32 %v4500, 1.442695
    %v4503 = vpow.pop %v4502
    %v4504 = vmul.f32 %v4501, 1.442695
    %v4505 = vpow.pop %v4504
    %4508 = vset.pattern.permute.xlu0 0
    %4509 = vperm.xlu0 %4508, %v4503
    %v4510 = vpop.permute.xlu0 %4509
    %4511 = vset.pattern.permute.xlu0 0
    %4512 = vperm.xlu0 %4511, %v4505
    %v4513 = vpop.permute.xlu0 %4512
    %v4514 = vlaneseq
    %v4515 = vshrl.u32 %v4514, 7
    %v4516 = vsub.s32 %v240, %v4515
    %v4517 = vrot.slane %v4510, %v4516
    %v4518 = vlaneseq
    %v4519 = vshrl.u32 %v4518, 7
    %v4520 = vsub.s32 %v240, %v4519
    %v4521 = vrot.slane %v4513, %v4520
    %v4522 = vsel %vm249, %v4521, %v4517
    %v4524 = vsel %vm252, %v4522, 0.0
    %4525 = vadd.xlane.f32.xlu0 %v4524
    %v4526 = vpop.xlane.xlu0 %4525
    %v4527 = vrcp.pop %v4526
    %v4529 = vlaneseq
    %v4530 = vshrl.u32 %v4529, 7
    %v4531 = vsub.s32 0, %v4530
    %v4532 = vrot.slane %v4527, %v4531
    %v4533 = vlaneseq
    %v4534 = vshrl.u32 %v4533, 7
    %v4535 = vsub.s32 1, %v4534
    %v4536 = vrot.slane %v4527, %v4535
    %v4539 = vmul.f32 %v4503, %v4532
    %v4540 = vmul.f32 %v4505, %v4536
    %4542 = vset.pattern.permute.xlu0 0
    %4543 = vperm.xlu0 %4542, %v4539
    %v4544 = vpop.permute.xlu0 %4543
    %4547 = vset.pattern.permute.xlu0 0
    %4548 = vperm.xlu0 %4547, %v4540
    %v4549 = vpop.permute.xlu0 %4548
    %v4551 = vmul.f32 %v4544, %v2886
    %v4552 = vmul.f32 %v4549, %v2896
    %v4553 = vsel %vm549, %v4551, 0.0
    %v4554 = vrot.slane %v4553, 4
    %v4555 = vadd.f32 %v4553, %v4554
    %v4556 = vrot.slane %v4555, 2
    %v4557 = vadd.f32 %v4555, %v4556
    %v4558 = vrot.slane %v4557, 1
    %v4559 = vadd.f32 %v4557, %v4558
    %v4560 = vsel %vm549, %v4552, 0.0
    %v4561 = vrot.slane %v4560, 4
    %v4562 = vadd.f32 %v4560, %v4561
    %v4563 = vrot.slane %v4562, 2
    %v4564 = vadd.f32 %v4562, %v4563
    %v4565 = vrot.slane %v4564, 1
    %v4566 = vadd.f32 %v4564, %v4565
    %4567 = vrot.lane.b32.xlu0 %v4166, 104
    %v4568 = vpop.permute.xlu0 %4567
    %4569 = vrot.lane.b32.xlu0 %v4167, 104
    %v4570 = vpop.permute.xlu0 %4569
    %v4573 = vsel %vm222, %v4568, 0.0
    %4574 = vadd.xlane.f32.xlu0 %v4573
    %v4575 = vpop.xlane.xlu0 %4574
    %v4576 = vsel %vm222, %v4570, 0.0
    %4577 = vadd.xlane.f32.xlu0 %v4576
    %v4578 = vpop.xlane.xlu0 %4577
    %v4579 = vmul.f32 %v4575, 0.35355338
    %v4580 = vmul.f32 %v4578, 0.35355338
    %vm4581 = vcmp.gt.f32.partialorder %v4579, 0.0
    %vm4582 = vcmp.gt.f32.partialorder %v4580, 0.0
    %v4583 = vmul.f32 %v4579, 0.2
    %v4584 = vmul.f32 %v4580, 0.2
    %v4585 = vsel %vm4581, %v4579, %v4583
    %v4586 = vsel %vm4582, %v4580, %v4584
    %4587 = vset.pattern.permute.xlu0 3
    %4588 = vperm.xlu0 %4587, %v4120
    %v4589 = vpop.permute.xlu0 %4588
    %v4590 = vlaneseq
    %v4591 = vshrl.u32 %v4590, 7
    %v4592 = vsub.s32 0, %v4591
    %v4593 = vrot.slane %v4589, %v4592
    %v4594 = vlaneseq
    %v4595 = vshrl.u32 %v4594, 7
    %v4596 = vsub.s32 1, %v4595
    %v4597 = vrot.slane %v4589, %v4596
    %v4600 = vmul.f32 %v4585, %v4593
    %v4601 = vmul.f32 %v4586, %v4597
    %4604 = vset.pattern.permute.xlu0 0
    %4605 = vperm.xlu0 %4604, %v4600
    %v4606 = vpop.permute.xlu0 %4605
    %4607 = vset.pattern.permute.xlu0 0
    %4608 = vperm.xlu0 %4607, %v4601
    %v4609 = vpop.permute.xlu0 %4608
    %v4610 = vlaneseq
    %v4611 = vshrl.u32 %v4610, 7
    %v4612 = vsub.s32 %v240, %v4611
    %v4613 = vrot.slane %v4606, %v4612
    %v4614 = vlaneseq
    %v4615 = vshrl.u32 %v4614, 7
    %v4616 = vsub.s32 %v240, %v4615
    %v4617 = vrot.slane %v4609, %v4616
    %v4618 = vsel %vm249, %v4617, %v4613
    %v4620 = vsel %vm252, %v4618, -inf
    %4621 = vmax.xlane.f32.xlu0 %v4620
    %v4622 = vpop.xlane.xlu0 %4621
    %v4624 = vlaneseq
    %v4625 = vshrl.u32 %v4624, 7
    %v4626 = vsub.s32 0, %v4625
    %v4627 = vrot.slane %v4622, %v4626
    %v4628 = vlaneseq
    %v4629 = vshrl.u32 %v4628, 7
    %v4630 = vsub.s32 1, %v4629
    %v4631 = vrot.slane %v4622, %v4630
    %v4634 = vsub.f32 %v4600, %v4627
    %v4635 = vsub.f32 %v4601, %v4631
    %v4636 = vmul.f32 %v4634, 1.442695
    %v4637 = vpow.pop %v4636
    %v4638 = vmul.f32 %v4635, 1.442695
    %v4639 = vpow.pop %v4638
    %4642 = vset.pattern.permute.xlu0 0
    %4643 = vperm.xlu0 %4642, %v4637
    %v4644 = vpop.permute.xlu0 %4643
    %4645 = vset.pattern.permute.xlu0 0
    %4646 = vperm.xlu0 %4645, %v4639
    %v4647 = vpop.permute.xlu0 %4646
    %v4648 = vlaneseq
    %v4649 = vshrl.u32 %v4648, 7
    %v4650 = vsub.s32 %v240, %v4649
    %v4651 = vrot.slane %v4644, %v4650
    %v4652 = vlaneseq
    %v4653 = vshrl.u32 %v4652, 7
    %v4654 = vsub.s32 %v240, %v4653
    %v4655 = vrot.slane %v4647, %v4654
    %v4656 = vsel %vm249, %v4655, %v4651
    %v4658 = vsel %vm252, %v4656, 0.0
    %4659 = vadd.xlane.f32.xlu0 %v4658
    %v4660 = vpop.xlane.xlu0 %4659
    %v4661 = vrcp.pop %v4660
    %v4663 = vlaneseq
    %v4664 = vshrl.u32 %v4663, 7
    %v4665 = vsub.s32 0, %v4664
    %v4666 = vrot.slane %v4661, %v4665
    %v4667 = vlaneseq
    %v4668 = vshrl.u32 %v4667, 7
    %v4669 = vsub.s32 1, %v4668
    %v4670 = vrot.slane %v4661, %v4669
    %v4673 = vmul.f32 %v4637, %v4666
    %v4674 = vmul.f32 %v4639, %v4670
    %4676 = vset.pattern.permute.xlu0 0
    %4677 = vperm.xlu0 %4676, %v4673
    %v4678 = vpop.permute.xlu0 %4677
    %4681 = vset.pattern.permute.xlu0 0
    %4682 = vperm.xlu0 %4681, %v4674
    %v4683 = vpop.permute.xlu0 %4682
    %v4685 = vmul.f32 %v4678, %v2886
    %v4686 = vmul.f32 %v4683, %v2896
    %v4687 = vsel %vm663, %v4685, 0.0
    %v4688 = vrot.slane %v4687, 4
    %v4689 = vadd.f32 %v4687, %v4688
    %v4690 = vrot.slane %v4689, 2
    %v4691 = vadd.f32 %v4689, %v4690
    %v4692 = vrot.slane %v4691, 1
    %v4693 = vadd.f32 %v4691, %v4692
    %v4694 = vsel %vm663, %v4686, 0.0
    %v4695 = vrot.slane %v4694, 4
    %v4696 = vadd.f32 %v4694, %v4695
    %v4697 = vrot.slane %v4696, 2
    %v4698 = vadd.f32 %v4696, %v4697
    %v4699 = vrot.slane %v4698, 1
    %v4700 = vadd.f32 %v4698, %v4699
    %v4703 = vsel %vm249, %v4296, %v4289
    %v4707 = vsel %vm249, %v4432, %v4425
    %v4711 = vsel %vm249, %v4566, %v4559
    %v4715 = vsel %vm249, %v4700, %v4693
    %v4717 = vsel %vm222, %v4703, %v4707
    %v4718 = vsel %vm695, %v4717, %v4711
    %v4719 = vsel %vm697, %v4718, %v4715
    %v4720 = vmul.f32 %v2891, %v4159
    %v4721 = vmul.f32 %v2901, %v4163
    %v4722 = vsel %vm222, %v4720, 0.0
    %4723 = vadd.xlane.f32.xlu0 %v4722
    %v4724 = vpop.xlane.xlu0 %4723
    %v4725 = vsel %vm222, %v4721, 0.0
    %4726 = vadd.xlane.f32.xlu0 %v4725
    %v4727 = vpop.xlane.xlu0 %4726
    %v4728 = vmul.f32 %v4724, 0.35355338
    %v4729 = vmul.f32 %v4727, 0.35355338
    %vm4730 = vcmp.gt.f32.partialorder %v4728, 0.0
    %vm4731 = vcmp.gt.f32.partialorder %v4729, 0.0
    %v4732 = vmul.f32 %v4728, 0.2
    %v4733 = vmul.f32 %v4729, 0.2
    %v4734 = vsel %vm4730, %v4728, %v4732
    %v4735 = vsel %vm4731, %v4729, %v4733
    %4737 = vset.pattern.permute.xlu0 0
    %4738 = vperm.xlu0 %4737, %v4132
    %v4739 = vpop.permute.xlu0 %4738
    %v4740 = vlaneseq
    %v4741 = vshrl.u32 %v4740, 7
    %v4742 = vsub.s32 0, %v4741
    %v4743 = vrot.slane %v4739, %v4742
    %v4744 = vlaneseq
    %v4745 = vshrl.u32 %v4744, 7
    %v4746 = vsub.s32 1, %v4745
    %v4747 = vrot.slane %v4739, %v4746
    %v4750 = vmul.f32 %v4734, %v4743
    %v4751 = vmul.f32 %v4735, %v4747
    %4754 = vset.pattern.permute.xlu0 0
    %4755 = vperm.xlu0 %4754, %v4750
    %v4756 = vpop.permute.xlu0 %4755
    %4757 = vset.pattern.permute.xlu0 0
    %4758 = vperm.xlu0 %4757, %v4751
    %v4759 = vpop.permute.xlu0 %4758
    %v4760 = vlaneseq
    %v4761 = vshrl.u32 %v4760, 7
    %v4762 = vsub.s32 %v240, %v4761
    %v4763 = vrot.slane %v4756, %v4762
    %v4764 = vlaneseq
    %v4765 = vshrl.u32 %v4764, 7
    %v4766 = vsub.s32 %v240, %v4765
    %v4767 = vrot.slane %v4759, %v4766
    %v4768 = vsel %vm249, %v4767, %v4763
    %v4770 = vsel %vm252, %v4768, -inf
    %4771 = vmax.xlane.f32.xlu0 %v4770
    %v4772 = vpop.xlane.xlu0 %4771
    %v4774 = vlaneseq
    %v4775 = vshrl.u32 %v4774, 7
    %v4776 = vsub.s32 0, %v4775
    %v4777 = vrot.slane %v4772, %v4776
    %v4778 = vlaneseq
    %v4779 = vshrl.u32 %v4778, 7
    %v4780 = vsub.s32 1, %v4779
    %v4781 = vrot.slane %v4772, %v4780
    %v4784 = vsub.f32 %v4750, %v4777
    %v4785 = vsub.f32 %v4751, %v4781
    %v4786 = vmul.f32 %v4784, 1.442695
    %v4787 = vpow.pop %v4786
    %v4788 = vmul.f32 %v4785, 1.442695
    %v4789 = vpow.pop %v4788
    %4792 = vset.pattern.permute.xlu0 0
    %4793 = vperm.xlu0 %4792, %v4787
    %v4794 = vpop.permute.xlu0 %4793
    %4795 = vset.pattern.permute.xlu0 0
    %4796 = vperm.xlu0 %4795, %v4789
    %v4797 = vpop.permute.xlu0 %4796
    %v4798 = vlaneseq
    %v4799 = vshrl.u32 %v4798, 7
    %v4800 = vsub.s32 %v240, %v4799
    %v4801 = vrot.slane %v4794, %v4800
    %v4802 = vlaneseq
    %v4803 = vshrl.u32 %v4802, 7
    %v4804 = vsub.s32 %v240, %v4803
    %v4805 = vrot.slane %v4797, %v4804
    %v4806 = vsel %vm249, %v4805, %v4801
    %v4808 = vsel %vm252, %v4806, 0.0
    %4809 = vadd.xlane.f32.xlu0 %v4808
    %v4810 = vpop.xlane.xlu0 %4809
    %v4811 = vrcp.pop %v4810
    %v4813 = vlaneseq
    %v4814 = vshrl.u32 %v4813, 7
    %v4815 = vsub.s32 0, %v4814
    %v4816 = vrot.slane %v4811, %v4815
    %v4817 = vlaneseq
    %v4818 = vshrl.u32 %v4817, 7
    %v4819 = vsub.s32 1, %v4818
    %v4820 = vrot.slane %v4811, %v4819
    %v4823 = vmul.f32 %v4787, %v4816
    %v4824 = vmul.f32 %v4789, %v4820
    %4826 = vset.pattern.permute.xlu0 0
    %4827 = vperm.xlu0 %4826, %v4823
    %v4828 = vpop.permute.xlu0 %4827
    %4831 = vset.pattern.permute.xlu0 0
    %4832 = vperm.xlu0 %4831, %v4824
    %v4833 = vpop.permute.xlu0 %4832
    %v4835 = vmul.f32 %v4828, %v2891
    %v4836 = vmul.f32 %v4833, %v2901
    %v4837 = vsel %vm222, %v4835, 0.0
    %v4838 = vrot.slane %v4837, 4
    %v4839 = vadd.f32 %v4837, %v4838
    %v4840 = vrot.slane %v4839, 2
    %v4841 = vadd.f32 %v4839, %v4840
    %v4842 = vrot.slane %v4841, 1
    %v4843 = vadd.f32 %v4841, %v4842
    %v4844 = vsel %vm222, %v4836, 0.0
    %v4845 = vrot.slane %v4844, 4
    %v4846 = vadd.f32 %v4844, %v4845
    %v4847 = vrot.slane %v4846, 2
    %v4848 = vadd.f32 %v4846, %v4847
    %v4849 = vrot.slane %v4848, 1
    %v4850 = vadd.f32 %v4848, %v4849
    %4853 = vrot.lane.b32.xlu0 %v4720, 120
    %v4854 = vpop.permute.xlu0 %4853
    %4855 = vrot.lane.b32.xlu0 %v4721, 120
    %v4856 = vpop.permute.xlu0 %4855
    %v4859 = vsel %vm222, %v4854, 0.0
    %4860 = vadd.xlane.f32.xlu0 %v4859
    %v4861 = vpop.xlane.xlu0 %4860
    %v4862 = vsel %vm222, %v4856, 0.0
    %4863 = vadd.xlane.f32.xlu0 %v4862
    %v4864 = vpop.xlane.xlu0 %4863
    %v4865 = vmul.f32 %v4861, 0.35355338
    %v4866 = vmul.f32 %v4864, 0.35355338
    %vm4867 = vcmp.gt.f32.partialorder %v4865, 0.0
    %vm4868 = vcmp.gt.f32.partialorder %v4866, 0.0
    %v4869 = vmul.f32 %v4865, 0.2
    %v4870 = vmul.f32 %v4866, 0.2
    %v4871 = vsel %vm4867, %v4865, %v4869
    %v4872 = vsel %vm4868, %v4866, %v4870
    %4873 = vset.pattern.permute.xlu0 1
    %4874 = vperm.xlu0 %4873, %v4132
    %v4875 = vpop.permute.xlu0 %4874
    %v4876 = vlaneseq
    %v4877 = vshrl.u32 %v4876, 7
    %v4878 = vsub.s32 0, %v4877
    %v4879 = vrot.slane %v4875, %v4878
    %v4880 = vlaneseq
    %v4881 = vshrl.u32 %v4880, 7
    %v4882 = vsub.s32 1, %v4881
    %v4883 = vrot.slane %v4875, %v4882
    %v4886 = vmul.f32 %v4871, %v4879
    %v4887 = vmul.f32 %v4872, %v4883
    %4890 = vset.pattern.permute.xlu0 0
    %4891 = vperm.xlu0 %4890, %v4886
    %v4892 = vpop.permute.xlu0 %4891
    %4893 = vset.pattern.permute.xlu0 0
    %4894 = vperm.xlu0 %4893, %v4887
    %v4895 = vpop.permute.xlu0 %4894
    %v4896 = vlaneseq
    %v4897 = vshrl.u32 %v4896, 7
    %v4898 = vsub.s32 %v240, %v4897
    %v4899 = vrot.slane %v4892, %v4898
    %v4900 = vlaneseq
    %v4901 = vshrl.u32 %v4900, 7
    %v4902 = vsub.s32 %v240, %v4901
    %v4903 = vrot.slane %v4895, %v4902
    %v4904 = vsel %vm249, %v4903, %v4899
    %v4906 = vsel %vm252, %v4904, -inf
    %4907 = vmax.xlane.f32.xlu0 %v4906
    %v4908 = vpop.xlane.xlu0 %4907
    %v4910 = vlaneseq
    %v4911 = vshrl.u32 %v4910, 7
    %v4912 = vsub.s32 0, %v4911
    %v4913 = vrot.slane %v4908, %v4912
    %v4914 = vlaneseq
    %v4915 = vshrl.u32 %v4914, 7
    %v4916 = vsub.s32 1, %v4915
    %v4917 = vrot.slane %v4908, %v4916
    %v4920 = vsub.f32 %v4886, %v4913
    %v4921 = vsub.f32 %v4887, %v4917
    %v4922 = vmul.f32 %v4920, 1.442695
    %v4923 = vpow.pop %v4922
    %v4924 = vmul.f32 %v4921, 1.442695
    %v4925 = vpow.pop %v4924
    %4928 = vset.pattern.permute.xlu0 0
    %4929 = vperm.xlu0 %4928, %v4923
    %v4930 = vpop.permute.xlu0 %4929
    %4931 = vset.pattern.permute.xlu0 0
    %4932 = vperm.xlu0 %4931, %v4925
    %v4933 = vpop.permute.xlu0 %4932
    %v4934 = vlaneseq
    %v4935 = vshrl.u32 %v4934, 7
    %v4936 = vsub.s32 %v240, %v4935
    %v4937 = vrot.slane %v4930, %v4936
    %v4938 = vlaneseq
    %v4939 = vshrl.u32 %v4938, 7
    %v4940 = vsub.s32 %v240, %v4939
    %v4941 = vrot.slane %v4933, %v4940
    %v4942 = vsel %vm249, %v4941, %v4937
    %v4944 = vsel %vm252, %v4942, 0.0
    %4945 = vadd.xlane.f32.xlu0 %v4944
    %v4946 = vpop.xlane.xlu0 %4945
    %v4947 = vrcp.pop %v4946
    %v4949 = vlaneseq
    %v4950 = vshrl.u32 %v4949, 7
    %v4951 = vsub.s32 0, %v4950
    %v4952 = vrot.slane %v4947, %v4951
    %v4953 = vlaneseq
    %v4954 = vshrl.u32 %v4953, 7
    %v4955 = vsub.s32 1, %v4954
    %v4956 = vrot.slane %v4947, %v4955
    %v4959 = vmul.f32 %v4923, %v4952
    %v4960 = vmul.f32 %v4925, %v4956
    %4962 = vset.pattern.permute.xlu0 0
    %4963 = vperm.xlu0 %4962, %v4959
    %v4964 = vpop.permute.xlu0 %4963
    %4967 = vset.pattern.permute.xlu0 0
    %4968 = vperm.xlu0 %4967, %v4960
    %v4969 = vpop.permute.xlu0 %4968
    %v4971 = vmul.f32 %v4964, %v2891
    %v4972 = vmul.f32 %v4969, %v2901
    %v4973 = vsel %vm435, %v4971, 0.0
    %v4974 = vrot.slane %v4973, 4
    %v4975 = vadd.f32 %v4973, %v4974
    %v4976 = vrot.slane %v4975, 2
    %v4977 = vadd.f32 %v4975, %v4976
    %v4978 = vrot.slane %v4977, 1
    %v4979 = vadd.f32 %v4977, %v4978
    %v4980 = vsel %vm435, %v4972, 0.0
    %v4981 = vrot.slane %v4980, 4
    %v4982 = vadd.f32 %v4980, %v4981
    %v4983 = vrot.slane %v4982, 2
    %v4984 = vadd.f32 %v4982, %v4983
    %v4985 = vrot.slane %v4984, 1
    %v4986 = vadd.f32 %v4984, %v4985
    %4987 = vrot.lane.b32.xlu0 %v4720, 112
    %v4988 = vpop.permute.xlu0 %4987
    %4989 = vrot.lane.b32.xlu0 %v4721, 112
    %v4990 = vpop.permute.xlu0 %4989
    %v4993 = vsel %vm222, %v4988, 0.0
    %4994 = vadd.xlane.f32.xlu0 %v4993
    %v4995 = vpop.xlane.xlu0 %4994
    %v4996 = vsel %vm222, %v4990, 0.0
    %4997 = vadd.xlane.f32.xlu0 %v4996
    %v4998 = vpop.xlane.xlu0 %4997
    %v4999 = vmul.f32 %v4995, 0.35355338
    %v5000 = vmul.f32 %v4998, 0.35355338
    %vm5001 = vcmp.gt.f32.partialorder %v4999, 0.0
    %vm5002 = vcmp.gt.f32.partialorder %v5000, 0.0
    %v5003 = vmul.f32 %v4999, 0.2
    %v5004 = vmul.f32 %v5000, 0.2
    %v5005 = vsel %vm5001, %v4999, %v5003
    %v5006 = vsel %vm5002, %v5000, %v5004
    %5007 = vset.pattern.permute.xlu0 2
    %5008 = vperm.xlu0 %5007, %v4132
    %v5009 = vpop.permute.xlu0 %5008
    %v5010 = vlaneseq
    %v5011 = vshrl.u32 %v5010, 7
    %v5012 = vsub.s32 0, %v5011
    %v5013 = vrot.slane %v5009, %v5012
    %v5014 = vlaneseq
    %v5015 = vshrl.u32 %v5014, 7
    %v5016 = vsub.s32 1, %v5015
    %v5017 = vrot.slane %v5009, %v5016
    %v5020 = vmul.f32 %v5005, %v5013
    %v5021 = vmul.f32 %v5006, %v5017
    %5024 = vset.pattern.permute.xlu0 0
    %5025 = vperm.xlu0 %5024, %v5020
    %v5026 = vpop.permute.xlu0 %5025
    %5027 = vset.pattern.permute.xlu0 0
    %5028 = vperm.xlu0 %5027, %v5021
    %v5029 = vpop.permute.xlu0 %5028
    %v5030 = vlaneseq
    %v5031 = vshrl.u32 %v5030, 7
    %v5032 = vsub.s32 %v240, %v5031
    %v5033 = vrot.slane %v5026, %v5032
    %v5034 = vlaneseq
    %v5035 = vshrl.u32 %v5034, 7
    %v5036 = vsub.s32 %v240, %v5035
    %v5037 = vrot.slane %v5029, %v5036
    %v5038 = vsel %vm249, %v5037, %v5033
    %v5040 = vsel %vm252, %v5038, -inf
    %5041 = vmax.xlane.f32.xlu0 %v5040
    %v5042 = vpop.xlane.xlu0 %5041
    %v5044 = vlaneseq
    %v5045 = vshrl.u32 %v5044, 7
    %v5046 = vsub.s32 0, %v5045
    %v5047 = vrot.slane %v5042, %v5046
    %v5048 = vlaneseq
    %v5049 = vshrl.u32 %v5048, 7
    %v5050 = vsub.s32 1, %v5049
    %v5051 = vrot.slane %v5042, %v5050
    %v5054 = vsub.f32 %v5020, %v5047
    %v5055 = vsub.f32 %v5021, %v5051
    %v5056 = vmul.f32 %v5054, 1.442695
    %v5057 = vpow.pop %v5056
    %v5058 = vmul.f32 %v5055, 1.442695
    %v5059 = vpow.pop %v5058
    %5062 = vset.pattern.permute.xlu0 0
    %5063 = vperm.xlu0 %5062, %v5057
    %v5064 = vpop.permute.xlu0 %5063
    %5065 = vset.pattern.permute.xlu0 0
    %5066 = vperm.xlu0 %5065, %v5059
    %v5067 = vpop.permute.xlu0 %5066
    %v5068 = vlaneseq
    %v5069 = vshrl.u32 %v5068, 7
    %v5070 = vsub.s32 %v240, %v5069
    %v5071 = vrot.slane %v5064, %v5070
    %v5072 = vlaneseq
    %v5073 = vshrl.u32 %v5072, 7
    %v5074 = vsub.s32 %v240, %v5073
    %v5075 = vrot.slane %v5067, %v5074
    %v5076 = vsel %vm249, %v5075, %v5071
    %v5078 = vsel %vm252, %v5076, 0.0
    %5079 = vadd.xlane.f32.xlu0 %v5078
    %v5080 = vpop.xlane.xlu0 %5079
    %v5081 = vrcp.pop %v5080
    %v5083 = vlaneseq
    %v5084 = vshrl.u32 %v5083, 7
    %v5085 = vsub.s32 0, %v5084
    %v5086 = vrot.slane %v5081, %v5085
    %v5087 = vlaneseq
    %v5088 = vshrl.u32 %v5087, 7
    %v5089 = vsub.s32 1, %v5088
    %v5090 = vrot.slane %v5081, %v5089
    %v5093 = vmul.f32 %v5057, %v5086
    %v5094 = vmul.f32 %v5059, %v5090
    %5096 = vset.pattern.permute.xlu0 0
    %5097 = vperm.xlu0 %5096, %v5093
    %v5098 = vpop.permute.xlu0 %5097
    %5101 = vset.pattern.permute.xlu0 0
    %5102 = vperm.xlu0 %5101, %v5094
    %v5103 = vpop.permute.xlu0 %5102
    %v5105 = vmul.f32 %v5098, %v2891
    %v5106 = vmul.f32 %v5103, %v2901
    %v5107 = vsel %vm549, %v5105, 0.0
    %v5108 = vrot.slane %v5107, 4
    %v5109 = vadd.f32 %v5107, %v5108
    %v5110 = vrot.slane %v5109, 2
    %v5111 = vadd.f32 %v5109, %v5110
    %v5112 = vrot.slane %v5111, 1
    %v5113 = vadd.f32 %v5111, %v5112
    %v5114 = vsel %vm549, %v5106, 0.0
    %v5115 = vrot.slane %v5114, 4
    %v5116 = vadd.f32 %v5114, %v5115
    %v5117 = vrot.slane %v5116, 2
    %v5118 = vadd.f32 %v5116, %v5117
    %v5119 = vrot.slane %v5118, 1
    %v5120 = vadd.f32 %v5118, %v5119
    %5121 = vrot.lane.b32.xlu0 %v4720, 104
    %v5122 = vpop.permute.xlu0 %5121
    %5123 = vrot.lane.b32.xlu0 %v4721, 104
    %v5124 = vpop.permute.xlu0 %5123
    %v5127 = vsel %vm222, %v5122, 0.0
    %5128 = vadd.xlane.f32.xlu0 %v5127
    %v5129 = vpop.xlane.xlu0 %5128
    %v5130 = vsel %vm222, %v5124, 0.0
    %5131 = vadd.xlane.f32.xlu0 %v5130
    %v5132 = vpop.xlane.xlu0 %5131
    %v5133 = vmul.f32 %v5129, 0.35355338
    %v5134 = vmul.f32 %v5132, 0.35355338
    %vm5135 = vcmp.gt.f32.partialorder %v5133, 0.0
    %vm5136 = vcmp.gt.f32.partialorder %v5134, 0.0
    %v5137 = vmul.f32 %v5133, 0.2
    %v5138 = vmul.f32 %v5134, 0.2
    %v5139 = vsel %vm5135, %v5133, %v5137
    %v5140 = vsel %vm5136, %v5134, %v5138
    %5141 = vset.pattern.permute.xlu0 3
    %5142 = vperm.xlu0 %5141, %v4132
    %v5143 = vpop.permute.xlu0 %5142
    %v5144 = vlaneseq
    %v5145 = vshrl.u32 %v5144, 7
    %v5146 = vsub.s32 0, %v5145
    %v5147 = vrot.slane %v5143, %v5146
    %v5148 = vlaneseq
    %v5149 = vshrl.u32 %v5148, 7
    %v5150 = vsub.s32 1, %v5149
    %v5151 = vrot.slane %v5143, %v5150
    %v5154 = vmul.f32 %v5139, %v5147
    %v5155 = vmul.f32 %v5140, %v5151
    %5158 = vset.pattern.permute.xlu0 0
    %5159 = vperm.xlu0 %5158, %v5154
    %v5160 = vpop.permute.xlu0 %5159
    %5161 = vset.pattern.permute.xlu0 0
    %5162 = vperm.xlu0 %5161, %v5155
    %v5163 = vpop.permute.xlu0 %5162
    %v5164 = vlaneseq
    %v5165 = vshrl.u32 %v5164, 7
    %v5166 = vsub.s32 %v240, %v5165
    %v5167 = vrot.slane %v5160, %v5166
    %v5168 = vlaneseq
    %v5169 = vshrl.u32 %v5168, 7
    %v5170 = vsub.s32 %v240, %v5169
    %v5171 = vrot.slane %v5163, %v5170
    %v5172 = vsel %vm249, %v5171, %v5167
    %v5174 = vsel %vm252, %v5172, -inf
    %5175 = vmax.xlane.f32.xlu0 %v5174
    %v5176 = vpop.xlane.xlu0 %5175
    %v5178 = vlaneseq
    %v5179 = vshrl.u32 %v5178, 7
    %v5180 = vsub.s32 0, %v5179
    %v5181 = vrot.slane %v5176, %v5180
    %v5182 = vlaneseq
    %v5183 = vshrl.u32 %v5182, 7
    %v5184 = vsub.s32 1, %v5183
    %v5185 = vrot.slane %v5176, %v5184
    %v5188 = vsub.f32 %v5154, %v5181
    %v5189 = vsub.f32 %v5155, %v5185
    %v5190 = vmul.f32 %v5188, 1.442695
    %v5191 = vpow.pop %v5190
    %v5192 = vmul.f32 %v5189, 1.442695
    %v5193 = vpow.pop %v5192
    %5196 = vset.pattern.permute.xlu0 0
    %5197 = vperm.xlu0 %5196, %v5191
    %v5198 = vpop.permute.xlu0 %5197
    %5199 = vset.pattern.permute.xlu0 0
    %5200 = vperm.xlu0 %5199, %v5193
    %v5201 = vpop.permute.xlu0 %5200
    %v5202 = vlaneseq
    %v5203 = vshrl.u32 %v5202, 7
    %v5204 = vsub.s32 %v240, %v5203
    %v5205 = vrot.slane %v5198, %v5204
    %v5206 = vlaneseq
    %v5207 = vshrl.u32 %v5206, 7
    %v5208 = vsub.s32 %v240, %v5207
    %v5209 = vrot.slane %v5201, %v5208
    %v5210 = vsel %vm249, %v5209, %v5205
    %v5212 = vsel %vm252, %v5210, 0.0
    %5213 = vadd.xlane.f32.xlu0 %v5212
    %v5214 = vpop.xlane.xlu0 %5213
    %v5215 = vrcp.pop %v5214
    %v5217 = vlaneseq
    %v5218 = vshrl.u32 %v5217, 7
    %v5219 = vsub.s32 0, %v5218
    %v5220 = vrot.slane %v5215, %v5219
    %v5221 = vlaneseq
    %v5222 = vshrl.u32 %v5221, 7
    %v5223 = vsub.s32 1, %v5222
    %v5224 = vrot.slane %v5215, %v5223
    %v5227 = vmul.f32 %v5191, %v5220
    %v5228 = vmul.f32 %v5193, %v5224
    %5230 = vset.pattern.permute.xlu0 0
    %5231 = vperm.xlu0 %5230, %v5227
    %v5232 = vpop.permute.xlu0 %5231
    %5235 = vset.pattern.permute.xlu0 0
    %5236 = vperm.xlu0 %5235, %v5228
    %v5237 = vpop.permute.xlu0 %5236
    %v5239 = vmul.f32 %v5232, %v2891
    %v5240 = vmul.f32 %v5237, %v2901
    %v5241 = vsel %vm663, %v5239, 0.0
    %v5242 = vrot.slane %v5241, 4
    %v5243 = vadd.f32 %v5241, %v5242
    %v5244 = vrot.slane %v5243, 2
    %v5245 = vadd.f32 %v5243, %v5244
    %v5246 = vrot.slane %v5245, 1
    %v5247 = vadd.f32 %v5245, %v5246
    %v5248 = vsel %vm663, %v5240, 0.0
    %v5249 = vrot.slane %v5248, 4
    %v5250 = vadd.f32 %v5248, %v5249
    %v5251 = vrot.slane %v5250, 2
    %v5252 = vadd.f32 %v5250, %v5251
    %v5253 = vrot.slane %v5252, 1
    %v5254 = vadd.f32 %v5252, %v5253
    %v5257 = vsel %vm249, %v4850, %v4843
    %v5261 = vsel %vm249, %v4986, %v4979
    %v5265 = vsel %vm249, %v5120, %v5113
    %v5269 = vsel %vm249, %v5254, %v5247
    %v5271 = vsel %vm222, %v5257, %v5261
    %v5272 = vsel %vm695, %v5271, %v5265
    %v5273 = vsel %vm697, %v5272, %v5269
    %v5274 = vsel %vm85, %v4108, 0
    %5276 = vmatprep.subr.mxu0 0.0
    %5277 = vmatpush1.msra.mxu0 %v2905
    %5278 = vmatprep.subr.mxu0 0.0
    %5279 = vmatpush1.msra.mxu0 %v2906
    %5280 = vmatprep.subr.mxu0 0.0
    %5281 = vmatpush1.msra.mxu0 %v2907
    %5282 = vmatprep.subr.mxu0 0.0
    %5283 = vmatpush1.msra.mxu0 %v2908
    %5284 = vmatprep.subr.mxu0 0.0
    %5285 = vmatpush1.msra.mxu0 0.0
    %5286 = vmatprep.subr.mxu0 0.0
    %5287 = vmatpush1.msra.mxu0 0.0
    %5288 = vmatprep.subr.mxu0 0.0
    %5289 = vmatpush1.msra.mxu0 0.0
    %5290 = vmatprep.subr.mxu0 0.0
    %5291 = vmatpush1.msra.mxu0 0.0
    %5292 = vmatprep.subr.mxu0 0.0
    %5293 = vmatpush1.msra.mxu0 0.0
    %5294 = vmatprep.subr.mxu0 0.0
    %5295 = vmatpush1.msra.mxu0 0.0
    %5296 = vmatprep.subr.mxu0 0.0
    %5297 = vmatpush1.msra.mxu0 0.0
    %5298 = vmatprep.subr.mxu0 0.0
    %5299 = vmatpush1.msra.mxu0 0.0
    %5300 = vmatprep.subr.mxu0 0.0
    %5301 = vmatpush1.msra.mxu0 0.0
    %5302 = vmatprep.subr.mxu0 0.0
    %5303 = vmatpush1.msra.mxu0 0.0
    %5304 = vmatprep.subr.mxu0 0.0
    %5305 = vmatpush1.msra.mxu0 0.0
    %5306 = vmatprep.subr.mxu0 0.0
    %5307 = vmatpush1.msra.mxu0 0.0
    %5308 = vmatprep.subr.mxu0 0.0
    %5309 = vmatpush1.msra.mxu0 0.0
    %5310 = vmatprep.subr.mxu0 0.0
    %5311 = vmatpush1.msra.mxu0 0.0
    %5312 = vmatprep.subr.mxu0 0.0
    %5313 = vmatpush1.msra.mxu0 0.0
    %5314 = vmatprep.subr.mxu0 0.0
    %5315 = vmatpush1.msra.mxu0 0.0
    %5316 = vmatprep.subr.mxu0 0.0
    %5317 = vmatpush1.msra.mxu0 0.0
    %5318 = vmatprep.subr.mxu0 0.0
    %5319 = vmatpush1.msra.mxu0 0.0
    %5320 = vmatprep.subr.mxu0 0.0
    %5321 = vmatpush1.msra.mxu0 0.0
    %5322 = vmatprep.subr.mxu0 0.0
    %5323 = vmatpush1.msra.mxu0 0.0
    %5324 = vmatprep.subr.mxu0 0.0
    %5325 = vmatpush1.msra.mxu0 0.0
    %5326 = vmatprep.subr.mxu0 0.0
    %5327 = vmatpush1.msra.mxu0 0.0
    %5328 = vmatprep.subr.mxu0 0.0
    %5329 = vmatpush1.msra.mxu0 0.0
    %5330 = vmatprep.subr.mxu0 0.0
    %5331 = vmatpush1.msra.mxu0 0.0
    %5332 = vmatprep.subr.mxu0 0.0
    %5333 = vmatpush1.msra.mxu0 0.0
    %5334 = vmatprep.subr.mxu0 0.0
    %5335 = vmatpush1.msra.mxu0 0.0
    %5336 = vmatprep.subr.mxu0 0.0
    %5337 = vmatpush1.msra.mxu0 0.0
    %5338 = vmatprep.subr.mxu0 0.0
    %5339 = vmatpush1.msra.mxu0 0.0
    %5340 = vmatprep.mubr.f32.mxu0 0.0
    %5341 = vmatmul.mubr.f32.gmra.mrb[0].mxu0 %v5274
    %v5342 = vpop.f32.mrb[0].mxu0
    %v5343 = vadd.f32 0.0, %v5342
    %v5344 = vpop.f32.mrb[0].mxu0
    %5345 = vdwg.mxu0
    %v5346 = vmul.f32 %v5343, %v4719
    %v5347 = vsel %vm252, %v5346, 0.0
    %5348 = vadd.xlane.f32.xlu0 %v5347
    %v5349 = vpop.xlane.xlu0 %5348
    %v5350 = vmul.f32 %v5343, %v5273
    %v5351 = vsel %vm252, %v5350, 0.0
    %5352 = vadd.xlane.f32.xlu0 %v5351
    %v5353 = vpop.xlane.xlu0 %5352
    %v5354 = vsel %vm1248, %v5349, %v5353
    %v5355 = vmul.f32 %v5354, 0.35355338
    %v5356 = vsel %vm1251, %v5355, -inf
    %5357 = vmax.xlane.f32.xlu0 %v5356
    %v5358 = vpop.xlane.xlu0 %5357
    %v5359 = vsub.f32 %v5355, %v5358
    %v5360 = vmul.f32 %v5359, 1.442695
    %v5361 = vpow.pop %v5360
    %v5362 = vsel %vm1251, %v5361, 0.0
    %5363 = vadd.xlane.f32.xlu0 %v5362
    %v5364 = vpop.xlane.xlu0 %5363
    %v5365 = vrcp.pop %v5364
    %v5366 = vmul.f32 %v5361, %v5365
    %5368 = vset.pattern.permute.xlu0 0
    %5369 = vperm.xlu0 %5368, %v5366
    %v5370 = vpop.permute.xlu0 %5369
    %v5372 = vmul.f32 %v5370, %v4719
    %v5373 = vadd.f32 %v5372, 0.0
    %5374 = vset.pattern.permute.xlu0 1
    %5375 = vperm.xlu0 %5374, %v5366
    %v5376 = vpop.permute.xlu0 %5375
    %v5378 = vmul.f32 %v5376, %v5273
    %v5379 = vadd.f32 %v5373, %v5378
    %v5380 = vadd.f32 %v4108, %v5379
    %5382 = vrot.lane.b32.xlu0 %v5346, 120
    %v5383 = vpop.permute.xlu0 %5382
    %v5385 = vsel %vm252, %v5383, 0.0
    %5386 = vadd.xlane.f32.xlu0 %v5385
    %v5387 = vpop.xlane.xlu0 %5386
    %5389 = vrot.lane.b32.xlu0 %v5350, 120
    %v5390 = vpop.permute.xlu0 %5389
    %v5392 = vsel %vm252, %v5390, 0.0
    %5393 = vadd.xlane.f32.xlu0 %v5392
    %v5394 = vpop.xlane.xlu0 %5393
    %v5395 = vsel %vm1248, %v5387, %v5394
    %v5396 = vmul.f32 %v5395, 0.35355338
    %v5397 = vsel %vm1251, %v5396, -inf
    %5398 = vmax.xlane.f32.xlu0 %v5397
    %v5399 = vpop.xlane.xlu0 %5398
    %v5400 = vsub.f32 %v5396, %v5399
    %v5401 = vmul.f32 %v5400, 1.442695
    %v5402 = vpow.pop %v5401
    %v5403 = vsel %vm1251, %v5402, 0.0
    %5404 = vadd.xlane.f32.xlu0 %v5403
    %v5405 = vpop.xlane.xlu0 %5404
    %v5406 = vrcp.pop %v5405
    %v5407 = vmul.f32 %v5402, %v5406
    %5409 = vset.pattern.permute.xlu0 0
    %5410 = vperm.xlu0 %5409, %v5407
    %v5411 = vpop.permute.xlu0 %5410
    %v5413 = vmul.f32 %v5411, %v4719
    %v5414 = vadd.f32 %v5413, 0.0
    %5415 = vset.pattern.permute.xlu0 1
    %5416 = vperm.xlu0 %5415, %v5407
    %v5417 = vpop.permute.xlu0 %5416
    %v5419 = vmul.f32 %v5417, %v5273
    %v5420 = vadd.f32 %v5414, %v5419
    %v5421 = vadd.f32 %v4108, %v5420
    %5422 = vrot.lane.b32.xlu0 %v5346, 112
    %v5423 = vpop.permute.xlu0 %5422
    %v5425 = vsel %vm252, %v5423, 0.0
    %5426 = vadd.xlane.f32.xlu0 %v5425
    %v5427 = vpop.xlane.xlu0 %5426
    %5428 = vrot.lane.b32.xlu0 %v5350, 112
    %v5429 = vpop.permute.xlu0 %5428
    %v5431 = vsel %vm252, %v5429, 0.0
    %5432 = vadd.xlane.f32.xlu0 %v5431
    %v5433 = vpop.xlane.xlu0 %5432
    %v5434 = vsel %vm1248, %v5427, %v5433
    %v5435 = vmul.f32 %v5434, 0.35355338
    %v5436 = vsel %vm1251, %v5435, -inf
    %5437 = vmax.xlane.f32.xlu0 %v5436
    %v5438 = vpop.xlane.xlu0 %5437
    %v5439 = vsub.f32 %v5435, %v5438
    %v5440 = vmul.f32 %v5439, 1.442695
    %v5441 = vpow.pop %v5440
    %v5442 = vsel %vm1251, %v5441, 0.0
    %5443 = vadd.xlane.f32.xlu0 %v5442
    %v5444 = vpop.xlane.xlu0 %5443
    %v5445 = vrcp.pop %v5444
    %v5446 = vmul.f32 %v5441, %v5445
    %5448 = vset.pattern.permute.xlu0 0
    %5449 = vperm.xlu0 %5448, %v5446
    %v5450 = vpop.permute.xlu0 %5449
    %v5452 = vmul.f32 %v5450, %v4719
    %v5453 = vadd.f32 %v5452, 0.0
    %5454 = vset.pattern.permute.xlu0 1
    %5455 = vperm.xlu0 %5454, %v5446
    %v5456 = vpop.permute.xlu0 %5455
    %v5458 = vmul.f32 %v5456, %v5273
    %v5459 = vadd.f32 %v5453, %v5458
    %v5460 = vadd.f32 %v4108, %v5459
    %5461 = vrot.lane.b32.xlu0 %v5346, 104
    %v5462 = vpop.permute.xlu0 %5461
    %v5464 = vsel %vm252, %v5462, 0.0
    %5465 = vadd.xlane.f32.xlu0 %v5464
    %v5466 = vpop.xlane.xlu0 %5465
    %5467 = vrot.lane.b32.xlu0 %v5350, 104
    %v5468 = vpop.permute.xlu0 %5467
    %v5470 = vsel %vm252, %v5468, 0.0
    %5471 = vadd.xlane.f32.xlu0 %v5470
    %v5472 = vpop.xlane.xlu0 %5471
    %v5473 = vsel %vm1248, %v5466, %v5472
    %v5474 = vmul.f32 %v5473, 0.35355338
    %v5475 = vsel %vm1251, %v5474, -inf
    %5476 = vmax.xlane.f32.xlu0 %v5475
    %v5477 = vpop.xlane.xlu0 %5476
    %v5478 = vsub.f32 %v5474, %v5477
    %v5479 = vmul.f32 %v5478, 1.442695
    %v5480 = vpow.pop %v5479
    %v5481 = vsel %vm1251, %v5480, 0.0
    %5482 = vadd.xlane.f32.xlu0 %v5481
    %v5483 = vpop.xlane.xlu0 %5482
    %v5484 = vrcp.pop %v5483
    %v5485 = vmul.f32 %v5480, %v5484
    %5487 = vset.pattern.permute.xlu0 0
    %5488 = vperm.xlu0 %5487, %v5485
    %v5489 = vpop.permute.xlu0 %5488
    %v5491 = vmul.f32 %v5489, %v4719
    %v5492 = vadd.f32 %v5491, 0.0
    %5493 = vset.pattern.permute.xlu0 1
    %5494 = vperm.xlu0 %5493, %v5485
    %v5495 = vpop.permute.xlu0 %5494
    %v5497 = vmul.f32 %v5495, %v5273
    %v5498 = vadd.f32 %v5492, %v5497
    %v5499 = vadd.f32 %v4108, %v5498
    %v5500 = vsel %vm222, %v5380, %v5421
    %v5501 = vsel %vm695, %v5500, %v5460
    %v5502 = vsel %vm697, %v5501, %v5499
    %v5503 = vmul.f32 %v2794, %v5502
    %v5504 = vld [vmem:[%s4] sm:$0x1]
    %vm5505 = vcmask 24576
    %v5506 = vsel %vm5505, %v5504, -inf
    %5507 = vmax.xlane.f32.xlu0 %v5506
    %v5508 = vpop.xlane.xlu0 %5507
    %v5509 = vsub.f32 %v5504, %v5508
    %v5510 = vmul.f32 %v5509, 1.442695
    %v5511 = vpow.pop %v5510
    %v5512 = vsel %vm5505, %v5511, 0.0
    %5513 = vadd.xlane.f32.xlu0 %v5512
    %v5514 = vpop.xlane.xlu0 %5513
    %v5515 = vrcp.pop %v5514
    %v5516 = vmul.f32 %v5511, %v5515
    %v5517 = vsel %vm252, %v5503, 0.0
    %5518 = vadd.xlane.f32.xlu0 %v5517
    %v5519 = vpop.xlane.xlu0 %5518
    %v5521 = vlaneseq
    %v5522 = vshrl.u32 %v5521, 7
    %v5523 = vsub.s32 0, %v5522
    %v5524 = vrot.slane %v5516, %v5523
    %v5526 = vmul.f32 %v5524, %v5519
    %v5527 = vadd.f32 %v5526, 0.0
    %5529 = vrot.lane.b32.xlu0 %v5503, 120
    %v5530 = vpop.permute.xlu0 %5529
    %v5532 = vsel %vm252, %v5530, 0.0
    %5533 = vadd.xlane.f32.xlu0 %v5532
    %v5534 = vpop.xlane.xlu0 %5533
    %v5535 = vmul.f32 %v5524, %v5534
    %5537 = vrot.lane.b32.xlu0 %v5535, 127
    %v5538 = vpop.permute.xlu0 %5537
    %v5540 = vadd.f32 %v5527, %v5538
    %5541 = vrot.lane.b32.xlu0 %v5503, 112
    %v5542 = vpop.permute.xlu0 %5541
    %v5544 = vsel %vm252, %v5542, 0.0
    %5545 = vadd.xlane.f32.xlu0 %v5544
    %v5546 = vpop.xlane.xlu0 %5545
    %v5547 = vmul.f32 %v5524, %v5546
    %5549 = vrot.lane.b32.xlu0 %v5547, 126
    %v5550 = vpop.permute.xlu0 %5549
    %v5552 = vadd.f32 %v5540, %v5550
    %5553 = vrot.lane.b32.xlu0 %v5503, 104
    %v5554 = vpop.permute.xlu0 %5553
    %v5556 = vsel %vm252, %v5554, 0.0
    %5557 = vadd.xlane.f32.xlu0 %v5556
    %v5558 = vpop.xlane.xlu0 %5557
    %v5559 = vmul.f32 %v5524, %v5558
    %5561 = vrot.lane.b32.xlu0 %v5559, 125
    %v5562 = vpop.permute.xlu0 %5561
    %v5564 = vadd.f32 %v5552, %v5562
    %vm5565 = vcmask 1041408
    %v5566 = vsel %vm5565, %v5564, 0.0
    %5568 = vset.pattern.permute.xlu0 0
    %5569 = vperm.xlu0 %5568, %v5566
    %v5570 = vpop.permute.xlu0 %5569
    %5572 = vst [vmem:[#allocation10] sm:$0xff] %v5570
    // Predicated region
    $region38: #{tpu_custom_call.1} parent=1 // pred_check
      _
    $region39: #{tpu_custom_call.1} parent=1 // pred_check_branch
      %5574 = sbr.rel (0) target = $region41
    $region40: #{tpu_custom_call.1} parent=1 // pred_region
      %s5576 = ssub.s32 128, 128
      %5577 = vsyncadd [#allocation4], %s5576
      %s5579 = sshll.u32 [#allocation10], 4
      %s5580 = int_to_ptr.vmem [resolvable:$true] %s5579
      %5582 = dma.vmem_to_hbm [thread:$0]  %s5580, 128, %s5, [#allocation4]
    $region41: #{tpu_custom_call.1} parent=1 // pred_fallthru
      _
    // Predicated region
    $region42: #{tpu_custom_call.1} parent=1 // pred_check
      _
    $region43: #{tpu_custom_call.1} parent=1 // pred_check_branch
      %5584 = sbr.rel (0) target = $region45
    $region44: #{tpu_custom_call.1} parent=1 // pred_region
      %5585 = dma.done [#allocation4], 128
    $region45: #{tpu_custom_call.1} parent=1 // pred_fallthru
      _
    %5586 = vsyncpa [#allocation3], 1
    %5587 = vsyncpa [#allocation6], 1
    %5588 = vsyncpa [#allocation9], 1
    %5589 = vsyncpa [#allocation4], 1

</llo_original>
